<compile_context>
chip_gen: v7x
topology: tpu7x:2x2x1
jax: 0.10.0
libtpu: 0.0.40
codegen_flags: <defaults>
</compile_context>

<pallas_src>
import functools
import math

import jax
import jax.numpy as jnp
from jax.experimental import pallas as pl
from jax.experimental.pallas import tpu as pltpu

# ----------------------------- config (small, consistent with the module) ----
D = 32            # model_dim (embed_dim)
MLP_DIM = 64      # mlp_dim
HEADS = 4         # attention_heads
DH = D // HEADS
SEQ = 8           # sequence_length
MEM = 8           # mem_length
MEMORY_LAYERS = 1
LAYERS = 1
EPS = 1e-5

_SLAB_W = 128     # lane width of the packed parameter slab
_VMEM = pl.BlockSpec(memory_space=pltpu.MemorySpace.VMEM)


# ----------------------------- static parameter-slab layout ------------------
def _layer_entries(prefix, cross=False, mem=False):
    e = [
        (prefix + "ln_g", (1, D)), (prefix + "ln_b", (1, D)),
        (prefix + "w_qkv", (D, 3 * D)), (prefix + "b_qkv", (1, 3 * D)),
        (prefix + "w_o", (D, D)), (prefix + "b_o", (1, D)),
        (prefix + "w1", (D, MLP_DIM)), (prefix + "b1", (1, MLP_DIM)),
        (prefix + "w2", (MLP_DIM, D)), (prefix + "b2", (1, D)),
        (prefix + "g1_W", (2 * D, 3 * D)), (prefix + "g1_uh", (D, D)), (prefix + "g1_bg", (1, D)),
        (prefix + "g2_W", (2 * D, 3 * D)), (prefix + "g2_uh", (D, D)), (prefix + "g2_bg", (1, D)),
    ]
    if cross:
        e += [(prefix + "c_qkv", (D, 3 * D)), (prefix + "cb_qkv", (1, 3 * D)),
              (prefix + "c_wo", (D, D)), (prefix + "cb_o", (1, D))]
    if mem:
        e += [(prefix + "mem", (MEM, D))]
    return e


def _plan_slab():
    entries = [("pe", (SEQ, D)),
               ("mask_causal", (SEQ, SEQ)),
               ("mask_xl", (SEQ, MEM + SEQ))]
    for i in range(MEMORY_LAYERS):
        entries += _layer_entries(f"pre{i}_")
        entries += _layer_entries(f"xl{i}_", mem=True)
    for i in range(LAYERS):
        entries += _layer_entries(f"dec{i}_", cross=True)
    off, row = {}, 0
    for name, (r, c) in entries:
        off[name] = (row, r, c)
        row += -(-r // 8) * 8            # keep every tensor 8-sublane aligned
    return off, row


_OFFSETS, _SLAB_ROWS = _plan_slab()


# ----------------------------- in-kernel building blocks ---------------------
def _ln(x, g, b):
    mu = jnp.mean(x, axis=-1, keepdims=True)
    xc = x - mu
    var = jnp.mean(xc * xc, axis=-1, keepdims=True)
    return xc * jax.lax.rsqrt(var + EPS) * g + b


def _relu(x):
    return jnp.maximum(x, 0.0)


def _softmax_rows(s):
    s = s - jnp.max(s, axis=-1, keepdims=True)
    p = jnp.exp(s)
    return p * pl.reciprocal(jnp.sum(p, axis=-1, keepdims=True), approx=True)


def _attn_core(q, k, v, w_o, b_o, mask_add):
    """q:(sq,D), k/v:(sk,D).  1/sqrt(DH) already folded into q; per-head accumulation
    directly into the output projection (no lane concat of head contexts)."""
    out = None
    for h in range(HEADS):
        sl = slice(h * DH, (h + 1) * DH)
        s = jnp.dot(q[:, sl], k[:, sl].T, preferred_element_type=jnp.float32)
        if mask_add is not None:
            s = s + mask_add
        ctx = jnp.dot(_softmax_rows(s), v[:, sl], preferred_element_type=jnp.float32)
        contrib = jnp.dot(ctx, w_o[sl, :], preferred_element_type=jnp.float32)
        out = contrib if out is None else out + contrib
    return out + b_o


def _self_attn(y, w_qkv, b_qkv, w_o, b_o, mask_add):
    qkv = jnp.dot(y, w_qkv, preferred_element_type=jnp.float32) + b_qkv
    return _attn_core(qkv[:, :D], qkv[:, D:2 * D], qkv[:, 2 * D:], w_o, b_o, mask_add)


def _xl_attn(y, mem, w_qkv, b_qkv, w_o, b_o, mask_add):
    # One fused QKV matmul over [mem; y]; q is a free sublane slice of the last SEQ rows.
    full = jnp.concatenate([mem, y], axis=0)                    # (MEM+SEQ, D)
    qkv = jnp.dot(full, w_qkv, preferred_element_type=jnp.float32) + b_qkv
    return _attn_core(qkv[MEM:MEM + SEQ, :D], qkv[:, D:2 * D], qkv[:, 2 * D:],
                      w_o, b_o, mask_add)


def _cross_attn(xq, enc_n, w_qkv, b_qkv, w_o, b_o):
    # One fused QKV matmul over the stacked [x; enc_norm] rows.
    stacked = jnp.concatenate([xq, enc_n], axis=0)              # (2*SEQ, D)
    qkv = jnp.dot(stacked, w_qkv, preferred_element_type=jnp.float32) + b_qkv
    return _attn_core(qkv[:SEQ, :D], qkv[SEQ:, D:2 * D], qkv[SEQ:, 2 * D:],
                      w_o, b_o, None)


def _mlp(x, w1, b1, w2, b2):
    h = _relu(jnp.dot(x, w1, preferred_element_type=jnp.float32) + b1)
    return jnp.dot(h, w2, preferred_element_type=jnp.float32) + b2


def _gru(x, y, w_f, uh, bg):
    # GTrXL-style gated residual; wy (D,3D) and [ur|uz|0] (D,3D) fused into w_f (2D,3D).
    f = jnp.dot(jnp.concatenate([y, x], axis=-1), w_f, preferred_element_type=jnp.float32)
    r = jax.nn.sigmoid(f[:, :D])
    z = jax.nn.sigmoid(f[:, D:2 * D] - bg)
    h = jnp.tanh(f[:, 2 * D:] + jnp.dot(r * x, uh, preferred_element_type=jnp.float32))
    return (1.0 - z) * x + z * h


# ----------------------------- the single fused decoder kernel ---------------
def _decoder_kernel(x_ref, enc_ref, slab_ref, out_ref, *, off):
    def get(name):
        r0, r, c = off[name]
        return slab_ref[r0:r0 + r, :c]          # static slice of the packed slab

    x = x_ref[...] + get("pe")                  # positional encoding (gap = 0)
    enc = enc_ref[...]
    m_causal = get("mask_causal")               # additive (SEQ, SEQ)
    m_xl = get("mask_xl")                       # additive (SEQ, MEM+SEQ)

    def gru_gate(p, gate, x, y):
        return _gru(x, _relu(y), get(p + gate + "_W"), get(p + gate + "_uh"),
                    get(p + gate + "_bg"))

    for i in range(MEMORY_LAYERS):
        # ---- preXL layer ----
        p = f"pre{i}_"
        g, b = get(p + "ln_g"), get(p + "ln_b")
        y = _self_attn(_ln(x, g, b), get(p + "w_qkv"), get(p + "b_qkv"),
                       get(p + "w_o"), get(p + "b_o"), m_causal)
        # TODO(synk): nn.Dropout(0.1) treated as inference-mode identity.
        x = gru_gate(p, "g1", x, y)
        y = _mlp(_ln(x, g, b), get(p + "w1"), get(p + "b1"), get(p + "w2"), get(p + "b2"))
        x = gru_gate(p, "g2", x, y)

        # ---- XL layer ----
        p = f"xl{i}_"
        g, b = get(p + "ln_g"), get(p + "ln_b")
        # TODO(synk): the torch self.mem buffer update across forward calls is not persisted;
        # queries restricted to the current SEQ rows give an identical returned output.
        y = _xl_attn(_ln(x, g, b), get(p + "mem"), get(p + "w_qkv"), get(p + "b_qkv"),
                     get(p + "w_o"), get(p + "b_o"), m_xl)
        x = gru_gate(p, "g1", x, y)
        y = _mlp(_ln(x, g, b), get(p + "w1"), get(p + "b1"), get(p + "w2"), get(p + "b2"))
        x = gru_gate(p, "g2", x, y)

    for i in range(LAYERS):
        # ---- decoder (cross-attention) layer ----
        p = f"dec{i}_"
        g, b = get(p + "ln_g"), get(p + "ln_b")
        y = _self_attn(_ln(x, g, b), get(p + "w_qkv"), get(p + "b_qkv"),
                       get(p + "w_o"), get(p + "b_o"), m_causal)
        x = gru_gate(p, "g1", x, y)
        # matches the torch source: cross-attention query is the (un-normalized) x.
        y = _cross_attn(x, _ln(enc, g, b), get(p + "c_qkv"), get(p + "cb_qkv"),
                        get(p + "c_wo"), get(p + "cb_o"))
        x = gru_gate(p, "g2", x, y)
        y = _mlp(_ln(x, g, b), get(p + "w1"), get(p + "b1"), get(p + "w2"), get(p + "b2"))
        x = gru_gate(p, "g2", x, y)             # torch source reuses gate2 here

    out_ref[...] = x


def _decoder_forward(x, enc, slab):
    if x.shape[0] < SEQ:     # static pad (the `gap` path of positional_encoding)
        x = jnp.concatenate([jnp.zeros((SEQ - x.shape[0], D), x.dtype), x], axis=0)
    kern = functools.partial(_decoder_kernel, off=_OFFSETS)
    cost = pl.CostEstimate(
        flops=1_500_000,
        transcendentals=10_000,
        bytes_accessed=int(_SLAB_ROWS * _SLAB_W * 4 + 3 * SEQ * D * 4))
    return pl.pallas_call(
        kern,
        out_shape=jax.ShapeDtypeStruct((SEQ, D), jnp.float32),
        in_specs=[_VMEM, _VMEM, _VMEM],
        out_specs=_VMEM,
        cost_estimate=cost,
    )(x, enc, slab)


decoder_forward = jax.jit(_decoder_forward)


# ----------------------------- parameter init (deterministic) ----------------
def _pe_table():
    pos = jnp.arange(SEQ, dtype=jnp.float32)[:, None]
    freq = jnp.exp(jnp.arange(0, D, 2, dtype=jnp.float32) * (-math.log(10000.0) / D))
    pe = jnp.zeros((SEQ, D), jnp.float32)
    pe = pe.at[:, 0::2].set(jnp.sin(pos * freq))
    pe = pe.at[:, 1::2].set(jnp.cos(pos * freq))
    return pe


def _causal_mask_add(sq, sk, offset):
    qi = jnp.arange(sq)[:, None]
    ki = jnp.arange(sk)[None, :]
    return jnp.where(ki <= qi + offset, 0.0, -1e30).astype(jnp.float32)


def make_decoder_params(key):
    """Pack every parameter (and the PE table / additive masks) into one (rows,128) slab."""
    slab = jnp.zeros((_SLAB_ROWS, _SLAB_W), jnp.float32)

    def put(name, val):
        nonlocal slab
        r0, r, c = _OFFSETS[name]
        slab = slab.at[r0:r0 + r, :c].set(jnp.asarray(val, jnp.float32))

    put("pe", _pe_table())
    put("mask_causal", _causal_mask_add(SEQ, SEQ, 0))
    put("mask_xl", _causal_mask_add(SEQ, MEM + SEQ, MEM))

    q_scale = 1.0 / math.sqrt(DH)

    def lin(k, shape):
        return jax.random.normal(k, shape, jnp.float32) * 0.02

    def init_layer(key, prefix, cross=False, mem=False):
        ki = iter(jax.random.split(key, 16))
        put(prefix + "ln_g", jnp.ones((1, D)))
        put(prefix + "ln_b", jnp.zeros((1, D)))
        # fused QKV; 1/sqrt(DH) folded into the Q projection (bias is zero, no scaling needed)
        w_qkv = lin(next(ki), (D, 3 * D)).at[:, :D].multiply(q_scale)
        put(prefix + "w_qkv", w_qkv)
        put(prefix + "b_qkv", jnp.zeros((1, 3 * D)))
        put(prefix + "w_o", lin(next(ki), (D, D)))
        put(prefix + "b_o", jnp.zeros((1, D)))
        put(prefix + "w1", lin(next(ki), (D, MLP_DIM)))
        put(prefix + "b1", jnp.zeros((1, MLP_DIM)))
        put(prefix + "w2", lin(next(ki), (MLP_DIM, D)))
        put(prefix + "b2", jnp.zeros((1, D)))
        for g in ("g1_", "g2_"):
            wy = lin(next(ki), (D, 3 * D))               # [wr | wz | wh]
            ur = lin(next(ki), (D, D))
            uz = lin(next(ki), (D, D))
            uh = lin(next(ki), (D, D))
            ux_pad = jnp.concatenate([ur, uz, jnp.zeros((D, D), jnp.float32)], axis=1)
            put(prefix + g + "W", jnp.concatenate([wy, ux_pad], axis=0))   # (2D, 3D)
            put(prefix + g + "uh", uh)
            put(prefix + g + "bg", 2.0 * jnp.ones((1, D)))
        if cross:
            c_qkv = lin(next(ki), (D, 3 * D)).at[:, :D].multiply(q_scale)
            put(prefix + "c_qkv", c_qkv)
            put(prefix + "cb_qkv", jnp.zeros((1, 3 * D)))
            put(prefix + "c_wo", lin(next(ki), (D, D)))
            put(prefix + "cb_o", jnp.zeros((1, D)))
        if mem:
            put(prefix + "mem", jnp.zeros((MEM, D)))     # self.mem init

    for i in range(MEMORY_LAYERS):
        key, k1, k2 = jax.random.split(key, 3)
        init_layer(k1, f"pre{i}_")
        init_layer(k2, f"xl{i}_", mem=True)
    for i in range(LAYERS):
        key, k = jax.random.split(key)
        init_layer(k, f"dec{i}_", cross=True)
    return slab


# ----------------------------- main ------------------------------------------
if __name__ == "__main__":
    key = jax.random.PRNGKey(0)
    kx, ky, kp = jax.random.split(key, 3)
    x = jax.random.normal(kx, (SEQ, D), jnp.float32)      # decoder input
    y = jax.random.normal(ky, (SEQ, D), jnp.float32)      # encoder output (cross-attn kv)
    slab = make_decoder_params(kp)

    out = decoder_forward(x, y, slab)
    out = jax.block_until_ready(out)
    assert out.shape == (SEQ, D) and bool(jnp.all(jnp.isfinite(out)))
    print("KERNEL_OK")
</pallas_src>

<mosaic_0001>
module attributes {stable_mosaic.version = 11 : i64} {
  func.func @_decoder_kernel(%arg0: memref<8x32xf32, #tpu.memory_space<vmem>>, %arg1: memref<8x32xf32, #tpu.memory_space<vmem>>, %arg2: memref<1360x128xf32, #tpu.memory_space<vmem>>, %arg3: memref<8x32xf32, #tpu.memory_space<vmem>>) attributes {dimension_semantics = [], scalar_prefetch = 0 : i64, scratch_operands = 0 : i64, tpu.core_type = #tpu.core_type<tc>} {
    %c0 = arith.constant 0 : index
    %c0_0 = arith.constant 0 : index
    %0 = vector.load %arg0[%c0, %c0_0] : memref<8x32xf32, #tpu.memory_space<vmem>>, vector<8x32xf32>
    %c0_1 = arith.constant 0 : index
    %c0_2 = arith.constant 0 : index
    %1 = vector.load %arg2[%c0_1, %c0_2] : memref<1360x128xf32, #tpu.memory_space<vmem>>, vector<8x32xf32>
    %2 = arith.addf %0, %1 : vector<8x32xf32>
    %c0_3 = arith.constant 0 : index
    %c0_4 = arith.constant 0 : index
    %3 = vector.load %arg1[%c0_3, %c0_4] : memref<8x32xf32, #tpu.memory_space<vmem>>, vector<8x32xf32>
    %c8 = arith.constant 8 : index
    %c0_5 = arith.constant 0 : index
    %4 = vector.load %arg2[%c8, %c0_5] : memref<1360x128xf32, #tpu.memory_space<vmem>>, vector<8x8xf32>
    %c16 = arith.constant 16 : index
    %c0_6 = arith.constant 0 : index
    %5 = vector.load %arg2[%c16, %c0_6] : memref<1360x128xf32, #tpu.memory_space<vmem>>, vector<8x16xf32>
    %c24 = arith.constant 24 : index
    %c0_7 = arith.constant 0 : index
    %6 = vector.load %arg2[%c24, %c0_7] : memref<1360x128xf32, #tpu.memory_space<vmem>>, vector<1x32xf32>
    %c32 = arith.constant 32 : index
    %c0_8 = arith.constant 0 : index
    %7 = vector.load %arg2[%c32, %c0_8] : memref<1360x128xf32, #tpu.memory_space<vmem>>, vector<1x32xf32>
    %cst = arith.constant dense<0.000000e+00> : vector<8xf32>
    %8 = vector.multi_reduction <add>, %2, %cst [1] : vector<8x32xf32> to vector<8xf32>
    %9 = vector.shape_cast %8 : vector<8xf32> to vector<8x1xf32>
    %cst_9 = arith.constant 3.200000e+01 : f32
    %10 = vector.broadcast %cst_9 : f32 to vector<8x1xf32>
    %11 = arith.divf %9, %10 : vector<8x1xf32>
    %12 = vector.broadcast %11 : vector<8x1xf32> to vector<8x32xf32>
    %13 = arith.subf %2, %12 : vector<8x32xf32>
    %14 = arith.mulf %13, %13 : vector<8x32xf32>
    %cst_10 = arith.constant dense<0.000000e+00> : vector<8xf32>
    %15 = vector.multi_reduction <add>, %14, %cst_10 [1] : vector<8x32xf32> to vector<8xf32>
    %16 = vector.shape_cast %15 : vector<8xf32> to vector<8x1xf32>
    %cst_11 = arith.constant 3.200000e+01 : f32
    %17 = vector.broadcast %cst_11 : f32 to vector<8x1xf32>
    %18 = arith.divf %16, %17 : vector<8x1xf32>
    %cst_12 = arith.constant 9.99999974E-6 : f32
    %19 = vector.broadcast %cst_12 : f32 to vector<8x1xf32>
    %20 = arith.addf %18, %19 : vector<8x1xf32>
    %21 = math.rsqrt %20 : vector<8x1xf32>
    %22 = vector.broadcast %21 : vector<8x1xf32> to vector<8x32xf32>
    %23 = arith.mulf %13, %22 : vector<8x32xf32>
    %24 = vector.broadcast %6 : vector<1x32xf32> to vector<8x32xf32>
    %25 = arith.mulf %23, %24 : vector<8x32xf32>
    %26 = vector.broadcast %7 : vector<1x32xf32> to vector<8x32xf32>
    %27 = arith.addf %25, %26 : vector<8x32xf32>
    %c40 = arith.constant 40 : index
    %c0_13 = arith.constant 0 : index
    %28 = vector.load %arg2[%c40, %c0_13] : memref<1360x128xf32, #tpu.memory_space<vmem>>, vector<32x96xf32>
    %c72 = arith.constant 72 : index
    %c0_14 = arith.constant 0 : index
    %29 = vector.load %arg2[%c72, %c0_14] : memref<1360x128xf32, #tpu.memory_space<vmem>>, vector<1x96xf32>
    %c80 = arith.constant 80 : index
    %c0_15 = arith.constant 0 : index
    %30 = vector.load %arg2[%c80, %c0_15] : memref<1360x128xf32, #tpu.memory_space<vmem>>, vector<32x32xf32>
    %c112 = arith.constant 112 : index
    %c0_16 = arith.constant 0 : index
    %31 = vector.load %arg2[%c112, %c0_16] : memref<1360x128xf32, #tpu.memory_space<vmem>>, vector<1x32xf32>
    %cst_17 = arith.constant dense<0.000000e+00> : vector<8x96xf32>
    %32 = tpu.matmul %27, %28, %cst_17 {dimension_numbers = #tpu.dot_dimension_numbers<[1], [0], [0], [1], [0, 0, 1, 1], [], []>} : vector<8x32xf32>, vector<32x96xf32>, vector<8x96xf32> -> vector<8x96xf32>
    %33 = vector.broadcast %29 : vector<1x96xf32> to vector<8x96xf32>
    %34 = arith.addf %32, %33 : vector<8x96xf32>
    %35 = vector.extract_strided_slice %34 {offsets = [0, 0], sizes = [8, 32], strides = [1, 1]} : vector<8x96xf32> to vector<8x32xf32>
    %36 = vector.extract_strided_slice %34 {offsets = [0, 32], sizes = [8, 32], strides = [1, 1]} : vector<8x96xf32> to vector<8x32xf32>
    %37 = vector.extract_strided_slice %34 {offsets = [0, 64], sizes = [8, 32], strides = [1, 1]} : vector<8x96xf32> to vector<8x32xf32>
    %38 = vector.extract_strided_slice %35 {offsets = [0, 0], sizes = [8, 8], strides = [1, 1]} : vector<8x32xf32> to vector<8x8xf32>
    %39 = vector.extract_strided_slice %36 {offsets = [0, 0], sizes = [8, 8], strides = [1, 1]} : vector<8x32xf32> to vector<8x8xf32>
    %40 = tpu.transpose %39, [1, 0] : vector<8x8xf32> -> vector<8x8xf32>
    %cst_18 = arith.constant dense<0.000000e+00> : vector<8x8xf32>
    %41 = tpu.matmul %38, %40, %cst_18 {dimension_numbers = #tpu.dot_dimension_numbers<[1], [0], [0], [1], [0, 0, 1, 1], [], []>} : vector<8x8xf32>, vector<8x8xf32>, vector<8x8xf32> -> vector<8x8xf32>
    %42 = arith.addf %41, %4 : vector<8x8xf32>
    %cst_19 = arith.constant dense<0xFF800000> : vector<8xf32>
    %43 = vector.multi_reduction <maximumf>, %42, %cst_19 [1] : vector<8x8xf32> to vector<8xf32>
    %44 = vector.shape_cast %43 : vector<8xf32> to vector<8x1xf32>
    %45 = vector.broadcast %44 : vector<8x1xf32> to vector<8x8xf32>
    %46 = arith.subf %42, %45 : vector<8x8xf32>
    %47 = math.exp %46 : vector<8x8xf32>
    %cst_20 = arith.constant dense<0.000000e+00> : vector<8xf32>
    %48 = vector.multi_reduction <add>, %47, %cst_20 [1] : vector<8x8xf32> to vector<8xf32>
    %49 = vector.shape_cast %48 : vector<8xf32> to vector<8x1xf32>
    %50 = tpu.reciprocal %49 {approx = true} : vector<8x1xf32> -> vector<8x1xf32>
    %51 = vector.broadcast %50 : vector<8x1xf32> to vector<8x8xf32>
    %52 = arith.mulf %47, %51 : vector<8x8xf32>
    %53 = vector.extract_strided_slice %37 {offsets = [0, 0], sizes = [8, 8], strides = [1, 1]} : vector<8x32xf32> to vector<8x8xf32>
    %cst_21 = arith.constant dense<0.000000e+00> : vector<8x8xf32>
    %54 = tpu.matmul %52, %53, %cst_21 {dimension_numbers = #tpu.dot_dimension_numbers<[1], [0], [0], [1], [0, 0, 1, 1], [], []>} : vector<8x8xf32>, vector<8x8xf32>, vector<8x8xf32> -> vector<8x8xf32>
    %55 = vector.extract_strided_slice %30 {offsets = [0, 0], sizes = [8, 32], strides = [1, 1]} : vector<32x32xf32> to vector<8x32xf32>
    %cst_22 = arith.constant dense<0.000000e+00> : vector<8x32xf32>
    %56 = tpu.matmul %54, %55, %cst_22 {dimension_numbers = #tpu.dot_dimension_numbers<[1], [0], [0], [1], [0, 0, 1, 1], [], []>} : vector<8x8xf32>, vector<8x32xf32>, vector<8x32xf32> -> vector<8x32xf32>
    %57 = vector.extract_strided_slice %35 {offsets = [0, 8], sizes = [8, 8], strides = [1, 1]} : vector<8x32xf32> to vector<8x8xf32>
    %58 = vector.extract_strided_slice %36 {offsets = [0, 8], sizes = [8, 8], strides = [1, 1]} : vector<8x32xf32> to vector<8x8xf32>
    %59 = tpu.transpose %58, [1, 0] : vector<8x8xf32> -> vector<8x8xf32>
    %cst_23 = arith.constant dense<0.000000e+00> : vector<8x8xf32>
    %60 = tpu.matmul %57, %59, %cst_23 {dimension_numbers = #tpu.dot_dimension_numbers<[1], [0], [0], [1], [0, 0, 1, 1], [], []>} : vector<8x8xf32>, vector<8x8xf32>, vector<8x8xf32> -> vector<8x8xf32>
    %61 = arith.addf %60, %4 : vector<8x8xf32>
    %cst_24 = arith.constant dense<0xFF800000> : vector<8xf32>
    %62 = vector.multi_reduction <maximumf>, %61, %cst_24 [1] : vector<8x8xf32> to vector<8xf32>
    %63 = vector.shape_cast %62 : vector<8xf32> to vector<8x1xf32>
    %64 = vector.broadcast %63 : vector<8x1xf32> to vector<8x8xf32>
    %65 = arith.subf %61, %64 : vector<8x8xf32>
    %66 = math.exp %65 : vector<8x8xf32>
    %cst_25 = arith.constant dense<0.000000e+00> : vector<8xf32>
    %67 = vector.multi_reduction <add>, %66, %cst_25 [1] : vector<8x8xf32> to vector<8xf32>
    %68 = vector.shape_cast %67 : vector<8xf32> to vector<8x1xf32>
    %69 = tpu.reciprocal %68 {approx = true} : vector<8x1xf32> -> vector<8x1xf32>
    %70 = vector.broadcast %69 : vector<8x1xf32> to vector<8x8xf32>
    %71 = arith.mulf %66, %70 : vector<8x8xf32>
    %72 = vector.extract_strided_slice %37 {offsets = [0, 8], sizes = [8, 8], strides = [1, 1]} : vector<8x32xf32> to vector<8x8xf32>
    %cst_26 = arith.constant dense<0.000000e+00> : vector<8x8xf32>
    %73 = tpu.matmul %71, %72, %cst_26 {dimension_numbers = #tpu.dot_dimension_numbers<[1], [0], [0], [1], [0, 0, 1, 1], [], []>} : vector<8x8xf32>, vector<8x8xf32>, vector<8x8xf32> -> vector<8x8xf32>
    %74 = vector.extract_strided_slice %30 {offsets = [8, 0], sizes = [8, 32], strides = [1, 1]} : vector<32x32xf32> to vector<8x32xf32>
    %cst_27 = arith.constant dense<0.000000e+00> : vector<8x32xf32>
    %75 = tpu.matmul %73, %74, %cst_27 {dimension_numbers = #tpu.dot_dimension_numbers<[1], [0], [0], [1], [0, 0, 1, 1], [], []>} : vector<8x8xf32>, vector<8x32xf32>, vector<8x32xf32> -> vector<8x32xf32>
    %76 = arith.addf %56, %75 : vector<8x32xf32>
    %77 = vector.extract_strided_slice %35 {offsets = [0, 16], sizes = [8, 8], strides = [1, 1]} : vector<8x32xf32> to vector<8x8xf32>
    %78 = vector.extract_strided_slice %36 {offsets = [0, 16], sizes = [8, 8], strides = [1, 1]} : vector<8x32xf32> to vector<8x8xf32>
    %79 = tpu.transpose %78, [1, 0] : vector<8x8xf32> -> vector<8x8xf32>
    %cst_28 = arith.constant dense<0.000000e+00> : vector<8x8xf32>
    %80 = tpu.matmul %77, %79, %cst_28 {dimension_numbers = #tpu.dot_dimension_numbers<[1], [0], [0], [1], [0, 0, 1, 1], [], []>} : vector<8x8xf32>, vector<8x8xf32>, vector<8x8xf32> -> vector<8x8xf32>
    %81 = arith.addf %80, %4 : vector<8x8xf32>
    %cst_29 = arith.constant dense<0xFF800000> : vector<8xf32>
    %82 = vector.multi_reduction <maximumf>, %81, %cst_29 [1] : vector<8x8xf32> to vector<8xf32>
    %83 = vector.shape_cast %82 : vector<8xf32> to vector<8x1xf32>
    %84 = vector.broadcast %83 : vector<8x1xf32> to vector<8x8xf32>
    %85 = arith.subf %81, %84 : vector<8x8xf32>
    %86 = math.exp %85 : vector<8x8xf32>
    %cst_30 = arith.constant dense<0.000000e+00> : vector<8xf32>
    %87 = vector.multi_reduction <add>, %86, %cst_30 [1] : vector<8x8xf32> to vector<8xf32>
    %88 = vector.shape_cast %87 : vector<8xf32> to vector<8x1xf32>
    %89 = tpu.reciprocal %88 {approx = true} : vector<8x1xf32> -> vector<8x1xf32>
    %90 = vector.broadcast %89 : vector<8x1xf32> to vector<8x8xf32>
    %91 = arith.mulf %86, %90 : vector<8x8xf32>
    %92 = vector.extract_strided_slice %37 {offsets = [0, 16], sizes = [8, 8], strides = [1, 1]} : vector<8x32xf32> to vector<8x8xf32>
    %cst_31 = arith.constant dense<0.000000e+00> : vector<8x8xf32>
    %93 = tpu.matmul %91, %92, %cst_31 {dimension_numbers = #tpu.dot_dimension_numbers<[1], [0], [0], [1], [0, 0, 1, 1], [], []>} : vector<8x8xf32>, vector<8x8xf32>, vector<8x8xf32> -> vector<8x8xf32>
    %94 = vector.extract_strided_slice %30 {offsets = [16, 0], sizes = [8, 32], strides = [1, 1]} : vector<32x32xf32> to vector<8x32xf32>
    %cst_32 = arith.constant dense<0.000000e+00> : vector<8x32xf32>
    %95 = tpu.matmul %93, %94, %cst_32 {dimension_numbers = #tpu.dot_dimension_numbers<[1], [0], [0], [1], [0, 0, 1, 1], [], []>} : vector<8x8xf32>, vector<8x32xf32>, vector<8x32xf32> -> vector<8x32xf32>
    %96 = arith.addf %76, %95 : vector<8x32xf32>
    %97 = vector.extract_strided_slice %35 {offsets = [0, 24], sizes = [8, 8], strides = [1, 1]} : vector<8x32xf32> to vector<8x8xf32>
    %98 = vector.extract_strided_slice %36 {offsets = [0, 24], sizes = [8, 8], strides = [1, 1]} : vector<8x32xf32> to vector<8x8xf32>
    %99 = tpu.transpose %98, [1, 0] : vector<8x8xf32> -> vector<8x8xf32>
    %cst_33 = arith.constant dense<0.000000e+00> : vector<8x8xf32>
    %100 = tpu.matmul %97, %99, %cst_33 {dimension_numbers = #tpu.dot_dimension_numbers<[1], [0], [0], [1], [0, 0, 1, 1], [], []>} : vector<8x8xf32>, vector<8x8xf32>, vector<8x8xf32> -> vector<8x8xf32>
    %101 = arith.addf %100, %4 : vector<8x8xf32>
    %cst_34 = arith.constant dense<0xFF800000> : vector<8xf32>
    %102 = vector.multi_reduction <maximumf>, %101, %cst_34 [1] : vector<8x8xf32> to vector<8xf32>
    %103 = vector.shape_cast %102 : vector<8xf32> to vector<8x1xf32>
    %104 = vector.broadcast %103 : vector<8x1xf32> to vector<8x8xf32>
    %105 = arith.subf %101, %104 : vector<8x8xf32>
    %106 = math.exp %105 : vector<8x8xf32>
    %cst_35 = arith.constant dense<0.000000e+00> : vector<8xf32>
    %107 = vector.multi_reduction <add>, %106, %cst_35 [1] : vector<8x8xf32> to vector<8xf32>
    %108 = vector.shape_cast %107 : vector<8xf32> to vector<8x1xf32>
    %109 = tpu.reciprocal %108 {approx = true} : vector<8x1xf32> -> vector<8x1xf32>
    %110 = vector.broadcast %109 : vector<8x1xf32> to vector<8x8xf32>
    %111 = arith.mulf %106, %110 : vector<8x8xf32>
    %112 = vector.extract_strided_slice %37 {offsets = [0, 24], sizes = [8, 8], strides = [1, 1]} : vector<8x32xf32> to vector<8x8xf32>
    %cst_36 = arith.constant dense<0.000000e+00> : vector<8x8xf32>
    %113 = tpu.matmul %111, %112, %cst_36 {dimension_numbers = #tpu.dot_dimension_numbers<[1], [0], [0], [1], [0, 0, 1, 1], [], []>} : vector<8x8xf32>, vector<8x8xf32>, vector<8x8xf32> -> vector<8x8xf32>
    %114 = vector.extract_strided_slice %30 {offsets = [24, 0], sizes = [8, 32], strides = [1, 1]} : vector<32x32xf32> to vector<8x32xf32>
    %cst_37 = arith.constant dense<0.000000e+00> : vector<8x32xf32>
    %115 = tpu.matmul %113, %114, %cst_37 {dimension_numbers = #tpu.dot_dimension_numbers<[1], [0], [0], [1], [0, 0, 1, 1], [], []>} : vector<8x8xf32>, vector<8x32xf32>, vector<8x32xf32> -> vector<8x32xf32>
    %116 = arith.addf %96, %115 : vector<8x32xf32>
    %117 = vector.broadcast %31 : vector<1x32xf32> to vector<8x32xf32>
    %118 = arith.addf %116, %117 : vector<8x32xf32>
    %cst_38 = arith.constant 0.000000e+00 : f32
    %119 = vector.broadcast %cst_38 : f32 to vector<8x32xf32>
    %120 = arith.maximumf %118, %119 : vector<8x32xf32>
    %c232 = arith.constant 232 : index
    %c0_39 = arith.constant 0 : index
    %121 = vector.load %arg2[%c232, %c0_39] : memref<1360x128xf32, #tpu.memory_space<vmem>>, vector<64x96xf32>
    %c296 = arith.constant 296 : index
    %c0_40 = arith.constant 0 : index
    %122 = vector.load %arg2[%c296, %c0_40] : memref<1360x128xf32, #tpu.memory_space<vmem>>, vector<32x32xf32>
    %c328 = arith.constant 328 : index
    %c0_41 = arith.constant 0 : index
    %123 = vector.load %arg2[%c328, %c0_41] : memref<1360x128xf32, #tpu.memory_space<vmem>>, vector<1x32xf32>
    %124 = tpu.concatenate %120, %2 in 1 : vector<8x32xf32>, vector<8x32xf32> -> vector<8x64xf32>
    %cst_42 = arith.constant dense<0.000000e+00> : vector<8x96xf32>
    %125 = tpu.matmul %124, %121, %cst_42 {dimension_numbers = #tpu.dot_dimension_numbers<[1], [0], [0], [1], [0, 0, 1, 1], [], []>} : vector<8x64xf32>, vector<64x96xf32>, vector<8x96xf32> -> vector<8x96xf32>
    %126 = vector.extract_strided_slice %125 {offsets = [0, 0], sizes = [8, 32], strides = [1, 1]} : vector<8x96xf32> to vector<8x32xf32>
    %127 = arith.negf %126 : vector<8x32xf32>
    %128 = math.exp %127 : vector<8x32xf32>
    %cst_43 = arith.constant 1.000000e+00 : f32
    %129 = vector.broadcast %cst_43 : f32 to vector<8x32xf32>
    %130 = arith.addf %129, %128 : vector<8x32xf32>
    %131 = arith.divf %129, %130 : vector<8x32xf32>
    %132 = vector.extract_strided_slice %125 {offsets = [0, 32], sizes = [8, 32], strides = [1, 1]} : vector<8x96xf32> to vector<8x32xf32>
    %133 = vector.broadcast %123 : vector<1x32xf32> to vector<8x32xf32>
    %134 = arith.subf %132, %133 : vector<8x32xf32>
    %135 = arith.negf %134 : vector<8x32xf32>
    %136 = math.exp %135 : vector<8x32xf32>
    %cst_44 = arith.constant 1.000000e+00 : f32
    %137 = vector.broadcast %cst_44 : f32 to vector<8x32xf32>
    %138 = arith.addf %137, %136 : vector<8x32xf32>
    %139 = arith.divf %137, %138 : vector<8x32xf32>
    %140 = vector.extract_strided_slice %125 {offsets = [0, 64], sizes = [8, 32], strides = [1, 1]} : vector<8x96xf32> to vector<8x32xf32>
    %141 = arith.mulf %131, %2 : vector<8x32xf32>
    %cst_45 = arith.constant dense<0.000000e+00> : vector<8x32xf32>
    %142 = tpu.matmul %141, %122, %cst_45 {dimension_numbers = #tpu.dot_dimension_numbers<[1], [0], [0], [1], [0, 0, 1, 1], [], []>} : vector<8x32xf32>, vector<32x32xf32>, vector<8x32xf32> -> vector<8x32xf32>
    %143 = arith.addf %140, %142 : vector<8x32xf32>
    %144 = math.tanh %143 : vector<8x32xf32>
    %cst_46 = arith.constant 1.000000e+00 : f32
    %145 = vector.broadcast %cst_46 : f32 to vector<8x32xf32>
    %146 = arith.subf %145, %139 : vector<8x32xf32>
    %147 = arith.mulf %146, %2 : vector<8x32xf32>
    %148 = arith.mulf %139, %144 : vector<8x32xf32>
    %149 = arith.addf %147, %148 : vector<8x32xf32>
    %cst_47 = arith.constant dense<0.000000e+00> : vector<8xf32>
    %150 = vector.multi_reduction <add>, %149, %cst_47 [1] : vector<8x32xf32> to vector<8xf32>
    %151 = vector.shape_cast %150 : vector<8xf32> to vector<8x1xf32>
    %cst_48 = arith.constant 3.200000e+01 : f32
    %152 = vector.broadcast %cst_48 : f32 to vector<8x1xf32>
    %153 = arith.divf %151, %152 : vector<8x1xf32>
    %154 = vector.broadcast %153 : vector<8x1xf32> to vector<8x32xf32>
    %155 = arith.subf %149, %154 : vector<8x32xf32>
    %156 = arith.mulf %155, %155 : vector<8x32xf32>
    %cst_49 = arith.constant dense<0.000000e+00> : vector<8xf32>
    %157 = vector.multi_reduction <add>, %156, %cst_49 [1] : vector<8x32xf32> to vector<8xf32>
    %158 = vector.shape_cast %157 : vector<8xf32> to vector<8x1xf32>
    %cst_50 = arith.constant 3.200000e+01 : f32
    %159 = vector.broadcast %cst_50 : f32 to vector<8x1xf32>
    %160 = arith.divf %158, %159 : vector<8x1xf32>
    %cst_51 = arith.constant 9.99999974E-6 : f32
    %161 = vector.broadcast %cst_51 : f32 to vector<8x1xf32>
    %162 = arith.addf %160, %161 : vector<8x1xf32>
    %163 = math.rsqrt %162 : vector<8x1xf32>
    %164 = vector.broadcast %163 : vector<8x1xf32> to vector<8x32xf32>
    %165 = arith.mulf %155, %164 : vector<8x32xf32>
    %166 = vector.broadcast %6 : vector<1x32xf32> to vector<8x32xf32>
    %167 = arith.mulf %165, %166 : vector<8x32xf32>
    %168 = vector.broadcast %7 : vector<1x32xf32> to vector<8x32xf32>
    %169 = arith.addf %167, %168 : vector<8x32xf32>
    %c120 = arith.constant 120 : index
    %c0_52 = arith.constant 0 : index
    %170 = vector.load %arg2[%c120, %c0_52] : memref<1360x128xf32, #tpu.memory_space<vmem>>, vector<32x64xf32>
    %c152 = arith.constant 152 : index
    %c0_53 = arith.constant 0 : index
    %171 = vector.load %arg2[%c152, %c0_53] : memref<1360x128xf32, #tpu.memory_space<vmem>>, vector<1x64xf32>
    %c160 = arith.constant 160 : index
    %c0_54 = arith.constant 0 : index
    %172 = vector.load %arg2[%c160, %c0_54] : memref<1360x128xf32, #tpu.memory_space<vmem>>, vector<64x32xf32>
    %c224 = arith.constant 224 : index
    %c0_55 = arith.constant 0 : index
    %173 = vector.load %arg2[%c224, %c0_55] : memref<1360x128xf32, #tpu.memory_space<vmem>>, vector<1x32xf32>
    %cst_56 = arith.constant dense<0.000000e+00> : vector<8x64xf32>
    %174 = tpu.matmul %169, %170, %cst_56 {dimension_numbers = #tpu.dot_dimension_numbers<[1], [0], [0], [1], [0, 0, 1, 1], [], []>} : vector<8x32xf32>, vector<32x64xf32>, vector<8x64xf32> -> vector<8x64xf32>
    %175 = vector.broadcast %171 : vector<1x64xf32> to vector<8x64xf32>
    %176 = arith.addf %174, %175 : vector<8x64xf32>
    %cst_57 = arith.constant 0.000000e+00 : f32
    %177 = vector.broadcast %cst_57 : f32 to vector<8x64xf32>
    %178 = arith.maximumf %176, %177 : vector<8x64xf32>
    %cst_58 = arith.constant dense<0.000000e+00> : vector<8x32xf32>
    %179 = tpu.matmul %178, %172, %cst_58 {dimension_numbers = #tpu.dot_dimension_numbers<[1], [0], [0], [1], [0, 0, 1, 1], [], []>} : vector<8x64xf32>, vector<64x32xf32>, vector<8x32xf32> -> vector<8x32xf32>
    %180 = vector.broadcast %173 : vector<1x32xf32> to vector<8x32xf32>
    %181 = arith.addf %179, %180 : vector<8x32xf32>
    %cst_59 = arith.constant 0.000000e+00 : f32
    %182 = vector.broadcast %cst_59 : f32 to vector<8x32xf32>
    %183 = arith.maximumf %181, %182 : vector<8x32xf32>
    %c336 = arith.constant 336 : index
    %c0_60 = arith.constant 0 : index
    %184 = vector.load %arg2[%c336, %c0_60] : memref<1360x128xf32, #tpu.memory_space<vmem>>, vector<64x96xf32>
    %c400 = arith.constant 400 : index
    %c0_61 = arith.constant 0 : index
    %185 = vector.load %arg2[%c400, %c0_61] : memref<1360x128xf32, #tpu.memory_space<vmem>>, vector<32x32xf32>
    %c432 = arith.constant 432 : index
    %c0_62 = arith.constant 0 : index
    %186 = vector.load %arg2[%c432, %c0_62] : memref<1360x128xf32, #tpu.memory_space<vmem>>, vector<1x32xf32>
    %187 = tpu.concatenate %183, %149 in 1 : vector<8x32xf32>, vector<8x32xf32> -> vector<8x64xf32>
    %cst_63 = arith.constant dense<0.000000e+00> : vector<8x96xf32>
    %188 = tpu.matmul %187, %184, %cst_63 {dimension_numbers = #tpu.dot_dimension_numbers<[1], [0], [0], [1], [0, 0, 1, 1], [], []>} : vector<8x64xf32>, vector<64x96xf32>, vector<8x96xf32> -> vector<8x96xf32>
    %189 = vector.extract_strided_slice %188 {offsets = [0, 0], sizes = [8, 32], strides = [1, 1]} : vector<8x96xf32> to vector<8x32xf32>
    %190 = arith.negf %189 : vector<8x32xf32>
    %191 = math.exp %190 : vector<8x32xf32>
    %cst_64 = arith.constant 1.000000e+00 : f32
    %192 = vector.broadcast %cst_64 : f32 to vector<8x32xf32>
    %193 = arith.addf %192, %191 : vector<8x32xf32>
    %194 = arith.divf %192, %193 : vector<8x32xf32>
    %195 = vector.extract_strided_slice %188 {offsets = [0, 32], sizes = [8, 32], strides = [1, 1]} : vector<8x96xf32> to vector<8x32xf32>
    %196 = vector.broadcast %186 : vector<1x32xf32> to vector<8x32xf32>
    %197 = arith.subf %195, %196 : vector<8x32xf32>
    %198 = arith.negf %197 : vector<8x32xf32>
    %199 = math.exp %198 : vector<8x32xf32>
    %cst_65 = arith.constant 1.000000e+00 : f32
    %200 = vector.broadcast %cst_65 : f32 to vector<8x32xf32>
    %201 = arith.addf %200, %199 : vector<8x32xf32>
    %202 = arith.divf %200, %201 : vector<8x32xf32>
    %203 = vector.extract_strided_slice %188 {offsets = [0, 64], sizes = [8, 32], strides = [1, 1]} : vector<8x96xf32> to vector<8x32xf32>
    %204 = arith.mulf %194, %149 : vector<8x32xf32>
    %cst_66 = arith.constant dense<0.000000e+00> : vector<8x32xf32>
    %205 = tpu.matmul %204, %185, %cst_66 {dimension_numbers = #tpu.dot_dimension_numbers<[1], [0], [0], [1], [0, 0, 1, 1], [], []>} : vector<8x32xf32>, vector<32x32xf32>, vector<8x32xf32> -> vector<8x32xf32>
    %206 = arith.addf %203, %205 : vector<8x32xf32>
    %207 = math.tanh %206 : vector<8x32xf32>
    %cst_67 = arith.constant 1.000000e+00 : f32
    %208 = vector.broadcast %cst_67 : f32 to vector<8x32xf32>
    %209 = arith.subf %208, %202 : vector<8x32xf32>
    %210 = arith.mulf %209, %149 : vector<8x32xf32>
    %211 = arith.mulf %202, %207 : vector<8x32xf32>
    %212 = arith.addf %210, %211 : vector<8x32xf32>
    %c440 = arith.constant 440 : index
    %c0_68 = arith.constant 0 : index
    %213 = vector.load %arg2[%c440, %c0_68] : memref<1360x128xf32, #tpu.memory_space<vmem>>, vector<1x32xf32>
    %c448 = arith.constant 448 : index
    %c0_69 = arith.constant 0 : index
    %214 = vector.load %arg2[%c448, %c0_69] : memref<1360x128xf32, #tpu.memory_space<vmem>>, vector<1x32xf32>
    %cst_70 = arith.constant dense<0.000000e+00> : vector<8xf32>
    %215 = vector.multi_reduction <add>, %212, %cst_70 [1] : vector<8x32xf32> to vector<8xf32>
    %216 = vector.shape_cast %215 : vector<8xf32> to vector<8x1xf32>
    %cst_71 = arith.constant 3.200000e+01 : f32
    %217 = vector.broadcast %cst_71 : f32 to vector<8x1xf32>
    %218 = arith.divf %216, %217 : vector<8x1xf32>
    %219 = vector.broadcast %218 : vector<8x1xf32> to vector<8x32xf32>
    %220 = arith.subf %212, %219 : vector<8x32xf32>
    %221 = arith.mulf %220, %220 : vector<8x32xf32>
    %cst_72 = arith.constant dense<0.000000e+00> : vector<8xf32>
    %222 = vector.multi_reduction <add>, %221, %cst_72 [1] : vector<8x32xf32> to vector<8xf32>
    %223 = vector.shape_cast %222 : vector<8xf32> to vector<8x1xf32>
    %cst_73 = arith.constant 3.200000e+01 : f32
    %224 = vector.broadcast %cst_73 : f32 to vector<8x1xf32>
    %225 = arith.divf %223, %224 : vector<8x1xf32>
    %cst_74 = arith.constant 9.99999974E-6 : f32
    %226 = vector.broadcast %cst_74 : f32 to vector<8x1xf32>
    %227 = arith.addf %225, %226 : vector<8x1xf32>
    %228 = math.rsqrt %227 : vector<8x1xf32>
    %229 = vector.broadcast %228 : vector<8x1xf32> to vector<8x32xf32>
    %230 = arith.mulf %220, %229 : vector<8x32xf32>
    %231 = vector.broadcast %213 : vector<1x32xf32> to vector<8x32xf32>
    %232 = arith.mulf %230, %231 : vector<8x32xf32>
    %233 = vector.broadcast %214 : vector<1x32xf32> to vector<8x32xf32>
    %234 = arith.addf %232, %233 : vector<8x32xf32>
    %c856 = arith.constant 856 : index
    %c0_75 = arith.constant 0 : index
    %235 = vector.load %arg2[%c856, %c0_75] : memref<1360x128xf32, #tpu.memory_space<vmem>>, vector<8x32xf32>
    %c456 = arith.constant 456 : index
    %c0_76 = arith.constant 0 : index
    %236 = vector.load %arg2[%c456, %c0_76] : memref<1360x128xf32, #tpu.memory_space<vmem>>, vector<32x96xf32>
    %c488 = arith.constant 488 : index
    %c0_77 = arith.constant 0 : index
    %237 = vector.load %arg2[%c488, %c0_77] : memref<1360x128xf32, #tpu.memory_space<vmem>>, vector<1x96xf32>
    %c496 = arith.constant 496 : index
    %c0_78 = arith.constant 0 : index
    %238 = vector.load %arg2[%c496, %c0_78] : memref<1360x128xf32, #tpu.memory_space<vmem>>, vector<32x32xf32>
    %c528 = arith.constant 528 : index
    %c0_79 = arith.constant 0 : index
    %239 = vector.load %arg2[%c528, %c0_79] : memref<1360x128xf32, #tpu.memory_space<vmem>>, vector<1x32xf32>
    %240 = tpu.concatenate %235, %234 in 0 : vector<8x32xf32>, vector<8x32xf32> -> vector<16x32xf32>
    %cst_80 = arith.constant dense<0.000000e+00> : vector<16x96xf32>
    %241 = tpu.matmul %240, %236, %cst_80 {dimension_numbers = #tpu.dot_dimension_numbers<[1], [0], [0], [1], [0, 0, 1, 1], [], []>} : vector<16x32xf32>, vector<32x96xf32>, vector<16x96xf32> -> vector<16x96xf32>
    %242 = vector.broadcast %237 : vector<1x96xf32> to vector<16x96xf32>
    %243 = arith.addf %241, %242 : vector<16x96xf32>
    %244 = vector.extract_strided_slice %243 {offsets = [8, 0], sizes = [8, 32], strides = [1, 1]} : vector<16x96xf32> to vector<8x32xf32>
    %245 = vector.extract_strided_slice %243 {offsets = [0, 32], sizes = [16, 32], strides = [1, 1]} : vector<16x96xf32> to vector<16x32xf32>
    %246 = vector.extract_strided_slice %243 {offsets = [0, 64], sizes = [16, 32], strides = [1, 1]} : vector<16x96xf32> to vector<16x32xf32>
    %247 = vector.extract_strided_slice %244 {offsets = [0, 0], sizes = [8, 8], strides = [1, 1]} : vector<8x32xf32> to vector<8x8xf32>
    %248 = vector.extract_strided_slice %245 {offsets = [0, 0], sizes = [16, 8], strides = [1, 1]} : vector<16x32xf32> to vector<16x8xf32>
    %249 = tpu.transpose %248, [1, 0] : vector<16x8xf32> -> vector<8x16xf32>
    %cst_81 = arith.constant dense<0.000000e+00> : vector<8x16xf32>
    %250 = tpu.matmul %247, %249, %cst_81 {dimension_numbers = #tpu.dot_dimension_numbers<[1], [0], [0], [1], [0, 0, 1, 1], [], []>} : vector<8x8xf32>, vector<8x16xf32>, vector<8x16xf32> -> vector<8x16xf32>
    %251 = arith.addf %250, %5 : vector<8x16xf32>
    %cst_82 = arith.constant dense<0xFF800000> : vector<8xf32>
    %252 = vector.multi_reduction <maximumf>, %251, %cst_82 [1] : vector<8x16xf32> to vector<8xf32>
    %253 = vector.shape_cast %252 : vector<8xf32> to vector<8x1xf32>
    %254 = vector.broadcast %253 : vector<8x1xf32> to vector<8x16xf32>
    %255 = arith.subf %251, %254 : vector<8x16xf32>
    %256 = math.exp %255 : vector<8x16xf32>
    %cst_83 = arith.constant dense<0.000000e+00> : vector<8xf32>
    %257 = vector.multi_reduction <add>, %256, %cst_83 [1] : vector<8x16xf32> to vector<8xf32>
    %258 = vector.shape_cast %257 : vector<8xf32> to vector<8x1xf32>
    %259 = tpu.reciprocal %258 {approx = true} : vector<8x1xf32> -> vector<8x1xf32>
    %260 = vector.broadcast %259 : vector<8x1xf32> to vector<8x16xf32>
    %261 = arith.mulf %256, %260 : vector<8x16xf32>
    %262 = vector.extract_strided_slice %246 {offsets = [0, 0], sizes = [16, 8], strides = [1, 1]} : vector<16x32xf32> to vector<16x8xf32>
    %cst_84 = arith.constant dense<0.000000e+00> : vector<8x8xf32>
    %263 = tpu.matmul %261, %262, %cst_84 {dimension_numbers = #tpu.dot_dimension_numbers<[1], [0], [0], [1], [0, 0, 1, 1], [], []>} : vector<8x16xf32>, vector<16x8xf32>, vector<8x8xf32> -> vector<8x8xf32>
    %264 = vector.extract_strided_slice %238 {offsets = [0, 0], sizes = [8, 32], strides = [1, 1]} : vector<32x32xf32> to vector<8x32xf32>
    %cst_85 = arith.constant dense<0.000000e+00> : vector<8x32xf32>
    %265 = tpu.matmul %263, %264, %cst_85 {dimension_numbers = #tpu.dot_dimension_numbers<[1], [0], [0], [1], [0, 0, 1, 1], [], []>} : vector<8x8xf32>, vector<8x32xf32>, vector<8x32xf32> -> vector<8x32xf32>
    %266 = vector.extract_strided_slice %244 {offsets = [0, 8], sizes = [8, 8], strides = [1, 1]} : vector<8x32xf32> to vector<8x8xf32>
    %267 = vector.extract_strided_slice %245 {offsets = [0, 8], sizes = [16, 8], strides = [1, 1]} : vector<16x32xf32> to vector<16x8xf32>
    %268 = tpu.transpose %267, [1, 0] : vector<16x8xf32> -> vector<8x16xf32>
    %cst_86 = arith.constant dense<0.000000e+00> : vector<8x16xf32>
    %269 = tpu.matmul %266, %268, %cst_86 {dimension_numbers = #tpu.dot_dimension_numbers<[1], [0], [0], [1], [0, 0, 1, 1], [], []>} : vector<8x8xf32>, vector<8x16xf32>, vector<8x16xf32> -> vector<8x16xf32>
    %270 = arith.addf %269, %5 : vector<8x16xf32>
    %cst_87 = arith.constant dense<0xFF800000> : vector<8xf32>
    %271 = vector.multi_reduction <maximumf>, %270, %cst_87 [1] : vector<8x16xf32> to vector<8xf32>
    %272 = vector.shape_cast %271 : vector<8xf32> to vector<8x1xf32>
    %273 = vector.broadcast %272 : vector<8x1xf32> to vector<8x16xf32>
    %274 = arith.subf %270, %273 : vector<8x16xf32>
    %275 = math.exp %274 : vector<8x16xf32>
    %cst_88 = arith.constant dense<0.000000e+00> : vector<8xf32>
    %276 = vector.multi_reduction <add>, %275, %cst_88 [1] : vector<8x16xf32> to vector<8xf32>
    %277 = vector.shape_cast %276 : vector<8xf32> to vector<8x1xf32>
    %278 = tpu.reciprocal %277 {approx = true} : vector<8x1xf32> -> vector<8x1xf32>
    %279 = vector.broadcast %278 : vector<8x1xf32> to vector<8x16xf32>
    %280 = arith.mulf %275, %279 : vector<8x16xf32>
    %281 = vector.extract_strided_slice %246 {offsets = [0, 8], sizes = [16, 8], strides = [1, 1]} : vector<16x32xf32> to vector<16x8xf32>
    %cst_89 = arith.constant dense<0.000000e+00> : vector<8x8xf32>
    %282 = tpu.matmul %280, %281, %cst_89 {dimension_numbers = #tpu.dot_dimension_numbers<[1], [0], [0], [1], [0, 0, 1, 1], [], []>} : vector<8x16xf32>, vector<16x8xf32>, vector<8x8xf32> -> vector<8x8xf32>
    %283 = vector.extract_strided_slice %238 {offsets = [8, 0], sizes = [8, 32], strides = [1, 1]} : vector<32x32xf32> to vector<8x32xf32>
    %cst_90 = arith.constant dense<0.000000e+00> : vector<8x32xf32>
    %284 = tpu.matmul %282, %283, %cst_90 {dimension_numbers = #tpu.dot_dimension_numbers<[1], [0], [0], [1], [0, 0, 1, 1], [], []>} : vector<8x8xf32>, vector<8x32xf32>, vector<8x32xf32> -> vector<8x32xf32>
    %285 = arith.addf %265, %284 : vector<8x32xf32>
    %286 = vector.extract_strided_slice %244 {offsets = [0, 16], sizes = [8, 8], strides = [1, 1]} : vector<8x32xf32> to vector<8x8xf32>
    %287 = vector.extract_strided_slice %245 {offsets = [0, 16], sizes = [16, 8], strides = [1, 1]} : vector<16x32xf32> to vector<16x8xf32>
    %288 = tpu.transpose %287, [1, 0] : vector<16x8xf32> -> vector<8x16xf32>
    %cst_91 = arith.constant dense<0.000000e+00> : vector<8x16xf32>
    %289 = tpu.matmul %286, %288, %cst_91 {dimension_numbers = #tpu.dot_dimension_numbers<[1], [0], [0], [1], [0, 0, 1, 1], [], []>} : vector<8x8xf32>, vector<8x16xf32>, vector<8x16xf32> -> vector<8x16xf32>
    %290 = arith.addf %289, %5 : vector<8x16xf32>
    %cst_92 = arith.constant dense<0xFF800000> : vector<8xf32>
    %291 = vector.multi_reduction <maximumf>, %290, %cst_92 [1] : vector<8x16xf32> to vector<8xf32>
    %292 = vector.shape_cast %291 : vector<8xf32> to vector<8x1xf32>
    %293 = vector.broadcast %292 : vector<8x1xf32> to vector<8x16xf32>
    %294 = arith.subf %290, %293 : vector<8x16xf32>
    %295 = math.exp %294 : vector<8x16xf32>
    %cst_93 = arith.constant dense<0.000000e+00> : vector<8xf32>
    %296 = vector.multi_reduction <add>, %295, %cst_93 [1] : vector<8x16xf32> to vector<8xf32>
    %297 = vector.shape_cast %296 : vector<8xf32> to vector<8x1xf32>
    %298 = tpu.reciprocal %297 {approx = true} : vector<8x1xf32> -> vector<8x1xf32>
    %299 = vector.broadcast %298 : vector<8x1xf32> to vector<8x16xf32>
    %300 = arith.mulf %295, %299 : vector<8x16xf32>
    %301 = vector.extract_strided_slice %246 {offsets = [0, 16], sizes = [16, 8], strides = [1, 1]} : vector<16x32xf32> to vector<16x8xf32>
    %cst_94 = arith.constant dense<0.000000e+00> : vector<8x8xf32>
    %302 = tpu.matmul %300, %301, %cst_94 {dimension_numbers = #tpu.dot_dimension_numbers<[1], [0], [0], [1], [0, 0, 1, 1], [], []>} : vector<8x16xf32>, vector<16x8xf32>, vector<8x8xf32> -> vector<8x8xf32>
    %303 = vector.extract_strided_slice %238 {offsets = [16, 0], sizes = [8, 32], strides = [1, 1]} : vector<32x32xf32> to vector<8x32xf32>
    %cst_95 = arith.constant dense<0.000000e+00> : vector<8x32xf32>
    %304 = tpu.matmul %302, %303, %cst_95 {dimension_numbers = #tpu.dot_dimension_numbers<[1], [0], [0], [1], [0, 0, 1, 1], [], []>} : vector<8x8xf32>, vector<8x32xf32>, vector<8x32xf32> -> vector<8x32xf32>
    %305 = arith.addf %285, %304 : vector<8x32xf32>
    %306 = vector.extract_strided_slice %244 {offsets = [0, 24], sizes = [8, 8], strides = [1, 1]} : vector<8x32xf32> to vector<8x8xf32>
    %307 = vector.extract_strided_slice %245 {offsets = [0, 24], sizes = [16, 8], strides = [1, 1]} : vector<16x32xf32> to vector<16x8xf32>
    %308 = tpu.transpose %307, [1, 0] : vector<16x8xf32> -> vector<8x16xf32>
    %cst_96 = arith.constant dense<0.000000e+00> : vector<8x16xf32>
    %309 = tpu.matmul %306, %308, %cst_96 {dimension_numbers = #tpu.dot_dimension_numbers<[1], [0], [0], [1], [0, 0, 1, 1], [], []>} : vector<8x8xf32>, vector<8x16xf32>, vector<8x16xf32> -> vector<8x16xf32>
    %310 = arith.addf %309, %5 : vector<8x16xf32>
    %cst_97 = arith.constant dense<0xFF800000> : vector<8xf32>
    %311 = vector.multi_reduction <maximumf>, %310, %cst_97 [1] : vector<8x16xf32> to vector<8xf32>
    %312 = vector.shape_cast %311 : vector<8xf32> to vector<8x1xf32>
    %313 = vector.broadcast %312 : vector<8x1xf32> to vector<8x16xf32>
    %314 = arith.subf %310, %313 : vector<8x16xf32>
    %315 = math.exp %314 : vector<8x16xf32>
    %cst_98 = arith.constant dense<0.000000e+00> : vector<8xf32>
    %316 = vector.multi_reduction <add>, %315, %cst_98 [1] : vector<8x16xf32> to vector<8xf32>
    %317 = vector.shape_cast %316 : vector<8xf32> to vector<8x1xf32>
    %318 = tpu.reciprocal %317 {approx = true} : vector<8x1xf32> -> vector<8x1xf32>
    %319 = vector.broadcast %318 : vector<8x1xf32> to vector<8x16xf32>
    %320 = arith.mulf %315, %319 : vector<8x16xf32>
    %321 = vector.extract_strided_slice %246 {offsets = [0, 24], sizes = [16, 8], strides = [1, 1]} : vector<16x32xf32> to vector<16x8xf32>
    %cst_99 = arith.constant dense<0.000000e+00> : vector<8x8xf32>
    %322 = tpu.matmul %320, %321, %cst_99 {dimension_numbers = #tpu.dot_dimension_numbers<[1], [0], [0], [1], [0, 0, 1, 1], [], []>} : vector<8x16xf32>, vector<16x8xf32>, vector<8x8xf32> -> vector<8x8xf32>
    %323 = vector.extract_strided_slice %238 {offsets = [24, 0], sizes = [8, 32], strides = [1, 1]} : vector<32x32xf32> to vector<8x32xf32>
    %cst_100 = arith.constant dense<0.000000e+00> : vector<8x32xf32>
    %324 = tpu.matmul %322, %323, %cst_100 {dimension_numbers = #tpu.dot_dimension_numbers<[1], [0], [0], [1], [0, 0, 1, 1], [], []>} : vector<8x8xf32>, vector<8x32xf32>, vector<8x32xf32> -> vector<8x32xf32>
    %325 = arith.addf %305, %324 : vector<8x32xf32>
    %326 = vector.broadcast %239 : vector<1x32xf32> to vector<8x32xf32>
    %327 = arith.addf %325, %326 : vector<8x32xf32>
    %cst_101 = arith.constant 0.000000e+00 : f32
    %328 = vector.broadcast %cst_101 : f32 to vector<8x32xf32>
    %329 = arith.maximumf %327, %328 : vector<8x32xf32>
    %c648 = arith.constant 648 : index
    %c0_102 = arith.constant 0 : index
    %330 = vector.load %arg2[%c648, %c0_102] : memref<1360x128xf32, #tpu.memory_space<vmem>>, vector<64x96xf32>
    %c712 = arith.constant 712 : index
    %c0_103 = arith.constant 0 : index
    %331 = vector.load %arg2[%c712, %c0_103] : memref<1360x128xf32, #tpu.memory_space<vmem>>, vector<32x32xf32>
    %c744 = arith.constant 744 : index
    %c0_104 = arith.constant 0 : index
    %332 = vector.load %arg2[%c744, %c0_104] : memref<1360x128xf32, #tpu.memory_space<vmem>>, vector<1x32xf32>
    %333 = tpu.concatenate %329, %212 in 1 : vector<8x32xf32>, vector<8x32xf32> -> vector<8x64xf32>
    %cst_105 = arith.constant dense<0.000000e+00> : vector<8x96xf32>
    %334 = tpu.matmul %333, %330, %cst_105 {dimension_numbers = #tpu.dot_dimension_numbers<[1], [0], [0], [1], [0, 0, 1, 1], [], []>} : vector<8x64xf32>, vector<64x96xf32>, vector<8x96xf32> -> vector<8x96xf32>
    %335 = vector.extract_strided_slice %334 {offsets = [0, 0], sizes = [8, 32], strides = [1, 1]} : vector<8x96xf32> to vector<8x32xf32>
    %336 = arith.negf %335 : vector<8x32xf32>
    %337 = math.exp %336 : vector<8x32xf32>
    %cst_106 = arith.constant 1.000000e+00 : f32
    %338 = vector.broadcast %cst_106 : f32 to vector<8x32xf32>
    %339 = arith.addf %338, %337 : vector<8x32xf32>
    %340 = arith.divf %338, %339 : vector<8x32xf32>
    %341 = vector.extract_strided_slice %334 {offsets = [0, 32], sizes = [8, 32], strides = [1, 1]} : vector<8x96xf32> to vector<8x32xf32>
    %342 = vector.broadcast %332 : vector<1x32xf32> to vector<8x32xf32>
    %343 = arith.subf %341, %342 : vector<8x32xf32>
    %344 = arith.negf %343 : vector<8x32xf32>
    %345 = math.exp %344 : vector<8x32xf32>
    %cst_107 = arith.constant 1.000000e+00 : f32
    %346 = vector.broadcast %cst_107 : f32 to vector<8x32xf32>
    %347 = arith.addf %346, %345 : vector<8x32xf32>
    %348 = arith.divf %346, %347 : vector<8x32xf32>
    %349 = vector.extract_strided_slice %334 {offsets = [0, 64], sizes = [8, 32], strides = [1, 1]} : vector<8x96xf32> to vector<8x32xf32>
    %350 = arith.mulf %340, %212 : vector<8x32xf32>
    %cst_108 = arith.constant dense<0.000000e+00> : vector<8x32xf32>
    %351 = tpu.matmul %350, %331, %cst_108 {dimension_numbers = #tpu.dot_dimension_numbers<[1], [0], [0], [1], [0, 0, 1, 1], [], []>} : vector<8x32xf32>, vector<32x32xf32>, vector<8x32xf32> -> vector<8x32xf32>
    %352 = arith.addf %349, %351 : vector<8x32xf32>
    %353 = math.tanh %352 : vector<8x32xf32>
    %cst_109 = arith.constant 1.000000e+00 : f32
    %354 = vector.broadcast %cst_109 : f32 to vector<8x32xf32>
    %355 = arith.subf %354, %348 : vector<8x32xf32>
    %356 = arith.mulf %355, %212 : vector<8x32xf32>
    %357 = arith.mulf %348, %353 : vector<8x32xf32>
    %358 = arith.addf %356, %357 : vector<8x32xf32>
    %cst_110 = arith.constant dense<0.000000e+00> : vector<8xf32>
    %359 = vector.multi_reduction <add>, %358, %cst_110 [1] : vector<8x32xf32> to vector<8xf32>
    %360 = vector.shape_cast %359 : vector<8xf32> to vector<8x1xf32>
    %cst_111 = arith.constant 3.200000e+01 : f32
    %361 = vector.broadcast %cst_111 : f32 to vector<8x1xf32>
    %362 = arith.divf %360, %361 : vector<8x1xf32>
    %363 = vector.broadcast %362 : vector<8x1xf32> to vector<8x32xf32>
    %364 = arith.subf %358, %363 : vector<8x32xf32>
    %365 = arith.mulf %364, %364 : vector<8x32xf32>
    %cst_112 = arith.constant dense<0.000000e+00> : vector<8xf32>
    %366 = vector.multi_reduction <add>, %365, %cst_112 [1] : vector<8x32xf32> to vector<8xf32>
    %367 = vector.shape_cast %366 : vector<8xf32> to vector<8x1xf32>
    %cst_113 = arith.constant 3.200000e+01 : f32
    %368 = vector.broadcast %cst_113 : f32 to vector<8x1xf32>
    %369 = arith.divf %367, %368 : vector<8x1xf32>
    %cst_114 = arith.constant 9.99999974E-6 : f32
    %370 = vector.broadcast %cst_114 : f32 to vector<8x1xf32>
    %371 = arith.addf %369, %370 : vector<8x1xf32>
    %372 = math.rsqrt %371 : vector<8x1xf32>
    %373 = vector.broadcast %372 : vector<8x1xf32> to vector<8x32xf32>
    %374 = arith.mulf %364, %373 : vector<8x32xf32>
    %375 = vector.broadcast %213 : vector<1x32xf32> to vector<8x32xf32>
    %376 = arith.mulf %374, %375 : vector<8x32xf32>
    %377 = vector.broadcast %214 : vector<1x32xf32> to vector<8x32xf32>
    %378 = arith.addf %376, %377 : vector<8x32xf32>
    %c536 = arith.constant 536 : index
    %c0_115 = arith.constant 0 : index
    %379 = vector.load %arg2[%c536, %c0_115] : memref<1360x128xf32, #tpu.memory_space<vmem>>, vector<32x64xf32>
    %c568 = arith.constant 568 : index
    %c0_116 = arith.constant 0 : index
    %380 = vector.load %arg2[%c568, %c0_116] : memref<1360x128xf32, #tpu.memory_space<vmem>>, vector<1x64xf32>
    %c576 = arith.constant 576 : index
    %c0_117 = arith.constant 0 : index
    %381 = vector.load %arg2[%c576, %c0_117] : memref<1360x128xf32, #tpu.memory_space<vmem>>, vector<64x32xf32>
    %c640 = arith.constant 640 : index
    %c0_118 = arith.constant 0 : index
    %382 = vector.load %arg2[%c640, %c0_118] : memref<1360x128xf32, #tpu.memory_space<vmem>>, vector<1x32xf32>
    %cst_119 = arith.constant dense<0.000000e+00> : vector<8x64xf32>
    %383 = tpu.matmul %378, %379, %cst_119 {dimension_numbers = #tpu.dot_dimension_numbers<[1], [0], [0], [1], [0, 0, 1, 1], [], []>} : vector<8x32xf32>, vector<32x64xf32>, vector<8x64xf32> -> vector<8x64xf32>
    %384 = vector.broadcast %380 : vector<1x64xf32> to vector<8x64xf32>
    %385 = arith.addf %383, %384 : vector<8x64xf32>
    %cst_120 = arith.constant 0.000000e+00 : f32
    %386 = vector.broadcast %cst_120 : f32 to vector<8x64xf32>
    %387 = arith.maximumf %385, %386 : vector<8x64xf32>
    %cst_121 = arith.constant dense<0.000000e+00> : vector<8x32xf32>
    %388 = tpu.matmul %387, %381, %cst_121 {dimension_numbers = #tpu.dot_dimension_numbers<[1], [0], [0], [1], [0, 0, 1, 1], [], []>} : vector<8x64xf32>, vector<64x32xf32>, vector<8x32xf32> -> vector<8x32xf32>
    %389 = vector.broadcast %382 : vector<1x32xf32> to vector<8x32xf32>
    %390 = arith.addf %388, %389 : vector<8x32xf32>
    %cst_122 = arith.constant 0.000000e+00 : f32
    %391 = vector.broadcast %cst_122 : f32 to vector<8x32xf32>
    %392 = arith.maximumf %390, %391 : vector<8x32xf32>
    %c752 = arith.constant 752 : index
    %c0_123 = arith.constant 0 : index
    %393 = vector.load %arg2[%c752, %c0_123] : memref<1360x128xf32, #tpu.memory_space<vmem>>, vector<64x96xf32>
    %c816 = arith.constant 816 : index
    %c0_124 = arith.constant 0 : index
    %394 = vector.load %arg2[%c816, %c0_124] : memref<1360x128xf32, #tpu.memory_space<vmem>>, vector<32x32xf32>
    %c848 = arith.constant 848 : index
    %c0_125 = arith.constant 0 : index
    %395 = vector.load %arg2[%c848, %c0_125] : memref<1360x128xf32, #tpu.memory_space<vmem>>, vector<1x32xf32>
    %396 = tpu.concatenate %392, %358 in 1 : vector<8x32xf32>, vector<8x32xf32> -> vector<8x64xf32>
    %cst_126 = arith.constant dense<0.000000e+00> : vector<8x96xf32>
    %397 = tpu.matmul %396, %393, %cst_126 {dimension_numbers = #tpu.dot_dimension_numbers<[1], [0], [0], [1], [0, 0, 1, 1], [], []>} : vector<8x64xf32>, vector<64x96xf32>, vector<8x96xf32> -> vector<8x96xf32>
    %398 = vector.extract_strided_slice %397 {offsets = [0, 0], sizes = [8, 32], strides = [1, 1]} : vector<8x96xf32> to vector<8x32xf32>
    %399 = arith.negf %398 : vector<8x32xf32>
    %400 = math.exp %399 : vector<8x32xf32>
    %cst_127 = arith.constant 1.000000e+00 : f32
    %401 = vector.broadcast %cst_127 : f32 to vector<8x32xf32>
    %402 = arith.addf %401, %400 : vector<8x32xf32>
    %403 = arith.divf %401, %402 : vector<8x32xf32>
    %404 = vector.extract_strided_slice %397 {offsets = [0, 32], sizes = [8, 32], strides = [1, 1]} : vector<8x96xf32> to vector<8x32xf32>
    %405 = vector.broadcast %395 : vector<1x32xf32> to vector<8x32xf32>
    %406 = arith.subf %404, %405 : vector<8x32xf32>
    %407 = arith.negf %406 : vector<8x32xf32>
    %408 = math.exp %407 : vector<8x32xf32>
    %cst_128 = arith.constant 1.000000e+00 : f32
    %409 = vector.broadcast %cst_128 : f32 to vector<8x32xf32>
    %410 = arith.addf %409, %408 : vector<8x32xf32>
    %411 = arith.divf %409, %410 : vector<8x32xf32>
    %412 = vector.extract_strided_slice %397 {offsets = [0, 64], sizes = [8, 32], strides = [1, 1]} : vector<8x96xf32> to vector<8x32xf32>
    %413 = arith.mulf %403, %358 : vector<8x32xf32>
    %cst_129 = arith.constant dense<0.000000e+00> : vector<8x32xf32>
    %414 = tpu.matmul %413, %394, %cst_129 {dimension_numbers = #tpu.dot_dimension_numbers<[1], [0], [0], [1], [0, 0, 1, 1], [], []>} : vector<8x32xf32>, vector<32x32xf32>, vector<8x32xf32> -> vector<8x32xf32>
    %415 = arith.addf %412, %414 : vector<8x32xf32>
    %416 = math.tanh %415 : vector<8x32xf32>
    %cst_130 = arith.constant 1.000000e+00 : f32
    %417 = vector.broadcast %cst_130 : f32 to vector<8x32xf32>
    %418 = arith.subf %417, %411 : vector<8x32xf32>
    %419 = arith.mulf %418, %358 : vector<8x32xf32>
    %420 = arith.mulf %411, %416 : vector<8x32xf32>
    %421 = arith.addf %419, %420 : vector<8x32xf32>
    %c864 = arith.constant 864 : index
    %c0_131 = arith.constant 0 : index
    %422 = vector.load %arg2[%c864, %c0_131] : memref<1360x128xf32, #tpu.memory_space<vmem>>, vector<1x32xf32>
    %c872 = arith.constant 872 : index
    %c0_132 = arith.constant 0 : index
    %423 = vector.load %arg2[%c872, %c0_132] : memref<1360x128xf32, #tpu.memory_space<vmem>>, vector<1x32xf32>
    %cst_133 = arith.constant dense<0.000000e+00> : vector<8xf32>
    %424 = vector.multi_reduction <add>, %421, %cst_133 [1] : vector<8x32xf32> to vector<8xf32>
    %425 = vector.shape_cast %424 : vector<8xf32> to vector<8x1xf32>
    %cst_134 = arith.constant 3.200000e+01 : f32
    %426 = vector.broadcast %cst_134 : f32 to vector<8x1xf32>
    %427 = arith.divf %425, %426 : vector<8x1xf32>
    %428 = vector.broadcast %427 : vector<8x1xf32> to vector<8x32xf32>
    %429 = arith.subf %421, %428 : vector<8x32xf32>
    %430 = arith.mulf %429, %429 : vector<8x32xf32>
    %cst_135 = arith.constant dense<0.000000e+00> : vector<8xf32>
    %431 = vector.multi_reduction <add>, %430, %cst_135 [1] : vector<8x32xf32> to vector<8xf32>
    %432 = vector.shape_cast %431 : vector<8xf32> to vector<8x1xf32>
    %cst_136 = arith.constant 3.200000e+01 : f32
    %433 = vector.broadcast %cst_136 : f32 to vector<8x1xf32>
    %434 = arith.divf %432, %433 : vector<8x1xf32>
    %cst_137 = arith.constant 9.99999974E-6 : f32
    %435 = vector.broadcast %cst_137 : f32 to vector<8x1xf32>
    %436 = arith.addf %434, %435 : vector<8x1xf32>
    %437 = math.rsqrt %436 : vector<8x1xf32>
    %438 = vector.broadcast %437 : vector<8x1xf32> to vector<8x32xf32>
    %439 = arith.mulf %429, %438 : vector<8x32xf32>
    %440 = vector.broadcast %422 : vector<1x32xf32> to vector<8x32xf32>
    %441 = arith.mulf %439, %440 : vector<8x32xf32>
    %442 = vector.broadcast %423 : vector<1x32xf32> to vector<8x32xf32>
    %443 = arith.addf %441, %442 : vector<8x32xf32>
    %c880 = arith.constant 880 : index
    %c0_138 = arith.constant 0 : index
    %444 = vector.load %arg2[%c880, %c0_138] : memref<1360x128xf32, #tpu.memory_space<vmem>>, vector<32x96xf32>
    %c912 = arith.constant 912 : index
    %c0_139 = arith.constant 0 : index
    %445 = vector.load %arg2[%c912, %c0_139] : memref<1360x128xf32, #tpu.memory_space<vmem>>, vector<1x96xf32>
    %c920 = arith.constant 920 : index
    %c0_140 = arith.constant 0 : index
    %446 = vector.load %arg2[%c920, %c0_140] : memref<1360x128xf32, #tpu.memory_space<vmem>>, vector<32x32xf32>
    %c952 = arith.constant 952 : index
    %c0_141 = arith.constant 0 : index
    %447 = vector.load %arg2[%c952, %c0_141] : memref<1360x128xf32, #tpu.memory_space<vmem>>, vector<1x32xf32>
    %cst_142 = arith.constant dense<0.000000e+00> : vector<8x96xf32>
    %448 = tpu.matmul %443, %444, %cst_142 {dimension_numbers = #tpu.dot_dimension_numbers<[1], [0], [0], [1], [0, 0, 1, 1], [], []>} : vector<8x32xf32>, vector<32x96xf32>, vector<8x96xf32> -> vector<8x96xf32>
    %449 = vector.broadcast %445 : vector<1x96xf32> to vector<8x96xf32>
    %450 = arith.addf %448, %449 : vector<8x96xf32>
    %451 = vector.extract_strided_slice %450 {offsets = [0, 0], sizes = [8, 32], strides = [1, 1]} : vector<8x96xf32> to vector<8x32xf32>
    %452 = vector.extract_strided_slice %450 {offsets = [0, 32], sizes = [8, 32], strides = [1, 1]} : vector<8x96xf32> to vector<8x32xf32>
    %453 = vector.extract_strided_slice %450 {offsets = [0, 64], sizes = [8, 32], strides = [1, 1]} : vector<8x96xf32> to vector<8x32xf32>
    %454 = vector.extract_strided_slice %451 {offsets = [0, 0], sizes = [8, 8], strides = [1, 1]} : vector<8x32xf32> to vector<8x8xf32>
    %455 = vector.extract_strided_slice %452 {offsets = [0, 0], sizes = [8, 8], strides = [1, 1]} : vector<8x32xf32> to vector<8x8xf32>
    %456 = tpu.transpose %455, [1, 0] : vector<8x8xf32> -> vector<8x8xf32>
    %cst_143 = arith.constant dense<0.000000e+00> : vector<8x8xf32>
    %457 = tpu.matmul %454, %456, %cst_143 {dimension_numbers = #tpu.dot_dimension_numbers<[1], [0], [0], [1], [0, 0, 1, 1], [], []>} : vector<8x8xf32>, vector<8x8xf32>, vector<8x8xf32> -> vector<8x8xf32>
    %458 = arith.addf %457, %4 : vector<8x8xf32>
    %cst_144 = arith.constant dense<0xFF800000> : vector<8xf32>
    %459 = vector.multi_reduction <maximumf>, %458, %cst_144 [1] : vector<8x8xf32> to vector<8xf32>
    %460 = vector.shape_cast %459 : vector<8xf32> to vector<8x1xf32>
    %461 = vector.broadcast %460 : vector<8x1xf32> to vector<8x8xf32>
    %462 = arith.subf %458, %461 : vector<8x8xf32>
    %463 = math.exp %462 : vector<8x8xf32>
    %cst_145 = arith.constant dense<0.000000e+00> : vector<8xf32>
    %464 = vector.multi_reduction <add>, %463, %cst_145 [1] : vector<8x8xf32> to vector<8xf32>
    %465 = vector.shape_cast %464 : vector<8xf32> to vector<8x1xf32>
    %466 = tpu.reciprocal %465 {approx = true} : vector<8x1xf32> -> vector<8x1xf32>
    %467 = vector.broadcast %466 : vector<8x1xf32> to vector<8x8xf32>
    %468 = arith.mulf %463, %467 : vector<8x8xf32>
    %469 = vector.extract_strided_slice %453 {offsets = [0, 0], sizes = [8, 8], strides = [1, 1]} : vector<8x32xf32> to vector<8x8xf32>
    %cst_146 = arith.constant dense<0.000000e+00> : vector<8x8xf32>
    %470 = tpu.matmul %468, %469, %cst_146 {dimension_numbers = #tpu.dot_dimension_numbers<[1], [0], [0], [1], [0, 0, 1, 1], [], []>} : vector<8x8xf32>, vector<8x8xf32>, vector<8x8xf32> -> vector<8x8xf32>
    %471 = vector.extract_strided_slice %446 {offsets = [0, 0], sizes = [8, 32], strides = [1, 1]} : vector<32x32xf32> to vector<8x32xf32>
    %cst_147 = arith.constant dense<0.000000e+00> : vector<8x32xf32>
    %472 = tpu.matmul %470, %471, %cst_147 {dimension_numbers = #tpu.dot_dimension_numbers<[1], [0], [0], [1], [0, 0, 1, 1], [], []>} : vector<8x8xf32>, vector<8x32xf32>, vector<8x32xf32> -> vector<8x32xf32>
    %473 = vector.extract_strided_slice %451 {offsets = [0, 8], sizes = [8, 8], strides = [1, 1]} : vector<8x32xf32> to vector<8x8xf32>
    %474 = vector.extract_strided_slice %452 {offsets = [0, 8], sizes = [8, 8], strides = [1, 1]} : vector<8x32xf32> to vector<8x8xf32>
    %475 = tpu.transpose %474, [1, 0] : vector<8x8xf32> -> vector<8x8xf32>
    %cst_148 = arith.constant dense<0.000000e+00> : vector<8x8xf32>
    %476 = tpu.matmul %473, %475, %cst_148 {dimension_numbers = #tpu.dot_dimension_numbers<[1], [0], [0], [1], [0, 0, 1, 1], [], []>} : vector<8x8xf32>, vector<8x8xf32>, vector<8x8xf32> -> vector<8x8xf32>
    %477 = arith.addf %476, %4 : vector<8x8xf32>
    %cst_149 = arith.constant dense<0xFF800000> : vector<8xf32>
    %478 = vector.multi_reduction <maximumf>, %477, %cst_149 [1] : vector<8x8xf32> to vector<8xf32>
    %479 = vector.shape_cast %478 : vector<8xf32> to vector<8x1xf32>
    %480 = vector.broadcast %479 : vector<8x1xf32> to vector<8x8xf32>
    %481 = arith.subf %477, %480 : vector<8x8xf32>
    %482 = math.exp %481 : vector<8x8xf32>
    %cst_150 = arith.constant dense<0.000000e+00> : vector<8xf32>
    %483 = vector.multi_reduction <add>, %482, %cst_150 [1] : vector<8x8xf32> to vector<8xf32>
    %484 = vector.shape_cast %483 : vector<8xf32> to vector<8x1xf32>
    %485 = tpu.reciprocal %484 {approx = true} : vector<8x1xf32> -> vector<8x1xf32>
    %486 = vector.broadcast %485 : vector<8x1xf32> to vector<8x8xf32>
    %487 = arith.mulf %482, %486 : vector<8x8xf32>
    %488 = vector.extract_strided_slice %453 {offsets = [0, 8], sizes = [8, 8], strides = [1, 1]} : vector<8x32xf32> to vector<8x8xf32>
    %cst_151 = arith.constant dense<0.000000e+00> : vector<8x8xf32>
    %489 = tpu.matmul %487, %488, %cst_151 {dimension_numbers = #tpu.dot_dimension_numbers<[1], [0], [0], [1], [0, 0, 1, 1], [], []>} : vector<8x8xf32>, vector<8x8xf32>, vector<8x8xf32> -> vector<8x8xf32>
    %490 = vector.extract_strided_slice %446 {offsets = [8, 0], sizes = [8, 32], strides = [1, 1]} : vector<32x32xf32> to vector<8x32xf32>
    %cst_152 = arith.constant dense<0.000000e+00> : vector<8x32xf32>
    %491 = tpu.matmul %489, %490, %cst_152 {dimension_numbers = #tpu.dot_dimension_numbers<[1], [0], [0], [1], [0, 0, 1, 1], [], []>} : vector<8x8xf32>, vector<8x32xf32>, vector<8x32xf32> -> vector<8x32xf32>
    %492 = arith.addf %472, %491 : vector<8x32xf32>
    %493 = vector.extract_strided_slice %451 {offsets = [0, 16], sizes = [8, 8], strides = [1, 1]} : vector<8x32xf32> to vector<8x8xf32>
    %494 = vector.extract_strided_slice %452 {offsets = [0, 16], sizes = [8, 8], strides = [1, 1]} : vector<8x32xf32> to vector<8x8xf32>
    %495 = tpu.transpose %494, [1, 0] : vector<8x8xf32> -> vector<8x8xf32>
    %cst_153 = arith.constant dense<0.000000e+00> : vector<8x8xf32>
    %496 = tpu.matmul %493, %495, %cst_153 {dimension_numbers = #tpu.dot_dimension_numbers<[1], [0], [0], [1], [0, 0, 1, 1], [], []>} : vector<8x8xf32>, vector<8x8xf32>, vector<8x8xf32> -> vector<8x8xf32>
    %497 = arith.addf %496, %4 : vector<8x8xf32>
    %cst_154 = arith.constant dense<0xFF800000> : vector<8xf32>
    %498 = vector.multi_reduction <maximumf>, %497, %cst_154 [1] : vector<8x8xf32> to vector<8xf32>
    %499 = vector.shape_cast %498 : vector<8xf32> to vector<8x1xf32>
    %500 = vector.broadcast %499 : vector<8x1xf32> to vector<8x8xf32>
    %501 = arith.subf %497, %500 : vector<8x8xf32>
    %502 = math.exp %501 : vector<8x8xf32>
    %cst_155 = arith.constant dense<0.000000e+00> : vector<8xf32>
    %503 = vector.multi_reduction <add>, %502, %cst_155 [1] : vector<8x8xf32> to vector<8xf32>
    %504 = vector.shape_cast %503 : vector<8xf32> to vector<8x1xf32>
    %505 = tpu.reciprocal %504 {approx = true} : vector<8x1xf32> -> vector<8x1xf32>
    %506 = vector.broadcast %505 : vector<8x1xf32> to vector<8x8xf32>
    %507 = arith.mulf %502, %506 : vector<8x8xf32>
    %508 = vector.extract_strided_slice %453 {offsets = [0, 16], sizes = [8, 8], strides = [1, 1]} : vector<8x32xf32> to vector<8x8xf32>
    %cst_156 = arith.constant dense<0.000000e+00> : vector<8x8xf32>
    %509 = tpu.matmul %507, %508, %cst_156 {dimension_numbers = #tpu.dot_dimension_numbers<[1], [0], [0], [1], [0, 0, 1, 1], [], []>} : vector<8x8xf32>, vector<8x8xf32>, vector<8x8xf32> -> vector<8x8xf32>
    %510 = vector.extract_strided_slice %446 {offsets = [16, 0], sizes = [8, 32], strides = [1, 1]} : vector<32x32xf32> to vector<8x32xf32>
    %cst_157 = arith.constant dense<0.000000e+00> : vector<8x32xf32>
    %511 = tpu.matmul %509, %510, %cst_157 {dimension_numbers = #tpu.dot_dimension_numbers<[1], [0], [0], [1], [0, 0, 1, 1], [], []>} : vector<8x8xf32>, vector<8x32xf32>, vector<8x32xf32> -> vector<8x32xf32>
    %512 = arith.addf %492, %511 : vector<8x32xf32>
    %513 = vector.extract_strided_slice %451 {offsets = [0, 24], sizes = [8, 8], strides = [1, 1]} : vector<8x32xf32> to vector<8x8xf32>
    %514 = vector.extract_strided_slice %452 {offsets = [0, 24], sizes = [8, 8], strides = [1, 1]} : vector<8x32xf32> to vector<8x8xf32>
    %515 = tpu.transpose %514, [1, 0] : vector<8x8xf32> -> vector<8x8xf32>
    %cst_158 = arith.constant dense<0.000000e+00> : vector<8x8xf32>
    %516 = tpu.matmul %513, %515, %cst_158 {dimension_numbers = #tpu.dot_dimension_numbers<[1], [0], [0], [1], [0, 0, 1, 1], [], []>} : vector<8x8xf32>, vector<8x8xf32>, vector<8x8xf32> -> vector<8x8xf32>
    %517 = arith.addf %516, %4 : vector<8x8xf32>
    %cst_159 = arith.constant dense<0xFF800000> : vector<8xf32>
    %518 = vector.multi_reduction <maximumf>, %517, %cst_159 [1] : vector<8x8xf32> to vector<8xf32>
    %519 = vector.shape_cast %518 : vector<8xf32> to vector<8x1xf32>
    %520 = vector.broadcast %519 : vector<8x1xf32> to vector<8x8xf32>
    %521 = arith.subf %517, %520 : vector<8x8xf32>
    %522 = math.exp %521 : vector<8x8xf32>
    %cst_160 = arith.constant dense<0.000000e+00> : vector<8xf32>
    %523 = vector.multi_reduction <add>, %522, %cst_160 [1] : vector<8x8xf32> to vector<8xf32>
    %524 = vector.shape_cast %523 : vector<8xf32> to vector<8x1xf32>
    %525 = tpu.reciprocal %524 {approx = true} : vector<8x1xf32> -> vector<8x1xf32>
    %526 = vector.broadcast %525 : vector<8x1xf32> to vector<8x8xf32>
    %527 = arith.mulf %522, %526 : vector<8x8xf32>
    %528 = vector.extract_strided_slice %453 {offsets = [0, 24], sizes = [8, 8], strides = [1, 1]} : vector<8x32xf32> to vector<8x8xf32>
    %cst_161 = arith.constant dense<0.000000e+00> : vector<8x8xf32>
    %529 = tpu.matmul %527, %528, %cst_161 {dimension_numbers = #tpu.dot_dimension_numbers<[1], [0], [0], [1], [0, 0, 1, 1], [], []>} : vector<8x8xf32>, vector<8x8xf32>, vector<8x8xf32> -> vector<8x8xf32>
    %530 = vector.extract_strided_slice %446 {offsets = [24, 0], sizes = [8, 32], strides = [1, 1]} : vector<32x32xf32> to vector<8x32xf32>
    %cst_162 = arith.constant dense<0.000000e+00> : vector<8x32xf32>
    %531 = tpu.matmul %529, %530, %cst_162 {dimension_numbers = #tpu.dot_dimension_numbers<[1], [0], [0], [1], [0, 0, 1, 1], [], []>} : vector<8x8xf32>, vector<8x32xf32>, vector<8x32xf32> -> vector<8x32xf32>
    %532 = arith.addf %512, %531 : vector<8x32xf32>
    %533 = vector.broadcast %447 : vector<1x32xf32> to vector<8x32xf32>
    %534 = arith.addf %532, %533 : vector<8x32xf32>
    %cst_163 = arith.constant 0.000000e+00 : f32
    %535 = vector.broadcast %cst_163 : f32 to vector<8x32xf32>
    %536 = arith.maximumf %534, %535 : vector<8x32xf32>
    %c1072 = arith.constant 1072 : index
    %c0_164 = arith.constant 0 : index
    %537 = vector.load %arg2[%c1072, %c0_164] : memref<1360x128xf32, #tpu.memory_space<vmem>>, vector<64x96xf32>
    %c1136 = arith.constant 1136 : index
    %c0_165 = arith.constant 0 : index
    %538 = vector.load %arg2[%c1136, %c0_165] : memref<1360x128xf32, #tpu.memory_space<vmem>>, vector<32x32xf32>
    %c1168 = arith.constant 1168 : index
    %c0_166 = arith.constant 0 : index
    %539 = vector.load %arg2[%c1168, %c0_166] : memref<1360x128xf32, #tpu.memory_space<vmem>>, vector<1x32xf32>
    %540 = tpu.concatenate %536, %421 in 1 : vector<8x32xf32>, vector<8x32xf32> -> vector<8x64xf32>
    %cst_167 = arith.constant dense<0.000000e+00> : vector<8x96xf32>
    %541 = tpu.matmul %540, %537, %cst_167 {dimension_numbers = #tpu.dot_dimension_numbers<[1], [0], [0], [1], [0, 0, 1, 1], [], []>} : vector<8x64xf32>, vector<64x96xf32>, vector<8x96xf32> -> vector<8x96xf32>
    %542 = vector.extract_strided_slice %541 {offsets = [0, 0], sizes = [8, 32], strides = [1, 1]} : vector<8x96xf32> to vector<8x32xf32>
    %543 = arith.negf %542 : vector<8x32xf32>
    %544 = math.exp %543 : vector<8x32xf32>
    %cst_168 = arith.constant 1.000000e+00 : f32
    %545 = vector.broadcast %cst_168 : f32 to vector<8x32xf32>
    %546 = arith.addf %545, %544 : vector<8x32xf32>
    %547 = arith.divf %545, %546 : vector<8x32xf32>
    %548 = vector.extract_strided_slice %541 {offsets = [0, 32], sizes = [8, 32], strides = [1, 1]} : vector<8x96xf32> to vector<8x32xf32>
    %549 = vector.broadcast %539 : vector<1x32xf32> to vector<8x32xf32>
    %550 = arith.subf %548, %549 : vector<8x32xf32>
    %551 = arith.negf %550 : vector<8x32xf32>
    %552 = math.exp %551 : vector<8x32xf32>
    %cst_169 = arith.constant 1.000000e+00 : f32
    %553 = vector.broadcast %cst_169 : f32 to vector<8x32xf32>
    %554 = arith.addf %553, %552 : vector<8x32xf32>
    %555 = arith.divf %553, %554 : vector<8x32xf32>
    %556 = vector.extract_strided_slice %541 {offsets = [0, 64], sizes = [8, 32], strides = [1, 1]} : vector<8x96xf32> to vector<8x32xf32>
    %557 = arith.mulf %547, %421 : vector<8x32xf32>
    %cst_170 = arith.constant dense<0.000000e+00> : vector<8x32xf32>
    %558 = tpu.matmul %557, %538, %cst_170 {dimension_numbers = #tpu.dot_dimension_numbers<[1], [0], [0], [1], [0, 0, 1, 1], [], []>} : vector<8x32xf32>, vector<32x32xf32>, vector<8x32xf32> -> vector<8x32xf32>
    %559 = arith.addf %556, %558 : vector<8x32xf32>
    %560 = math.tanh %559 : vector<8x32xf32>
    %cst_171 = arith.constant 1.000000e+00 : f32
    %561 = vector.broadcast %cst_171 : f32 to vector<8x32xf32>
    %562 = arith.subf %561, %555 : vector<8x32xf32>
    %563 = arith.mulf %562, %421 : vector<8x32xf32>
    %564 = arith.mulf %555, %560 : vector<8x32xf32>
    %565 = arith.addf %563, %564 : vector<8x32xf32>
    %cst_172 = arith.constant dense<0.000000e+00> : vector<8xf32>
    %566 = vector.multi_reduction <add>, %3, %cst_172 [1] : vector<8x32xf32> to vector<8xf32>
    %567 = vector.shape_cast %566 : vector<8xf32> to vector<8x1xf32>
    %cst_173 = arith.constant 3.200000e+01 : f32
    %568 = vector.broadcast %cst_173 : f32 to vector<8x1xf32>
    %569 = arith.divf %567, %568 : vector<8x1xf32>
    %570 = vector.broadcast %569 : vector<8x1xf32> to vector<8x32xf32>
    %571 = arith.subf %3, %570 : vector<8x32xf32>
    %572 = arith.mulf %571, %571 : vector<8x32xf32>
    %cst_174 = arith.constant dense<0.000000e+00> : vector<8xf32>
    %573 = vector.multi_reduction <add>, %572, %cst_174 [1] : vector<8x32xf32> to vector<8xf32>
    %574 = vector.shape_cast %573 : vector<8xf32> to vector<8x1xf32>
    %cst_175 = arith.constant 3.200000e+01 : f32
    %575 = vector.broadcast %cst_175 : f32 to vector<8x1xf32>
    %576 = arith.divf %574, %575 : vector<8x1xf32>
    %cst_176 = arith.constant 9.99999974E-6 : f32
    %577 = vector.broadcast %cst_176 : f32 to vector<8x1xf32>
    %578 = arith.addf %576, %577 : vector<8x1xf32>
    %579 = math.rsqrt %578 : vector<8x1xf32>
    %580 = vector.broadcast %579 : vector<8x1xf32> to vector<8x32xf32>
    %581 = arith.mulf %571, %580 : vector<8x32xf32>
    %582 = vector.broadcast %422 : vector<1x32xf32> to vector<8x32xf32>
    %583 = arith.mulf %581, %582 : vector<8x32xf32>
    %584 = vector.broadcast %423 : vector<1x32xf32> to vector<8x32xf32>
    %585 = arith.addf %583, %584 : vector<8x32xf32>
    %c1280 = arith.constant 1280 : index
    %c0_177 = arith.constant 0 : index
    %586 = vector.load %arg2[%c1280, %c0_177] : memref<1360x128xf32, #tpu.memory_space<vmem>>, vector<32x96xf32>
    %c1312 = arith.constant 1312 : index
    %c0_178 = arith.constant 0 : index
    %587 = vector.load %arg2[%c1312, %c0_178] : memref<1360x128xf32, #tpu.memory_space<vmem>>, vector<1x96xf32>
    %c1320 = arith.constant 1320 : index
    %c0_179 = arith.constant 0 : index
    %588 = vector.load %arg2[%c1320, %c0_179] : memref<1360x128xf32, #tpu.memory_space<vmem>>, vector<32x32xf32>
    %c1352 = arith.constant 1352 : index
    %c0_180 = arith.constant 0 : index
    %589 = vector.load %arg2[%c1352, %c0_180] : memref<1360x128xf32, #tpu.memory_space<vmem>>, vector<1x32xf32>
    %590 = tpu.concatenate %565, %585 in 0 : vector<8x32xf32>, vector<8x32xf32> -> vector<16x32xf32>
    %cst_181 = arith.constant dense<0.000000e+00> : vector<16x96xf32>
    %591 = tpu.matmul %590, %586, %cst_181 {dimension_numbers = #tpu.dot_dimension_numbers<[1], [0], [0], [1], [0, 0, 1, 1], [], []>} : vector<16x32xf32>, vector<32x96xf32>, vector<16x96xf32> -> vector<16x96xf32>
    %592 = vector.broadcast %587 : vector<1x96xf32> to vector<16x96xf32>
    %593 = arith.addf %591, %592 : vector<16x96xf32>
    %594 = vector.extract_strided_slice %593 {offsets = [0, 0], sizes = [8, 32], strides = [1, 1]} : vector<16x96xf32> to vector<8x32xf32>
    %595 = vector.extract_strided_slice %593 {offsets = [8, 32], sizes = [8, 32], strides = [1, 1]} : vector<16x96xf32> to vector<8x32xf32>
    %596 = vector.extract_strided_slice %593 {offsets = [8, 64], sizes = [8, 32], strides = [1, 1]} : vector<16x96xf32> to vector<8x32xf32>
    %597 = vector.extract_strided_slice %594 {offsets = [0, 0], sizes = [8, 8], strides = [1, 1]} : vector<8x32xf32> to vector<8x8xf32>
    %598 = vector.extract_strided_slice %595 {offsets = [0, 0], sizes = [8, 8], strides = [1, 1]} : vector<8x32xf32> to vector<8x8xf32>
    %599 = tpu.transpose %598, [1, 0] : vector<8x8xf32> -> vector<8x8xf32>
    %cst_182 = arith.constant dense<0.000000e+00> : vector<8x8xf32>
    %600 = tpu.matmul %597, %599, %cst_182 {dimension_numbers = #tpu.dot_dimension_numbers<[1], [0], [0], [1], [0, 0, 1, 1], [], []>} : vector<8x8xf32>, vector<8x8xf32>, vector<8x8xf32> -> vector<8x8xf32>
    %cst_183 = arith.constant dense<0xFF800000> : vector<8xf32>
    %601 = vector.multi_reduction <maximumf>, %600, %cst_183 [1] : vector<8x8xf32> to vector<8xf32>
    %602 = vector.shape_cast %601 : vector<8xf32> to vector<8x1xf32>
    %603 = vector.broadcast %602 : vector<8x1xf32> to vector<8x8xf32>
    %604 = arith.subf %600, %603 : vector<8x8xf32>
    %605 = math.exp %604 : vector<8x8xf32>
    %cst_184 = arith.constant dense<0.000000e+00> : vector<8xf32>
    %606 = vector.multi_reduction <add>, %605, %cst_184 [1] : vector<8x8xf32> to vector<8xf32>
    %607 = vector.shape_cast %606 : vector<8xf32> to vector<8x1xf32>
    %608 = tpu.reciprocal %607 {approx = true} : vector<8x1xf32> -> vector<8x1xf32>
    %609 = vector.broadcast %608 : vector<8x1xf32> to vector<8x8xf32>
    %610 = arith.mulf %605, %609 : vector<8x8xf32>
    %611 = vector.extract_strided_slice %596 {offsets = [0, 0], sizes = [8, 8], strides = [1, 1]} : vector<8x32xf32> to vector<8x8xf32>
    %cst_185 = arith.constant dense<0.000000e+00> : vector<8x8xf32>
    %612 = tpu.matmul %610, %611, %cst_185 {dimension_numbers = #tpu.dot_dimension_numbers<[1], [0], [0], [1], [0, 0, 1, 1], [], []>} : vector<8x8xf32>, vector<8x8xf32>, vector<8x8xf32> -> vector<8x8xf32>
    %613 = vector.extract_strided_slice %588 {offsets = [0, 0], sizes = [8, 32], strides = [1, 1]} : vector<32x32xf32> to vector<8x32xf32>
    %cst_186 = arith.constant dense<0.000000e+00> : vector<8x32xf32>
    %614 = tpu.matmul %612, %613, %cst_186 {dimension_numbers = #tpu.dot_dimension_numbers<[1], [0], [0], [1], [0, 0, 1, 1], [], []>} : vector<8x8xf32>, vector<8x32xf32>, vector<8x32xf32> -> vector<8x32xf32>
    %615 = vector.extract_strided_slice %594 {offsets = [0, 8], sizes = [8, 8], strides = [1, 1]} : vector<8x32xf32> to vector<8x8xf32>
    %616 = vector.extract_strided_slice %595 {offsets = [0, 8], sizes = [8, 8], strides = [1, 1]} : vector<8x32xf32> to vector<8x8xf32>
    %617 = tpu.transpose %616, [1, 0] : vector<8x8xf32> -> vector<8x8xf32>
    %cst_187 = arith.constant dense<0.000000e+00> : vector<8x8xf32>
    %618 = tpu.matmul %615, %617, %cst_187 {dimension_numbers = #tpu.dot_dimension_numbers<[1], [0], [0], [1], [0, 0, 1, 1], [], []>} : vector<8x8xf32>, vector<8x8xf32>, vector<8x8xf32> -> vector<8x8xf32>
    %cst_188 = arith.constant dense<0xFF800000> : vector<8xf32>
    %619 = vector.multi_reduction <maximumf>, %618, %cst_188 [1] : vector<8x8xf32> to vector<8xf32>
    %620 = vector.shape_cast %619 : vector<8xf32> to vector<8x1xf32>
    %621 = vector.broadcast %620 : vector<8x1xf32> to vector<8x8xf32>
    %622 = arith.subf %618, %621 : vector<8x8xf32>
    %623 = math.exp %622 : vector<8x8xf32>
    %cst_189 = arith.constant dense<0.000000e+00> : vector<8xf32>
    %624 = vector.multi_reduction <add>, %623, %cst_189 [1] : vector<8x8xf32> to vector<8xf32>
    %625 = vector.shape_cast %624 : vector<8xf32> to vector<8x1xf32>
    %626 = tpu.reciprocal %625 {approx = true} : vector<8x1xf32> -> vector<8x1xf32>
    %627 = vector.broadcast %626 : vector<8x1xf32> to vector<8x8xf32>
    %628 = arith.mulf %623, %627 : vector<8x8xf32>
    %629 = vector.extract_strided_slice %596 {offsets = [0, 8], sizes = [8, 8], strides = [1, 1]} : vector<8x32xf32> to vector<8x8xf32>
    %cst_190 = arith.constant dense<0.000000e+00> : vector<8x8xf32>
    %630 = tpu.matmul %628, %629, %cst_190 {dimension_numbers = #tpu.dot_dimension_numbers<[1], [0], [0], [1], [0, 0, 1, 1], [], []>} : vector<8x8xf32>, vector<8x8xf32>, vector<8x8xf32> -> vector<8x8xf32>
    %631 = vector.extract_strided_slice %588 {offsets = [8, 0], sizes = [8, 32], strides = [1, 1]} : vector<32x32xf32> to vector<8x32xf32>
    %cst_191 = arith.constant dense<0.000000e+00> : vector<8x32xf32>
    %632 = tpu.matmul %630, %631, %cst_191 {dimension_numbers = #tpu.dot_dimension_numbers<[1], [0], [0], [1], [0, 0, 1, 1], [], []>} : vector<8x8xf32>, vector<8x32xf32>, vector<8x32xf32> -> vector<8x32xf32>
    %633 = arith.addf %614, %632 : vector<8x32xf32>
    %634 = vector.extract_strided_slice %594 {offsets = [0, 16], sizes = [8, 8], strides = [1, 1]} : vector<8x32xf32> to vector<8x8xf32>
    %635 = vector.extract_strided_slice %595 {offsets = [0, 16], sizes = [8, 8], strides = [1, 1]} : vector<8x32xf32> to vector<8x8xf32>
    %636 = tpu.transpose %635, [1, 0] : vector<8x8xf32> -> vector<8x8xf32>
    %cst_192 = arith.constant dense<0.000000e+00> : vector<8x8xf32>
    %637 = tpu.matmul %634, %636, %cst_192 {dimension_numbers = #tpu.dot_dimension_numbers<[1], [0], [0], [1], [0, 0, 1, 1], [], []>} : vector<8x8xf32>, vector<8x8xf32>, vector<8x8xf32> -> vector<8x8xf32>
    %cst_193 = arith.constant dense<0xFF800000> : vector<8xf32>
    %638 = vector.multi_reduction <maximumf>, %637, %cst_193 [1] : vector<8x8xf32> to vector<8xf32>
    %639 = vector.shape_cast %638 : vector<8xf32> to vector<8x1xf32>
    %640 = vector.broadcast %639 : vector<8x1xf32> to vector<8x8xf32>
    %641 = arith.subf %637, %640 : vector<8x8xf32>
    %642 = math.exp %641 : vector<8x8xf32>
    %cst_194 = arith.constant dense<0.000000e+00> : vector<8xf32>
    %643 = vector.multi_reduction <add>, %642, %cst_194 [1] : vector<8x8xf32> to vector<8xf32>
    %644 = vector.shape_cast %643 : vector<8xf32> to vector<8x1xf32>
    %645 = tpu.reciprocal %644 {approx = true} : vector<8x1xf32> -> vector<8x1xf32>
    %646 = vector.broadcast %645 : vector<8x1xf32> to vector<8x8xf32>
    %647 = arith.mulf %642, %646 : vector<8x8xf32>
    %648 = vector.extract_strided_slice %596 {offsets = [0, 16], sizes = [8, 8], strides = [1, 1]} : vector<8x32xf32> to vector<8x8xf32>
    %cst_195 = arith.constant dense<0.000000e+00> : vector<8x8xf32>
    %649 = tpu.matmul %647, %648, %cst_195 {dimension_numbers = #tpu.dot_dimension_numbers<[1], [0], [0], [1], [0, 0, 1, 1], [], []>} : vector<8x8xf32>, vector<8x8xf32>, vector<8x8xf32> -> vector<8x8xf32>
    %650 = vector.extract_strided_slice %588 {offsets = [16, 0], sizes = [8, 32], strides = [1, 1]} : vector<32x32xf32> to vector<8x32xf32>
    %cst_196 = arith.constant dense<0.000000e+00> : vector<8x32xf32>
    %651 = tpu.matmul %649, %650, %cst_196 {dimension_numbers = #tpu.dot_dimension_numbers<[1], [0], [0], [1], [0, 0, 1, 1], [], []>} : vector<8x8xf32>, vector<8x32xf32>, vector<8x32xf32> -> vector<8x32xf32>
    %652 = arith.addf %633, %651 : vector<8x32xf32>
    %653 = vector.extract_strided_slice %594 {offsets = [0, 24], sizes = [8, 8], strides = [1, 1]} : vector<8x32xf32> to vector<8x8xf32>
    %654 = vector.extract_strided_slice %595 {offsets = [0, 24], sizes = [8, 8], strides = [1, 1]} : vector<8x32xf32> to vector<8x8xf32>
    %655 = tpu.transpose %654, [1, 0] : vector<8x8xf32> -> vector<8x8xf32>
    %cst_197 = arith.constant dense<0.000000e+00> : vector<8x8xf32>
    %656 = tpu.matmul %653, %655, %cst_197 {dimension_numbers = #tpu.dot_dimension_numbers<[1], [0], [0], [1], [0, 0, 1, 1], [], []>} : vector<8x8xf32>, vector<8x8xf32>, vector<8x8xf32> -> vector<8x8xf32>
    %cst_198 = arith.constant dense<0xFF800000> : vector<8xf32>
    %657 = vector.multi_reduction <maximumf>, %656, %cst_198 [1] : vector<8x8xf32> to vector<8xf32>
    %658 = vector.shape_cast %657 : vector<8xf32> to vector<8x1xf32>
    %659 = vector.broadcast %658 : vector<8x1xf32> to vector<8x8xf32>
    %660 = arith.subf %656, %659 : vector<8x8xf32>
    %661 = math.exp %660 : vector<8x8xf32>
    %cst_199 = arith.constant dense<0.000000e+00> : vector<8xf32>
    %662 = vector.multi_reduction <add>, %661, %cst_199 [1] : vector<8x8xf32> to vector<8xf32>
    %663 = vector.shape_cast %662 : vector<8xf32> to vector<8x1xf32>
    %664 = tpu.reciprocal %663 {approx = true} : vector<8x1xf32> -> vector<8x1xf32>
    %665 = vector.broadcast %664 : vector<8x1xf32> to vector<8x8xf32>
    %666 = arith.mulf %661, %665 : vector<8x8xf32>
    %667 = vector.extract_strided_slice %596 {offsets = [0, 24], sizes = [8, 8], strides = [1, 1]} : vector<8x32xf32> to vector<8x8xf32>
    %cst_200 = arith.constant dense<0.000000e+00> : vector<8x8xf32>
    %668 = tpu.matmul %666, %667, %cst_200 {dimension_numbers = #tpu.dot_dimension_numbers<[1], [0], [0], [1], [0, 0, 1, 1], [], []>} : vector<8x8xf32>, vector<8x8xf32>, vector<8x8xf32> -> vector<8x8xf32>
    %669 = vector.extract_strided_slice %588 {offsets = [24, 0], sizes = [8, 32], strides = [1, 1]} : vector<32x32xf32> to vector<8x32xf32>
    %cst_201 = arith.constant dense<0.000000e+00> : vector<8x32xf32>
    %670 = tpu.matmul %668, %669, %cst_201 {dimension_numbers = #tpu.dot_dimension_numbers<[1], [0], [0], [1], [0, 0, 1, 1], [], []>} : vector<8x8xf32>, vector<8x32xf32>, vector<8x32xf32> -> vector<8x32xf32>
    %671 = arith.addf %652, %670 : vector<8x32xf32>
    %672 = vector.broadcast %589 : vector<1x32xf32> to vector<8x32xf32>
    %673 = arith.addf %671, %672 : vector<8x32xf32>
    %cst_202 = arith.constant 0.000000e+00 : f32
    %674 = vector.broadcast %cst_202 : f32 to vector<8x32xf32>
    %675 = arith.maximumf %673, %674 : vector<8x32xf32>
    %c1176 = arith.constant 1176 : index
    %c0_203 = arith.constant 0 : index
    %676 = vector.load %arg2[%c1176, %c0_203] : memref<1360x128xf32, #tpu.memory_space<vmem>>, vector<64x96xf32>
    %c1240 = arith.constant 1240 : index
    %c0_204 = arith.constant 0 : index
    %677 = vector.load %arg2[%c1240, %c0_204] : memref<1360x128xf32, #tpu.memory_space<vmem>>, vector<32x32xf32>
    %c1272 = arith.constant 1272 : index
    %c0_205 = arith.constant 0 : index
    %678 = vector.load %arg2[%c1272, %c0_205] : memref<1360x128xf32, #tpu.memory_space<vmem>>, vector<1x32xf32>
    %679 = tpu.concatenate %675, %565 in 1 : vector<8x32xf32>, vector<8x32xf32> -> vector<8x64xf32>
    %cst_206 = arith.constant dense<0.000000e+00> : vector<8x96xf32>
    %680 = tpu.matmul %679, %676, %cst_206 {dimension_numbers = #tpu.dot_dimension_numbers<[1], [0], [0], [1], [0, 0, 1, 1], [], []>} : vector<8x64xf32>, vector<64x96xf32>, vector<8x96xf32> -> vector<8x96xf32>
    %681 = vector.extract_strided_slice %680 {offsets = [0, 0], sizes = [8, 32], strides = [1, 1]} : vector<8x96xf32> to vector<8x32xf32>
    %682 = arith.negf %681 : vector<8x32xf32>
    %683 = math.exp %682 : vector<8x32xf32>
    %cst_207 = arith.constant 1.000000e+00 : f32
    %684 = vector.broadcast %cst_207 : f32 to vector<8x32xf32>
    %685 = arith.addf %684, %683 : vector<8x32xf32>
    %686 = arith.divf %684, %685 : vector<8x32xf32>
    %687 = vector.extract_strided_slice %680 {offsets = [0, 32], sizes = [8, 32], strides = [1, 1]} : vector<8x96xf32> to vector<8x32xf32>
    %688 = vector.broadcast %678 : vector<1x32xf32> to vector<8x32xf32>
    %689 = arith.subf %687, %688 : vector<8x32xf32>
    %690 = arith.negf %689 : vector<8x32xf32>
    %691 = math.exp %690 : vector<8x32xf32>
    %cst_208 = arith.constant 1.000000e+00 : f32
    %692 = vector.broadcast %cst_208 : f32 to vector<8x32xf32>
    %693 = arith.addf %692, %691 : vector<8x32xf32>
    %694 = arith.divf %692, %693 : vector<8x32xf32>
    %695 = vector.extract_strided_slice %680 {offsets = [0, 64], sizes = [8, 32], strides = [1, 1]} : vector<8x96xf32> to vector<8x32xf32>
    %696 = arith.mulf %686, %565 : vector<8x32xf32>
    %cst_209 = arith.constant dense<0.000000e+00> : vector<8x32xf32>
    %697 = tpu.matmul %696, %677, %cst_209 {dimension_numbers = #tpu.dot_dimension_numbers<[1], [0], [0], [1], [0, 0, 1, 1], [], []>} : vector<8x32xf32>, vector<32x32xf32>, vector<8x32xf32> -> vector<8x32xf32>
    %698 = arith.addf %695, %697 : vector<8x32xf32>
    %699 = math.tanh %698 : vector<8x32xf32>
    %cst_210 = arith.constant 1.000000e+00 : f32
    %700 = vector.broadcast %cst_210 : f32 to vector<8x32xf32>
    %701 = arith.subf %700, %694 : vector<8x32xf32>
    %702 = arith.mulf %701, %565 : vector<8x32xf32>
    %703 = arith.mulf %694, %699 : vector<8x32xf32>
    %704 = arith.addf %702, %703 : vector<8x32xf32>
    %cst_211 = arith.constant dense<0.000000e+00> : vector<8xf32>
    %705 = vector.multi_reduction <add>, %704, %cst_211 [1] : vector<8x32xf32> to vector<8xf32>
    %706 = vector.shape_cast %705 : vector<8xf32> to vector<8x1xf32>
    %cst_212 = arith.constant 3.200000e+01 : f32
    %707 = vector.broadcast %cst_212 : f32 to vector<8x1xf32>
    %708 = arith.divf %706, %707 : vector<8x1xf32>
    %709 = vector.broadcast %708 : vector<8x1xf32> to vector<8x32xf32>
    %710 = arith.subf %704, %709 : vector<8x32xf32>
    %711 = arith.mulf %710, %710 : vector<8x32xf32>
    %cst_213 = arith.constant dense<0.000000e+00> : vector<8xf32>
    %712 = vector.multi_reduction <add>, %711, %cst_213 [1] : vector<8x32xf32> to vector<8xf32>
    %713 = vector.shape_cast %712 : vector<8xf32> to vector<8x1xf32>
    %cst_214 = arith.constant 3.200000e+01 : f32
    %714 = vector.broadcast %cst_214 : f32 to vector<8x1xf32>
    %715 = arith.divf %713, %714 : vector<8x1xf32>
    %cst_215 = arith.constant 9.99999974E-6 : f32
    %716 = vector.broadcast %cst_215 : f32 to vector<8x1xf32>
    %717 = arith.addf %715, %716 : vector<8x1xf32>
    %718 = math.rsqrt %717 : vector<8x1xf32>
    %719 = vector.broadcast %718 : vector<8x1xf32> to vector<8x32xf32>
    %720 = arith.mulf %710, %719 : vector<8x32xf32>
    %721 = vector.broadcast %422 : vector<1x32xf32> to vector<8x32xf32>
    %722 = arith.mulf %720, %721 : vector<8x32xf32>
    %723 = vector.broadcast %423 : vector<1x32xf32> to vector<8x32xf32>
    %724 = arith.addf %722, %723 : vector<8x32xf32>
    %c960 = arith.constant 960 : index
    %c0_216 = arith.constant 0 : index
    %725 = vector.load %arg2[%c960, %c0_216] : memref<1360x128xf32, #tpu.memory_space<vmem>>, vector<32x64xf32>
    %c992 = arith.constant 992 : index
    %c0_217 = arith.constant 0 : index
    %726 = vector.load %arg2[%c992, %c0_217] : memref<1360x128xf32, #tpu.memory_space<vmem>>, vector<1x64xf32>
    %c1000 = arith.constant 1000 : index
    %c0_218 = arith.constant 0 : index
    %727 = vector.load %arg2[%c1000, %c0_218] : memref<1360x128xf32, #tpu.memory_space<vmem>>, vector<64x32xf32>
    %c1064 = arith.constant 1064 : index
    %c0_219 = arith.constant 0 : index
    %728 = vector.load %arg2[%c1064, %c0_219] : memref<1360x128xf32, #tpu.memory_space<vmem>>, vector<1x32xf32>
    %cst_220 = arith.constant dense<0.000000e+00> : vector<8x64xf32>
    %729 = tpu.matmul %724, %725, %cst_220 {dimension_numbers = #tpu.dot_dimension_numbers<[1], [0], [0], [1], [0, 0, 1, 1], [], []>} : vector<8x32xf32>, vector<32x64xf32>, vector<8x64xf32> -> vector<8x64xf32>
    %730 = vector.broadcast %726 : vector<1x64xf32> to vector<8x64xf32>
    %731 = arith.addf %729, %730 : vector<8x64xf32>
    %cst_221 = arith.constant 0.000000e+00 : f32
    %732 = vector.broadcast %cst_221 : f32 to vector<8x64xf32>
    %733 = arith.maximumf %731, %732 : vector<8x64xf32>
    %cst_222 = arith.constant dense<0.000000e+00> : vector<8x32xf32>
    %734 = tpu.matmul %733, %727, %cst_222 {dimension_numbers = #tpu.dot_dimension_numbers<[1], [0], [0], [1], [0, 0, 1, 1], [], []>} : vector<8x64xf32>, vector<64x32xf32>, vector<8x32xf32> -> vector<8x32xf32>
    %735 = vector.broadcast %728 : vector<1x32xf32> to vector<8x32xf32>
    %736 = arith.addf %734, %735 : vector<8x32xf32>
    %cst_223 = arith.constant 0.000000e+00 : f32
    %737 = vector.broadcast %cst_223 : f32 to vector<8x32xf32>
    %738 = arith.maximumf %736, %737 : vector<8x32xf32>
    %c1176_224 = arith.constant 1176 : index
    %c0_225 = arith.constant 0 : index
    %739 = vector.load %arg2[%c1176_224, %c0_225] : memref<1360x128xf32, #tpu.memory_space<vmem>>, vector<64x96xf32>
    %c1240_226 = arith.constant 1240 : index
    %c0_227 = arith.constant 0 : index
    %740 = vector.load %arg2[%c1240_226, %c0_227] : memref<1360x128xf32, #tpu.memory_space<vmem>>, vector<32x32xf32>
    %c1272_228 = arith.constant 1272 : index
    %c0_229 = arith.constant 0 : index
    %741 = vector.load %arg2[%c1272_228, %c0_229] : memref<1360x128xf32, #tpu.memory_space<vmem>>, vector<1x32xf32>
    %742 = tpu.concatenate %738, %704 in 1 : vector<8x32xf32>, vector<8x32xf32> -> vector<8x64xf32>
    %cst_230 = arith.constant dense<0.000000e+00> : vector<8x96xf32>
    %743 = tpu.matmul %742, %739, %cst_230 {dimension_numbers = #tpu.dot_dimension_numbers<[1], [0], [0], [1], [0, 0, 1, 1], [], []>} : vector<8x64xf32>, vector<64x96xf32>, vector<8x96xf32> -> vector<8x96xf32>
    %744 = vector.extract_strided_slice %743 {offsets = [0, 0], sizes = [8, 32], strides = [1, 1]} : vector<8x96xf32> to vector<8x32xf32>
    %745 = arith.negf %744 : vector<8x32xf32>
    %746 = math.exp %745 : vector<8x32xf32>
    %cst_231 = arith.constant 1.000000e+00 : f32
    %747 = vector.broadcast %cst_231 : f32 to vector<8x32xf32>
    %748 = arith.addf %747, %746 : vector<8x32xf32>
    %749 = arith.divf %747, %748 : vector<8x32xf32>
    %750 = vector.extract_strided_slice %743 {offsets = [0, 32], sizes = [8, 32], strides = [1, 1]} : vector<8x96xf32> to vector<8x32xf32>
    %751 = vector.broadcast %741 : vector<1x32xf32> to vector<8x32xf32>
    %752 = arith.subf %750, %751 : vector<8x32xf32>
    %753 = arith.negf %752 : vector<8x32xf32>
    %754 = math.exp %753 : vector<8x32xf32>
    %cst_232 = arith.constant 1.000000e+00 : f32
    %755 = vector.broadcast %cst_232 : f32 to vector<8x32xf32>
    %756 = arith.addf %755, %754 : vector<8x32xf32>
    %757 = arith.divf %755, %756 : vector<8x32xf32>
    %758 = vector.extract_strided_slice %743 {offsets = [0, 64], sizes = [8, 32], strides = [1, 1]} : vector<8x96xf32> to vector<8x32xf32>
    %759 = arith.mulf %749, %704 : vector<8x32xf32>
    %cst_233 = arith.constant dense<0.000000e+00> : vector<8x32xf32>
    %760 = tpu.matmul %759, %740, %cst_233 {dimension_numbers = #tpu.dot_dimension_numbers<[1], [0], [0], [1], [0, 0, 1, 1], [], []>} : vector<8x32xf32>, vector<32x32xf32>, vector<8x32xf32> -> vector<8x32xf32>
    %761 = arith.addf %758, %760 : vector<8x32xf32>
    %762 = math.tanh %761 : vector<8x32xf32>
    %cst_234 = arith.constant 1.000000e+00 : f32
    %763 = vector.broadcast %cst_234 : f32 to vector<8x32xf32>
    %764 = arith.subf %763, %757 : vector<8x32xf32>
    %765 = arith.mulf %764, %704 : vector<8x32xf32>
    %766 = arith.mulf %757, %762 : vector<8x32xf32>
    %767 = arith.addf %765, %766 : vector<8x32xf32>
    %c0_235 = arith.constant 0 : index
    %c0_236 = arith.constant 0 : index
    %768 = vector.load %arg3[%c0_235, %c0_236] : memref<8x32xf32, #tpu.memory_space<vmem>>, vector<8x32xf32>
    tpu.vector_store %arg3[%c0_235, %c0_236], %767 {strides = array<i32>} : memref<8x32xf32, #tpu.memory_space<vmem>>, vector<8x32xf32>,
    return
  }
}

</mosaic_0001>

<llo_original>
// kernel: _decoder_forward.1
$region0: #{_decoder_forward.1}
  #allocation0 [shape = 'u32[]', space=smem, size = 0x4, offset = 0x4, fixed_abs, tag = 'smem constant byte address 0x4 - core index']
  #allocation1 [shape = 'u32[144,128]{1,0:T(1,128)}', space=vmem, size = 0x12000, scoped, tag = 'internal scratch']
  %s0 = inlined_call_operand.hbm [shape: f32[8,32], index: 0, kind: input, shape index: {}]
  %s1 = inlined_call_operand.hbm [shape: f32[8,32], index: 1, kind: input, shape index: {}]
  %s2 = inlined_call_operand.hbm [shape: f32[1360,128], index: 2, kind: input, shape index: {}]
  %s3 = inlined_call_operand.hbm [shape: f32[8,32], index: 3, kind: output, shape index: {}]
  %s4 = sld [smem:[#allocation0]]
  $region34: #{_decoder_forward.1} parent=0
    _
  %s6 = ssub.s32 1, %s4
  %s7 = scalar_select 0, %s6, %s4
  $region1: #{_decoder_forward.1} parent=0
    #allocation2 [shape = 'u8[4096]{0}', space=vmem, size = 0x1000, scoped, tag = 'input window, operand 0, single buffered']
    #allocation3 [shape = 's32[1]{0}', space=sflag, size = 0x4, scoped, tag = 'scoped memory for _decoder_forward.1']
    #allocation4 [shape = 's32[1]{0}', space=sflag, size = 0x4, scoped, tag = 'scoped memory for _decoder_forward.1']
    #allocation5 [shape = 'u8[4096]{0}', space=vmem, size = 0x1000, scoped, tag = 'input window, operand 1, single buffered']
    #allocation6 [shape = 's32[1]{0}', space=sflag, size = 0x4, scoped, tag = 'scoped memory for _decoder_forward.1']
    #allocation7 [shape = 'u8[696320]{0}', space=vmem, size = 0xaa000, scoped, tag = 'input window, operand 2, single buffered']
    #allocation8 [shape = 'u8[4096]{0}', space=vmem, size = 0x1000, scoped, tag = 'output window, operand 0, single buffered']
    %8 = vsyncpa [#allocation3], 0
    %9 = vsyncpa [#allocation6], 0
    %10 = vsyncpa [#allocation4], 0
    // Predicated region
    $region2: #{_decoder_forward.1} parent=1 // pred_check
      _
    $region3: #{_decoder_forward.1} parent=1 // pred_check_branch
      %12 = sbr.rel (0) target = $region5
    $region4: #{_decoder_forward.1} parent=1 // pred_region
      %s14 = ssub.s32 128, 128
      %15 = vsyncadd [#allocation3], %s14
      %s17 = sshll.u32 [#allocation2], 4
      %s18 = int_to_ptr.vmem [resolvable:$true] %s17
      %20 = dma.hbm_to_vmem [thread:$0]  %s0, 128, %s18, [#allocation3]
    $region5: #{_decoder_forward.1} parent=1 // pred_fallthru
      _
    // Predicated region
    $region6: #{_decoder_forward.1} parent=1 // pred_check
      _
    $region7: #{_decoder_forward.1} parent=1 // pred_check_branch
      %22 = sbr.rel (0) target = $region9
    $region8: #{_decoder_forward.1} parent=1 // pred_region
      %s24 = ssub.s32 128, 128
      %25 = vsyncadd [#allocation6], %s24
      %s27 = sshll.u32 [#allocation5], 4
      %s28 = int_to_ptr.vmem [resolvable:$true] %s27
      %30 = dma.hbm_to_vmem [thread:$0]  %s1, 128, %s28, [#allocation6]
    $region9: #{_decoder_forward.1} parent=1 // pred_fallthru
      _
    // Predicated region
    $region10: #{_decoder_forward.1} parent=1 // pred_check
      _
    $region11: #{_decoder_forward.1} parent=1 // pred_check_branch
      %32 = sbr.rel (0) target = $region13
    $region12: #{_decoder_forward.1} parent=1 // pred_region
      %s34 = ssub.s32 21760, 21760
      %35 = vsyncadd [#allocation6], %s34
      %s36 = sshll.u32 [#allocation7], 4
      %s37 = int_to_ptr.vmem [resolvable:$true] %s36
      %42 = dma.hbm_to_vmem [thread:$0]  %s2, 21760, %s37, [#allocation6], 128, 128, 8
    $region13: #{_decoder_forward.1} parent=1 // pred_fallthru
      _
    // Predicated region
    $region14: #{_decoder_forward.1} parent=1 // pred_check
      _
    $region15: #{_decoder_forward.1} parent=1 // pred_check_branch
      %44 = sbr.rel (0) target = $region17
    $region16: #{_decoder_forward.1} parent=1 // pred_region
      %45 = dma.done [#allocation3], 128
    $region17: #{_decoder_forward.1} parent=1 // pred_fallthru
      _
    // Predicated region
    $region18: #{_decoder_forward.1} parent=1 // pred_check
      _
    $region19: #{_decoder_forward.1} parent=1 // pred_check_branch
      %47 = sbr.rel (0) target = $region21
    $region20: #{_decoder_forward.1} parent=1 // pred_region
      %48 = dma.done [#allocation6], 128
    $region21: #{_decoder_forward.1} parent=1 // pred_fallthru
      _
    // Predicated region
    $region22: #{_decoder_forward.1} parent=1 // pred_check
      _
    $region23: #{_decoder_forward.1} parent=1 // pred_check_branch
      %50 = sbr.rel (0) target = $region25
    $region24: #{_decoder_forward.1} parent=1 // pred_region
      %51 = dma.done [#allocation6], 21760
    $region25: #{_decoder_forward.1} parent=1 // pred_fallthru
      _
    %v52 = vld [vmem:[#allocation2] sm:$0xff]
    %v53 = vld [vmem:[#allocation7] sm:$0xff]
    %v54 = vadd.f32 %v52, %v53
    %v55 = vld [vmem:[#allocation5] sm:$0xff]
    %v56 = vld [vmem:[#allocation7 + $0x8] sm:$0xff]
    %v57 = vld [vmem:[#allocation7 + $0x10] sm:$0xff]
    %v58 = vld [vmem:[#allocation7 + $0x18] sm:$0x1]
    %v59 = vld [vmem:[#allocation7 + $0x20] sm:$0x1]
    %vm60 = vcmask 261120
    %v61 = vsel %vm60, %v54, 0.0
    %62 = vadd.xlane.f32.xlu0 %v61
    %v63 = vpop.xlane.xlu0 %62
    %v64 = vrcp.pop 32.0
    %v65 = vmul.f32 %v63, %v64
    %v66 = vsub.f32 %v54, %v65
    %v67 = vmul.f32 %v66, %v66
    %v68 = vsel %vm60, %v67, 0.0
    %69 = vadd.xlane.f32.xlu0 %v68
    %v70 = vpop.xlane.xlu0 %69
    %v71 = vmul.f32 %v70, %v64
    %v72 = vadd.f32 %v71, 1e-05
    %v73 = vrsqrt.pop %v72
    %v74 = vmul.f32 %v66, %v73
    %v75 = vlaneseq
    %v76 = vshrl.u32 %v75, 7
    %v77 = vsub.s32 0, %v76
    %v78 = vrot.slane %v58, %v77
    %v79 = vmul.f32 %v74, %v78
    %v80 = vlaneseq
    %v81 = vshrl.u32 %v80, 7
    %v82 = vsub.s32 0, %v81
    %v83 = vrot.slane %v59, %v82
    %v84 = vadd.f32 %v79, %v83
    %v85 = vld [vmem:[#allocation7 + $0x28] sm:$0xff]
    %v86 = vld [vmem:[#allocation7 + $0x30] sm:$0xff]
    %v87 = vld [vmem:[#allocation7 + $0x38] sm:$0xff]
    %v88 = vld [vmem:[#allocation7 + $0x40] sm:$0xff]
    %v89 = vld [vmem:[#allocation7 + $0x48] sm:$0x1]
    %v90 = vld [vmem:[#allocation7 + $0x50] sm:$0xff]
    %v91 = vld [vmem:[#allocation7 + $0x58] sm:$0xff]
    %v92 = vld [vmem:[#allocation7 + $0x60] sm:$0xff]
    %v93 = vld [vmem:[#allocation7 + $0x68] sm:$0xff]
    %v94 = vld [vmem:[#allocation7 + $0x70] sm:$0x1]
    %v95 = vlaneseq
    %v96 = vshrl.u32 %v95, 7
    %v97 = vsub.s32 0, %v96
    %v98 = vrot.slane %v89, %v97
    %v100 = vsel %vm60, %v84, 0
    %102 = vmatprep.subr.mxu0 0.0
    %103 = vmatpush1.msra.mxu0 %v85
    %104 = vmatprep.subr.mxu0 0.0
    %105 = vmatpush1.msra.mxu0 %v86
    %106 = vmatprep.subr.mxu0 0.0
    %107 = vmatpush1.msra.mxu0 %v87
    %108 = vmatprep.subr.mxu0 0.0
    %109 = vmatpush1.msra.mxu0 %v88
    %110 = vmatprep.subr.mxu0 0.0
    %111 = vmatpush1.msra.mxu0 0.0
    %112 = vmatprep.subr.mxu0 0.0
    %113 = vmatpush1.msra.mxu0 0.0
    %114 = vmatprep.subr.mxu0 0.0
    %115 = vmatpush1.msra.mxu0 0.0
    %116 = vmatprep.subr.mxu0 0.0
    %117 = vmatpush1.msra.mxu0 0.0
    %118 = vmatprep.subr.mxu0 0.0
    %119 = vmatpush1.msra.mxu0 0.0
    %120 = vmatprep.subr.mxu0 0.0
    %121 = vmatpush1.msra.mxu0 0.0
    %122 = vmatprep.subr.mxu0 0.0
    %123 = vmatpush1.msra.mxu0 0.0
    %124 = vmatprep.subr.mxu0 0.0
    %125 = vmatpush1.msra.mxu0 0.0
    %126 = vmatprep.subr.mxu0 0.0
    %127 = vmatpush1.msra.mxu0 0.0
    %128 = vmatprep.subr.mxu0 0.0
    %129 = vmatpush1.msra.mxu0 0.0
    %130 = vmatprep.subr.mxu0 0.0
    %131 = vmatpush1.msra.mxu0 0.0
    %132 = vmatprep.subr.mxu0 0.0
    %133 = vmatpush1.msra.mxu0 0.0
    %134 = vmatprep.subr.mxu0 0.0
    %135 = vmatpush1.msra.mxu0 0.0
    %136 = vmatprep.subr.mxu0 0.0
    %137 = vmatpush1.msra.mxu0 0.0
    %138 = vmatprep.subr.mxu0 0.0
    %139 = vmatpush1.msra.mxu0 0.0
    %140 = vmatprep.subr.mxu0 0.0
    %141 = vmatpush1.msra.mxu0 0.0
    %142 = vmatprep.subr.mxu0 0.0
    %143 = vmatpush1.msra.mxu0 0.0
    %144 = vmatprep.subr.mxu0 0.0
    %145 = vmatpush1.msra.mxu0 0.0
    %146 = vmatprep.subr.mxu0 0.0
    %147 = vmatpush1.msra.mxu0 0.0
    %148 = vmatprep.subr.mxu0 0.0
    %149 = vmatpush1.msra.mxu0 0.0
    %150 = vmatprep.subr.mxu0 0.0
    %151 = vmatpush1.msra.mxu0 0.0
    %152 = vmatprep.subr.mxu0 0.0
    %153 = vmatpush1.msra.mxu0 0.0
    %154 = vmatprep.subr.mxu0 0.0
    %155 = vmatpush1.msra.mxu0 0.0
    %156 = vmatprep.subr.mxu0 0.0
    %157 = vmatpush1.msra.mxu0 0.0
    %158 = vmatprep.subr.mxu0 0.0
    %159 = vmatpush1.msra.mxu0 0.0
    %160 = vmatprep.subr.mxu0 0.0
    %161 = vmatpush1.msra.mxu0 0.0
    %162 = vmatprep.subr.mxu0 0.0
    %163 = vmatpush1.msra.mxu0 0.0
    %164 = vmatprep.subr.mxu0 0.0
    %165 = vmatpush1.msra.mxu0 0.0
    %166 = vmatprep.mubr.f32.mxu0 0.0
    %167 = vmatmul.mubr.f32.gmra.mrb[0].mxu0 %v100
    %v168 = vpop.f32.mrb[0].mxu0
    %v169 = vadd.f32 %v98, %v168
    %v170 = vpop.f32.mrb[0].mxu0
    %171 = vdwg.mxu0
    %173 = vrot.lane.b32.xlu0 %v169, 96
    %v174 = vpop.permute.xlu0 %173
    %vm175 = vcmask 64512
    %v176 = vsel %vm175, %v169, 0
    %v178 = vsel %vm175, %v174, 0
    %180 = vmatprep.subr.mxu0 0.0
    %181 = vmatpush1.xpose.msra.mxu0 %v178
    %182 = vmatprep.subr.mxu0 0.0
    %183 = vmatpush1.xpose.msra.mxu0 0.0
    %184 = vmatprep.subr.mxu0 0.0
    %185 = vmatpush1.xpose.msra.mxu0 0.0
    %186 = vmatprep.subr.mxu0 0.0
    %187 = vmatpush1.xpose.msra.mxu0 0.0
    %188 = vmatprep.subr.mxu0 0.0
    %189 = vmatpush1.xpose.msra.mxu0 0.0
    %190 = vmatprep.subr.mxu0 0.0
    %191 = vmatpush1.xpose.msra.mxu0 0.0
    %192 = vmatprep.subr.mxu0 0.0
    %193 = vmatpush1.xpose.msra.mxu0 0.0
    %194 = vmatprep.subr.mxu0 0.0
    %195 = vmatpush1.xpose.msra.mxu0 0.0
    %196 = vmatprep.subr.mxu0 0.0
    %197 = vmatpush1.xpose.msra.mxu0 0.0
    %198 = vmatprep.subr.mxu0 0.0
    %199 = vmatpush1.xpose.msra.mxu0 0.0
    %200 = vmatprep.subr.mxu0 0.0
    %201 = vmatpush1.xpose.msra.mxu0 0.0
    %202 = vmatprep.subr.mxu0 0.0
    %203 = vmatpush1.xpose.msra.mxu0 0.0
    %204 = vmatprep.subr.mxu0 0.0
    %205 = vmatpush1.xpose.msra.mxu0 0.0
    %206 = vmatprep.subr.mxu0 0.0
    %207 = vmatpush1.xpose.msra.mxu0 0.0
    %208 = vmatprep.subr.mxu0 0.0
    %209 = vmatpush1.xpose.msra.mxu0 0.0
    %210 = vmatprep.subr.mxu0 0.0
    %211 = vmatpush1.xpose.msra.mxu0 0.0
    %212 = vmatprep.subr.mxu0 0.0
    %213 = vmatpush1.xpose.msra.mxu0 0.0
    %214 = vmatprep.subr.mxu0 0.0
    %215 = vmatpush1.xpose.msra.mxu0 0.0
    %216 = vmatprep.subr.mxu0 0.0
    %217 = vmatpush1.xpose.msra.mxu0 0.0
    %218 = vmatprep.subr.mxu0 0.0
    %219 = vmatpush1.xpose.msra.mxu0 0.0
    %220 = vmatprep.subr.mxu0 0.0
    %221 = vmatpush1.xpose.msra.mxu0 0.0
    %222 = vmatprep.subr.mxu0 0.0
    %223 = vmatpush1.xpose.msra.mxu0 0.0
    %224 = vmatprep.subr.mxu0 0.0
    %225 = vmatpush1.xpose.msra.mxu0 0.0
    %226 = vmatprep.subr.mxu0 0.0
    %227 = vmatpush1.xpose.msra.mxu0 0.0
    %228 = vmatprep.subr.mxu0 0.0
    %229 = vmatpush1.xpose.msra.mxu0 0.0
    %230 = vmatprep.subr.mxu0 0.0
    %231 = vmatpush1.xpose.msra.mxu0 0.0
    %232 = vmatprep.subr.mxu0 0.0
    %233 = vmatpush1.xpose.msra.mxu0 0.0
    %234 = vmatprep.subr.mxu0 0.0
    %235 = vmatpush1.xpose.msra.mxu0 0.0
    %236 = vmatprep.subr.mxu0 0.0
    %237 = vmatpush1.xpose.msra.mxu0 0.0
    %238 = vmatprep.subr.mxu0 0.0
    %239 = vmatpush1.xpose.msra.mxu0 0.0
    %240 = vmatprep.subr.mxu0 0.0
    %241 = vmatpush1.xpose.msra.mxu0 0.0
    %242 = vmatprep.subr.mxu0 0.0
    %243 = vmatpush1.xpose.msra.mxu0 0.0
    %244 = vmatprep.mubr.f32.mxu0 0.0
    %245 = vmatmul.mubr.f32.gmra.mrb[0].mxu0 %v176
    %v246 = vpop.f32.mrb[0].mxu0
    %v247 = vadd.f32 %v56, %v246
    %v248 = vpop.f32.mrb[0].mxu0
    %249 = vdwg.mxu0
    %v250 = vsel %vm175, %v247, -inf
    %251 = vmax.xlane.f32.xlu0 %v250
    %v252 = vpop.xlane.xlu0 %251
    %v253 = vsub.f32 %v247, %v252
    %v254 = vmul.f32 %v253, 1.442695
    %v255 = vpow.pop %v254
    %v256 = vsel %vm175, %v255, 0.0
    %257 = vadd.xlane.f32.xlu0 %v256
    %v258 = vpop.xlane.xlu0 %257
    %v259 = vrcp.pop %v258
    %v260 = vmul.f32 %v255, %v259
    %261 = vrot.lane.b32.xlu0 %v169, 64
    %v262 = vpop.permute.xlu0 %261
    %v265 = vsel %vm175, %v260, 0
    %267 = vmatprep.subr.mxu0 0.0
    %268 = vmatpush1.msra.mxu0 %v262
    %269 = vmatprep.subr.mxu0 0.0
    %270 = vmatpush1.msra.mxu0 0.0
    %271 = vmatprep.subr.mxu0 0.0
    %272 = vmatpush1.msra.mxu0 0.0
    %273 = vmatprep.subr.mxu0 0.0
    %274 = vmatpush1.msra.mxu0 0.0
    %275 = vmatprep.subr.mxu0 0.0
    %276 = vmatpush1.msra.mxu0 0.0
    %277 = vmatprep.subr.mxu0 0.0
    %278 = vmatpush1.msra.mxu0 0.0
    %279 = vmatprep.subr.mxu0 0.0
    %280 = vmatpush1.msra.mxu0 0.0
    %281 = vmatprep.subr.mxu0 0.0
    %282 = vmatpush1.msra.mxu0 0.0
    %283 = vmatprep.subr.mxu0 0.0
    %284 = vmatpush1.msra.mxu0 0.0
    %285 = vmatprep.subr.mxu0 0.0
    %286 = vmatpush1.msra.mxu0 0.0
    %287 = vmatprep.subr.mxu0 0.0
    %288 = vmatpush1.msra.mxu0 0.0
    %289 = vmatprep.subr.mxu0 0.0
    %290 = vmatpush1.msra.mxu0 0.0
    %291 = vmatprep.subr.mxu0 0.0
    %292 = vmatpush1.msra.mxu0 0.0
    %293 = vmatprep.subr.mxu0 0.0
    %294 = vmatpush1.msra.mxu0 0.0
    %295 = vmatprep.subr.mxu0 0.0
    %296 = vmatpush1.msra.mxu0 0.0
    %297 = vmatprep.subr.mxu0 0.0
    %298 = vmatpush1.msra.mxu0 0.0
    %299 = vmatprep.subr.mxu0 0.0
    %300 = vmatpush1.msra.mxu0 0.0
    %301 = vmatprep.subr.mxu0 0.0
    %302 = vmatpush1.msra.mxu0 0.0
    %303 = vmatprep.subr.mxu0 0.0
    %304 = vmatpush1.msra.mxu0 0.0
    %305 = vmatprep.subr.mxu0 0.0
    %306 = vmatpush1.msra.mxu0 0.0
    %307 = vmatprep.subr.mxu0 0.0
    %308 = vmatpush1.msra.mxu0 0.0
    %309 = vmatprep.subr.mxu0 0.0
    %310 = vmatpush1.msra.mxu0 0.0
    %311 = vmatprep.subr.mxu0 0.0
    %312 = vmatpush1.msra.mxu0 0.0
    %313 = vmatprep.subr.mxu0 0.0
    %314 = vmatpush1.msra.mxu0 0.0
    %315 = vmatprep.subr.mxu0 0.0
    %316 = vmatpush1.msra.mxu0 0.0
    %317 = vmatprep.subr.mxu0 0.0
    %318 = vmatpush1.msra.mxu0 0.0
    %319 = vmatprep.subr.mxu0 0.0
    %320 = vmatpush1.msra.mxu0 0.0
    %321 = vmatprep.subr.mxu0 0.0
    %322 = vmatpush1.msra.mxu0 0.0
    %323 = vmatprep.subr.mxu0 0.0
    %324 = vmatpush1.msra.mxu0 0.0
    %325 = vmatprep.subr.mxu0 0.0
    %326 = vmatpush1.msra.mxu0 0.0
    %327 = vmatprep.subr.mxu0 0.0
    %328 = vmatpush1.msra.mxu0 0.0
    %329 = vmatprep.subr.mxu0 0.0
    %330 = vmatpush1.msra.mxu0 0.0
    %331 = vmatprep.mubr.f32.mxu0 0.0
    %332 = vmatmul.mubr.f32.gmra.mrb[0].mxu0 %v265
    %v333 = vpop.f32.mrb[0].mxu0
    %v334 = vadd.f32 0.0, %v333
    %v335 = vpop.f32.mrb[0].mxu0
    %336 = vdwg.mxu0
    %337 = vrot.lane.b32.xlu0 %v169, 120
    %v338 = vpop.permute.xlu0 %337
    %339 = vrot.lane.b32.xlu0 %v169, 88
    %v340 = vpop.permute.xlu0 %339
    %v341 = vsel %vm175, %v338, 0
    %v343 = vsel %vm175, %v340, 0
    %345 = vmatprep.subr.mxu0 0.0
    %346 = vmatpush1.xpose.msra.mxu0 %v343
    %347 = vmatprep.subr.mxu0 0.0
    %348 = vmatpush1.xpose.msra.mxu0 0.0
    %349 = vmatprep.subr.mxu0 0.0
    %350 = vmatpush1.xpose.msra.mxu0 0.0
    %351 = vmatprep.subr.mxu0 0.0
    %352 = vmatpush1.xpose.msra.mxu0 0.0
    %353 = vmatprep.subr.mxu0 0.0
    %354 = vmatpush1.xpose.msra.mxu0 0.0
    %355 = vmatprep.subr.mxu0 0.0
    %356 = vmatpush1.xpose.msra.mxu0 0.0
    %357 = vmatprep.subr.mxu0 0.0
    %358 = vmatpush1.xpose.msra.mxu0 0.0
    %359 = vmatprep.subr.mxu0 0.0
    %360 = vmatpush1.xpose.msra.mxu0 0.0
    %361 = vmatprep.subr.mxu0 0.0
    %362 = vmatpush1.xpose.msra.mxu0 0.0
    %363 = vmatprep.subr.mxu0 0.0
    %364 = vmatpush1.xpose.msra.mxu0 0.0
    %365 = vmatprep.subr.mxu0 0.0
    %366 = vmatpush1.xpose.msra.mxu0 0.0
    %367 = vmatprep.subr.mxu0 0.0
    %368 = vmatpush1.xpose.msra.mxu0 0.0
    %369 = vmatprep.subr.mxu0 0.0
    %370 = vmatpush1.xpose.msra.mxu0 0.0
    %371 = vmatprep.subr.mxu0 0.0
    %372 = vmatpush1.xpose.msra.mxu0 0.0
    %373 = vmatprep.subr.mxu0 0.0
    %374 = vmatpush1.xpose.msra.mxu0 0.0
    %375 = vmatprep.subr.mxu0 0.0
    %376 = vmatpush1.xpose.msra.mxu0 0.0
    %377 = vmatprep.subr.mxu0 0.0
    %378 = vmatpush1.xpose.msra.mxu0 0.0
    %379 = vmatprep.subr.mxu0 0.0
    %380 = vmatpush1.xpose.msra.mxu0 0.0
    %381 = vmatprep.subr.mxu0 0.0
    %382 = vmatpush1.xpose.msra.mxu0 0.0
    %383 = vmatprep.subr.mxu0 0.0
    %384 = vmatpush1.xpose.msra.mxu0 0.0
    %385 = vmatprep.subr.mxu0 0.0
    %386 = vmatpush1.xpose.msra.mxu0 0.0
    %387 = vmatprep.subr.mxu0 0.0
    %388 = vmatpush1.xpose.msra.mxu0 0.0
    %389 = vmatprep.subr.mxu0 0.0
    %390 = vmatpush1.xpose.msra.mxu0 0.0
    %391 = vmatprep.subr.mxu0 0.0
    %392 = vmatpush1.xpose.msra.mxu0 0.0
    %393 = vmatprep.subr.mxu0 0.0
    %394 = vmatpush1.xpose.msra.mxu0 0.0
    %395 = vmatprep.subr.mxu0 0.0
    %396 = vmatpush1.xpose.msra.mxu0 0.0
    %397 = vmatprep.subr.mxu0 0.0
    %398 = vmatpush1.xpose.msra.mxu0 0.0
    %399 = vmatprep.subr.mxu0 0.0
    %400 = vmatpush1.xpose.msra.mxu0 0.0
    %401 = vmatprep.subr.mxu0 0.0
    %402 = vmatpush1.xpose.msra.mxu0 0.0
    %403 = vmatprep.subr.mxu0 0.0
    %404 = vmatpush1.xpose.msra.mxu0 0.0
    %405 = vmatprep.subr.mxu0 0.0
    %406 = vmatpush1.xpose.msra.mxu0 0.0
    %407 = vmatprep.subr.mxu0 0.0
    %408 = vmatpush1.xpose.msra.mxu0 0.0
    %409 = vmatprep.mubr.f32.mxu0 0.0
    %410 = vmatmul.mubr.f32.gmra.mrb[0].mxu0 %v341
    %v411 = vpop.f32.mrb[0].mxu0
    %v412 = vadd.f32 %v56, %v411
    %v413 = vpop.f32.mrb[0].mxu0
    %414 = vdwg.mxu0
    %v415 = vsel %vm175, %v412, -inf
    %416 = vmax.xlane.f32.xlu0 %v415
    %v417 = vpop.xlane.xlu0 %416
    %v418 = vsub.f32 %v412, %v417
    %v419 = vmul.f32 %v418, 1.442695
    %v420 = vpow.pop %v419
    %v421 = vsel %vm175, %v420, 0.0
    %422 = vadd.xlane.f32.xlu0 %v421
    %v423 = vpop.xlane.xlu0 %422
    %v424 = vrcp.pop %v423
    %v425 = vmul.f32 %v420, %v424
    %426 = vrot.lane.b32.xlu0 %v169, 56
    %v427 = vpop.permute.xlu0 %426
    %v430 = vsel %vm175, %v425, 0
    %432 = vmatprep.subr.mxu0 0.0
    %433 = vmatpush1.msra.mxu0 %v427
    %434 = vmatprep.subr.mxu0 0.0
    %435 = vmatpush1.msra.mxu0 0.0
    %436 = vmatprep.subr.mxu0 0.0
    %437 = vmatpush1.msra.mxu0 0.0
    %438 = vmatprep.subr.mxu0 0.0
    %439 = vmatpush1.msra.mxu0 0.0
    %440 = vmatprep.subr.mxu0 0.0
    %441 = vmatpush1.msra.mxu0 0.0
    %442 = vmatprep.subr.mxu0 0.0
    %443 = vmatpush1.msra.mxu0 0.0
    %444 = vmatprep.subr.mxu0 0.0
    %445 = vmatpush1.msra.mxu0 0.0
    %446 = vmatprep.subr.mxu0 0.0
    %447 = vmatpush1.msra.mxu0 0.0
    %448 = vmatprep.subr.mxu0 0.0
    %449 = vmatpush1.msra.mxu0 0.0
    %450 = vmatprep.subr.mxu0 0.0
    %451 = vmatpush1.msra.mxu0 0.0
    %452 = vmatprep.subr.mxu0 0.0
    %453 = vmatpush1.msra.mxu0 0.0
    %454 = vmatprep.subr.mxu0 0.0
    %455 = vmatpush1.msra.mxu0 0.0
    %456 = vmatprep.subr.mxu0 0.0
    %457 = vmatpush1.msra.mxu0 0.0
    %458 = vmatprep.subr.mxu0 0.0
    %459 = vmatpush1.msra.mxu0 0.0
    %460 = vmatprep.subr.mxu0 0.0
    %461 = vmatpush1.msra.mxu0 0.0
    %462 = vmatprep.subr.mxu0 0.0
    %463 = vmatpush1.msra.mxu0 0.0
    %464 = vmatprep.subr.mxu0 0.0
    %465 = vmatpush1.msra.mxu0 0.0
    %466 = vmatprep.subr.mxu0 0.0
    %467 = vmatpush1.msra.mxu0 0.0
    %468 = vmatprep.subr.mxu0 0.0
    %469 = vmatpush1.msra.mxu0 0.0
    %470 = vmatprep.subr.mxu0 0.0
    %471 = vmatpush1.msra.mxu0 0.0
    %472 = vmatprep.subr.mxu0 0.0
    %473 = vmatpush1.msra.mxu0 0.0
    %474 = vmatprep.subr.mxu0 0.0
    %475 = vmatpush1.msra.mxu0 0.0
    %476 = vmatprep.subr.mxu0 0.0
    %477 = vmatpush1.msra.mxu0 0.0
    %478 = vmatprep.subr.mxu0 0.0
    %479 = vmatpush1.msra.mxu0 0.0
    %480 = vmatprep.subr.mxu0 0.0
    %481 = vmatpush1.msra.mxu0 0.0
    %482 = vmatprep.subr.mxu0 0.0
    %483 = vmatpush1.msra.mxu0 0.0
    %484 = vmatprep.subr.mxu0 0.0
    %485 = vmatpush1.msra.mxu0 0.0
    %486 = vmatprep.subr.mxu0 0.0
    %487 = vmatpush1.msra.mxu0 0.0
    %488 = vmatprep.subr.mxu0 0.0
    %489 = vmatpush1.msra.mxu0 0.0
    %490 = vmatprep.subr.mxu0 0.0
    %491 = vmatpush1.msra.mxu0 0.0
    %492 = vmatprep.subr.mxu0 0.0
    %493 = vmatpush1.msra.mxu0 0.0
    %494 = vmatprep.subr.mxu0 0.0
    %495 = vmatpush1.msra.mxu0 0.0
    %496 = vmatprep.mubr.f32.mxu0 0.0
    %497 = vmatmul.mubr.f32.gmra.mrb[0].mxu0 %v430
    %v498 = vpop.f32.mrb[0].mxu0
    %v499 = vadd.f32 0.0, %v498
    %v500 = vpop.f32.mrb[0].mxu0
    %501 = vdwg.mxu0
    %v503 = vsel %vm175, %v499, 0
    %505 = vmatprep.subr.mxu0 0.0
    %506 = vmatpush1.msra.mxu0 %v91
    %507 = vmatprep.subr.mxu0 0.0
    %508 = vmatpush1.msra.mxu0 0.0
    %509 = vmatprep.subr.mxu0 0.0
    %510 = vmatpush1.msra.mxu0 0.0
    %511 = vmatprep.subr.mxu0 0.0
    %512 = vmatpush1.msra.mxu0 0.0
    %513 = vmatprep.subr.mxu0 0.0
    %514 = vmatpush1.msra.mxu0 0.0
    %515 = vmatprep.subr.mxu0 0.0
    %516 = vmatpush1.msra.mxu0 0.0
    %517 = vmatprep.subr.mxu0 0.0
    %518 = vmatpush1.msra.mxu0 0.0
    %519 = vmatprep.subr.mxu0 0.0
    %520 = vmatpush1.msra.mxu0 0.0
    %521 = vmatprep.subr.mxu0 0.0
    %522 = vmatpush1.msra.mxu0 0.0
    %523 = vmatprep.subr.mxu0 0.0
    %524 = vmatpush1.msra.mxu0 0.0
    %525 = vmatprep.subr.mxu0 0.0
    %526 = vmatpush1.msra.mxu0 0.0
    %527 = vmatprep.subr.mxu0 0.0
    %528 = vmatpush1.msra.mxu0 0.0
    %529 = vmatprep.subr.mxu0 0.0
    %530 = vmatpush1.msra.mxu0 0.0
    %531 = vmatprep.subr.mxu0 0.0
    %532 = vmatpush1.msra.mxu0 0.0
    %533 = vmatprep.subr.mxu0 0.0
    %534 = vmatpush1.msra.mxu0 0.0
    %535 = vmatprep.subr.mxu0 0.0
    %536 = vmatpush1.msra.mxu0 0.0
    %537 = vmatprep.subr.mxu0 0.0
    %538 = vmatpush1.msra.mxu0 0.0
    %539 = vmatprep.subr.mxu0 0.0
    %540 = vmatpush1.msra.mxu0 0.0
    %541 = vmatprep.subr.mxu0 0.0
    %542 = vmatpush1.msra.mxu0 0.0
    %543 = vmatprep.subr.mxu0 0.0
    %544 = vmatpush1.msra.mxu0 0.0
    %545 = vmatprep.subr.mxu0 0.0
    %546 = vmatpush1.msra.mxu0 0.0
    %547 = vmatprep.subr.mxu0 0.0
    %548 = vmatpush1.msra.mxu0 0.0
    %549 = vmatprep.subr.mxu0 0.0
    %550 = vmatpush1.msra.mxu0 0.0
    %551 = vmatprep.subr.mxu0 0.0
    %552 = vmatpush1.msra.mxu0 0.0
    %553 = vmatprep.subr.mxu0 0.0
    %554 = vmatpush1.msra.mxu0 0.0
    %555 = vmatprep.subr.mxu0 0.0
    %556 = vmatpush1.msra.mxu0 0.0
    %557 = vmatprep.subr.mxu0 0.0
    %558 = vmatpush1.msra.mxu0 0.0
    %559 = vmatprep.subr.mxu0 0.0
    %560 = vmatpush1.msra.mxu0 0.0
    %561 = vmatprep.subr.mxu0 0.0
    %562 = vmatpush1.msra.mxu0 0.0
    %563 = vmatprep.subr.mxu0 0.0
    %564 = vmatpush1.msra.mxu0 0.0
    %565 = vmatprep.subr.mxu0 0.0
    %566 = vmatpush1.msra.mxu0 0.0
    %567 = vmatprep.subr.mxu0 0.0
    %568 = vmatpush1.msra.mxu0 0.0
    %569 = vmatprep.mubr.f32.mxu0 0.0
    %570 = vmatmul.mubr.f32.gmra.mrb[0].mxu0 %v503
    %v571 = vpop.f32.mrb[0].mxu0
    %v572 = vadd.f32 0.0, %v571
    %v573 = vpop.f32.mrb[0].mxu0
    %574 = vdwg.mxu0
    %v576 = vsel %vm175, %v334, 0
    %578 = vmatprep.subr.mxu0 0.0
    %579 = vmatpush1.msra.mxu0 %v90
    %580 = vmatprep.subr.mxu0 0.0
    %581 = vmatpush1.msra.mxu0 0.0
    %582 = vmatprep.subr.mxu0 0.0
    %583 = vmatpush1.msra.mxu0 0.0
    %584 = vmatprep.subr.mxu0 0.0
    %585 = vmatpush1.msra.mxu0 0.0
    %586 = vmatprep.subr.mxu0 0.0
    %587 = vmatpush1.msra.mxu0 0.0
    %588 = vmatprep.subr.mxu0 0.0
    %589 = vmatpush1.msra.mxu0 0.0
    %590 = vmatprep.subr.mxu0 0.0
    %591 = vmatpush1.msra.mxu0 0.0
    %592 = vmatprep.subr.mxu0 0.0
    %593 = vmatpush1.msra.mxu0 0.0
    %594 = vmatprep.subr.mxu0 0.0
    %595 = vmatpush1.msra.mxu0 0.0
    %596 = vmatprep.subr.mxu0 0.0
    %597 = vmatpush1.msra.mxu0 0.0
    %598 = vmatprep.subr.mxu0 0.0
    %599 = vmatpush1.msra.mxu0 0.0
    %600 = vmatprep.subr.mxu0 0.0
    %601 = vmatpush1.msra.mxu0 0.0
    %602 = vmatprep.subr.mxu0 0.0
    %603 = vmatpush1.msra.mxu0 0.0
    %604 = vmatprep.subr.mxu0 0.0
    %605 = vmatpush1.msra.mxu0 0.0
    %606 = vmatprep.subr.mxu0 0.0
    %607 = vmatpush1.msra.mxu0 0.0
    %608 = vmatprep.subr.mxu0 0.0
    %609 = vmatpush1.msra.mxu0 0.0
    %610 = vmatprep.subr.mxu0 0.0
    %611 = vmatpush1.msra.mxu0 0.0
    %612 = vmatprep.subr.mxu0 0.0
    %613 = vmatpush1.msra.mxu0 0.0
    %614 = vmatprep.subr.mxu0 0.0
    %615 = vmatpush1.msra.mxu0 0.0
    %616 = vmatprep.subr.mxu0 0.0
    %617 = vmatpush1.msra.mxu0 0.0
    %618 = vmatprep.subr.mxu0 0.0
    %619 = vmatpush1.msra.mxu0 0.0
    %620 = vmatprep.subr.mxu0 0.0
    %621 = vmatpush1.msra.mxu0 0.0
    %622 = vmatprep.subr.mxu0 0.0
    %623 = vmatpush1.msra.mxu0 0.0
    %624 = vmatprep.subr.mxu0 0.0
    %625 = vmatpush1.msra.mxu0 0.0
    %626 = vmatprep.subr.mxu0 0.0
    %627 = vmatpush1.msra.mxu0 0.0
    %628 = vmatprep.subr.mxu0 0.0
    %629 = vmatpush1.msra.mxu0 0.0
    %630 = vmatprep.subr.mxu0 0.0
    %631 = vmatpush1.msra.mxu0 0.0
    %632 = vmatprep.subr.mxu0 0.0
    %633 = vmatpush1.msra.mxu0 0.0
    %634 = vmatprep.subr.mxu0 0.0
    %635 = vmatpush1.msra.mxu0 0.0
    %636 = vmatprep.subr.mxu0 0.0
    %637 = vmatpush1.msra.mxu0 0.0
    %638 = vmatprep.subr.mxu0 0.0
    %639 = vmatpush1.msra.mxu0 0.0
    %640 = vmatprep.subr.mxu0 0.0
    %641 = vmatpush1.msra.mxu0 0.0
    %642 = vmatprep.mubr.f32.mxu0 0.0
    %643 = vmatmul.mubr.f32.gmra.mrb[0].mxu0 %v576
    %v644 = vpop.f32.mrb[0].mxu0
    %v645 = vadd.f32 %v572, %v644
    %v646 = vpop.f32.mrb[0].mxu0
    %647 = vdwg.mxu0
    %648 = vrot.lane.b32.xlu0 %v169, 112
    %v649 = vpop.permute.xlu0 %648
    %650 = vrot.lane.b32.xlu0 %v169, 80
    %v651 = vpop.permute.xlu0 %650
    %v652 = vsel %vm175, %v649, 0
    %v654 = vsel %vm175, %v651, 0
    %656 = vmatprep.subr.mxu0 0.0
    %657 = vmatpush1.xpose.msra.mxu0 %v654
    %658 = vmatprep.subr.mxu0 0.0
    %659 = vmatpush1.xpose.msra.mxu0 0.0
    %660 = vmatprep.subr.mxu0 0.0
    %661 = vmatpush1.xpose.msra.mxu0 0.0
    %662 = vmatprep.subr.mxu0 0.0
    %663 = vmatpush1.xpose.msra.mxu0 0.0
    %664 = vmatprep.subr.mxu0 0.0
    %665 = vmatpush1.xpose.msra.mxu0 0.0
    %666 = vmatprep.subr.mxu0 0.0
    %667 = vmatpush1.xpose.msra.mxu0 0.0
    %668 = vmatprep.subr.mxu0 0.0
    %669 = vmatpush1.xpose.msra.mxu0 0.0
    %670 = vmatprep.subr.mxu0 0.0
    %671 = vmatpush1.xpose.msra.mxu0 0.0
    %672 = vmatprep.subr.mxu0 0.0
    %673 = vmatpush1.xpose.msra.mxu0 0.0
    %674 = vmatprep.subr.mxu0 0.0
    %675 = vmatpush1.xpose.msra.mxu0 0.0
    %676 = vmatprep.subr.mxu0 0.0
    %677 = vmatpush1.xpose.msra.mxu0 0.0
    %678 = vmatprep.subr.mxu0 0.0
    %679 = vmatpush1.xpose.msra.mxu0 0.0
    %680 = vmatprep.subr.mxu0 0.0
    %681 = vmatpush1.xpose.msra.mxu0 0.0
    %682 = vmatprep.subr.mxu0 0.0
    %683 = vmatpush1.xpose.msra.mxu0 0.0
    %684 = vmatprep.subr.mxu0 0.0
    %685 = vmatpush1.xpose.msra.mxu0 0.0
    %686 = vmatprep.subr.mxu0 0.0
    %687 = vmatpush1.xpose.msra.mxu0 0.0
    %688 = vmatprep.subr.mxu0 0.0
    %689 = vmatpush1.xpose.msra.mxu0 0.0
    %690 = vmatprep.subr.mxu0 0.0
    %691 = vmatpush1.xpose.msra.mxu0 0.0
    %692 = vmatprep.subr.mxu0 0.0
    %693 = vmatpush1.xpose.msra.mxu0 0.0
    %694 = vmatprep.subr.mxu0 0.0
    %695 = vmatpush1.xpose.msra.mxu0 0.0
    %696 = vmatprep.subr.mxu0 0.0
    %697 = vmatpush1.xpose.msra.mxu0 0.0
    %698 = vmatprep.subr.mxu0 0.0
    %699 = vmatpush1.xpose.msra.mxu0 0.0
    %700 = vmatprep.subr.mxu0 0.0
    %701 = vmatpush1.xpose.msra.mxu0 0.0
    %702 = vmatprep.subr.mxu0 0.0
    %703 = vmatpush1.xpose.msra.mxu0 0.0
    %704 = vmatprep.subr.mxu0 0.0
    %705 = vmatpush1.xpose.msra.mxu0 0.0
    %706 = vmatprep.subr.mxu0 0.0
    %707 = vmatpush1.xpose.msra.mxu0 0.0
    %708 = vmatprep.subr.mxu0 0.0
    %709 = vmatpush1.xpose.msra.mxu0 0.0
    %710 = vmatprep.subr.mxu0 0.0
    %711 = vmatpush1.xpose.msra.mxu0 0.0
    %712 = vmatprep.subr.mxu0 0.0
    %713 = vmatpush1.xpose.msra.mxu0 0.0
    %714 = vmatprep.subr.mxu0 0.0
    %715 = vmatpush1.xpose.msra.mxu0 0.0
    %716 = vmatprep.subr.mxu0 0.0
    %717 = vmatpush1.xpose.msra.mxu0 0.0
    %718 = vmatprep.subr.mxu0 0.0
    %719 = vmatpush1.xpose.msra.mxu0 0.0
    %720 = vmatprep.mubr.f32.mxu0 0.0
    %721 = vmatmul.mubr.f32.gmra.mrb[0].mxu0 %v652
    %v722 = vpop.f32.mrb[0].mxu0
    %v723 = vadd.f32 %v56, %v722
    %v724 = vpop.f32.mrb[0].mxu0
    %725 = vdwg.mxu0
    %v726 = vsel %vm175, %v723, -inf
    %727 = vmax.xlane.f32.xlu0 %v726
    %v728 = vpop.xlane.xlu0 %727
    %v729 = vsub.f32 %v723, %v728
    %v730 = vmul.f32 %v729, 1.442695
    %v731 = vpow.pop %v730
    %v732 = vsel %vm175, %v731, 0.0
    %733 = vadd.xlane.f32.xlu0 %v732
    %v734 = vpop.xlane.xlu0 %733
    %v735 = vrcp.pop %v734
    %v736 = vmul.f32 %v731, %v735
    %737 = vrot.lane.b32.xlu0 %v169, 48
    %v738 = vpop.permute.xlu0 %737
    %v741 = vsel %vm175, %v736, 0
    %743 = vmatprep.subr.mxu0 0.0
    %744 = vmatpush1.msra.mxu0 %v738
    %745 = vmatprep.subr.mxu0 0.0
    %746 = vmatpush1.msra.mxu0 0.0
    %747 = vmatprep.subr.mxu0 0.0
    %748 = vmatpush1.msra.mxu0 0.0
    %749 = vmatprep.subr.mxu0 0.0
    %750 = vmatpush1.msra.mxu0 0.0
    %751 = vmatprep.subr.mxu0 0.0
    %752 = vmatpush1.msra.mxu0 0.0
    %753 = vmatprep.subr.mxu0 0.0
    %754 = vmatpush1.msra.mxu0 0.0
    %755 = vmatprep.subr.mxu0 0.0
    %756 = vmatpush1.msra.mxu0 0.0
    %757 = vmatprep.subr.mxu0 0.0
    %758 = vmatpush1.msra.mxu0 0.0
    %759 = vmatprep.subr.mxu0 0.0
    %760 = vmatpush1.msra.mxu0 0.0
    %761 = vmatprep.subr.mxu0 0.0
    %762 = vmatpush1.msra.mxu0 0.0
    %763 = vmatprep.subr.mxu0 0.0
    %764 = vmatpush1.msra.mxu0 0.0
    %765 = vmatprep.subr.mxu0 0.0
    %766 = vmatpush1.msra.mxu0 0.0
    %767 = vmatprep.subr.mxu0 0.0
    %768 = vmatpush1.msra.mxu0 0.0
    %769 = vmatprep.subr.mxu0 0.0
    %770 = vmatpush1.msra.mxu0 0.0
    %771 = vmatprep.subr.mxu0 0.0
    %772 = vmatpush1.msra.mxu0 0.0
    %773 = vmatprep.subr.mxu0 0.0
    %774 = vmatpush1.msra.mxu0 0.0
    %775 = vmatprep.subr.mxu0 0.0
    %776 = vmatpush1.msra.mxu0 0.0
    %777 = vmatprep.subr.mxu0 0.0
    %778 = vmatpush1.msra.mxu0 0.0
    %779 = vmatprep.subr.mxu0 0.0
    %780 = vmatpush1.msra.mxu0 0.0
    %781 = vmatprep.subr.mxu0 0.0
    %782 = vmatpush1.msra.mxu0 0.0
    %783 = vmatprep.subr.mxu0 0.0
    %784 = vmatpush1.msra.mxu0 0.0
    %785 = vmatprep.subr.mxu0 0.0
    %786 = vmatpush1.msra.mxu0 0.0
    %787 = vmatprep.subr.mxu0 0.0
    %788 = vmatpush1.msra.mxu0 0.0
    %789 = vmatprep.subr.mxu0 0.0
    %790 = vmatpush1.msra.mxu0 0.0
    %791 = vmatprep.subr.mxu0 0.0
    %792 = vmatpush1.msra.mxu0 0.0
    %793 = vmatprep.subr.mxu0 0.0
    %794 = vmatpush1.msra.mxu0 0.0
    %795 = vmatprep.subr.mxu0 0.0
    %796 = vmatpush1.msra.mxu0 0.0
    %797 = vmatprep.subr.mxu0 0.0
    %798 = vmatpush1.msra.mxu0 0.0
    %799 = vmatprep.subr.mxu0 0.0
    %800 = vmatpush1.msra.mxu0 0.0
    %801 = vmatprep.subr.mxu0 0.0
    %802 = vmatpush1.msra.mxu0 0.0
    %803 = vmatprep.subr.mxu0 0.0
    %804 = vmatpush1.msra.mxu0 0.0
    %805 = vmatprep.subr.mxu0 0.0
    %806 = vmatpush1.msra.mxu0 0.0
    %807 = vmatprep.mubr.f32.mxu0 0.0
    %808 = vmatmul.mubr.f32.gmra.mrb[0].mxu0 %v741
    %v809 = vpop.f32.mrb[0].mxu0
    %v810 = vadd.f32 0.0, %v809
    %v811 = vpop.f32.mrb[0].mxu0
    %812 = vdwg.mxu0
    %v814 = vsel %vm175, %v810, 0
    %816 = vmatprep.subr.mxu0 0.0
    %817 = vmatpush1.msra.mxu0 %v92
    %818 = vmatprep.subr.mxu0 0.0
    %819 = vmatpush1.msra.mxu0 0.0
    %820 = vmatprep.subr.mxu0 0.0
    %821 = vmatpush1.msra.mxu0 0.0
    %822 = vmatprep.subr.mxu0 0.0
    %823 = vmatpush1.msra.mxu0 0.0
    %824 = vmatprep.subr.mxu0 0.0
    %825 = vmatpush1.msra.mxu0 0.0
    %826 = vmatprep.subr.mxu0 0.0
    %827 = vmatpush1.msra.mxu0 0.0
    %828 = vmatprep.subr.mxu0 0.0
    %829 = vmatpush1.msra.mxu0 0.0
    %830 = vmatprep.subr.mxu0 0.0
    %831 = vmatpush1.msra.mxu0 0.0
    %832 = vmatprep.subr.mxu0 0.0
    %833 = vmatpush1.msra.mxu0 0.0
    %834 = vmatprep.subr.mxu0 0.0
    %835 = vmatpush1.msra.mxu0 0.0
    %836 = vmatprep.subr.mxu0 0.0
    %837 = vmatpush1.msra.mxu0 0.0
    %838 = vmatprep.subr.mxu0 0.0
    %839 = vmatpush1.msra.mxu0 0.0
    %840 = vmatprep.subr.mxu0 0.0
    %841 = vmatpush1.msra.mxu0 0.0
    %842 = vmatprep.subr.mxu0 0.0
    %843 = vmatpush1.msra.mxu0 0.0
    %844 = vmatprep.subr.mxu0 0.0
    %845 = vmatpush1.msra.mxu0 0.0
    %846 = vmatprep.subr.mxu0 0.0
    %847 = vmatpush1.msra.mxu0 0.0
    %848 = vmatprep.subr.mxu0 0.0
    %849 = vmatpush1.msra.mxu0 0.0
    %850 = vmatprep.subr.mxu0 0.0
    %851 = vmatpush1.msra.mxu0 0.0
    %852 = vmatprep.subr.mxu0 0.0
    %853 = vmatpush1.msra.mxu0 0.0
    %854 = vmatprep.subr.mxu0 0.0
    %855 = vmatpush1.msra.mxu0 0.0
    %856 = vmatprep.subr.mxu0 0.0
    %857 = vmatpush1.msra.mxu0 0.0
    %858 = vmatprep.subr.mxu0 0.0
    %859 = vmatpush1.msra.mxu0 0.0
    %860 = vmatprep.subr.mxu0 0.0
    %861 = vmatpush1.msra.mxu0 0.0
    %862 = vmatprep.subr.mxu0 0.0
    %863 = vmatpush1.msra.mxu0 0.0
    %864 = vmatprep.subr.mxu0 0.0
    %865 = vmatpush1.msra.mxu0 0.0
    %866 = vmatprep.subr.mxu0 0.0
    %867 = vmatpush1.msra.mxu0 0.0
    %868 = vmatprep.subr.mxu0 0.0
    %869 = vmatpush1.msra.mxu0 0.0
    %870 = vmatprep.subr.mxu0 0.0
    %871 = vmatpush1.msra.mxu0 0.0
    %872 = vmatprep.subr.mxu0 0.0
    %873 = vmatpush1.msra.mxu0 0.0
    %874 = vmatprep.subr.mxu0 0.0
    %875 = vmatpush1.msra.mxu0 0.0
    %876 = vmatprep.subr.mxu0 0.0
    %877 = vmatpush1.msra.mxu0 0.0
    %878 = vmatprep.subr.mxu0 0.0
    %879 = vmatpush1.msra.mxu0 0.0
    %880 = vmatprep.mubr.f32.mxu0 0.0
    %881 = vmatmul.mubr.f32.gmra.mrb[0].mxu0 %v814
    %v882 = vpop.f32.mrb[0].mxu0
    %v883 = vadd.f32 0.0, %v882
    %v884 = vpop.f32.mrb[0].mxu0
    %885 = vdwg.mxu0
    %v886 = vadd.f32 %v645, %v883
    %887 = vrot.lane.b32.xlu0 %v169, 104
    %v888 = vpop.permute.xlu0 %887
    %889 = vrot.lane.b32.xlu0 %v169, 72
    %v890 = vpop.permute.xlu0 %889
    %v891 = vsel %vm175, %v888, 0
    %v893 = vsel %vm175, %v890, 0
    %895 = vmatprep.subr.mxu0 0.0
    %896 = vmatpush1.xpose.msra.mxu0 %v893
    %897 = vmatprep.subr.mxu0 0.0
    %898 = vmatpush1.xpose.msra.mxu0 0.0
    %899 = vmatprep.subr.mxu0 0.0
    %900 = vmatpush1.xpose.msra.mxu0 0.0
    %901 = vmatprep.subr.mxu0 0.0
    %902 = vmatpush1.xpose.msra.mxu0 0.0
    %903 = vmatprep.subr.mxu0 0.0
    %904 = vmatpush1.xpose.msra.mxu0 0.0
    %905 = vmatprep.subr.mxu0 0.0
    %906 = vmatpush1.xpose.msra.mxu0 0.0
    %907 = vmatprep.subr.mxu0 0.0
    %908 = vmatpush1.xpose.msra.mxu0 0.0
    %909 = vmatprep.subr.mxu0 0.0
    %910 = vmatpush1.xpose.msra.mxu0 0.0
    %911 = vmatprep.subr.mxu0 0.0
    %912 = vmatpush1.xpose.msra.mxu0 0.0
    %913 = vmatprep.subr.mxu0 0.0
    %914 = vmatpush1.xpose.msra.mxu0 0.0
    %915 = vmatprep.subr.mxu0 0.0
    %916 = vmatpush1.xpose.msra.mxu0 0.0
    %917 = vmatprep.subr.mxu0 0.0
    %918 = vmatpush1.xpose.msra.mxu0 0.0
    %919 = vmatprep.subr.mxu0 0.0
    %920 = vmatpush1.xpose.msra.mxu0 0.0
    %921 = vmatprep.subr.mxu0 0.0
    %922 = vmatpush1.xpose.msra.mxu0 0.0
    %923 = vmatprep.subr.mxu0 0.0
    %924 = vmatpush1.xpose.msra.mxu0 0.0
    %925 = vmatprep.subr.mxu0 0.0
    %926 = vmatpush1.xpose.msra.mxu0 0.0
    %927 = vmatprep.subr.mxu0 0.0
    %928 = vmatpush1.xpose.msra.mxu0 0.0
    %929 = vmatprep.subr.mxu0 0.0
    %930 = vmatpush1.xpose.msra.mxu0 0.0
    %931 = vmatprep.subr.mxu0 0.0
    %932 = vmatpush1.xpose.msra.mxu0 0.0
    %933 = vmatprep.subr.mxu0 0.0
    %934 = vmatpush1.xpose.msra.mxu0 0.0
    %935 = vmatprep.subr.mxu0 0.0
    %936 = vmatpush1.xpose.msra.mxu0 0.0
    %937 = vmatprep.subr.mxu0 0.0
    %938 = vmatpush1.xpose.msra.mxu0 0.0
    %939 = vmatprep.subr.mxu0 0.0
    %940 = vmatpush1.xpose.msra.mxu0 0.0
    %941 = vmatprep.subr.mxu0 0.0
    %942 = vmatpush1.xpose.msra.mxu0 0.0
    %943 = vmatprep.subr.mxu0 0.0
    %944 = vmatpush1.xpose.msra.mxu0 0.0
    %945 = vmatprep.subr.mxu0 0.0
    %946 = vmatpush1.xpose.msra.mxu0 0.0
    %947 = vmatprep.subr.mxu0 0.0
    %948 = vmatpush1.xpose.msra.mxu0 0.0
    %949 = vmatprep.subr.mxu0 0.0
    %950 = vmatpush1.xpose.msra.mxu0 0.0
    %951 = vmatprep.subr.mxu0 0.0
    %952 = vmatpush1.xpose.msra.mxu0 0.0
    %953 = vmatprep.subr.mxu0 0.0
    %954 = vmatpush1.xpose.msra.mxu0 0.0
    %955 = vmatprep.subr.mxu0 0.0
    %956 = vmatpush1.xpose.msra.mxu0 0.0
    %957 = vmatprep.subr.mxu0 0.0
    %958 = vmatpush1.xpose.msra.mxu0 0.0
    %959 = vmatprep.mubr.f32.mxu0 0.0
    %960 = vmatmul.mubr.f32.gmra.mrb[0].mxu0 %v891
    %v961 = vpop.f32.mrb[0].mxu0
    %v962 = vadd.f32 %v56, %v961
    %v963 = vpop.f32.mrb[0].mxu0
    %964 = vdwg.mxu0
    %v965 = vsel %vm175, %v962, -inf
    %966 = vmax.xlane.f32.xlu0 %v965
    %v967 = vpop.xlane.xlu0 %966
    %v968 = vsub.f32 %v962, %v967
    %v969 = vmul.f32 %v968, 1.442695
    %v970 = vpow.pop %v969
    %v971 = vsel %vm175, %v970, 0.0
    %972 = vadd.xlane.f32.xlu0 %v971
    %v973 = vpop.xlane.xlu0 %972
    %v974 = vrcp.pop %v973
    %v975 = vmul.f32 %v970, %v974
    %976 = vrot.lane.b32.xlu0 %v169, 40
    %v977 = vpop.permute.xlu0 %976
    %v980 = vsel %vm175, %v975, 0
    %982 = vmatprep.subr.mxu0 0.0
    %983 = vmatpush1.msra.mxu0 %v977
    %984 = vmatprep.subr.mxu0 0.0
    %985 = vmatpush1.msra.mxu0 0.0
    %986 = vmatprep.subr.mxu0 0.0
    %987 = vmatpush1.msra.mxu0 0.0
    %988 = vmatprep.subr.mxu0 0.0
    %989 = vmatpush1.msra.mxu0 0.0
    %990 = vmatprep.subr.mxu0 0.0
    %991 = vmatpush1.msra.mxu0 0.0
    %992 = vmatprep.subr.mxu0 0.0
    %993 = vmatpush1.msra.mxu0 0.0
    %994 = vmatprep.subr.mxu0 0.0
    %995 = vmatpush1.msra.mxu0 0.0
    %996 = vmatprep.subr.mxu0 0.0
    %997 = vmatpush1.msra.mxu0 0.0
    %998 = vmatprep.subr.mxu0 0.0
    %999 = vmatpush1.msra.mxu0 0.0
    %1000 = vmatprep.subr.mxu0 0.0
    %1001 = vmatpush1.msra.mxu0 0.0
    %1002 = vmatprep.subr.mxu0 0.0
    %1003 = vmatpush1.msra.mxu0 0.0
    %1004 = vmatprep.subr.mxu0 0.0
    %1005 = vmatpush1.msra.mxu0 0.0
    %1006 = vmatprep.subr.mxu0 0.0
    %1007 = vmatpush1.msra.mxu0 0.0
    %1008 = vmatprep.subr.mxu0 0.0
    %1009 = vmatpush1.msra.mxu0 0.0
    %1010 = vmatprep.subr.mxu0 0.0
    %1011 = vmatpush1.msra.mxu0 0.0
    %1012 = vmatprep.subr.mxu0 0.0
    %1013 = vmatpush1.msra.mxu0 0.0
    %1014 = vmatprep.subr.mxu0 0.0
    %1015 = vmatpush1.msra.mxu0 0.0
    %1016 = vmatprep.subr.mxu0 0.0
    %1017 = vmatpush1.msra.mxu0 0.0
    %1018 = vmatprep.subr.mxu0 0.0
    %1019 = vmatpush1.msra.mxu0 0.0
    %1020 = vmatprep.subr.mxu0 0.0
    %1021 = vmatpush1.msra.mxu0 0.0
    %1022 = vmatprep.subr.mxu0 0.0
    %1023 = vmatpush1.msra.mxu0 0.0
    %1024 = vmatprep.subr.mxu0 0.0
    %1025 = vmatpush1.msra.mxu0 0.0
    %1026 = vmatprep.subr.mxu0 0.0
    %1027 = vmatpush1.msra.mxu0 0.0
    %1028 = vmatprep.subr.mxu0 0.0
    %1029 = vmatpush1.msra.mxu0 0.0
    %1030 = vmatprep.subr.mxu0 0.0
    %1031 = vmatpush1.msra.mxu0 0.0
    %1032 = vmatprep.subr.mxu0 0.0
    %1033 = vmatpush1.msra.mxu0 0.0
    %1034 = vmatprep.subr.mxu0 0.0
    %1035 = vmatpush1.msra.mxu0 0.0
    %1036 = vmatprep.subr.mxu0 0.0
    %1037 = vmatpush1.msra.mxu0 0.0
    %1038 = vmatprep.subr.mxu0 0.0
    %1039 = vmatpush1.msra.mxu0 0.0
    %1040 = vmatprep.subr.mxu0 0.0
    %1041 = vmatpush1.msra.mxu0 0.0
    %1042 = vmatprep.subr.mxu0 0.0
    %1043 = vmatpush1.msra.mxu0 0.0
    %1044 = vmatprep.subr.mxu0 0.0
    %1045 = vmatpush1.msra.mxu0 0.0
    %1046 = vmatprep.mubr.f32.mxu0 0.0
    %1047 = vmatmul.mubr.f32.gmra.mrb[0].mxu0 %v980
    %v1048 = vpop.f32.mrb[0].mxu0
    %v1049 = vadd.f32 0.0, %v1048
    %v1050 = vpop.f32.mrb[0].mxu0
    %1051 = vdwg.mxu0
    %v1053 = vsel %vm175, %v1049, 0
    %1055 = vmatprep.subr.mxu0 0.0
    %1056 = vmatpush1.msra.mxu0 %v93
    %1057 = vmatprep.subr.mxu0 0.0
    %1058 = vmatpush1.msra.mxu0 0.0
    %1059 = vmatprep.subr.mxu0 0.0
    %1060 = vmatpush1.msra.mxu0 0.0
    %1061 = vmatprep.subr.mxu0 0.0
    %1062 = vmatpush1.msra.mxu0 0.0
    %1063 = vmatprep.subr.mxu0 0.0
    %1064 = vmatpush1.msra.mxu0 0.0
    %1065 = vmatprep.subr.mxu0 0.0
    %1066 = vmatpush1.msra.mxu0 0.0
    %1067 = vmatprep.subr.mxu0 0.0
    %1068 = vmatpush1.msra.mxu0 0.0
    %1069 = vmatprep.subr.mxu0 0.0
    %1070 = vmatpush1.msra.mxu0 0.0
    %1071 = vmatprep.subr.mxu0 0.0
    %1072 = vmatpush1.msra.mxu0 0.0
    %1073 = vmatprep.subr.mxu0 0.0
    %1074 = vmatpush1.msra.mxu0 0.0
    %1075 = vmatprep.subr.mxu0 0.0
    %1076 = vmatpush1.msra.mxu0 0.0
    %1077 = vmatprep.subr.mxu0 0.0
    %1078 = vmatpush1.msra.mxu0 0.0
    %1079 = vmatprep.subr.mxu0 0.0
    %1080 = vmatpush1.msra.mxu0 0.0
    %1081 = vmatprep.subr.mxu0 0.0
    %1082 = vmatpush1.msra.mxu0 0.0
    %1083 = vmatprep.subr.mxu0 0.0
    %1084 = vmatpush1.msra.mxu0 0.0
    %1085 = vmatprep.subr.mxu0 0.0
    %1086 = vmatpush1.msra.mxu0 0.0
    %1087 = vmatprep.subr.mxu0 0.0
    %1088 = vmatpush1.msra.mxu0 0.0
    %1089 = vmatprep.subr.mxu0 0.0
    %1090 = vmatpush1.msra.mxu0 0.0
    %1091 = vmatprep.subr.mxu0 0.0
    %1092 = vmatpush1.msra.mxu0 0.0
    %1093 = vmatprep.subr.mxu0 0.0
    %1094 = vmatpush1.msra.mxu0 0.0
    %1095 = vmatprep.subr.mxu0 0.0
    %1096 = vmatpush1.msra.mxu0 0.0
    %1097 = vmatprep.subr.mxu0 0.0
    %1098 = vmatpush1.msra.mxu0 0.0
    %1099 = vmatprep.subr.mxu0 0.0
    %1100 = vmatpush1.msra.mxu0 0.0
    %1101 = vmatprep.subr.mxu0 0.0
    %1102 = vmatpush1.msra.mxu0 0.0
    %1103 = vmatprep.subr.mxu0 0.0
    %1104 = vmatpush1.msra.mxu0 0.0
    %1105 = vmatprep.subr.mxu0 0.0
    %1106 = vmatpush1.msra.mxu0 0.0
    %1107 = vmatprep.subr.mxu0 0.0
    %1108 = vmatpush1.msra.mxu0 0.0
    %1109 = vmatprep.subr.mxu0 0.0
    %1110 = vmatpush1.msra.mxu0 0.0
    %1111 = vmatprep.subr.mxu0 0.0
    %1112 = vmatpush1.msra.mxu0 0.0
    %1113 = vmatprep.subr.mxu0 0.0
    %1114 = vmatpush1.msra.mxu0 0.0
    %1115 = vmatprep.subr.mxu0 0.0
    %1116 = vmatpush1.msra.mxu0 0.0
    %1117 = vmatprep.subr.mxu0 0.0
    %1118 = vmatpush1.msra.mxu0 0.0
    %1119 = vmatprep.mubr.f32.mxu0 0.0
    %1120 = vmatmul.mubr.f32.gmra.mrb[0].mxu0 %v1053
    %v1121 = vpop.f32.mrb[0].mxu0
    %v1122 = vadd.f32 0.0, %v1121
    %v1123 = vpop.f32.mrb[0].mxu0
    %1124 = vdwg.mxu0
    %v1125 = vadd.f32 %v886, %v1122
    %v1126 = vlaneseq
    %v1127 = vshrl.u32 %v1126, 7
    %v1128 = vsub.s32 0, %v1127
    %v1129 = vrot.slane %v94, %v1128
    %v1130 = vadd.f32 %v1125, %v1129
    %v1131 = vmax.f32 %v1130, 0.0
    %v1132 = vld [vmem:[#allocation7 + $0xe8] sm:$0xff]
    %v1133 = vld [vmem:[#allocation7 + $0xf0] sm:$0xff]
    %v1134 = vld [vmem:[#allocation7 + $0xf8] sm:$0xff]
    %v1135 = vld [vmem:[#allocation7 + $0x100] sm:$0xff]
    %v1136 = vld [vmem:[#allocation7 + $0x108] sm:$0xff]
    %v1137 = vld [vmem:[#allocation7 + $0x110] sm:$0xff]
    %v1138 = vld [vmem:[#allocation7 + $0x118] sm:$0xff]
    %v1139 = vld [vmem:[#allocation7 + $0x120] sm:$0xff]
    %v1140 = vld [vmem:[#allocation7 + $0x128] sm:$0xff]
    %v1141 = vld [vmem:[#allocation7 + $0x130] sm:$0xff]
    %v1142 = vld [vmem:[#allocation7 + $0x138] sm:$0xff]
    %v1143 = vld [vmem:[#allocation7 + $0x140] sm:$0xff]
    %v1144 = vld [vmem:[#allocation7 + $0x148] sm:$0x1]
    %1146 = vrot.lane.b32.xlu0 %v54, 32
    %v1147 = vpop.permute.xlu0 %1146
    %v1149 = vsel %vm60, %v1131, %v1147
    %vm1150 = vcmask 523264
    %v1152 = vsel %vm1150, %v1149, 0
    %1154 = vmatprep.subr.mxu0 0.0
    %1155 = vmatpush1.msra.mxu0 %v1132
    %1156 = vmatprep.subr.mxu0 0.0
    %1157 = vmatpush1.msra.mxu0 %v1133
    %1158 = vmatprep.subr.mxu0 0.0
    %1159 = vmatpush1.msra.mxu0 %v1134
    %1160 = vmatprep.subr.mxu0 0.0
    %1161 = vmatpush1.msra.mxu0 %v1135
    %1162 = vmatprep.subr.mxu0 0.0
    %1163 = vmatpush1.msra.mxu0 %v1136
    %1164 = vmatprep.subr.mxu0 0.0
    %1165 = vmatpush1.msra.mxu0 %v1137
    %1166 = vmatprep.subr.mxu0 0.0
    %1167 = vmatpush1.msra.mxu0 %v1138
    %1168 = vmatprep.subr.mxu0 0.0
    %1169 = vmatpush1.msra.mxu0 %v1139
    %1170 = vmatprep.subr.mxu0 0.0
    %1171 = vmatpush1.msra.mxu0 0.0
    %1172 = vmatprep.subr.mxu0 0.0
    %1173 = vmatpush1.msra.mxu0 0.0
    %1174 = vmatprep.subr.mxu0 0.0
    %1175 = vmatpush1.msra.mxu0 0.0
    %1176 = vmatprep.subr.mxu0 0.0
    %1177 = vmatpush1.msra.mxu0 0.0
    %1178 = vmatprep.subr.mxu0 0.0
    %1179 = vmatpush1.msra.mxu0 0.0
    %1180 = vmatprep.subr.mxu0 0.0
    %1181 = vmatpush1.msra.mxu0 0.0
    %1182 = vmatprep.subr.mxu0 0.0
    %1183 = vmatpush1.msra.mxu0 0.0
    %1184 = vmatprep.subr.mxu0 0.0
    %1185 = vmatpush1.msra.mxu0 0.0
    %1186 = vmatprep.subr.mxu0 0.0
    %1187 = vmatpush1.msra.mxu0 0.0
    %1188 = vmatprep.subr.mxu0 0.0
    %1189 = vmatpush1.msra.mxu0 0.0
    %1190 = vmatprep.subr.mxu0 0.0
    %1191 = vmatpush1.msra.mxu0 0.0
    %1192 = vmatprep.subr.mxu0 0.0
    %1193 = vmatpush1.msra.mxu0 0.0
    %1194 = vmatprep.subr.mxu0 0.0
    %1195 = vmatpush1.msra.mxu0 0.0
    %1196 = vmatprep.subr.mxu0 0.0
    %1197 = vmatpush1.msra.mxu0 0.0
    %1198 = vmatprep.subr.mxu0 0.0
    %1199 = vmatpush1.msra.mxu0 0.0
    %1200 = vmatprep.subr.mxu0 0.0
    %1201 = vmatpush1.msra.mxu0 0.0
    %1202 = vmatprep.subr.mxu0 0.0
    %1203 = vmatpush1.msra.mxu0 0.0
    %1204 = vmatprep.subr.mxu0 0.0
    %1205 = vmatpush1.msra.mxu0 0.0
    %1206 = vmatprep.subr.mxu0 0.0
    %1207 = vmatpush1.msra.mxu0 0.0
    %1208 = vmatprep.subr.mxu0 0.0
    %1209 = vmatpush1.msra.mxu0 0.0
    %1210 = vmatprep.subr.mxu0 0.0
    %1211 = vmatpush1.msra.mxu0 0.0
    %1212 = vmatprep.subr.mxu0 0.0
    %1213 = vmatpush1.msra.mxu0 0.0
    %1214 = vmatprep.subr.mxu0 0.0
    %1215 = vmatpush1.msra.mxu0 0.0
    %1216 = vmatprep.subr.mxu0 0.0
    %1217 = vmatpush1.msra.mxu0 0.0
    %1218 = vmatprep.mubr.f32.mxu0 0.0
    %1219 = vmatmul.mubr.f32.gmra.mrb[0].mxu0 %v1152
    %v1220 = vpop.f32.mrb[0].mxu0
    %v1221 = vadd.f32 0.0, %v1220
    %v1222 = vpop.f32.mrb[0].mxu0
    %1223 = vdwg.mxu0
    %v1224 = vxor.u32 %v1221, 2147483648
    %v1225 = vmul.f32 %v1224, 1.442695
    %v1226 = vpow.pop %v1225
    %v1227 = vadd.f32 %v1226, 1.0
    %v1228 = vrcp.pop %v1227
    %v1229 = vmul.f32 1.0, %v1228
    %v1230 = vlaneseq
    %v1231 = vshrl.u32 %v1230, 7
    %v1232 = vsub.s32 0, %v1231
    %v1233 = vrot.slane %v1144, %v1232
    %1235 = vrot.lane.b32.xlu0 %v1233, 32
    %v1236 = vpop.permute.xlu0 %1235
    %v1238 = vsub.f32 %v1221, %v1236
    %v1239 = vxor.u32 %v1238, 2147483648
    %v1240 = vmul.f32 %v1239, 1.442695
    %v1241 = vpow.pop %v1240
    %v1242 = vadd.f32 %v1241, 1.0
    %v1243 = vrcp.pop %v1242
    %v1244 = vmul.f32 1.0, %v1243
    %v1245 = vmul.f32 %v1229, %v54
    %v1247 = vsel %vm60, %v1245, 0
    %1249 = vmatprep.subr.mxu0 0.0
    %1250 = vmatpush1.msra.mxu0 %v1140
    %1251 = vmatprep.subr.mxu0 0.0
    %1252 = vmatpush1.msra.mxu0 %v1141
    %1253 = vmatprep.subr.mxu0 0.0
    %1254 = vmatpush1.msra.mxu0 %v1142
    %1255 = vmatprep.subr.mxu0 0.0
    %1256 = vmatpush1.msra.mxu0 %v1143
    %1257 = vmatprep.subr.mxu0 0.0
    %1258 = vmatpush1.msra.mxu0 0.0
    %1259 = vmatprep.subr.mxu0 0.0
    %1260 = vmatpush1.msra.mxu0 0.0
    %1261 = vmatprep.subr.mxu0 0.0
    %1262 = vmatpush1.msra.mxu0 0.0
    %1263 = vmatprep.subr.mxu0 0.0
    %1264 = vmatpush1.msra.mxu0 0.0
    %1265 = vmatprep.subr.mxu0 0.0
    %1266 = vmatpush1.msra.mxu0 0.0
    %1267 = vmatprep.subr.mxu0 0.0
    %1268 = vmatpush1.msra.mxu0 0.0
    %1269 = vmatprep.subr.mxu0 0.0
    %1270 = vmatpush1.msra.mxu0 0.0
    %1271 = vmatprep.subr.mxu0 0.0
    %1272 = vmatpush1.msra.mxu0 0.0
    %1273 = vmatprep.subr.mxu0 0.0
    %1274 = vmatpush1.msra.mxu0 0.0
    %1275 = vmatprep.subr.mxu0 0.0
    %1276 = vmatpush1.msra.mxu0 0.0
    %1277 = vmatprep.subr.mxu0 0.0
    %1278 = vmatpush1.msra.mxu0 0.0
    %1279 = vmatprep.subr.mxu0 0.0
    %1280 = vmatpush1.msra.mxu0 0.0
    %1281 = vmatprep.subr.mxu0 0.0
    %1282 = vmatpush1.msra.mxu0 0.0
    %1283 = vmatprep.subr.mxu0 0.0
    %1284 = vmatpush1.msra.mxu0 0.0
    %1285 = vmatprep.subr.mxu0 0.0
    %1286 = vmatpush1.msra.mxu0 0.0
    %1287 = vmatprep.subr.mxu0 0.0
    %1288 = vmatpush1.msra.mxu0 0.0
    %1289 = vmatprep.subr.mxu0 0.0
    %1290 = vmatpush1.msra.mxu0 0.0
    %1291 = vmatprep.subr.mxu0 0.0
    %1292 = vmatpush1.msra.mxu0 0.0
    %1293 = vmatprep.subr.mxu0 0.0
    %1294 = vmatpush1.msra.mxu0 0.0
    %1295 = vmatprep.subr.mxu0 0.0
    %1296 = vmatpush1.msra.mxu0 0.0
    %1297 = vmatprep.subr.mxu0 0.0
    %1298 = vmatpush1.msra.mxu0 0.0
    %1299 = vmatprep.subr.mxu0 0.0
    %1300 = vmatpush1.msra.mxu0 0.0
    %1301 = vmatprep.subr.mxu0 0.0
    %1302 = vmatpush1.msra.mxu0 0.0
    %1303 = vmatprep.subr.mxu0 0.0
    %1304 = vmatpush1.msra.mxu0 0.0
    %1305 = vmatprep.subr.mxu0 0.0
    %1306 = vmatpush1.msra.mxu0 0.0
    %1307 = vmatprep.subr.mxu0 0.0
    %1308 = vmatpush1.msra.mxu0 0.0
    %1309 = vmatprep.subr.mxu0 0.0
    %1310 = vmatpush1.msra.mxu0 0.0
    %1311 = vmatprep.subr.mxu0 0.0
    %1312 = vmatpush1.msra.mxu0 0.0
    %1313 = vmatprep.mubr.f32.mxu0 0.0
    %1314 = vmatmul.mubr.f32.gmra.mrb[0].mxu0 %v1247
    %v1315 = vpop.f32.mrb[0].mxu0
    %v1316 = vadd.f32 0.0, %v1315
    %v1317 = vpop.f32.mrb[0].mxu0
    %1318 = vdwg.mxu0
    %1320 = vrot.lane.b32.xlu0 %v1316, 64
    %v1321 = vpop.permute.xlu0 %1320
    %v1323 = vadd.f32 %v1221, %v1321
    %v1324 = vtanh.pop %v1323
    %v1325 = vsub.f32 1.0, %v1244
    %v1326 = vmul.f32 %v1325, %v1147
    %1328 = vrot.lane.b32.xlu0 %v1324, 96
    %v1329 = vpop.permute.xlu0 %1328
    %v1331 = vmul.f32 %v1244, %v1329
    %v1332 = vadd.f32 %v1326, %v1331
    %1334 = vrot.lane.b32.xlu0 %v1332, 96
    %v1335 = vpop.permute.xlu0 %1334
    %v1337 = vsel %vm60, %v1335, 0.0
    %1338 = vadd.xlane.f32.xlu0 %v1337
    %v1339 = vpop.xlane.xlu0 %1338
    %v1340 = vmul.f32 %v1339, %v64
    %v1341 = vsub.f32 %v1332, %v1340
    %v1342 = vmul.f32 %v1341, %v1341
    %1344 = vrot.lane.b32.xlu0 %v1342, 96
    %v1345 = vpop.permute.xlu0 %1344
    %v1347 = vsel %vm60, %v1345, 0.0
    %1348 = vadd.xlane.f32.xlu0 %v1347
    %v1349 = vpop.xlane.xlu0 %1348
    %v1350 = vmul.f32 %v1349, %v64
    %v1351 = vadd.f32 %v1350, 1e-05
    %v1352 = vrsqrt.pop %v1351
    %v1353 = vmul.f32 %v1341, %v1352
    %1355 = vrot.lane.b32.xlu0 %v78, 32
    %v1356 = vpop.permute.xlu0 %1355
    %v1358 = vmul.f32 %v1353, %v1356
    %1360 = vrot.lane.b32.xlu0 %v83, 32
    %v1361 = vpop.permute.xlu0 %1360
    %v1363 = vadd.f32 %v1358, %v1361
    %v1364 = vld [vmem:[#allocation7 + $0x78] sm:$0xff]
    %v1365 = vld [vmem:[#allocation7 + $0x80] sm:$0xff]
    %v1366 = vld [vmem:[#allocation7 + $0x88] sm:$0xff]
    %v1367 = vld [vmem:[#allocation7 + $0x90] sm:$0xff]
    %v1368 = vld [vmem:[#allocation7 + $0x98] sm:$0x1]
    %v1369 = vld [vmem:[#allocation7 + $0xa0] sm:$0xff]
    %v1370 = vld [vmem:[#allocation7 + $0xa8] sm:$0xff]
    %v1371 = vld [vmem:[#allocation7 + $0xb0] sm:$0xff]
    %v1372 = vld [vmem:[#allocation7 + $0xb8] sm:$0xff]
    %v1373 = vld [vmem:[#allocation7 + $0xc0] sm:$0xff]
    %v1374 = vld [vmem:[#allocation7 + $0xc8] sm:$0xff]
    %v1375 = vld [vmem:[#allocation7 + $0xd0] sm:$0xff]
    %v1376 = vld [vmem:[#allocation7 + $0xd8] sm:$0xff]
    %v1377 = vld [vmem:[#allocation7 + $0xe0] sm:$0x1]
    %v1378 = vlaneseq
    %v1379 = vshrl.u32 %v1378, 7
    %v1380 = vsub.s32 0, %v1379
    %v1381 = vrot.slane %v1368, %v1380
    %1383 = vrot.lane.b32.xlu0 %v1363, 96
    %v1384 = vpop.permute.xlu0 %1383
    %v1385 = vsel %vm60, %v1384, 0
    %1387 = vmatprep.subr.mxu0 0.0
    %1388 = vmatpush1.msra.mxu0 %v1364
    %1389 = vmatprep.subr.mxu0 0.0
    %1390 = vmatpush1.msra.mxu0 %v1365
    %1391 = vmatprep.subr.mxu0 0.0
    %1392 = vmatpush1.msra.mxu0 %v1366
    %1393 = vmatprep.subr.mxu0 0.0
    %1394 = vmatpush1.msra.mxu0 %v1367
    %1395 = vmatprep.subr.mxu0 0.0
    %1396 = vmatpush1.msra.mxu0 0.0
    %1397 = vmatprep.subr.mxu0 0.0
    %1398 = vmatpush1.msra.mxu0 0.0
    %1399 = vmatprep.subr.mxu0 0.0
    %1400 = vmatpush1.msra.mxu0 0.0
    %1401 = vmatprep.subr.mxu0 0.0
    %1402 = vmatpush1.msra.mxu0 0.0
    %1403 = vmatprep.subr.mxu0 0.0
    %1404 = vmatpush1.msra.mxu0 0.0
    %1405 = vmatprep.subr.mxu0 0.0
    %1406 = vmatpush1.msra.mxu0 0.0
    %1407 = vmatprep.subr.mxu0 0.0
    %1408 = vmatpush1.msra.mxu0 0.0
    %1409 = vmatprep.subr.mxu0 0.0
    %1410 = vmatpush1.msra.mxu0 0.0
    %1411 = vmatprep.subr.mxu0 0.0
    %1412 = vmatpush1.msra.mxu0 0.0
    %1413 = vmatprep.subr.mxu0 0.0
    %1414 = vmatpush1.msra.mxu0 0.0
    %1415 = vmatprep.subr.mxu0 0.0
    %1416 = vmatpush1.msra.mxu0 0.0
    %1417 = vmatprep.subr.mxu0 0.0
    %1418 = vmatpush1.msra.mxu0 0.0
    %1419 = vmatprep.subr.mxu0 0.0
    %1420 = vmatpush1.msra.mxu0 0.0
    %1421 = vmatprep.subr.mxu0 0.0
    %1422 = vmatpush1.msra.mxu0 0.0
    %1423 = vmatprep.subr.mxu0 0.0
    %1424 = vmatpush1.msra.mxu0 0.0
    %1425 = vmatprep.subr.mxu0 0.0
    %1426 = vmatpush1.msra.mxu0 0.0
    %1427 = vmatprep.subr.mxu0 0.0
    %1428 = vmatpush1.msra.mxu0 0.0
    %1429 = vmatprep.subr.mxu0 0.0
    %1430 = vmatpush1.msra.mxu0 0.0
    %1431 = vmatprep.subr.mxu0 0.0
    %1432 = vmatpush1.msra.mxu0 0.0
    %1433 = vmatprep.subr.mxu0 0.0
    %1434 = vmatpush1.msra.mxu0 0.0
    %1435 = vmatprep.subr.mxu0 0.0
    %1436 = vmatpush1.msra.mxu0 0.0
    %1437 = vmatprep.subr.mxu0 0.0
    %1438 = vmatpush1.msra.mxu0 0.0
    %1439 = vmatprep.subr.mxu0 0.0
    %1440 = vmatpush1.msra.mxu0 0.0
    %1441 = vmatprep.subr.mxu0 0.0
    %1442 = vmatpush1.msra.mxu0 0.0
    %1443 = vmatprep.subr.mxu0 0.0
    %1444 = vmatpush1.msra.mxu0 0.0
    %1445 = vmatprep.subr.mxu0 0.0
    %1446 = vmatpush1.msra.mxu0 0.0
    %1447 = vmatprep.subr.mxu0 0.0
    %1448 = vmatpush1.msra.mxu0 0.0
    %1449 = vmatprep.subr.mxu0 0.0
    %1450 = vmatpush1.msra.mxu0 0.0
    %1451 = vmatprep.mubr.f32.mxu0 0.0
    %1452 = vmatmul.mubr.f32.gmra.mrb[0].mxu0 %v1385
    %v1453 = vpop.f32.mrb[0].mxu0
    %v1454 = vadd.f32 %v1381, %v1453
    %v1455 = vpop.f32.mrb[0].mxu0
    %1456 = vdwg.mxu0
    %v1457 = vmax.f32 %v1454, 0.0
    %v1458 = vlaneseq
    %v1459 = vshrl.u32 %v1458, 7
    %v1460 = vsub.s32 0, %v1459
    %v1461 = vrot.slane %v1377, %v1460
    %v1463 = vsel %vm1150, %v1457, 0
    %1465 = vmatprep.subr.mxu0 0.0
    %1466 = vmatpush1.msra.mxu0 %v1369
    %1467 = vmatprep.subr.mxu0 0.0
    %1468 = vmatpush1.msra.mxu0 %v1370
    %1469 = vmatprep.subr.mxu0 0.0
    %1470 = vmatpush1.msra.mxu0 %v1371
    %1471 = vmatprep.subr.mxu0 0.0
    %1472 = vmatpush1.msra.mxu0 %v1372
    %1473 = vmatprep.subr.mxu0 0.0
    %1474 = vmatpush1.msra.mxu0 %v1373
    %1475 = vmatprep.subr.mxu0 0.0
    %1476 = vmatpush1.msra.mxu0 %v1374
    %1477 = vmatprep.subr.mxu0 0.0
    %1478 = vmatpush1.msra.mxu0 %v1375
    %1479 = vmatprep.subr.mxu0 0.0
    %1480 = vmatpush1.msra.mxu0 %v1376
    %1481 = vmatprep.subr.mxu0 0.0
    %1482 = vmatpush1.msra.mxu0 0.0
    %1483 = vmatprep.subr.mxu0 0.0
    %1484 = vmatpush1.msra.mxu0 0.0
    %1485 = vmatprep.subr.mxu0 0.0
    %1486 = vmatpush1.msra.mxu0 0.0
    %1487 = vmatprep.subr.mxu0 0.0
    %1488 = vmatpush1.msra.mxu0 0.0
    %1489 = vmatprep.subr.mxu0 0.0
    %1490 = vmatpush1.msra.mxu0 0.0
    %1491 = vmatprep.subr.mxu0 0.0
    %1492 = vmatpush1.msra.mxu0 0.0
    %1493 = vmatprep.subr.mxu0 0.0
    %1494 = vmatpush1.msra.mxu0 0.0
    %1495 = vmatprep.subr.mxu0 0.0
    %1496 = vmatpush1.msra.mxu0 0.0
    %1497 = vmatprep.subr.mxu0 0.0
    %1498 = vmatpush1.msra.mxu0 0.0
    %1499 = vmatprep.subr.mxu0 0.0
    %1500 = vmatpush1.msra.mxu0 0.0
    %1501 = vmatprep.subr.mxu0 0.0
    %1502 = vmatpush1.msra.mxu0 0.0
    %1503 = vmatprep.subr.mxu0 0.0
    %1504 = vmatpush1.msra.mxu0 0.0
    %1505 = vmatprep.subr.mxu0 0.0
    %1506 = vmatpush1.msra.mxu0 0.0
    %1507 = vmatprep.subr.mxu0 0.0
    %1508 = vmatpush1.msra.mxu0 0.0
    %1509 = vmatprep.subr.mxu0 0.0
    %1510 = vmatpush1.msra.mxu0 0.0
    %1511 = vmatprep.subr.mxu0 0.0
    %1512 = vmatpush1.msra.mxu0 0.0
    %1513 = vmatprep.subr.mxu0 0.0
    %1514 = vmatpush1.msra.mxu0 0.0
    %1515 = vmatprep.subr.mxu0 0.0
    %1516 = vmatpush1.msra.mxu0 0.0
    %1517 = vmatprep.subr.mxu0 0.0
    %1518 = vmatpush1.msra.mxu0 0.0
    %1519 = vmatprep.subr.mxu0 0.0
    %1520 = vmatpush1.msra.mxu0 0.0
    %1521 = vmatprep.subr.mxu0 0.0
    %1522 = vmatpush1.msra.mxu0 0.0
    %1523 = vmatprep.subr.mxu0 0.0
    %1524 = vmatpush1.msra.mxu0 0.0
    %1525 = vmatprep.subr.mxu0 0.0
    %1526 = vmatpush1.msra.mxu0 0.0
    %1527 = vmatprep.subr.mxu0 0.0
    %1528 = vmatpush1.msra.mxu0 0.0
    %1529 = vmatprep.mubr.f32.mxu0 0.0
    %1530 = vmatmul.mubr.f32.gmra.mrb[0].mxu0 %v1463
    %v1531 = vpop.f32.mrb[0].mxu0
    %v1532 = vadd.f32 %v1461, %v1531
    %v1533 = vpop.f32.mrb[0].mxu0
    %1534 = vdwg.mxu0
    %v1535 = vmax.f32 %v1532, 0.0
    %v1536 = vld [vmem:[#allocation7 + $0x150] sm:$0xff]
    %v1537 = vld [vmem:[#allocation7 + $0x158] sm:$0xff]
    %v1538 = vld [vmem:[#allocation7 + $0x160] sm:$0xff]
    %v1539 = vld [vmem:[#allocation7 + $0x168] sm:$0xff]
    %v1540 = vld [vmem:[#allocation7 + $0x170] sm:$0xff]
    %v1541 = vld [vmem:[#allocation7 + $0x178] sm:$0xff]
    %v1542 = vld [vmem:[#allocation7 + $0x180] sm:$0xff]
    %v1543 = vld [vmem:[#allocation7 + $0x188] sm:$0xff]
    %v1544 = vld [vmem:[#allocation7 + $0x190] sm:$0xff]
    %v1545 = vld [vmem:[#allocation7 + $0x198] sm:$0xff]
    %v1546 = vld [vmem:[#allocation7 + $0x1a0] sm:$0xff]
    %v1547 = vld [vmem:[#allocation7 + $0x1a8] sm:$0xff]
    %v1548 = vld [vmem:[#allocation7 + $0x1b0] sm:$0x1]
    %v1549 = vsel %vm60, %v1535, %v1332
    %v1551 = vsel %vm1150, %v1549, 0
    %1553 = vmatprep.subr.mxu0 0.0
    %1554 = vmatpush1.msra.mxu0 %v1536
    %1555 = vmatprep.subr.mxu0 0.0
    %1556 = vmatpush1.msra.mxu0 %v1537
    %1557 = vmatprep.subr.mxu0 0.0
    %1558 = vmatpush1.msra.mxu0 %v1538
    %1559 = vmatprep.subr.mxu0 0.0
    %1560 = vmatpush1.msra.mxu0 %v1539
    %1561 = vmatprep.subr.mxu0 0.0
    %1562 = vmatpush1.msra.mxu0 %v1540
    %1563 = vmatprep.subr.mxu0 0.0
    %1564 = vmatpush1.msra.mxu0 %v1541
    %1565 = vmatprep.subr.mxu0 0.0
    %1566 = vmatpush1.msra.mxu0 %v1542
    %1567 = vmatprep.subr.mxu0 0.0
    %1568 = vmatpush1.msra.mxu0 %v1543
    %1569 = vmatprep.subr.mxu0 0.0
    %1570 = vmatpush1.msra.mxu0 0.0
    %1571 = vmatprep.subr.mxu0 0.0
    %1572 = vmatpush1.msra.mxu0 0.0
    %1573 = vmatprep.subr.mxu0 0.0
    %1574 = vmatpush1.msra.mxu0 0.0
    %1575 = vmatprep.subr.mxu0 0.0
    %1576 = vmatpush1.msra.mxu0 0.0
    %1577 = vmatprep.subr.mxu0 0.0
    %1578 = vmatpush1.msra.mxu0 0.0
    %1579 = vmatprep.subr.mxu0 0.0
    %1580 = vmatpush1.msra.mxu0 0.0
    %1581 = vmatprep.subr.mxu0 0.0
    %1582 = vmatpush1.msra.mxu0 0.0
    %1583 = vmatprep.subr.mxu0 0.0
    %1584 = vmatpush1.msra.mxu0 0.0
    %1585 = vmatprep.subr.mxu0 0.0
    %1586 = vmatpush1.msra.mxu0 0.0
    %1587 = vmatprep.subr.mxu0 0.0
    %1588 = vmatpush1.msra.mxu0 0.0
    %1589 = vmatprep.subr.mxu0 0.0
    %1590 = vmatpush1.msra.mxu0 0.0
    %1591 = vmatprep.subr.mxu0 0.0
    %1592 = vmatpush1.msra.mxu0 0.0
    %1593 = vmatprep.subr.mxu0 0.0
    %1594 = vmatpush1.msra.mxu0 0.0
    %1595 = vmatprep.subr.mxu0 0.0
    %1596 = vmatpush1.msra.mxu0 0.0
    %1597 = vmatprep.subr.mxu0 0.0
    %1598 = vmatpush1.msra.mxu0 0.0
    %1599 = vmatprep.subr.mxu0 0.0
    %1600 = vmatpush1.msra.mxu0 0.0
    %1601 = vmatprep.subr.mxu0 0.0
    %1602 = vmatpush1.msra.mxu0 0.0
    %1603 = vmatprep.subr.mxu0 0.0
    %1604 = vmatpush1.msra.mxu0 0.0
    %1605 = vmatprep.subr.mxu0 0.0
    %1606 = vmatpush1.msra.mxu0 0.0
    %1607 = vmatprep.subr.mxu0 0.0
    %1608 = vmatpush1.msra.mxu0 0.0
    %1609 = vmatprep.subr.mxu0 0.0
    %1610 = vmatpush1.msra.mxu0 0.0
    %1611 = vmatprep.subr.mxu0 0.0
    %1612 = vmatpush1.msra.mxu0 0.0
    %1613 = vmatprep.subr.mxu0 0.0
    %1614 = vmatpush1.msra.mxu0 0.0
    %1615 = vmatprep.subr.mxu0 0.0
    %1616 = vmatpush1.msra.mxu0 0.0
    %1617 = vmatprep.mubr.f32.mxu0 0.0
    %1618 = vmatmul.mubr.f32.gmra.mrb[0].mxu0 %v1551
    %v1619 = vpop.f32.mrb[0].mxu0
    %v1620 = vadd.f32 0.0, %v1619
    %v1621 = vpop.f32.mrb[0].mxu0
    %1622 = vdwg.mxu0
    %v1623 = vxor.u32 %v1620, 2147483648
    %v1624 = vmul.f32 %v1623, 1.442695
    %v1625 = vpow.pop %v1624
    %v1626 = vadd.f32 %v1625, 1.0
    %v1627 = vrcp.pop %v1626
    %v1628 = vmul.f32 1.0, %v1627
    %v1629 = vlaneseq
    %v1630 = vshrl.u32 %v1629, 7
    %v1631 = vsub.s32 0, %v1630
    %v1632 = vrot.slane %v1548, %v1631
    %1634 = vrot.lane.b32.xlu0 %v1632, 32
    %v1635 = vpop.permute.xlu0 %1634
    %v1637 = vsub.f32 %v1620, %v1635
    %v1638 = vxor.u32 %v1637, 2147483648
    %v1639 = vmul.f32 %v1638, 1.442695
    %v1640 = vpow.pop %v1639
    %v1641 = vadd.f32 %v1640, 1.0
    %v1642 = vrcp.pop %v1641
    %v1643 = vmul.f32 1.0, %v1642
    %v1644 = vmul.f32 %v1628, %v1335
    %v1646 = vsel %vm60, %v1644, 0
    %1648 = vmatprep.subr.mxu0 0.0
    %1649 = vmatpush1.msra.mxu0 %v1544
    %1650 = vmatprep.subr.mxu0 0.0
    %1651 = vmatpush1.msra.mxu0 %v1545
    %1652 = vmatprep.subr.mxu0 0.0
    %1653 = vmatpush1.msra.mxu0 %v1546
    %1654 = vmatprep.subr.mxu0 0.0
    %1655 = vmatpush1.msra.mxu0 %v1547
    %1656 = vmatprep.subr.mxu0 0.0
    %1657 = vmatpush1.msra.mxu0 0.0
    %1658 = vmatprep.subr.mxu0 0.0
    %1659 = vmatpush1.msra.mxu0 0.0
    %1660 = vmatprep.subr.mxu0 0.0
    %1661 = vmatpush1.msra.mxu0 0.0
    %1662 = vmatprep.subr.mxu0 0.0
    %1663 = vmatpush1.msra.mxu0 0.0
    %1664 = vmatprep.subr.mxu0 0.0
    %1665 = vmatpush1.msra.mxu0 0.0
    %1666 = vmatprep.subr.mxu0 0.0
    %1667 = vmatpush1.msra.mxu0 0.0
    %1668 = vmatprep.subr.mxu0 0.0
    %1669 = vmatpush1.msra.mxu0 0.0
    %1670 = vmatprep.subr.mxu0 0.0
    %1671 = vmatpush1.msra.mxu0 0.0
    %1672 = vmatprep.subr.mxu0 0.0
    %1673 = vmatpush1.msra.mxu0 0.0
    %1674 = vmatprep.subr.mxu0 0.0
    %1675 = vmatpush1.msra.mxu0 0.0
    %1676 = vmatprep.subr.mxu0 0.0
    %1677 = vmatpush1.msra.mxu0 0.0
    %1678 = vmatprep.subr.mxu0 0.0
    %1679 = vmatpush1.msra.mxu0 0.0
    %1680 = vmatprep.subr.mxu0 0.0
    %1681 = vmatpush1.msra.mxu0 0.0
    %1682 = vmatprep.subr.mxu0 0.0
    %1683 = vmatpush1.msra.mxu0 0.0
    %1684 = vmatprep.subr.mxu0 0.0
    %1685 = vmatpush1.msra.mxu0 0.0
    %1686 = vmatprep.subr.mxu0 0.0
    %1687 = vmatpush1.msra.mxu0 0.0
    %1688 = vmatprep.subr.mxu0 0.0
    %1689 = vmatpush1.msra.mxu0 0.0
    %1690 = vmatprep.subr.mxu0 0.0
    %1691 = vmatpush1.msra.mxu0 0.0
    %1692 = vmatprep.subr.mxu0 0.0
    %1693 = vmatpush1.msra.mxu0 0.0
    %1694 = vmatprep.subr.mxu0 0.0
    %1695 = vmatpush1.msra.mxu0 0.0
    %1696 = vmatprep.subr.mxu0 0.0
    %1697 = vmatpush1.msra.mxu0 0.0
    %1698 = vmatprep.subr.mxu0 0.0
    %1699 = vmatpush1.msra.mxu0 0.0
    %1700 = vmatprep.subr.mxu0 0.0
    %1701 = vmatpush1.msra.mxu0 0.0
    %1702 = vmatprep.subr.mxu0 0.0
    %1703 = vmatpush1.msra.mxu0 0.0
    %1704 = vmatprep.subr.mxu0 0.0
    %1705 = vmatpush1.msra.mxu0 0.0
    %1706 = vmatprep.subr.mxu0 0.0
    %1707 = vmatpush1.msra.mxu0 0.0
    %1708 = vmatprep.subr.mxu0 0.0
    %1709 = vmatpush1.msra.mxu0 0.0
    %1710 = vmatprep.subr.mxu0 0.0
    %1711 = vmatpush1.msra.mxu0 0.0
    %1712 = vmatprep.mubr.f32.mxu0 0.0
    %1713 = vmatmul.mubr.f32.gmra.mrb[0].mxu0 %v1646
    %v1714 = vpop.f32.mrb[0].mxu0
    %v1715 = vadd.f32 0.0, %v1714
    %v1716 = vpop.f32.mrb[0].mxu0
    %1717 = vdwg.mxu0
    %1719 = vrot.lane.b32.xlu0 %v1715, 64
    %v1720 = vpop.permute.xlu0 %1719
    %v1722 = vadd.f32 %v1620, %v1720
    %v1723 = vtanh.pop %v1722
    %v1724 = vsub.f32 1.0, %v1643
    %v1725 = vmul.f32 %v1724, %v1332
    %1727 = vrot.lane.b32.xlu0 %v1723, 96
    %v1728 = vpop.permute.xlu0 %1727
    %v1730 = vmul.f32 %v1643, %v1728
    %v1731 = vadd.f32 %v1725, %v1730
    %v1732 = vld [vmem:[#allocation7 + $0x1b8] sm:$0x1]
    %v1733 = vld [vmem:[#allocation7 + $0x1c0] sm:$0x1]
    %1735 = vrot.lane.b32.xlu0 %v1731, 96
    %v1736 = vpop.permute.xlu0 %1735
    %v1738 = vsel %vm60, %v1736, 0.0
    %1739 = vadd.xlane.f32.xlu0 %v1738
    %v1740 = vpop.xlane.xlu0 %1739
    %v1741 = vmul.f32 %v1740, %v64
    %v1742 = vsub.f32 %v1731, %v1741
    %v1743 = vmul.f32 %v1742, %v1742
    %1745 = vrot.lane.b32.xlu0 %v1743, 96
    %v1746 = vpop.permute.xlu0 %1745
    %v1748 = vsel %vm60, %v1746, 0.0
    %1749 = vadd.xlane.f32.xlu0 %v1748
    %v1750 = vpop.xlane.xlu0 %1749
    %v1751 = vmul.f32 %v1750, %v64
    %v1752 = vadd.f32 %v1751, 1e-05
    %v1753 = vrsqrt.pop %v1752
    %v1754 = vmul.f32 %v1742, %v1753
    %v1755 = vlaneseq
    %v1756 = vshrl.u32 %v1755, 7
    %v1757 = vsub.s32 0, %v1756
    %v1758 = vrot.slane %v1732, %v1757
    %1760 = vrot.lane.b32.xlu0 %v1758, 32
    %v1761 = vpop.permute.xlu0 %1760
    %v1763 = vmul.f32 %v1754, %v1761
    %v1764 = vlaneseq
    %v1765 = vshrl.u32 %v1764, 7
    %v1766 = vsub.s32 0, %v1765
    %v1767 = vrot.slane %v1733, %v1766
    %1769 = vrot.lane.b32.xlu0 %v1767, 32
    %v1770 = vpop.permute.xlu0 %1769
    %v1772 = vadd.f32 %v1763, %v1770
    %v1773 = vld [vmem:[#allocation7 + $0x358] sm:$0xff]
    %v1774 = vld [vmem:[#allocation7 + $0x1c8] sm:$0xff]
    %v1775 = vld [vmem:[#allocation7 + $0x1d0] sm:$0xff]
    %v1776 = vld [vmem:[#allocation7 + $0x1d8] sm:$0xff]
    %v1777 = vld [vmem:[#allocation7 + $0x1e0] sm:$0xff]
    %v1778 = vld [vmem:[#allocation7 + $0x1e8] sm:$0x1]
    %v1779 = vld [vmem:[#allocation7 + $0x1f0] sm:$0xff]
    %v1780 = vld [vmem:[#allocation7 + $0x1f8] sm:$0xff]
    %v1781 = vld [vmem:[#allocation7 + $0x200] sm:$0xff]
    %v1782 = vld [vmem:[#allocation7 + $0x208] sm:$0xff]
    %v1783 = vld [vmem:[#allocation7 + $0x210] sm:$0x1]
    %1785 = vrot.lane.b32.xlu0 %v1772, 96
    %v1786 = vpop.permute.xlu0 %1785
    %v1787 = vlaneseq
    %v1788 = vshrl.u32 %v1787, 7
    %v1789 = vsub.s32 0, %v1788
    %v1790 = vrot.slane %v1778, %v1789
    %v1792 = vsel %vm60, %v1773, 0
    %v1794 = vsel %vm60, %v1786, 0
    %1796 = vmatprep.subr.mxu0 0.0
    %1797 = vmatpush1.msra.mxu0 %v1774
    %1798 = vmatprep.subr.mxu0 0.0
    %1799 = vmatpush1.msra.mxu0 %v1775
    %1800 = vmatprep.subr.mxu0 0.0
    %1801 = vmatpush1.msra.mxu0 %v1776
    %1802 = vmatprep.subr.mxu0 0.0
    %1803 = vmatpush1.msra.mxu0 %v1777
    %1804 = vmatprep.subr.mxu0 0.0
    %1805 = vmatpush1.msra.mxu0 0.0
    %1806 = vmatprep.subr.mxu0 0.0
    %1807 = vmatpush1.msra.mxu0 0.0
    %1808 = vmatprep.subr.mxu0 0.0
    %1809 = vmatpush1.msra.mxu0 0.0
    %1810 = vmatprep.subr.mxu0 0.0
    %1811 = vmatpush1.msra.mxu0 0.0
    %1812 = vmatprep.subr.mxu0 0.0
    %1813 = vmatpush1.msra.mxu0 0.0
    %1814 = vmatprep.subr.mxu0 0.0
    %1815 = vmatpush1.msra.mxu0 0.0
    %1816 = vmatprep.subr.mxu0 0.0
    %1817 = vmatpush1.msra.mxu0 0.0
    %1818 = vmatprep.subr.mxu0 0.0
    %1819 = vmatpush1.msra.mxu0 0.0
    %1820 = vmatprep.subr.mxu0 0.0
    %1821 = vmatpush1.msra.mxu0 0.0
    %1822 = vmatprep.subr.mxu0 0.0
    %1823 = vmatpush1.msra.mxu0 0.0
    %1824 = vmatprep.subr.mxu0 0.0
    %1825 = vmatpush1.msra.mxu0 0.0
    %1826 = vmatprep.subr.mxu0 0.0
    %1827 = vmatpush1.msra.mxu0 0.0
    %1828 = vmatprep.subr.mxu0 0.0
    %1829 = vmatpush1.msra.mxu0 0.0
    %1830 = vmatprep.subr.mxu0 0.0
    %1831 = vmatpush1.msra.mxu0 0.0
    %1832 = vmatprep.subr.mxu0 0.0
    %1833 = vmatpush1.msra.mxu0 0.0
    %1834 = vmatprep.subr.mxu0 0.0
    %1835 = vmatpush1.msra.mxu0 0.0
    %1836 = vmatprep.subr.mxu0 0.0
    %1837 = vmatpush1.msra.mxu0 0.0
    %1838 = vmatprep.subr.mxu0 0.0
    %1839 = vmatpush1.msra.mxu0 0.0
    %1840 = vmatprep.subr.mxu0 0.0
    %1841 = vmatpush1.msra.mxu0 0.0
    %1842 = vmatprep.subr.mxu0 0.0
    %1843 = vmatpush1.msra.mxu0 0.0
    %1844 = vmatprep.subr.mxu0 0.0
    %1845 = vmatpush1.msra.mxu0 0.0
    %1846 = vmatprep.subr.mxu0 0.0
    %1847 = vmatpush1.msra.mxu0 0.0
    %1848 = vmatprep.subr.mxu0 0.0
    %1849 = vmatpush1.msra.mxu0 0.0
    %1850 = vmatprep.subr.mxu0 0.0
    %1851 = vmatpush1.msra.mxu0 0.0
    %1852 = vmatprep.subr.mxu0 0.0
    %1853 = vmatpush1.msra.mxu0 0.0
    %1854 = vmatprep.subr.mxu0 0.0
    %1855 = vmatpush1.msra.mxu0 0.0
    %1856 = vmatprep.subr.mxu0 0.0
    %1857 = vmatpush1.msra.mxu0 0.0
    %1858 = vmatprep.subr.mxu0 0.0
    %1859 = vmatpush1.msra.mxu0 0.0
    %1860 = vmatprep.mubr.f32.mxu0 0.0
    %1861 = vmatmul.mubr.f32.gmra.mrb[0].mxu0 %v1792
    %v1862 = vpop.f32.mrb[0].mxu0
    %v1863 = vadd.f32 %v1790, %v1862
    %v1864 = vpop.f32.mrb[0].mxu0
    %1865 = vmatprep.mubr.f32.mxu0 0.0
    %1866 = vmatmul.mubr.f32.gmra.mrb[0].mxu0 %v1794
    %v1867 = vpop.f32.mrb[0].mxu0
    %v1868 = vadd.f32 %v1790, %v1867
    %v1869 = vpop.f32.mrb[0].mxu0
    %1870 = vdwg.mxu0
    %1873 = vrot.lane.b32.xlu0 %v1863, 96
    %v1874 = vpop.permute.xlu0 %1873
    %1875 = vrot.lane.b32.xlu0 %v1868, 96
    %v1876 = vpop.permute.xlu0 %1875
    %v1877 = vsel %vm175, %v1868, 0
    %v1879 = vsel %vm175, %v1874, 0
    %v1881 = vsel %vm175, %v1876, 0
    %1883 = vmatprep.subr.mxu0 0.0
    %1884 = vmatpush1.xpose.msra.mxu0 %v1879
    %1885 = vmatprep.subr.mxu0 0.0
    %1886 = vmatpush1.xpose.msra.mxu0 %v1881
    %1887 = vmatprep.subr.mxu0 0.0
    %1888 = vmatpush1.xpose.msra.mxu0 0.0
    %1889 = vmatprep.subr.mxu0 0.0
    %1890 = vmatpush1.xpose.msra.mxu0 0.0
    %1891 = vmatprep.subr.mxu0 0.0
    %1892 = vmatpush1.xpose.msra.mxu0 0.0
    %1893 = vmatprep.subr.mxu0 0.0
    %1894 = vmatpush1.xpose.msra.mxu0 0.0
    %1895 = vmatprep.subr.mxu0 0.0
    %1896 = vmatpush1.xpose.msra.mxu0 0.0
    %1897 = vmatprep.subr.mxu0 0.0
    %1898 = vmatpush1.xpose.msra.mxu0 0.0
    %1899 = vmatprep.subr.mxu0 0.0
    %1900 = vmatpush1.xpose.msra.mxu0 0.0
    %1901 = vmatprep.subr.mxu0 0.0
    %1902 = vmatpush1.xpose.msra.mxu0 0.0
    %1903 = vmatprep.subr.mxu0 0.0
    %1904 = vmatpush1.xpose.msra.mxu0 0.0
    %1905 = vmatprep.subr.mxu0 0.0
    %1906 = vmatpush1.xpose.msra.mxu0 0.0
    %1907 = vmatprep.subr.mxu0 0.0
    %1908 = vmatpush1.xpose.msra.mxu0 0.0
    %1909 = vmatprep.subr.mxu0 0.0
    %1910 = vmatpush1.xpose.msra.mxu0 0.0
    %1911 = vmatprep.subr.mxu0 0.0
    %1912 = vmatpush1.xpose.msra.mxu0 0.0
    %1913 = vmatprep.subr.mxu0 0.0
    %1914 = vmatpush1.xpose.msra.mxu0 0.0
    %1915 = vmatprep.subr.mxu0 0.0
    %1916 = vmatpush1.xpose.msra.mxu0 0.0
    %1917 = vmatprep.subr.mxu0 0.0
    %1918 = vmatpush1.xpose.msra.mxu0 0.0
    %1919 = vmatprep.subr.mxu0 0.0
    %1920 = vmatpush1.xpose.msra.mxu0 0.0
    %1921 = vmatprep.subr.mxu0 0.0
    %1922 = vmatpush1.xpose.msra.mxu0 0.0
    %1923 = vmatprep.subr.mxu0 0.0
    %1924 = vmatpush1.xpose.msra.mxu0 0.0
    %1925 = vmatprep.subr.mxu0 0.0
    %1926 = vmatpush1.xpose.msra.mxu0 0.0
    %1927 = vmatprep.subr.mxu0 0.0
    %1928 = vmatpush1.xpose.msra.mxu0 0.0
    %1929 = vmatprep.subr.mxu0 0.0
    %1930 = vmatpush1.xpose.msra.mxu0 0.0
    %1931 = vmatprep.subr.mxu0 0.0
    %1932 = vmatpush1.xpose.msra.mxu0 0.0
    %1933 = vmatprep.subr.mxu0 0.0
    %1934 = vmatpush1.xpose.msra.mxu0 0.0
    %1935 = vmatprep.subr.mxu0 0.0
    %1936 = vmatpush1.xpose.msra.mxu0 0.0
    %1937 = vmatprep.subr.mxu0 0.0
    %1938 = vmatpush1.xpose.msra.mxu0 0.0
    %1939 = vmatprep.subr.mxu0 0.0
    %1940 = vmatpush1.xpose.msra.mxu0 0.0
    %1941 = vmatprep.subr.mxu0 0.0
    %1942 = vmatpush1.xpose.msra.mxu0 0.0
    %1943 = vmatprep.subr.mxu0 0.0
    %1944 = vmatpush1.xpose.msra.mxu0 0.0
    %1945 = vmatprep.subr.mxu0 0.0
    %1946 = vmatpush1.xpose.msra.mxu0 0.0
    %1947 = vmatprep.mubr.f32.mxu0 0.0
    %1948 = vmatmul.mubr.f32.gmra.mrb[0].mxu0 %v1877
    %v1949 = vpop.f32.mrb[0].mxu0
    %v1950 = vadd.f32 %v57, %v1949
    %v1951 = vpop.f32.mrb[0].mxu0
    %1952 = vdwg.mxu0
    %vm1953 = vcmask 130048
    %v1954 = vsel %vm1953, %v1950, -inf
    %1955 = vmax.xlane.f32.xlu0 %v1954
    %v1956 = vpop.xlane.xlu0 %1955
    %v1957 = vsub.f32 %v1950, %v1956
    %v1958 = vmul.f32 %v1957, 1.442695
    %v1959 = vpow.pop %v1958
    %v1960 = vsel %vm1953, %v1959, 0.0
    %1961 = vadd.xlane.f32.xlu0 %v1960
    %v1962 = vpop.xlane.xlu0 %1961
    %v1963 = vrcp.pop %v1962
    %v1964 = vmul.f32 %v1959, %v1963
    %1965 = vrot.lane.b32.xlu0 %v1863, 64
    %v1966 = vpop.permute.xlu0 %1965
    %1967 = vrot.lane.b32.xlu0 %v1868, 64
    %v1968 = vpop.permute.xlu0 %1967
    %v1972 = vsel %vm1953, %v1964, 0
    %1974 = vmatprep.subr.mxu0 0.0
    %1975 = vmatpush1.msra.mxu0 %v1966
    %1976 = vmatprep.subr.mxu0 0.0
    %1977 = vmatpush1.msra.mxu0 %v1968
    %1978 = vmatprep.subr.mxu0 0.0
    %1979 = vmatpush1.msra.mxu0 0.0
    %1980 = vmatprep.subr.mxu0 0.0
    %1981 = vmatpush1.msra.mxu0 0.0
    %1982 = vmatprep.subr.mxu0 0.0
    %1983 = vmatpush1.msra.mxu0 0.0
    %1984 = vmatprep.subr.mxu0 0.0
    %1985 = vmatpush1.msra.mxu0 0.0
    %1986 = vmatprep.subr.mxu0 0.0
    %1987 = vmatpush1.msra.mxu0 0.0
    %1988 = vmatprep.subr.mxu0 0.0
    %1989 = vmatpush1.msra.mxu0 0.0
    %1990 = vmatprep.subr.mxu0 0.0
    %1991 = vmatpush1.msra.mxu0 0.0
    %1992 = vmatprep.subr.mxu0 0.0
    %1993 = vmatpush1.msra.mxu0 0.0
    %1994 = vmatprep.subr.mxu0 0.0
    %1995 = vmatpush1.msra.mxu0 0.0
    %1996 = vmatprep.subr.mxu0 0.0
    %1997 = vmatpush1.msra.mxu0 0.0
    %1998 = vmatprep.subr.mxu0 0.0
    %1999 = vmatpush1.msra.mxu0 0.0
    %2000 = vmatprep.subr.mxu0 0.0
    %2001 = vmatpush1.msra.mxu0 0.0
    %2002 = vmatprep.subr.mxu0 0.0
    %2003 = vmatpush1.msra.mxu0 0.0
    %2004 = vmatprep.subr.mxu0 0.0
    %2005 = vmatpush1.msra.mxu0 0.0
    %2006 = vmatprep.subr.mxu0 0.0
    %2007 = vmatpush1.msra.mxu0 0.0
    %2008 = vmatprep.subr.mxu0 0.0
    %2009 = vmatpush1.msra.mxu0 0.0
    %2010 = vmatprep.subr.mxu0 0.0
    %2011 = vmatpush1.msra.mxu0 0.0
    %2012 = vmatprep.subr.mxu0 0.0
    %2013 = vmatpush1.msra.mxu0 0.0
    %2014 = vmatprep.subr.mxu0 0.0
    %2015 = vmatpush1.msra.mxu0 0.0
    %2016 = vmatprep.subr.mxu0 0.0
    %2017 = vmatpush1.msra.mxu0 0.0
    %2018 = vmatprep.subr.mxu0 0.0
    %2019 = vmatpush1.msra.mxu0 0.0
    %2020 = vmatprep.subr.mxu0 0.0
    %2021 = vmatpush1.msra.mxu0 0.0
    %2022 = vmatprep.subr.mxu0 0.0
    %2023 = vmatpush1.msra.mxu0 0.0
    %2024 = vmatprep.subr.mxu0 0.0
    %2025 = vmatpush1.msra.mxu0 0.0
    %2026 = vmatprep.subr.mxu0 0.0
    %2027 = vmatpush1.msra.mxu0 0.0
    %2028 = vmatprep.subr.mxu0 0.0
    %2029 = vmatpush1.msra.mxu0 0.0
    %2030 = vmatprep.subr.mxu0 0.0
    %2031 = vmatpush1.msra.mxu0 0.0
    %2032 = vmatprep.subr.mxu0 0.0
    %2033 = vmatpush1.msra.mxu0 0.0
    %2034 = vmatprep.subr.mxu0 0.0
    %2035 = vmatpush1.msra.mxu0 0.0
    %2036 = vmatprep.subr.mxu0 0.0
    %2037 = vmatpush1.msra.mxu0 0.0
    %2038 = vmatprep.mubr.f32.mxu0 0.0
    %2039 = vmatmul.mubr.f32.gmra.mrb[0].mxu0 %v1972
    %v2040 = vpop.f32.mrb[0].mxu0
    %v2041 = vadd.f32 0.0, %v2040
    %v2042 = vpop.f32.mrb[0].mxu0
    %2043 = vdwg.mxu0
    %2044 = vrot.lane.b32.xlu0 %v1868, 120
    %v2045 = vpop.permute.xlu0 %2044
    %2046 = vrot.lane.b32.xlu0 %v1863, 88
    %v2047 = vpop.permute.xlu0 %2046
    %2048 = vrot.lane.b32.xlu0 %v1868, 88
    %v2049 = vpop.permute.xlu0 %2048
    %v2050 = vsel %vm175, %v2045, 0
    %v2052 = vsel %vm175, %v2047, 0
    %v2054 = vsel %vm175, %v2049, 0
    %2056 = vmatprep.subr.mxu0 0.0
    %2057 = vmatpush1.xpose.msra.mxu0 %v2052
    %2058 = vmatprep.subr.mxu0 0.0
    %2059 = vmatpush1.xpose.msra.mxu0 %v2054
    %2060 = vmatprep.subr.mxu0 0.0
    %2061 = vmatpush1.xpose.msra.mxu0 0.0
    %2062 = vmatprep.subr.mxu0 0.0
    %2063 = vmatpush1.xpose.msra.mxu0 0.0
    %2064 = vmatprep.subr.mxu0 0.0
    %2065 = vmatpush1.xpose.msra.mxu0 0.0
    %2066 = vmatprep.subr.mxu0 0.0
    %2067 = vmatpush1.xpose.msra.mxu0 0.0
    %2068 = vmatprep.subr.mxu0 0.0
    %2069 = vmatpush1.xpose.msra.mxu0 0.0
    %2070 = vmatprep.subr.mxu0 0.0
    %2071 = vmatpush1.xpose.msra.mxu0 0.0
    %2072 = vmatprep.subr.mxu0 0.0
    %2073 = vmatpush1.xpose.msra.mxu0 0.0
    %2074 = vmatprep.subr.mxu0 0.0
    %2075 = vmatpush1.xpose.msra.mxu0 0.0
    %2076 = vmatprep.subr.mxu0 0.0
    %2077 = vmatpush1.xpose.msra.mxu0 0.0
    %2078 = vmatprep.subr.mxu0 0.0
    %2079 = vmatpush1.xpose.msra.mxu0 0.0
    %2080 = vmatprep.subr.mxu0 0.0
    %2081 = vmatpush1.xpose.msra.mxu0 0.0
    %2082 = vmatprep.subr.mxu0 0.0
    %2083 = vmatpush1.xpose.msra.mxu0 0.0
    %2084 = vmatprep.subr.mxu0 0.0
    %2085 = vmatpush1.xpose.msra.mxu0 0.0
    %2086 = vmatprep.subr.mxu0 0.0
    %2087 = vmatpush1.xpose.msra.mxu0 0.0
    %2088 = vmatprep.subr.mxu0 0.0
    %2089 = vmatpush1.xpose.msra.mxu0 0.0
    %2090 = vmatprep.subr.mxu0 0.0
    %2091 = vmatpush1.xpose.msra.mxu0 0.0
    %2092 = vmatprep.subr.mxu0 0.0
    %2093 = vmatpush1.xpose.msra.mxu0 0.0
    %2094 = vmatprep.subr.mxu0 0.0
    %2095 = vmatpush1.xpose.msra.mxu0 0.0
    %2096 = vmatprep.subr.mxu0 0.0
    %2097 = vmatpush1.xpose.msra.mxu0 0.0
    %2098 = vmatprep.subr.mxu0 0.0
    %2099 = vmatpush1.xpose.msra.mxu0 0.0
    %2100 = vmatprep.subr.mxu0 0.0
    %2101 = vmatpush1.xpose.msra.mxu0 0.0
    %2102 = vmatprep.subr.mxu0 0.0
    %2103 = vmatpush1.xpose.msra.mxu0 0.0
    %2104 = vmatprep.subr.mxu0 0.0
    %2105 = vmatpush1.xpose.msra.mxu0 0.0
    %2106 = vmatprep.subr.mxu0 0.0
    %2107 = vmatpush1.xpose.msra.mxu0 0.0
    %2108 = vmatprep.subr.mxu0 0.0
    %2109 = vmatpush1.xpose.msra.mxu0 0.0
    %2110 = vmatprep.subr.mxu0 0.0
    %2111 = vmatpush1.xpose.msra.mxu0 0.0
    %2112 = vmatprep.subr.mxu0 0.0
    %2113 = vmatpush1.xpose.msra.mxu0 0.0
    %2114 = vmatprep.subr.mxu0 0.0
    %2115 = vmatpush1.xpose.msra.mxu0 0.0
    %2116 = vmatprep.subr.mxu0 0.0
    %2117 = vmatpush1.xpose.msra.mxu0 0.0
    %2118 = vmatprep.subr.mxu0 0.0
    %2119 = vmatpush1.xpose.msra.mxu0 0.0
    %2120 = vmatprep.mubr.f32.mxu0 0.0
    %2121 = vmatmul.mubr.f32.gmra.mrb[0].mxu0 %v2050
    %v2122 = vpop.f32.mrb[0].mxu0
    %v2123 = vadd.f32 %v57, %v2122
    %v2124 = vpop.f32.mrb[0].mxu0
    %2125 = vdwg.mxu0
    %v2126 = vsel %vm1953, %v2123, -inf
    %2127 = vmax.xlane.f32.xlu0 %v2126
    %v2128 = vpop.xlane.xlu0 %2127
    %v2129 = vsub.f32 %v2123, %v2128
    %v2130 = vmul.f32 %v2129, 1.442695
    %v2131 = vpow.pop %v2130
    %v2132 = vsel %vm1953, %v2131, 0.0
    %2133 = vadd.xlane.f32.xlu0 %v2132
    %v2134 = vpop.xlane.xlu0 %2133
    %v2135 = vrcp.pop %v2134
    %v2136 = vmul.f32 %v2131, %v2135
    %2137 = vrot.lane.b32.xlu0 %v1863, 56
    %v2138 = vpop.permute.xlu0 %2137
    %2139 = vrot.lane.b32.xlu0 %v1868, 56
    %v2140 = vpop.permute.xlu0 %2139
    %v2144 = vsel %vm1953, %v2136, 0
    %2146 = vmatprep.subr.mxu0 0.0
    %2147 = vmatpush1.msra.mxu0 %v2138
    %2148 = vmatprep.subr.mxu0 0.0
    %2149 = vmatpush1.msra.mxu0 %v2140
    %2150 = vmatprep.subr.mxu0 0.0
    %2151 = vmatpush1.msra.mxu0 0.0
    %2152 = vmatprep.subr.mxu0 0.0
    %2153 = vmatpush1.msra.mxu0 0.0
    %2154 = vmatprep.subr.mxu0 0.0
    %2155 = vmatpush1.msra.mxu0 0.0
    %2156 = vmatprep.subr.mxu0 0.0
    %2157 = vmatpush1.msra.mxu0 0.0
    %2158 = vmatprep.subr.mxu0 0.0
    %2159 = vmatpush1.msra.mxu0 0.0
    %2160 = vmatprep.subr.mxu0 0.0
    %2161 = vmatpush1.msra.mxu0 0.0
    %2162 = vmatprep.subr.mxu0 0.0
    %2163 = vmatpush1.msra.mxu0 0.0
    %2164 = vmatprep.subr.mxu0 0.0
    %2165 = vmatpush1.msra.mxu0 0.0
    %2166 = vmatprep.subr.mxu0 0.0
    %2167 = vmatpush1.msra.mxu0 0.0
    %2168 = vmatprep.subr.mxu0 0.0
    %2169 = vmatpush1.msra.mxu0 0.0
    %2170 = vmatprep.subr.mxu0 0.0
    %2171 = vmatpush1.msra.mxu0 0.0
    %2172 = vmatprep.subr.mxu0 0.0
    %2173 = vmatpush1.msra.mxu0 0.0
    %2174 = vmatprep.subr.mxu0 0.0
    %2175 = vmatpush1.msra.mxu0 0.0
    %2176 = vmatprep.subr.mxu0 0.0
    %2177 = vmatpush1.msra.mxu0 0.0
    %2178 = vmatprep.subr.mxu0 0.0
    %2179 = vmatpush1.msra.mxu0 0.0
    %2180 = vmatprep.subr.mxu0 0.0
    %2181 = vmatpush1.msra.mxu0 0.0
    %2182 = vmatprep.subr.mxu0 0.0
    %2183 = vmatpush1.msra.mxu0 0.0
    %2184 = vmatprep.subr.mxu0 0.0
    %2185 = vmatpush1.msra.mxu0 0.0
    %2186 = vmatprep.subr.mxu0 0.0
    %2187 = vmatpush1.msra.mxu0 0.0
    %2188 = vmatprep.subr.mxu0 0.0
    %2189 = vmatpush1.msra.mxu0 0.0
    %2190 = vmatprep.subr.mxu0 0.0
    %2191 = vmatpush1.msra.mxu0 0.0
    %2192 = vmatprep.subr.mxu0 0.0
    %2193 = vmatpush1.msra.mxu0 0.0
    %2194 = vmatprep.subr.mxu0 0.0
    %2195 = vmatpush1.msra.mxu0 0.0
    %2196 = vmatprep.subr.mxu0 0.0
    %2197 = vmatpush1.msra.mxu0 0.0
    %2198 = vmatprep.subr.mxu0 0.0
    %2199 = vmatpush1.msra.mxu0 0.0
    %2200 = vmatprep.subr.mxu0 0.0
    %2201 = vmatpush1.msra.mxu0 0.0
    %2202 = vmatprep.subr.mxu0 0.0
    %2203 = vmatpush1.msra.mxu0 0.0
    %2204 = vmatprep.subr.mxu0 0.0
    %2205 = vmatpush1.msra.mxu0 0.0
    %2206 = vmatprep.subr.mxu0 0.0
    %2207 = vmatpush1.msra.mxu0 0.0
    %2208 = vmatprep.subr.mxu0 0.0
    %2209 = vmatpush1.msra.mxu0 0.0
    %2210 = vmatprep.mubr.f32.mxu0 0.0
    %2211 = vmatmul.mubr.f32.gmra.mrb[0].mxu0 %v2144
    %v2212 = vpop.f32.mrb[0].mxu0
    %v2213 = vadd.f32 0.0, %v2212
    %v2214 = vpop.f32.mrb[0].mxu0
    %2215 = vdwg.mxu0
    %v2217 = vsel %vm175, %v2213, 0
    %2219 = vmatprep.subr.mxu0 0.0
    %2220 = vmatpush1.msra.mxu0 %v1780
    %2221 = vmatprep.subr.mxu0 0.0
    %2222 = vmatpush1.msra.mxu0 0.0
    %2223 = vmatprep.subr.mxu0 0.0
    %2224 = vmatpush1.msra.mxu0 0.0
    %2225 = vmatprep.subr.mxu0 0.0
    %2226 = vmatpush1.msra.mxu0 0.0
    %2227 = vmatprep.subr.mxu0 0.0
    %2228 = vmatpush1.msra.mxu0 0.0
    %2229 = vmatprep.subr.mxu0 0.0
    %2230 = vmatpush1.msra.mxu0 0.0
    %2231 = vmatprep.subr.mxu0 0.0
    %2232 = vmatpush1.msra.mxu0 0.0
    %2233 = vmatprep.subr.mxu0 0.0
    %2234 = vmatpush1.msra.mxu0 0.0
    %2235 = vmatprep.subr.mxu0 0.0
    %2236 = vmatpush1.msra.mxu0 0.0
    %2237 = vmatprep.subr.mxu0 0.0
    %2238 = vmatpush1.msra.mxu0 0.0
    %2239 = vmatprep.subr.mxu0 0.0
    %2240 = vmatpush1.msra.mxu0 0.0
    %2241 = vmatprep.subr.mxu0 0.0
    %2242 = vmatpush1.msra.mxu0 0.0
    %2243 = vmatprep.subr.mxu0 0.0
    %2244 = vmatpush1.msra.mxu0 0.0
    %2245 = vmatprep.subr.mxu0 0.0
    %2246 = vmatpush1.msra.mxu0 0.0
    %2247 = vmatprep.subr.mxu0 0.0
    %2248 = vmatpush1.msra.mxu0 0.0
    %2249 = vmatprep.subr.mxu0 0.0
    %2250 = vmatpush1.msra.mxu0 0.0
    %2251 = vmatprep.subr.mxu0 0.0
    %2252 = vmatpush1.msra.mxu0 0.0
    %2253 = vmatprep.subr.mxu0 0.0
    %2254 = vmatpush1.msra.mxu0 0.0
    %2255 = vmatprep.subr.mxu0 0.0
    %2256 = vmatpush1.msra.mxu0 0.0
    %2257 = vmatprep.subr.mxu0 0.0
    %2258 = vmatpush1.msra.mxu0 0.0
    %2259 = vmatprep.subr.mxu0 0.0
    %2260 = vmatpush1.msra.mxu0 0.0
    %2261 = vmatprep.subr.mxu0 0.0
    %2262 = vmatpush1.msra.mxu0 0.0
    %2263 = vmatprep.subr.mxu0 0.0
    %2264 = vmatpush1.msra.mxu0 0.0
    %2265 = vmatprep.subr.mxu0 0.0
    %2266 = vmatpush1.msra.mxu0 0.0
    %2267 = vmatprep.subr.mxu0 0.0
    %2268 = vmatpush1.msra.mxu0 0.0
    %2269 = vmatprep.subr.mxu0 0.0
    %2270 = vmatpush1.msra.mxu0 0.0
    %2271 = vmatprep.subr.mxu0 0.0
    %2272 = vmatpush1.msra.mxu0 0.0
    %2273 = vmatprep.subr.mxu0 0.0
    %2274 = vmatpush1.msra.mxu0 0.0
    %2275 = vmatprep.subr.mxu0 0.0
    %2276 = vmatpush1.msra.mxu0 0.0
    %2277 = vmatprep.subr.mxu0 0.0
    %2278 = vmatpush1.msra.mxu0 0.0
    %2279 = vmatprep.subr.mxu0 0.0
    %2280 = vmatpush1.msra.mxu0 0.0
    %2281 = vmatprep.subr.mxu0 0.0
    %2282 = vmatpush1.msra.mxu0 0.0
    %2283 = vmatprep.mubr.f32.mxu0 0.0
    %2284 = vmatmul.mubr.f32.gmra.mrb[0].mxu0 %v2217
    %v2285 = vpop.f32.mrb[0].mxu0
    %v2286 = vadd.f32 0.0, %v2285
    %v2287 = vpop.f32.mrb[0].mxu0
    %2288 = vdwg.mxu0
    %v2290 = vsel %vm175, %v2041, 0
    %2292 = vmatprep.subr.mxu0 0.0
    %2293 = vmatpush1.msra.mxu0 %v1779
    %2294 = vmatprep.subr.mxu0 0.0
    %2295 = vmatpush1.msra.mxu0 0.0
    %2296 = vmatprep.subr.mxu0 0.0
    %2297 = vmatpush1.msra.mxu0 0.0
    %2298 = vmatprep.subr.mxu0 0.0
    %2299 = vmatpush1.msra.mxu0 0.0
    %2300 = vmatprep.subr.mxu0 0.0
    %2301 = vmatpush1.msra.mxu0 0.0
    %2302 = vmatprep.subr.mxu0 0.0
    %2303 = vmatpush1.msra.mxu0 0.0
    %2304 = vmatprep.subr.mxu0 0.0
    %2305 = vmatpush1.msra.mxu0 0.0
    %2306 = vmatprep.subr.mxu0 0.0
    %2307 = vmatpush1.msra.mxu0 0.0
    %2308 = vmatprep.subr.mxu0 0.0
    %2309 = vmatpush1.msra.mxu0 0.0
    %2310 = vmatprep.subr.mxu0 0.0
    %2311 = vmatpush1.msra.mxu0 0.0
    %2312 = vmatprep.subr.mxu0 0.0
    %2313 = vmatpush1.msra.mxu0 0.0
    %2314 = vmatprep.subr.mxu0 0.0
    %2315 = vmatpush1.msra.mxu0 0.0
    %2316 = vmatprep.subr.mxu0 0.0
    %2317 = vmatpush1.msra.mxu0 0.0
    %2318 = vmatprep.subr.mxu0 0.0
    %2319 = vmatpush1.msra.mxu0 0.0
    %2320 = vmatprep.subr.mxu0 0.0
    %2321 = vmatpush1.msra.mxu0 0.0
    %2322 = vmatprep.subr.mxu0 0.0
    %2323 = vmatpush1.msra.mxu0 0.0
    %2324 = vmatprep.subr.mxu0 0.0
    %2325 = vmatpush1.msra.mxu0 0.0
    %2326 = vmatprep.subr.mxu0 0.0
    %2327 = vmatpush1.msra.mxu0 0.0
    %2328 = vmatprep.subr.mxu0 0.0
    %2329 = vmatpush1.msra.mxu0 0.0
    %2330 = vmatprep.subr.mxu0 0.0
    %2331 = vmatpush1.msra.mxu0 0.0
    %2332 = vmatprep.subr.mxu0 0.0
    %2333 = vmatpush1.msra.mxu0 0.0
    %2334 = vmatprep.subr.mxu0 0.0
    %2335 = vmatpush1.msra.mxu0 0.0
    %2336 = vmatprep.subr.mxu0 0.0
    %2337 = vmatpush1.msra.mxu0 0.0
    %2338 = vmatprep.subr.mxu0 0.0
    %2339 = vmatpush1.msra.mxu0 0.0
    %2340 = vmatprep.subr.mxu0 0.0
    %2341 = vmatpush1.msra.mxu0 0.0
    %2342 = vmatprep.subr.mxu0 0.0
    %2343 = vmatpush1.msra.mxu0 0.0
    %2344 = vmatprep.subr.mxu0 0.0
    %2345 = vmatpush1.msra.mxu0 0.0
    %2346 = vmatprep.subr.mxu0 0.0
    %2347 = vmatpush1.msra.mxu0 0.0
    %2348 = vmatprep.subr.mxu0 0.0
    %2349 = vmatpush1.msra.mxu0 0.0
    %2350 = vmatprep.subr.mxu0 0.0
    %2351 = vmatpush1.msra.mxu0 0.0
    %2352 = vmatprep.subr.mxu0 0.0
    %2353 = vmatpush1.msra.mxu0 0.0
    %2354 = vmatprep.subr.mxu0 0.0
    %2355 = vmatpush1.msra.mxu0 0.0
    %2356 = vmatprep.mubr.f32.mxu0 0.0
    %2357 = vmatmul.mubr.f32.gmra.mrb[0].mxu0 %v2290
    %v2358 = vpop.f32.mrb[0].mxu0
    %v2359 = vadd.f32 %v2286, %v2358
    %v2360 = vpop.f32.mrb[0].mxu0
    %2361 = vdwg.mxu0
    %2362 = vrot.lane.b32.xlu0 %v1868, 112
    %v2363 = vpop.permute.xlu0 %2362
    %2364 = vrot.lane.b32.xlu0 %v1863, 80
    %v2365 = vpop.permute.xlu0 %2364
    %2366 = vrot.lane.b32.xlu0 %v1868, 80
    %v2367 = vpop.permute.xlu0 %2366
    %v2368 = vsel %vm175, %v2363, 0
    %v2370 = vsel %vm175, %v2365, 0
    %v2372 = vsel %vm175, %v2367, 0
    %2374 = vmatprep.subr.mxu0 0.0
    %2375 = vmatpush1.xpose.msra.mxu0 %v2370
    %2376 = vmatprep.subr.mxu0 0.0
    %2377 = vmatpush1.xpose.msra.mxu0 %v2372
    %2378 = vmatprep.subr.mxu0 0.0
    %2379 = vmatpush1.xpose.msra.mxu0 0.0
    %2380 = vmatprep.subr.mxu0 0.0
    %2381 = vmatpush1.xpose.msra.mxu0 0.0
    %2382 = vmatprep.subr.mxu0 0.0
    %2383 = vmatpush1.xpose.msra.mxu0 0.0
    %2384 = vmatprep.subr.mxu0 0.0
    %2385 = vmatpush1.xpose.msra.mxu0 0.0
    %2386 = vmatprep.subr.mxu0 0.0
    %2387 = vmatpush1.xpose.msra.mxu0 0.0
    %2388 = vmatprep.subr.mxu0 0.0
    %2389 = vmatpush1.xpose.msra.mxu0 0.0
    %2390 = vmatprep.subr.mxu0 0.0
    %2391 = vmatpush1.xpose.msra.mxu0 0.0
    %2392 = vmatprep.subr.mxu0 0.0
    %2393 = vmatpush1.xpose.msra.mxu0 0.0
    %2394 = vmatprep.subr.mxu0 0.0
    %2395 = vmatpush1.xpose.msra.mxu0 0.0
    %2396 = vmatprep.subr.mxu0 0.0
    %2397 = vmatpush1.xpose.msra.mxu0 0.0
    %2398 = vmatprep.subr.mxu0 0.0
    %2399 = vmatpush1.xpose.msra.mxu0 0.0
    %2400 = vmatprep.subr.mxu0 0.0
    %2401 = vmatpush1.xpose.msra.mxu0 0.0
    %2402 = vmatprep.subr.mxu0 0.0
    %2403 = vmatpush1.xpose.msra.mxu0 0.0
    %2404 = vmatprep.subr.mxu0 0.0
    %2405 = vmatpush1.xpose.msra.mxu0 0.0
    %2406 = vmatprep.subr.mxu0 0.0
    %2407 = vmatpush1.xpose.msra.mxu0 0.0
    %2408 = vmatprep.subr.mxu0 0.0
    %2409 = vmatpush1.xpose.msra.mxu0 0.0
    %2410 = vmatprep.subr.mxu0 0.0
    %2411 = vmatpush1.xpose.msra.mxu0 0.0
    %2412 = vmatprep.subr.mxu0 0.0
    %2413 = vmatpush1.xpose.msra.mxu0 0.0
    %2414 = vmatprep.subr.mxu0 0.0
    %2415 = vmatpush1.xpose.msra.mxu0 0.0
    %2416 = vmatprep.subr.mxu0 0.0
    %2417 = vmatpush1.xpose.msra.mxu0 0.0
    %2418 = vmatprep.subr.mxu0 0.0
    %2419 = vmatpush1.xpose.msra.mxu0 0.0
    %2420 = vmatprep.subr.mxu0 0.0
    %2421 = vmatpush1.xpose.msra.mxu0 0.0
    %2422 = vmatprep.subr.mxu0 0.0
    %2423 = vmatpush1.xpose.msra.mxu0 0.0
    %2424 = vmatprep.subr.mxu0 0.0
    %2425 = vmatpush1.xpose.msra.mxu0 0.0
    %2426 = vmatprep.subr.mxu0 0.0
    %2427 = vmatpush1.xpose.msra.mxu0 0.0
    %2428 = vmatprep.subr.mxu0 0.0
    %2429 = vmatpush1.xpose.msra.mxu0 0.0
    %2430 = vmatprep.subr.mxu0 0.0
    %2431 = vmatpush1.xpose.msra.mxu0 0.0
    %2432 = vmatprep.subr.mxu0 0.0
    %2433 = vmatpush1.xpose.msra.mxu0 0.0
    %2434 = vmatprep.subr.mxu0 0.0
    %2435 = vmatpush1.xpose.msra.mxu0 0.0
    %2436 = vmatprep.subr.mxu0 0.0
    %2437 = vmatpush1.xpose.msra.mxu0 0.0
    %2438 = vmatprep.mubr.f32.mxu0 0.0
    %2439 = vmatmul.mubr.f32.gmra.mrb[0].mxu0 %v2368
    %v2440 = vpop.f32.mrb[0].mxu0
    %v2441 = vadd.f32 %v57, %v2440
    %v2442 = vpop.f32.mrb[0].mxu0
    %2443 = vdwg.mxu0
    %v2444 = vsel %vm1953, %v2441, -inf
    %2445 = vmax.xlane.f32.xlu0 %v2444
    %v2446 = vpop.xlane.xlu0 %2445
    %v2447 = vsub.f32 %v2441, %v2446
    %v2448 = vmul.f32 %v2447, 1.442695
    %v2449 = vpow.pop %v2448
    %v2450 = vsel %vm1953, %v2449, 0.0
    %2451 = vadd.xlane.f32.xlu0 %v2450
    %v2452 = vpop.xlane.xlu0 %2451
    %v2453 = vrcp.pop %v2452
    %v2454 = vmul.f32 %v2449, %v2453
    %2455 = vrot.lane.b32.xlu0 %v1863, 48
    %v2456 = vpop.permute.xlu0 %2455
    %2457 = vrot.lane.b32.xlu0 %v1868, 48
    %v2458 = vpop.permute.xlu0 %2457
    %v2462 = vsel %vm1953, %v2454, 0
    %2464 = vmatprep.subr.mxu0 0.0
    %2465 = vmatpush1.msra.mxu0 %v2456
    %2466 = vmatprep.subr.mxu0 0.0
    %2467 = vmatpush1.msra.mxu0 %v2458
    %2468 = vmatprep.subr.mxu0 0.0
    %2469 = vmatpush1.msra.mxu0 0.0
    %2470 = vmatprep.subr.mxu0 0.0
    %2471 = vmatpush1.msra.mxu0 0.0
    %2472 = vmatprep.subr.mxu0 0.0
    %2473 = vmatpush1.msra.mxu0 0.0
    %2474 = vmatprep.subr.mxu0 0.0
    %2475 = vmatpush1.msra.mxu0 0.0
    %2476 = vmatprep.subr.mxu0 0.0
    %2477 = vmatpush1.msra.mxu0 0.0
    %2478 = vmatprep.subr.mxu0 0.0
    %2479 = vmatpush1.msra.mxu0 0.0
    %2480 = vmatprep.subr.mxu0 0.0
    %2481 = vmatpush1.msra.mxu0 0.0
    %2482 = vmatprep.subr.mxu0 0.0
    %2483 = vmatpush1.msra.mxu0 0.0
    %2484 = vmatprep.subr.mxu0 0.0
    %2485 = vmatpush1.msra.mxu0 0.0
    %2486 = vmatprep.subr.mxu0 0.0
    %2487 = vmatpush1.msra.mxu0 0.0
    %2488 = vmatprep.subr.mxu0 0.0
    %2489 = vmatpush1.msra.mxu0 0.0
    %2490 = vmatprep.subr.mxu0 0.0
    %2491 = vmatpush1.msra.mxu0 0.0
    %2492 = vmatprep.subr.mxu0 0.0
    %2493 = vmatpush1.msra.mxu0 0.0
    %2494 = vmatprep.subr.mxu0 0.0
    %2495 = vmatpush1.msra.mxu0 0.0
    %2496 = vmatprep.subr.mxu0 0.0
    %2497 = vmatpush1.msra.mxu0 0.0
    %2498 = vmatprep.subr.mxu0 0.0
    %2499 = vmatpush1.msra.mxu0 0.0
    %2500 = vmatprep.subr.mxu0 0.0
    %2501 = vmatpush1.msra.mxu0 0.0
    %2502 = vmatprep.subr.mxu0 0.0
    %2503 = vmatpush1.msra.mxu0 0.0
    %2504 = vmatprep.subr.mxu0 0.0
    %2505 = vmatpush1.msra.mxu0 0.0
    %2506 = vmatprep.subr.mxu0 0.0
    %2507 = vmatpush1.msra.mxu0 0.0
    %2508 = vmatprep.subr.mxu0 0.0
    %2509 = vmatpush1.msra.mxu0 0.0
    %2510 = vmatprep.subr.mxu0 0.0
    %2511 = vmatpush1.msra.mxu0 0.0
    %2512 = vmatprep.subr.mxu0 0.0
    %2513 = vmatpush1.msra.mxu0 0.0
    %2514 = vmatprep.subr.mxu0 0.0
    %2515 = vmatpush1.msra.mxu0 0.0
    %2516 = vmatprep.subr.mxu0 0.0
    %2517 = vmatpush1.msra.mxu0 0.0
    %2518 = vmatprep.subr.mxu0 0.0
    %2519 = vmatpush1.msra.mxu0 0.0
    %2520 = vmatprep.subr.mxu0 0.0
    %2521 = vmatpush1.msra.mxu0 0.0
    %2522 = vmatprep.subr.mxu0 0.0
    %2523 = vmatpush1.msra.mxu0 0.0
    %2524 = vmatprep.subr.mxu0 0.0
    %2525 = vmatpush1.msra.mxu0 0.0
    %2526 = vmatprep.subr.mxu0 0.0
    %2527 = vmatpush1.msra.mxu0 0.0
    %2528 = vmatprep.mubr.f32.mxu0 0.0
    %2529 = vmatmul.mubr.f32.gmra.mrb[0].mxu0 %v2462
    %v2530 = vpop.f32.mrb[0].mxu0
    %v2531 = vadd.f32 0.0, %v2530
    %v2532 = vpop.f32.mrb[0].mxu0
    %2533 = vdwg.mxu0
    %v2535 = vsel %vm175, %v2531, 0
    %2537 = vmatprep.subr.mxu0 0.0
    %2538 = vmatpush1.msra.mxu0 %v1781
    %2539 = vmatprep.subr.mxu0 0.0
    %2540 = vmatpush1.msra.mxu0 0.0
    %2541 = vmatprep.subr.mxu0 0.0
    %2542 = vmatpush1.msra.mxu0 0.0
    %2543 = vmatprep.subr.mxu0 0.0
    %2544 = vmatpush1.msra.mxu0 0.0
    %2545 = vmatprep.subr.mxu0 0.0
    %2546 = vmatpush1.msra.mxu0 0.0
    %2547 = vmatprep.subr.mxu0 0.0
    %2548 = vmatpush1.msra.mxu0 0.0
    %2549 = vmatprep.subr.mxu0 0.0
    %2550 = vmatpush1.msra.mxu0 0.0
    %2551 = vmatprep.subr.mxu0 0.0
    %2552 = vmatpush1.msra.mxu0 0.0
    %2553 = vmatprep.subr.mxu0 0.0
    %2554 = vmatpush1.msra.mxu0 0.0
    %2555 = vmatprep.subr.mxu0 0.0
    %2556 = vmatpush1.msra.mxu0 0.0
    %2557 = vmatprep.subr.mxu0 0.0
    %2558 = vmatpush1.msra.mxu0 0.0
    %2559 = vmatprep.subr.mxu0 0.0
    %2560 = vmatpush1.msra.mxu0 0.0
    %2561 = vmatprep.subr.mxu0 0.0
    %2562 = vmatpush1.msra.mxu0 0.0
    %2563 = vmatprep.subr.mxu0 0.0
    %2564 = vmatpush1.msra.mxu0 0.0
    %2565 = vmatprep.subr.mxu0 0.0
    %2566 = vmatpush1.msra.mxu0 0.0
    %2567 = vmatprep.subr.mxu0 0.0
    %2568 = vmatpush1.msra.mxu0 0.0
    %2569 = vmatprep.subr.mxu0 0.0
    %2570 = vmatpush1.msra.mxu0 0.0
    %2571 = vmatprep.subr.mxu0 0.0
    %2572 = vmatpush1.msra.mxu0 0.0
    %2573 = vmatprep.subr.mxu0 0.0
    %2574 = vmatpush1.msra.mxu0 0.0
    %2575 = vmatprep.subr.mxu0 0.0
    %2576 = vmatpush1.msra.mxu0 0.0
    %2577 = vmatprep.subr.mxu0 0.0
    %2578 = vmatpush1.msra.mxu0 0.0
    %2579 = vmatprep.subr.mxu0 0.0
    %2580 = vmatpush1.msra.mxu0 0.0
    %2581 = vmatprep.subr.mxu0 0.0
    %2582 = vmatpush1.msra.mxu0 0.0
    %2583 = vmatprep.subr.mxu0 0.0
    %2584 = vmatpush1.msra.mxu0 0.0
    %2585 = vmatprep.subr.mxu0 0.0
    %2586 = vmatpush1.msra.mxu0 0.0
    %2587 = vmatprep.subr.mxu0 0.0
    %2588 = vmatpush1.msra.mxu0 0.0
    %2589 = vmatprep.subr.mxu0 0.0
    %2590 = vmatpush1.msra.mxu0 0.0
    %2591 = vmatprep.subr.mxu0 0.0
    %2592 = vmatpush1.msra.mxu0 0.0
    %2593 = vmatprep.subr.mxu0 0.0
    %2594 = vmatpush1.msra.mxu0 0.0
    %2595 = vmatprep.subr.mxu0 0.0
    %2596 = vmatpush1.msra.mxu0 0.0
    %2597 = vmatprep.subr.mxu0 0.0
    %2598 = vmatpush1.msra.mxu0 0.0
    %2599 = vmatprep.subr.mxu0 0.0
    %2600 = vmatpush1.msra.mxu0 0.0
    %2601 = vmatprep.mubr.f32.mxu0 0.0
    %2602 = vmatmul.mubr.f32.gmra.mrb[0].mxu0 %v2535
    %v2603 = vpop.f32.mrb[0].mxu0
    %v2604 = vadd.f32 0.0, %v2603
    %v2605 = vpop.f32.mrb[0].mxu0
    %2606 = vdwg.mxu0
    %v2607 = vadd.f32 %v2359, %v2604
    %2608 = vrot.lane.b32.xlu0 %v1868, 104
    %v2609 = vpop.permute.xlu0 %2608
    %2610 = vrot.lane.b32.xlu0 %v1863, 72
    %v2611 = vpop.permute.xlu0 %2610
    %2612 = vrot.lane.b32.xlu0 %v1868, 72
    %v2613 = vpop.permute.xlu0 %2612
    %v2614 = vsel %vm175, %v2609, 0
    %v2616 = vsel %vm175, %v2611, 0
    %v2618 = vsel %vm175, %v2613, 0
    %2620 = vmatprep.subr.mxu0 0.0
    %2621 = vmatpush1.xpose.msra.mxu0 %v2616
    %2622 = vmatprep.subr.mxu0 0.0
    %2623 = vmatpush1.xpose.msra.mxu0 %v2618
    %2624 = vmatprep.subr.mxu0 0.0
    %2625 = vmatpush1.xpose.msra.mxu0 0.0
    %2626 = vmatprep.subr.mxu0 0.0
    %2627 = vmatpush1.xpose.msra.mxu0 0.0
    %2628 = vmatprep.subr.mxu0 0.0
    %2629 = vmatpush1.xpose.msra.mxu0 0.0
    %2630 = vmatprep.subr.mxu0 0.0
    %2631 = vmatpush1.xpose.msra.mxu0 0.0
    %2632 = vmatprep.subr.mxu0 0.0
    %2633 = vmatpush1.xpose.msra.mxu0 0.0
    %2634 = vmatprep.subr.mxu0 0.0
    %2635 = vmatpush1.xpose.msra.mxu0 0.0
    %2636 = vmatprep.subr.mxu0 0.0
    %2637 = vmatpush1.xpose.msra.mxu0 0.0
    %2638 = vmatprep.subr.mxu0 0.0
    %2639 = vmatpush1.xpose.msra.mxu0 0.0
    %2640 = vmatprep.subr.mxu0 0.0
    %2641 = vmatpush1.xpose.msra.mxu0 0.0
    %2642 = vmatprep.subr.mxu0 0.0
    %2643 = vmatpush1.xpose.msra.mxu0 0.0
    %2644 = vmatprep.subr.mxu0 0.0
    %2645 = vmatpush1.xpose.msra.mxu0 0.0
    %2646 = vmatprep.subr.mxu0 0.0
    %2647 = vmatpush1.xpose.msra.mxu0 0.0
    %2648 = vmatprep.subr.mxu0 0.0
    %2649 = vmatpush1.xpose.msra.mxu0 0.0
    %2650 = vmatprep.subr.mxu0 0.0
    %2651 = vmatpush1.xpose.msra.mxu0 0.0
    %2652 = vmatprep.subr.mxu0 0.0
    %2653 = vmatpush1.xpose.msra.mxu0 0.0
    %2654 = vmatprep.subr.mxu0 0.0
    %2655 = vmatpush1.xpose.msra.mxu0 0.0
    %2656 = vmatprep.subr.mxu0 0.0
    %2657 = vmatpush1.xpose.msra.mxu0 0.0
    %2658 = vmatprep.subr.mxu0 0.0
    %2659 = vmatpush1.xpose.msra.mxu0 0.0
    %2660 = vmatprep.subr.mxu0 0.0
    %2661 = vmatpush1.xpose.msra.mxu0 0.0
    %2662 = vmatprep.subr.mxu0 0.0
    %2663 = vmatpush1.xpose.msra.mxu0 0.0
    %2664 = vmatprep.subr.mxu0 0.0
    %2665 = vmatpush1.xpose.msra.mxu0 0.0
    %2666 = vmatprep.subr.mxu0 0.0
    %2667 = vmatpush1.xpose.msra.mxu0 0.0
    %2668 = vmatprep.subr.mxu0 0.0
    %2669 = vmatpush1.xpose.msra.mxu0 0.0
    %2670 = vmatprep.subr.mxu0 0.0
    %2671 = vmatpush1.xpose.msra.mxu0 0.0
    %2672 = vmatprep.subr.mxu0 0.0
    %2673 = vmatpush1.xpose.msra.mxu0 0.0
    %2674 = vmatprep.subr.mxu0 0.0
    %2675 = vmatpush1.xpose.msra.mxu0 0.0
    %2676 = vmatprep.subr.mxu0 0.0
    %2677 = vmatpush1.xpose.msra.mxu0 0.0
    %2678 = vmatprep.subr.mxu0 0.0
    %2679 = vmatpush1.xpose.msra.mxu0 0.0
    %2680 = vmatprep.subr.mxu0 0.0
    %2681 = vmatpush1.xpose.msra.mxu0 0.0
    %2682 = vmatprep.subr.mxu0 0.0
    %2683 = vmatpush1.xpose.msra.mxu0 0.0
    %2684 = vmatprep.mubr.f32.mxu0 0.0
    %2685 = vmatmul.mubr.f32.gmra.mrb[0].mxu0 %v2614
    %v2686 = vpop.f32.mrb[0].mxu0
    %v2687 = vadd.f32 %v57, %v2686
    %v2688 = vpop.f32.mrb[0].mxu0
    %2689 = vdwg.mxu0
    %v2690 = vsel %vm1953, %v2687, -inf
    %2691 = vmax.xlane.f32.xlu0 %v2690
    %v2692 = vpop.xlane.xlu0 %2691
    %v2693 = vsub.f32 %v2687, %v2692
    %v2694 = vmul.f32 %v2693, 1.442695
    %v2695 = vpow.pop %v2694
    %v2696 = vsel %vm1953, %v2695, 0.0
    %2697 = vadd.xlane.f32.xlu0 %v2696
    %v2698 = vpop.xlane.xlu0 %2697
    %v2699 = vrcp.pop %v2698
    %v2700 = vmul.f32 %v2695, %v2699
    %2701 = vrot.lane.b32.xlu0 %v1863, 40
    %v2702 = vpop.permute.xlu0 %2701
    %2703 = vrot.lane.b32.xlu0 %v1868, 40
    %v2704 = vpop.permute.xlu0 %2703
    %v2708 = vsel %vm1953, %v2700, 0
    %2710 = vmatprep.subr.mxu0 0.0
    %2711 = vmatpush1.msra.mxu0 %v2702
    %2712 = vmatprep.subr.mxu0 0.0
    %2713 = vmatpush1.msra.mxu0 %v2704
    %2714 = vmatprep.subr.mxu0 0.0
    %2715 = vmatpush1.msra.mxu0 0.0
    %2716 = vmatprep.subr.mxu0 0.0
    %2717 = vmatpush1.msra.mxu0 0.0
    %2718 = vmatprep.subr.mxu0 0.0
    %2719 = vmatpush1.msra.mxu0 0.0
    %2720 = vmatprep.subr.mxu0 0.0
    %2721 = vmatpush1.msra.mxu0 0.0
    %2722 = vmatprep.subr.mxu0 0.0
    %2723 = vmatpush1.msra.mxu0 0.0
    %2724 = vmatprep.subr.mxu0 0.0
    %2725 = vmatpush1.msra.mxu0 0.0
    %2726 = vmatprep.subr.mxu0 0.0
    %2727 = vmatpush1.msra.mxu0 0.0
    %2728 = vmatprep.subr.mxu0 0.0
    %2729 = vmatpush1.msra.mxu0 0.0
    %2730 = vmatprep.subr.mxu0 0.0
    %2731 = vmatpush1.msra.mxu0 0.0
    %2732 = vmatprep.subr.mxu0 0.0
    %2733 = vmatpush1.msra.mxu0 0.0
    %2734 = vmatprep.subr.mxu0 0.0
    %2735 = vmatpush1.msra.mxu0 0.0
    %2736 = vmatprep.subr.mxu0 0.0
    %2737 = vmatpush1.msra.mxu0 0.0
    %2738 = vmatprep.subr.mxu0 0.0
    %2739 = vmatpush1.msra.mxu0 0.0
    %2740 = vmatprep.subr.mxu0 0.0
    %2741 = vmatpush1.msra.mxu0 0.0
    %2742 = vmatprep.subr.mxu0 0.0
    %2743 = vmatpush1.msra.mxu0 0.0
    %2744 = vmatprep.subr.mxu0 0.0
    %2745 = vmatpush1.msra.mxu0 0.0
    %2746 = vmatprep.subr.mxu0 0.0
    %2747 = vmatpush1.msra.mxu0 0.0
    %2748 = vmatprep.subr.mxu0 0.0
    %2749 = vmatpush1.msra.mxu0 0.0
    %2750 = vmatprep.subr.mxu0 0.0
    %2751 = vmatpush1.msra.mxu0 0.0
    %2752 = vmatprep.subr.mxu0 0.0
    %2753 = vmatpush1.msra.mxu0 0.0
    %2754 = vmatprep.subr.mxu0 0.0
    %2755 = vmatpush1.msra.mxu0 0.0
    %2756 = vmatprep.subr.mxu0 0.0
    %2757 = vmatpush1.msra.mxu0 0.0
    %2758 = vmatprep.subr.mxu0 0.0
    %2759 = vmatpush1.msra.mxu0 0.0
    %2760 = vmatprep.subr.mxu0 0.0
    %2761 = vmatpush1.msra.mxu0 0.0
    %2762 = vmatprep.subr.mxu0 0.0
    %2763 = vmatpush1.msra.mxu0 0.0
    %2764 = vmatprep.subr.mxu0 0.0
    %2765 = vmatpush1.msra.mxu0 0.0
    %2766 = vmatprep.subr.mxu0 0.0
    %2767 = vmatpush1.msra.mxu0 0.0
    %2768 = vmatprep.subr.mxu0 0.0
    %2769 = vmatpush1.msra.mxu0 0.0
    %2770 = vmatprep.subr.mxu0 0.0
    %2771 = vmatpush1.msra.mxu0 0.0
    %2772 = vmatprep.subr.mxu0 0.0
    %2773 = vmatpush1.msra.mxu0 0.0
    %2774 = vmatprep.mubr.f32.mxu0 0.0
    %2775 = vmatmul.mubr.f32.gmra.mrb[0].mxu0 %v2708
    %v2776 = vpop.f32.mrb[0].mxu0
    %v2777 = vadd.f32 0.0, %v2776
    %v2778 = vpop.f32.mrb[0].mxu0
    %2779 = vdwg.mxu0
    %v2781 = vsel %vm175, %v2777, 0
    %2783 = vmatprep.subr.mxu0 0.0
    %2784 = vmatpush1.msra.mxu0 %v1782
    %2785 = vmatprep.subr.mxu0 0.0
    %2786 = vmatpush1.msra.mxu0 0.0
    %2787 = vmatprep.subr.mxu0 0.0
    %2788 = vmatpush1.msra.mxu0 0.0
    %2789 = vmatprep.subr.mxu0 0.0
    %2790 = vmatpush1.msra.mxu0 0.0
    %2791 = vmatprep.subr.mxu0 0.0
    %2792 = vmatpush1.msra.mxu0 0.0
    %2793 = vmatprep.subr.mxu0 0.0
    %2794 = vmatpush1.msra.mxu0 0.0
    %2795 = vmatprep.subr.mxu0 0.0
    %2796 = vmatpush1.msra.mxu0 0.0
    %2797 = vmatprep.subr.mxu0 0.0
    %2798 = vmatpush1.msra.mxu0 0.0
    %2799 = vmatprep.subr.mxu0 0.0
    %2800 = vmatpush1.msra.mxu0 0.0
    %2801 = vmatprep.subr.mxu0 0.0
    %2802 = vmatpush1.msra.mxu0 0.0
    %2803 = vmatprep.subr.mxu0 0.0
    %2804 = vmatpush1.msra.mxu0 0.0
    %2805 = vmatprep.subr.mxu0 0.0
    %2806 = vmatpush1.msra.mxu0 0.0
    %2807 = vmatprep.subr.mxu0 0.0
    %2808 = vmatpush1.msra.mxu0 0.0
    %2809 = vmatprep.subr.mxu0 0.0
    %2810 = vmatpush1.msra.mxu0 0.0
    %2811 = vmatprep.subr.mxu0 0.0
    %2812 = vmatpush1.msra.mxu0 0.0
    %2813 = vmatprep.subr.mxu0 0.0
    %2814 = vmatpush1.msra.mxu0 0.0
    %2815 = vmatprep.subr.mxu0 0.0
    %2816 = vmatpush1.msra.mxu0 0.0
    %2817 = vmatprep.subr.mxu0 0.0
    %2818 = vmatpush1.msra.mxu0 0.0
    %2819 = vmatprep.subr.mxu0 0.0
    %2820 = vmatpush1.msra.mxu0 0.0
    %2821 = vmatprep.subr.mxu0 0.0
    %2822 = vmatpush1.msra.mxu0 0.0
    %2823 = vmatprep.subr.mxu0 0.0
    %2824 = vmatpush1.msra.mxu0 0.0
    %2825 = vmatprep.subr.mxu0 0.0
    %2826 = vmatpush1.msra.mxu0 0.0
    %2827 = vmatprep.subr.mxu0 0.0
    %2828 = vmatpush1.msra.mxu0 0.0
    %2829 = vmatprep.subr.mxu0 0.0
    %2830 = vmatpush1.msra.mxu0 0.0
    %2831 = vmatprep.subr.mxu0 0.0
    %2832 = vmatpush1.msra.mxu0 0.0
    %2833 = vmatprep.subr.mxu0 0.0
    %2834 = vmatpush1.msra.mxu0 0.0
    %2835 = vmatprep.subr.mxu0 0.0
    %2836 = vmatpush1.msra.mxu0 0.0
    %2837 = vmatprep.subr.mxu0 0.0
    %2838 = vmatpush1.msra.mxu0 0.0
    %2839 = vmatprep.subr.mxu0 0.0
    %2840 = vmatpush1.msra.mxu0 0.0
    %2841 = vmatprep.subr.mxu0 0.0
    %2842 = vmatpush1.msra.mxu0 0.0
    %2843 = vmatprep.subr.mxu0 0.0
    %2844 = vmatpush1.msra.mxu0 0.0
    %2845 = vmatprep.subr.mxu0 0.0
    %2846 = vmatpush1.msra.mxu0 0.0
    %2847 = vmatprep.mubr.f32.mxu0 0.0
    %2848 = vmatmul.mubr.f32.gmra.mrb[0].mxu0 %v2781
    %v2849 = vpop.f32.mrb[0].mxu0
    %v2850 = vadd.f32 0.0, %v2849
    %v2851 = vpop.f32.mrb[0].mxu0
    %2852 = vdwg.mxu0
    %v2853 = vadd.f32 %v2607, %v2850
    %v2854 = vlaneseq
    %v2855 = vshrl.u32 %v2854, 7
    %v2856 = vsub.s32 0, %v2855
    %v2857 = vrot.slane %v1783, %v2856
    %v2858 = vadd.f32 %v2853, %v2857
    %v2859 = vmax.f32 %v2858, 0.0
    %v2860 = vld [vmem:[#allocation7 + $0x288] sm:$0xff]
    %v2861 = vld [vmem:[#allocation7 + $0x290] sm:$0xff]
    %v2862 = vld [vmem:[#allocation7 + $0x298] sm:$0xff]
    %v2863 = vld [vmem:[#allocation7 + $0x2a0] sm:$0xff]
    %v2864 = vld [vmem:[#allocation7 + $0x2a8] sm:$0xff]
    %v2865 = vld [vmem:[#allocation7 + $0x2b0] sm:$0xff]
    %v2866 = vld [vmem:[#allocation7 + $0x2b8] sm:$0xff]
    %v2867 = vld [vmem:[#allocation7 + $0x2c0] sm:$0xff]
    %v2868 = vld [vmem:[#allocation7 + $0x2c8] sm:$0xff]
    %v2869 = vld [vmem:[#allocation7 + $0x2d0] sm:$0xff]
    %v2870 = vld [vmem:[#allocation7 + $0x2d8] sm:$0xff]
    %v2871 = vld [vmem:[#allocation7 + $0x2e0] sm:$0xff]
    %v2872 = vld [vmem:[#allocation7 + $0x2e8] sm:$0x1]
    %v2873 = vsel %vm60, %v2859, %v1731
    %v2875 = vsel %vm1150, %v2873, 0
    %2877 = vmatprep.subr.mxu0 0.0
    %2878 = vmatpush1.msra.mxu0 %v2860
    %2879 = vmatprep.subr.mxu0 0.0
    %2880 = vmatpush1.msra.mxu0 %v2861
    %2881 = vmatprep.subr.mxu0 0.0
    %2882 = vmatpush1.msra.mxu0 %v2862
    %2883 = vmatprep.subr.mxu0 0.0
    %2884 = vmatpush1.msra.mxu0 %v2863
    %2885 = vmatprep.subr.mxu0 0.0
    %2886 = vmatpush1.msra.mxu0 %v2864
    %2887 = vmatprep.subr.mxu0 0.0
    %2888 = vmatpush1.msra.mxu0 %v2865
    %2889 = vmatprep.subr.mxu0 0.0
    %2890 = vmatpush1.msra.mxu0 %v2866
    %2891 = vmatprep.subr.mxu0 0.0
    %2892 = vmatpush1.msra.mxu0 %v2867
    %2893 = vmatprep.subr.mxu0 0.0
    %2894 = vmatpush1.msra.mxu0 0.0
    %2895 = vmatprep.subr.mxu0 0.0
    %2896 = vmatpush1.msra.mxu0 0.0
    %2897 = vmatprep.subr.mxu0 0.0
    %2898 = vmatpush1.msra.mxu0 0.0
    %2899 = vmatprep.subr.mxu0 0.0
    %2900 = vmatpush1.msra.mxu0 0.0
    %2901 = vmatprep.subr.mxu0 0.0
    %2902 = vmatpush1.msra.mxu0 0.0
    %2903 = vmatprep.subr.mxu0 0.0
    %2904 = vmatpush1.msra.mxu0 0.0
    %2905 = vmatprep.subr.mxu0 0.0
    %2906 = vmatpush1.msra.mxu0 0.0
    %2907 = vmatprep.subr.mxu0 0.0
    %2908 = vmatpush1.msra.mxu0 0.0
    %2909 = vmatprep.subr.mxu0 0.0
    %2910 = vmatpush1.msra.mxu0 0.0
    %2911 = vmatprep.subr.mxu0 0.0
    %2912 = vmatpush1.msra.mxu0 0.0
    %2913 = vmatprep.subr.mxu0 0.0
    %2914 = vmatpush1.msra.mxu0 0.0
    %2915 = vmatprep.subr.mxu0 0.0
    %2916 = vmatpush1.msra.mxu0 0.0
    %2917 = vmatprep.subr.mxu0 0.0
    %2918 = vmatpush1.msra.mxu0 0.0
    %2919 = vmatprep.subr.mxu0 0.0
    %2920 = vmatpush1.msra.mxu0 0.0
    %2921 = vmatprep.subr.mxu0 0.0
    %2922 = vmatpush1.msra.mxu0 0.0
    %2923 = vmatprep.subr.mxu0 0.0
    %2924 = vmatpush1.msra.mxu0 0.0
    %2925 = vmatprep.subr.mxu0 0.0
    %2926 = vmatpush1.msra.mxu0 0.0
    %2927 = vmatprep.subr.mxu0 0.0
    %2928 = vmatpush1.msra.mxu0 0.0
    %2929 = vmatprep.subr.mxu0 0.0
    %2930 = vmatpush1.msra.mxu0 0.0
    %2931 = vmatprep.subr.mxu0 0.0
    %2932 = vmatpush1.msra.mxu0 0.0
    %2933 = vmatprep.subr.mxu0 0.0
    %2934 = vmatpush1.msra.mxu0 0.0
    %2935 = vmatprep.subr.mxu0 0.0
    %2936 = vmatpush1.msra.mxu0 0.0
    %2937 = vmatprep.subr.mxu0 0.0
    %2938 = vmatpush1.msra.mxu0 0.0
    %2939 = vmatprep.subr.mxu0 0.0
    %2940 = vmatpush1.msra.mxu0 0.0
    %2941 = vmatprep.mubr.f32.mxu0 0.0
    %2942 = vmatmul.mubr.f32.gmra.mrb[0].mxu0 %v2875
    %v2943 = vpop.f32.mrb[0].mxu0
    %v2944 = vadd.f32 0.0, %v2943
    %v2945 = vpop.f32.mrb[0].mxu0
    %2946 = vdwg.mxu0
    %v2947 = vxor.u32 %v2944, 2147483648
    %v2948 = vmul.f32 %v2947, 1.442695
    %v2949 = vpow.pop %v2948
    %v2950 = vadd.f32 %v2949, 1.0
    %v2951 = vrcp.pop %v2950
    %v2952 = vmul.f32 1.0, %v2951
    %v2953 = vlaneseq
    %v2954 = vshrl.u32 %v2953, 7
    %v2955 = vsub.s32 0, %v2954
    %v2956 = vrot.slane %v2872, %v2955
    %2958 = vrot.lane.b32.xlu0 %v2956, 32
    %v2959 = vpop.permute.xlu0 %2958
    %v2961 = vsub.f32 %v2944, %v2959
    %v2962 = vxor.u32 %v2961, 2147483648
    %v2963 = vmul.f32 %v2962, 1.442695
    %v2964 = vpow.pop %v2963
    %v2965 = vadd.f32 %v2964, 1.0
    %v2966 = vrcp.pop %v2965
    %v2967 = vmul.f32 1.0, %v2966
    %v2968 = vmul.f32 %v2952, %v1736
    %v2970 = vsel %vm60, %v2968, 0
    %2972 = vmatprep.subr.mxu0 0.0
    %2973 = vmatpush1.msra.mxu0 %v2868
    %2974 = vmatprep.subr.mxu0 0.0
    %2975 = vmatpush1.msra.mxu0 %v2869
    %2976 = vmatprep.subr.mxu0 0.0
    %2977 = vmatpush1.msra.mxu0 %v2870
    %2978 = vmatprep.subr.mxu0 0.0
    %2979 = vmatpush1.msra.mxu0 %v2871
    %2980 = vmatprep.subr.mxu0 0.0
    %2981 = vmatpush1.msra.mxu0 0.0
    %2982 = vmatprep.subr.mxu0 0.0
    %2983 = vmatpush1.msra.mxu0 0.0
    %2984 = vmatprep.subr.mxu0 0.0
    %2985 = vmatpush1.msra.mxu0 0.0
    %2986 = vmatprep.subr.mxu0 0.0
    %2987 = vmatpush1.msra.mxu0 0.0
    %2988 = vmatprep.subr.mxu0 0.0
    %2989 = vmatpush1.msra.mxu0 0.0
    %2990 = vmatprep.subr.mxu0 0.0
    %2991 = vmatpush1.msra.mxu0 0.0
    %2992 = vmatprep.subr.mxu0 0.0
    %2993 = vmatpush1.msra.mxu0 0.0
    %2994 = vmatprep.subr.mxu0 0.0
    %2995 = vmatpush1.msra.mxu0 0.0
    %2996 = vmatprep.subr.mxu0 0.0
    %2997 = vmatpush1.msra.mxu0 0.0
    %2998 = vmatprep.subr.mxu0 0.0
    %2999 = vmatpush1.msra.mxu0 0.0
    %3000 = vmatprep.subr.mxu0 0.0
    %3001 = vmatpush1.msra.mxu0 0.0
    %3002 = vmatprep.subr.mxu0 0.0
    %3003 = vmatpush1.msra.mxu0 0.0
    %3004 = vmatprep.subr.mxu0 0.0
    %3005 = vmatpush1.msra.mxu0 0.0
    %3006 = vmatprep.subr.mxu0 0.0
    %3007 = vmatpush1.msra.mxu0 0.0
    %3008 = vmatprep.subr.mxu0 0.0
    %3009 = vmatpush1.msra.mxu0 0.0
    %3010 = vmatprep.subr.mxu0 0.0
    %3011 = vmatpush1.msra.mxu0 0.0
    %3012 = vmatprep.subr.mxu0 0.0
    %3013 = vmatpush1.msra.mxu0 0.0
    %3014 = vmatprep.subr.mxu0 0.0
    %3015 = vmatpush1.msra.mxu0 0.0
    %3016 = vmatprep.subr.mxu0 0.0
    %3017 = vmatpush1.msra.mxu0 0.0
    %3018 = vmatprep.subr.mxu0 0.0
    %3019 = vmatpush1.msra.mxu0 0.0
    %3020 = vmatprep.subr.mxu0 0.0
    %3021 = vmatpush1.msra.mxu0 0.0
    %3022 = vmatprep.subr.mxu0 0.0
    %3023 = vmatpush1.msra.mxu0 0.0
    %3024 = vmatprep.subr.mxu0 0.0
    %3025 = vmatpush1.msra.mxu0 0.0
    %3026 = vmatprep.subr.mxu0 0.0
    %3027 = vmatpush1.msra.mxu0 0.0
    %3028 = vmatprep.subr.mxu0 0.0
    %3029 = vmatpush1.msra.mxu0 0.0
    %3030 = vmatprep.subr.mxu0 0.0
    %3031 = vmatpush1.msra.mxu0 0.0
    %3032 = vmatprep.subr.mxu0 0.0
    %3033 = vmatpush1.msra.mxu0 0.0
    %3034 = vmatprep.subr.mxu0 0.0
    %3035 = vmatpush1.msra.mxu0 0.0
    %3036 = vmatprep.mubr.f32.mxu0 0.0
    %3037 = vmatmul.mubr.f32.gmra.mrb[0].mxu0 %v2970
    %v3038 = vpop.f32.mrb[0].mxu0
    %v3039 = vadd.f32 0.0, %v3038
    %v3040 = vpop.f32.mrb[0].mxu0
    %3041 = vdwg.mxu0
    %3043 = vrot.lane.b32.xlu0 %v3039, 64
    %v3044 = vpop.permute.xlu0 %3043
    %v3046 = vadd.f32 %v2944, %v3044
    %v3047 = vtanh.pop %v3046
    %v3048 = vsub.f32 1.0, %v2967
    %v3049 = vmul.f32 %v3048, %v1731
    %3051 = vrot.lane.b32.xlu0 %v3047, 96
    %v3052 = vpop.permute.xlu0 %3051
    %v3054 = vmul.f32 %v2967, %v3052
    %v3055 = vadd.f32 %v3049, %v3054
    %3057 = vrot.lane.b32.xlu0 %v3055, 96
    %v3058 = vpop.permute.xlu0 %3057
    %v3060 = vsel %vm60, %v3058, 0.0
    %3061 = vadd.xlane.f32.xlu0 %v3060
    %v3062 = vpop.xlane.xlu0 %3061
    %v3063 = vmul.f32 %v3062, %v64
    %v3064 = vsub.f32 %v3055, %v3063
    %v3065 = vmul.f32 %v3064, %v3064
    %3067 = vrot.lane.b32.xlu0 %v3065, 96
    %v3068 = vpop.permute.xlu0 %3067
    %v3070 = vsel %vm60, %v3068, 0.0
    %3071 = vadd.xlane.f32.xlu0 %v3070
    %v3072 = vpop.xlane.xlu0 %3071
    %v3073 = vmul.f32 %v3072, %v64
    %v3074 = vadd.f32 %v3073, 1e-05
    %v3075 = vrsqrt.pop %v3074
    %v3076 = vmul.f32 %v3064, %v3075
    %v3077 = vmul.f32 %v3076, %v1761
    %v3078 = vadd.f32 %v3077, %v1770
    %v3079 = vld [vmem:[#allocation7 + $0x218] sm:$0xff]
    %v3080 = vld [vmem:[#allocation7 + $0x220] sm:$0xff]
    %v3081 = vld [vmem:[#allocation7 + $0x228] sm:$0xff]
    %v3082 = vld [vmem:[#allocation7 + $0x230] sm:$0xff]
    %v3083 = vld [vmem:[#allocation7 + $0x238] sm:$0x1]
    %v3084 = vld [vmem:[#allocation7 + $0x240] sm:$0xff]
    %v3085 = vld [vmem:[#allocation7 + $0x248] sm:$0xff]
    %v3086 = vld [vmem:[#allocation7 + $0x250] sm:$0xff]
    %v3087 = vld [vmem:[#allocation7 + $0x258] sm:$0xff]
    %v3088 = vld [vmem:[#allocation7 + $0x260] sm:$0xff]
    %v3089 = vld [vmem:[#allocation7 + $0x268] sm:$0xff]
    %v3090 = vld [vmem:[#allocation7 + $0x270] sm:$0xff]
    %v3091 = vld [vmem:[#allocation7 + $0x278] sm:$0xff]
    %v3092 = vld [vmem:[#allocation7 + $0x280] sm:$0x1]
    %v3093 = vlaneseq
    %v3094 = vshrl.u32 %v3093, 7
    %v3095 = vsub.s32 0, %v3094
    %v3096 = vrot.slane %v3083, %v3095
    %3098 = vrot.lane.b32.xlu0 %v3078, 96
    %v3099 = vpop.permute.xlu0 %3098
    %v3100 = vsel %vm60, %v3099, 0
    %3102 = vmatprep.subr.mxu0 0.0
    %3103 = vmatpush1.msra.mxu0 %v3079
    %3104 = vmatprep.subr.mxu0 0.0
    %3105 = vmatpush1.msra.mxu0 %v3080
    %3106 = vmatprep.subr.mxu0 0.0
    %3107 = vmatpush1.msra.mxu0 %v3081
    %3108 = vmatprep.subr.mxu0 0.0
    %3109 = vmatpush1.msra.mxu0 %v3082
    %3110 = vmatprep.subr.mxu0 0.0
    %3111 = vmatpush1.msra.mxu0 0.0
    %3112 = vmatprep.subr.mxu0 0.0
    %3113 = vmatpush1.msra.mxu0 0.0
    %3114 = vmatprep.subr.mxu0 0.0
    %3115 = vmatpush1.msra.mxu0 0.0
    %3116 = vmatprep.subr.mxu0 0.0
    %3117 = vmatpush1.msra.mxu0 0.0
    %3118 = vmatprep.subr.mxu0 0.0
    %3119 = vmatpush1.msra.mxu0 0.0
    %3120 = vmatprep.subr.mxu0 0.0
    %3121 = vmatpush1.msra.mxu0 0.0
    %3122 = vmatprep.subr.mxu0 0.0
    %3123 = vmatpush1.msra.mxu0 0.0
    %3124 = vmatprep.subr.mxu0 0.0
    %3125 = vmatpush1.msra.mxu0 0.0
    %3126 = vmatprep.subr.mxu0 0.0
    %3127 = vmatpush1.msra.mxu0 0.0
    %3128 = vmatprep.subr.mxu0 0.0
    %3129 = vmatpush1.msra.mxu0 0.0
    %3130 = vmatprep.subr.mxu0 0.0
    %3131 = vmatpush1.msra.mxu0 0.0
    %3132 = vmatprep.subr.mxu0 0.0
    %3133 = vmatpush1.msra.mxu0 0.0
    %3134 = vmatprep.subr.mxu0 0.0
    %3135 = vmatpush1.msra.mxu0 0.0
    %3136 = vmatprep.subr.mxu0 0.0
    %3137 = vmatpush1.msra.mxu0 0.0
    %3138 = vmatprep.subr.mxu0 0.0
    %3139 = vmatpush1.msra.mxu0 0.0
    %3140 = vmatprep.subr.mxu0 0.0
    %3141 = vmatpush1.msra.mxu0 0.0
    %3142 = vmatprep.subr.mxu0 0.0
    %3143 = vmatpush1.msra.mxu0 0.0
    %3144 = vmatprep.subr.mxu0 0.0
    %3145 = vmatpush1.msra.mxu0 0.0
    %3146 = vmatprep.subr.mxu0 0.0
    %3147 = vmatpush1.msra.mxu0 0.0
    %3148 = vmatprep.subr.mxu0 0.0
    %3149 = vmatpush1.msra.mxu0 0.0
    %3150 = vmatprep.subr.mxu0 0.0
    %3151 = vmatpush1.msra.mxu0 0.0
    %3152 = vmatprep.subr.mxu0 0.0
    %3153 = vmatpush1.msra.mxu0 0.0
    %3154 = vmatprep.subr.mxu0 0.0
    %3155 = vmatpush1.msra.mxu0 0.0
    %3156 = vmatprep.subr.mxu0 0.0
    %3157 = vmatpush1.msra.mxu0 0.0
    %3158 = vmatprep.subr.mxu0 0.0
    %3159 = vmatpush1.msra.mxu0 0.0
    %3160 = vmatprep.subr.mxu0 0.0
    %3161 = vmatpush1.msra.mxu0 0.0
    %3162 = vmatprep.subr.mxu0 0.0
    %3163 = vmatpush1.msra.mxu0 0.0
    %3164 = vmatprep.subr.mxu0 0.0
    %3165 = vmatpush1.msra.mxu0 0.0
    %3166 = vmatprep.mubr.f32.mxu0 0.0
    %3167 = vmatmul.mubr.f32.gmra.mrb[0].mxu0 %v3100
    %v3168 = vpop.f32.mrb[0].mxu0
    %v3169 = vadd.f32 %v3096, %v3168
    %v3170 = vpop.f32.mrb[0].mxu0
    %3171 = vdwg.mxu0
    %v3172 = vmax.f32 %v3169, 0.0
    %v3173 = vlaneseq
    %v3174 = vshrl.u32 %v3173, 7
    %v3175 = vsub.s32 0, %v3174
    %v3176 = vrot.slane %v3092, %v3175
    %v3178 = vsel %vm1150, %v3172, 0
    %3180 = vmatprep.subr.mxu0 0.0
    %3181 = vmatpush1.msra.mxu0 %v3084
    %3182 = vmatprep.subr.mxu0 0.0
    %3183 = vmatpush1.msra.mxu0 %v3085
    %3184 = vmatprep.subr.mxu0 0.0
    %3185 = vmatpush1.msra.mxu0 %v3086
    %3186 = vmatprep.subr.mxu0 0.0
    %3187 = vmatpush1.msra.mxu0 %v3087
    %3188 = vmatprep.subr.mxu0 0.0
    %3189 = vmatpush1.msra.mxu0 %v3088
    %3190 = vmatprep.subr.mxu0 0.0
    %3191 = vmatpush1.msra.mxu0 %v3089
    %3192 = vmatprep.subr.mxu0 0.0
    %3193 = vmatpush1.msra.mxu0 %v3090
    %3194 = vmatprep.subr.mxu0 0.0
    %3195 = vmatpush1.msra.mxu0 %v3091
    %3196 = vmatprep.subr.mxu0 0.0
    %3197 = vmatpush1.msra.mxu0 0.0
    %3198 = vmatprep.subr.mxu0 0.0
    %3199 = vmatpush1.msra.mxu0 0.0
    %3200 = vmatprep.subr.mxu0 0.0
    %3201 = vmatpush1.msra.mxu0 0.0
    %3202 = vmatprep.subr.mxu0 0.0
    %3203 = vmatpush1.msra.mxu0 0.0
    %3204 = vmatprep.subr.mxu0 0.0
    %3205 = vmatpush1.msra.mxu0 0.0
    %3206 = vmatprep.subr.mxu0 0.0
    %3207 = vmatpush1.msra.mxu0 0.0
    %3208 = vmatprep.subr.mxu0 0.0
    %3209 = vmatpush1.msra.mxu0 0.0
    %3210 = vmatprep.subr.mxu0 0.0
    %3211 = vmatpush1.msra.mxu0 0.0
    %3212 = vmatprep.subr.mxu0 0.0
    %3213 = vmatpush1.msra.mxu0 0.0
    %3214 = vmatprep.subr.mxu0 0.0
    %3215 = vmatpush1.msra.mxu0 0.0
    %3216 = vmatprep.subr.mxu0 0.0
    %3217 = vmatpush1.msra.mxu0 0.0
    %3218 = vmatprep.subr.mxu0 0.0
    %3219 = vmatpush1.msra.mxu0 0.0
    %3220 = vmatprep.subr.mxu0 0.0
    %3221 = vmatpush1.msra.mxu0 0.0
    %3222 = vmatprep.subr.mxu0 0.0
    %3223 = vmatpush1.msra.mxu0 0.0
    %3224 = vmatprep.subr.mxu0 0.0
    %3225 = vmatpush1.msra.mxu0 0.0
    %3226 = vmatprep.subr.mxu0 0.0
    %3227 = vmatpush1.msra.mxu0 0.0
    %3228 = vmatprep.subr.mxu0 0.0
    %3229 = vmatpush1.msra.mxu0 0.0
    %3230 = vmatprep.subr.mxu0 0.0
    %3231 = vmatpush1.msra.mxu0 0.0
    %3232 = vmatprep.subr.mxu0 0.0
    %3233 = vmatpush1.msra.mxu0 0.0
    %3234 = vmatprep.subr.mxu0 0.0
    %3235 = vmatpush1.msra.mxu0 0.0
    %3236 = vmatprep.subr.mxu0 0.0
    %3237 = vmatpush1.msra.mxu0 0.0
    %3238 = vmatprep.subr.mxu0 0.0
    %3239 = vmatpush1.msra.mxu0 0.0
    %3240 = vmatprep.subr.mxu0 0.0
    %3241 = vmatpush1.msra.mxu0 0.0
    %3242 = vmatprep.subr.mxu0 0.0
    %3243 = vmatpush1.msra.mxu0 0.0
    %3244 = vmatprep.mubr.f32.mxu0 0.0
    %3245 = vmatmul.mubr.f32.gmra.mrb[0].mxu0 %v3178
    %v3246 = vpop.f32.mrb[0].mxu0
    %v3247 = vadd.f32 %v3176, %v3246
    %v3248 = vpop.f32.mrb[0].mxu0
    %3249 = vdwg.mxu0
    %v3250 = vmax.f32 %v3247, 0.0
    %v3251 = vld [vmem:[#allocation7 + $0x2f0] sm:$0xff]
    %v3252 = vld [vmem:[#allocation7 + $0x2f8] sm:$0xff]
    %v3253 = vld [vmem:[#allocation7 + $0x300] sm:$0xff]
    %v3254 = vld [vmem:[#allocation7 + $0x308] sm:$0xff]
    %v3255 = vld [vmem:[#allocation7 + $0x310] sm:$0xff]
    %v3256 = vld [vmem:[#allocation7 + $0x318] sm:$0xff]
    %v3257 = vld [vmem:[#allocation7 + $0x320] sm:$0xff]
    %v3258 = vld [vmem:[#allocation7 + $0x328] sm:$0xff]
    %v3259 = vld [vmem:[#allocation7 + $0x330] sm:$0xff]
    %v3260 = vld [vmem:[#allocation7 + $0x338] sm:$0xff]
    %v3261 = vld [vmem:[#allocation7 + $0x340] sm:$0xff]
    %v3262 = vld [vmem:[#allocation7 + $0x348] sm:$0xff]
    %v3263 = vld [vmem:[#allocation7 + $0x350] sm:$0x1]
    %v3264 = vsel %vm60, %v3250, %v3055
    %v3266 = vsel %vm1150, %v3264, 0
    %3268 = vmatprep.subr.mxu0 0.0
    %3269 = vmatpush1.msra.mxu0 %v3251
    %3270 = vmatprep.subr.mxu0 0.0
    %3271 = vmatpush1.msra.mxu0 %v3252
    %3272 = vmatprep.subr.mxu0 0.0
    %3273 = vmatpush1.msra.mxu0 %v3253
    %3274 = vmatprep.subr.mxu0 0.0
    %3275 = vmatpush1.msra.mxu0 %v3254
    %3276 = vmatprep.subr.mxu0 0.0
    %3277 = vmatpush1.msra.mxu0 %v3255
    %3278 = vmatprep.subr.mxu0 0.0
    %3279 = vmatpush1.msra.mxu0 %v3256
    %3280 = vmatprep.subr.mxu0 0.0
    %3281 = vmatpush1.msra.mxu0 %v3257
    %3282 = vmatprep.subr.mxu0 0.0
    %3283 = vmatpush1.msra.mxu0 %v3258
    %3284 = vmatprep.subr.mxu0 0.0
    %3285 = vmatpush1.msra.mxu0 0.0
    %3286 = vmatprep.subr.mxu0 0.0
    %3287 = vmatpush1.msra.mxu0 0.0
    %3288 = vmatprep.subr.mxu0 0.0
    %3289 = vmatpush1.msra.mxu0 0.0
    %3290 = vmatprep.subr.mxu0 0.0
    %3291 = vmatpush1.msra.mxu0 0.0
    %3292 = vmatprep.subr.mxu0 0.0
    %3293 = vmatpush1.msra.mxu0 0.0
    %3294 = vmatprep.subr.mxu0 0.0
    %3295 = vmatpush1.msra.mxu0 0.0
    %3296 = vmatprep.subr.mxu0 0.0
    %3297 = vmatpush1.msra.mxu0 0.0
    %3298 = vmatprep.subr.mxu0 0.0
    %3299 = vmatpush1.msra.mxu0 0.0
    %3300 = vmatprep.subr.mxu0 0.0
    %3301 = vmatpush1.msra.mxu0 0.0
    %3302 = vmatprep.subr.mxu0 0.0
    %3303 = vmatpush1.msra.mxu0 0.0
    %3304 = vmatprep.subr.mxu0 0.0
    %3305 = vmatpush1.msra.mxu0 0.0
    %3306 = vmatprep.subr.mxu0 0.0
    %3307 = vmatpush1.msra.mxu0 0.0
    %3308 = vmatprep.subr.mxu0 0.0
    %3309 = vmatpush1.msra.mxu0 0.0
    %3310 = vmatprep.subr.mxu0 0.0
    %3311 = vmatpush1.msra.mxu0 0.0
    %3312 = vmatprep.subr.mxu0 0.0
    %3313 = vmatpush1.msra.mxu0 0.0
    %3314 = vmatprep.subr.mxu0 0.0
    %3315 = vmatpush1.msra.mxu0 0.0
    %3316 = vmatprep.subr.mxu0 0.0
    %3317 = vmatpush1.msra.mxu0 0.0
    %3318 = vmatprep.subr.mxu0 0.0
    %3319 = vmatpush1.msra.mxu0 0.0
    %3320 = vmatprep.subr.mxu0 0.0
    %3321 = vmatpush1.msra.mxu0 0.0
    %3322 = vmatprep.subr.mxu0 0.0
    %3323 = vmatpush1.msra.mxu0 0.0
    %3324 = vmatprep.subr.mxu0 0.0
    %3325 = vmatpush1.msra.mxu0 0.0
    %3326 = vmatprep.subr.mxu0 0.0
    %3327 = vmatpush1.msra.mxu0 0.0
    %3328 = vmatprep.subr.mxu0 0.0
    %3329 = vmatpush1.msra.mxu0 0.0
    %3330 = vmatprep.subr.mxu0 0.0
    %3331 = vmatpush1.msra.mxu0 0.0
    %3332 = vmatprep.mubr.f32.mxu0 0.0
    %3333 = vmatmul.mubr.f32.gmra.mrb[0].mxu0 %v3266
    %v3334 = vpop.f32.mrb[0].mxu0
    %v3335 = vadd.f32 0.0, %v3334
    %v3336 = vpop.f32.mrb[0].mxu0
    %3337 = vdwg.mxu0
    %v3338 = vxor.u32 %v3335, 2147483648
    %v3339 = vmul.f32 %v3338, 1.442695
    %v3340 = vpow.pop %v3339
    %v3341 = vadd.f32 %v3340, 1.0
    %v3342 = vrcp.pop %v3341
    %v3343 = vmul.f32 1.0, %v3342
    %v3344 = vlaneseq
    %v3345 = vshrl.u32 %v3344, 7
    %v3346 = vsub.s32 0, %v3345
    %v3347 = vrot.slane %v3263, %v3346
    %3349 = vrot.lane.b32.xlu0 %v3347, 32
    %v3350 = vpop.permute.xlu0 %3349
    %v3352 = vsub.f32 %v3335, %v3350
    %v3353 = vxor.u32 %v3352, 2147483648
    %v3354 = vmul.f32 %v3353, 1.442695
    %v3355 = vpow.pop %v3354
    %v3356 = vadd.f32 %v3355, 1.0
    %v3357 = vrcp.pop %v3356
    %v3358 = vmul.f32 1.0, %v3357
    %v3359 = vmul.f32 %v3343, %v3058
    %v3361 = vsel %vm60, %v3359, 0
    %3363 = vmatprep.subr.mxu0 0.0
    %3364 = vmatpush1.msra.mxu0 %v3259
    %3365 = vmatprep.subr.mxu0 0.0
    %3366 = vmatpush1.msra.mxu0 %v3260
    %3367 = vmatprep.subr.mxu0 0.0
    %3368 = vmatpush1.msra.mxu0 %v3261
    %3369 = vmatprep.subr.mxu0 0.0
    %3370 = vmatpush1.msra.mxu0 %v3262
    %3371 = vmatprep.subr.mxu0 0.0
    %3372 = vmatpush1.msra.mxu0 0.0
    %3373 = vmatprep.subr.mxu0 0.0
    %3374 = vmatpush1.msra.mxu0 0.0
    %3375 = vmatprep.subr.mxu0 0.0
    %3376 = vmatpush1.msra.mxu0 0.0
    %3377 = vmatprep.subr.mxu0 0.0
    %3378 = vmatpush1.msra.mxu0 0.0
    %3379 = vmatprep.subr.mxu0 0.0
    %3380 = vmatpush1.msra.mxu0 0.0
    %3381 = vmatprep.subr.mxu0 0.0
    %3382 = vmatpush1.msra.mxu0 0.0
    %3383 = vmatprep.subr.mxu0 0.0
    %3384 = vmatpush1.msra.mxu0 0.0
    %3385 = vmatprep.subr.mxu0 0.0
    %3386 = vmatpush1.msra.mxu0 0.0
    %3387 = vmatprep.subr.mxu0 0.0
    %3388 = vmatpush1.msra.mxu0 0.0
    %3389 = vmatprep.subr.mxu0 0.0
    %3390 = vmatpush1.msra.mxu0 0.0
    %3391 = vmatprep.subr.mxu0 0.0
    %3392 = vmatpush1.msra.mxu0 0.0
    %3393 = vmatprep.subr.mxu0 0.0
    %3394 = vmatpush1.msra.mxu0 0.0
    %3395 = vmatprep.subr.mxu0 0.0
    %3396 = vmatpush1.msra.mxu0 0.0
    %3397 = vmatprep.subr.mxu0 0.0
    %3398 = vmatpush1.msra.mxu0 0.0
    %3399 = vmatprep.subr.mxu0 0.0
    %3400 = vmatpush1.msra.mxu0 0.0
    %3401 = vmatprep.subr.mxu0 0.0
    %3402 = vmatpush1.msra.mxu0 0.0
    %3403 = vmatprep.subr.mxu0 0.0
    %3404 = vmatpush1.msra.mxu0 0.0
    %3405 = vmatprep.subr.mxu0 0.0
    %3406 = vmatpush1.msra.mxu0 0.0
    %3407 = vmatprep.subr.mxu0 0.0
    %3408 = vmatpush1.msra.mxu0 0.0
    %3409 = vmatprep.subr.mxu0 0.0
    %3410 = vmatpush1.msra.mxu0 0.0
    %3411 = vmatprep.subr.mxu0 0.0
    %3412 = vmatpush1.msra.mxu0 0.0
    %3413 = vmatprep.subr.mxu0 0.0
    %3414 = vmatpush1.msra.mxu0 0.0
    %3415 = vmatprep.subr.mxu0 0.0
    %3416 = vmatpush1.msra.mxu0 0.0
    %3417 = vmatprep.subr.mxu0 0.0
    %3418 = vmatpush1.msra.mxu0 0.0
    %3419 = vmatprep.subr.mxu0 0.0
    %3420 = vmatpush1.msra.mxu0 0.0
    %3421 = vmatprep.subr.mxu0 0.0
    %3422 = vmatpush1.msra.mxu0 0.0
    %3423 = vmatprep.subr.mxu0 0.0
    %3424 = vmatpush1.msra.mxu0 0.0
    %3425 = vmatprep.subr.mxu0 0.0
    %3426 = vmatpush1.msra.mxu0 0.0
    %3427 = vmatprep.mubr.f32.mxu0 0.0
    %3428 = vmatmul.mubr.f32.gmra.mrb[0].mxu0 %v3361
    %v3429 = vpop.f32.mrb[0].mxu0
    %v3430 = vadd.f32 0.0, %v3429
    %v3431 = vpop.f32.mrb[0].mxu0
    %3432 = vdwg.mxu0
    %3434 = vrot.lane.b32.xlu0 %v3430, 64
    %v3435 = vpop.permute.xlu0 %3434
    %v3437 = vadd.f32 %v3335, %v3435
    %v3438 = vtanh.pop %v3437
    %v3439 = vsub.f32 1.0, %v3358
    %v3440 = vmul.f32 %v3439, %v3055
    %3442 = vrot.lane.b32.xlu0 %v3438, 96
    %v3443 = vpop.permute.xlu0 %3442
    %v3445 = vmul.f32 %v3358, %v3443
    %v3446 = vadd.f32 %v3440, %v3445
    %v3447 = vld [vmem:[#allocation7 + $0x360] sm:$0x1]
    %v3448 = vld [vmem:[#allocation7 + $0x368] sm:$0x1]
    %3450 = vrot.lane.b32.xlu0 %v3446, 96
    %v3451 = vpop.permute.xlu0 %3450
    %v3453 = vsel %vm60, %v3451, 0.0
    %3454 = vadd.xlane.f32.xlu0 %v3453
    %v3455 = vpop.xlane.xlu0 %3454
    %v3456 = vmul.f32 %v3455, %v64
    %v3457 = vsub.f32 %v3446, %v3456
    %v3458 = vmul.f32 %v3457, %v3457
    %3460 = vrot.lane.b32.xlu0 %v3458, 96
    %v3461 = vpop.permute.xlu0 %3460
    %v3463 = vsel %vm60, %v3461, 0.0
    %3464 = vadd.xlane.f32.xlu0 %v3463
    %v3465 = vpop.xlane.xlu0 %3464
    %v3466 = vmul.f32 %v3465, %v64
    %v3467 = vadd.f32 %v3466, 1e-05
    %v3468 = vrsqrt.pop %v3467
    %v3469 = vmul.f32 %v3457, %v3468
    %v3470 = vlaneseq
    %v3471 = vshrl.u32 %v3470, 7
    %v3472 = vsub.s32 0, %v3471
    %v3473 = vrot.slane %v3447, %v3472
    %3475 = vrot.lane.b32.xlu0 %v3473, 32
    %v3476 = vpop.permute.xlu0 %3475
    %v3478 = vmul.f32 %v3469, %v3476
    %v3479 = vlaneseq
    %v3480 = vshrl.u32 %v3479, 7
    %v3481 = vsub.s32 0, %v3480
    %v3482 = vrot.slane %v3448, %v3481
    %3484 = vrot.lane.b32.xlu0 %v3482, 32
    %v3485 = vpop.permute.xlu0 %3484
    %v3487 = vadd.f32 %v3478, %v3485
    %v3488 = vld [vmem:[#allocation7 + $0x370] sm:$0xff]
    %v3489 = vld [vmem:[#allocation7 + $0x378] sm:$0xff]
    %v3490 = vld [vmem:[#allocation7 + $0x380] sm:$0xff]
    %v3491 = vld [vmem:[#allocation7 + $0x388] sm:$0xff]
    %v3492 = vld [vmem:[#allocation7 + $0x390] sm:$0x1]
    %v3493 = vld [vmem:[#allocation7 + $0x398] sm:$0xff]
    %v3494 = vld [vmem:[#allocation7 + $0x3a0] sm:$0xff]
    %v3495 = vld [vmem:[#allocation7 + $0x3a8] sm:$0xff]
    %v3496 = vld [vmem:[#allocation7 + $0x3b0] sm:$0xff]
    %v3497 = vld [vmem:[#allocation7 + $0x3b8] sm:$0x1]
    %v3498 = vlaneseq
    %v3499 = vshrl.u32 %v3498, 7
    %v3500 = vsub.s32 0, %v3499
    %v3501 = vrot.slane %v3492, %v3500
    %3503 = vrot.lane.b32.xlu0 %v3487, 96
    %v3504 = vpop.permute.xlu0 %3503
    %v3505 = vsel %vm60, %v3504, 0
    %3507 = vmatprep.subr.mxu0 0.0
    %3508 = vmatpush1.msra.mxu0 %v3488
    %3509 = vmatprep.subr.mxu0 0.0
    %3510 = vmatpush1.msra.mxu0 %v3489
    %3511 = vmatprep.subr.mxu0 0.0
    %3512 = vmatpush1.msra.mxu0 %v3490
    %3513 = vmatprep.subr.mxu0 0.0
    %3514 = vmatpush1.msra.mxu0 %v3491
    %3515 = vmatprep.subr.mxu0 0.0
    %3516 = vmatpush1.msra.mxu0 0.0
    %3517 = vmatprep.subr.mxu0 0.0
    %3518 = vmatpush1.msra.mxu0 0.0
    %3519 = vmatprep.subr.mxu0 0.0
    %3520 = vmatpush1.msra.mxu0 0.0
    %3521 = vmatprep.subr.mxu0 0.0
    %3522 = vmatpush1.msra.mxu0 0.0
    %3523 = vmatprep.subr.mxu0 0.0
    %3524 = vmatpush1.msra.mxu0 0.0
    %3525 = vmatprep.subr.mxu0 0.0
    %3526 = vmatpush1.msra.mxu0 0.0
    %3527 = vmatprep.subr.mxu0 0.0
    %3528 = vmatpush1.msra.mxu0 0.0
    %3529 = vmatprep.subr.mxu0 0.0
    %3530 = vmatpush1.msra.mxu0 0.0
    %3531 = vmatprep.subr.mxu0 0.0
    %3532 = vmatpush1.msra.mxu0 0.0
    %3533 = vmatprep.subr.mxu0 0.0
    %3534 = vmatpush1.msra.mxu0 0.0
    %3535 = vmatprep.subr.mxu0 0.0
    %3536 = vmatpush1.msra.mxu0 0.0
    %3537 = vmatprep.subr.mxu0 0.0
    %3538 = vmatpush1.msra.mxu0 0.0
    %3539 = vmatprep.subr.mxu0 0.0
    %3540 = vmatpush1.msra.mxu0 0.0
    %3541 = vmatprep.subr.mxu0 0.0
    %3542 = vmatpush1.msra.mxu0 0.0
    %3543 = vmatprep.subr.mxu0 0.0
    %3544 = vmatpush1.msra.mxu0 0.0
    %3545 = vmatprep.subr.mxu0 0.0
    %3546 = vmatpush1.msra.mxu0 0.0
    %3547 = vmatprep.subr.mxu0 0.0
    %3548 = vmatpush1.msra.mxu0 0.0
    %3549 = vmatprep.subr.mxu0 0.0
    %3550 = vmatpush1.msra.mxu0 0.0
    %3551 = vmatprep.subr.mxu0 0.0
    %3552 = vmatpush1.msra.mxu0 0.0
    %3553 = vmatprep.subr.mxu0 0.0
    %3554 = vmatpush1.msra.mxu0 0.0
    %3555 = vmatprep.subr.mxu0 0.0
    %3556 = vmatpush1.msra.mxu0 0.0
    %3557 = vmatprep.subr.mxu0 0.0
    %3558 = vmatpush1.msra.mxu0 0.0
    %3559 = vmatprep.subr.mxu0 0.0
    %3560 = vmatpush1.msra.mxu0 0.0
    %3561 = vmatprep.subr.mxu0 0.0
    %3562 = vmatpush1.msra.mxu0 0.0
    %3563 = vmatprep.subr.mxu0 0.0
    %3564 = vmatpush1.msra.mxu0 0.0
    %3565 = vmatprep.subr.mxu0 0.0
    %3566 = vmatpush1.msra.mxu0 0.0
    %3567 = vmatprep.subr.mxu0 0.0
    %3568 = vmatpush1.msra.mxu0 0.0
    %3569 = vmatprep.subr.mxu0 0.0
    %3570 = vmatpush1.msra.mxu0 0.0
    %3571 = vmatprep.mubr.f32.mxu0 0.0
    %3572 = vmatmul.mubr.f32.gmra.mrb[0].mxu0 %v3505
    %v3573 = vpop.f32.mrb[0].mxu0
    %v3574 = vadd.f32 %v3501, %v3573
    %v3575 = vpop.f32.mrb[0].mxu0
    %3576 = vdwg.mxu0
    %3578 = vrot.lane.b32.xlu0 %v3574, 96
    %v3579 = vpop.permute.xlu0 %3578
    %v3580 = vsel %vm175, %v3574, 0
    %v3582 = vsel %vm175, %v3579, 0
    %3584 = vmatprep.subr.mxu0 0.0
    %3585 = vmatpush1.xpose.msra.mxu0 %v3582
    %3586 = vmatprep.subr.mxu0 0.0
    %3587 = vmatpush1.xpose.msra.mxu0 0.0
    %3588 = vmatprep.subr.mxu0 0.0
    %3589 = vmatpush1.xpose.msra.mxu0 0.0
    %3590 = vmatprep.subr.mxu0 0.0
    %3591 = vmatpush1.xpose.msra.mxu0 0.0
    %3592 = vmatprep.subr.mxu0 0.0
    %3593 = vmatpush1.xpose.msra.mxu0 0.0
    %3594 = vmatprep.subr.mxu0 0.0
    %3595 = vmatpush1.xpose.msra.mxu0 0.0
    %3596 = vmatprep.subr.mxu0 0.0
    %3597 = vmatpush1.xpose.msra.mxu0 0.0
    %3598 = vmatprep.subr.mxu0 0.0
    %3599 = vmatpush1.xpose.msra.mxu0 0.0
    %3600 = vmatprep.subr.mxu0 0.0
    %3601 = vmatpush1.xpose.msra.mxu0 0.0
    %3602 = vmatprep.subr.mxu0 0.0
    %3603 = vmatpush1.xpose.msra.mxu0 0.0
    %3604 = vmatprep.subr.mxu0 0.0
    %3605 = vmatpush1.xpose.msra.mxu0 0.0
    %3606 = vmatprep.subr.mxu0 0.0
    %3607 = vmatpush1.xpose.msra.mxu0 0.0
    %3608 = vmatprep.subr.mxu0 0.0
    %3609 = vmatpush1.xpose.msra.mxu0 0.0
    %3610 = vmatprep.subr.mxu0 0.0
    %3611 = vmatpush1.xpose.msra.mxu0 0.0
    %3612 = vmatprep.subr.mxu0 0.0
    %3613 = vmatpush1.xpose.msra.mxu0 0.0
    %3614 = vmatprep.subr.mxu0 0.0
    %3615 = vmatpush1.xpose.msra.mxu0 0.0
    %3616 = vmatprep.subr.mxu0 0.0
    %3617 = vmatpush1.xpose.msra.mxu0 0.0
    %3618 = vmatprep.subr.mxu0 0.0
    %3619 = vmatpush1.xpose.msra.mxu0 0.0
    %3620 = vmatprep.subr.mxu0 0.0
    %3621 = vmatpush1.xpose.msra.mxu0 0.0
    %3622 = vmatprep.subr.mxu0 0.0
    %3623 = vmatpush1.xpose.msra.mxu0 0.0
    %3624 = vmatprep.subr.mxu0 0.0
    %3625 = vmatpush1.xpose.msra.mxu0 0.0
    %3626 = vmatprep.subr.mxu0 0.0
    %3627 = vmatpush1.xpose.msra.mxu0 0.0
    %3628 = vmatprep.subr.mxu0 0.0
    %3629 = vmatpush1.xpose.msra.mxu0 0.0
    %3630 = vmatprep.subr.mxu0 0.0
    %3631 = vmatpush1.xpose.msra.mxu0 0.0
    %3632 = vmatprep.subr.mxu0 0.0
    %3633 = vmatpush1.xpose.msra.mxu0 0.0
    %3634 = vmatprep.subr.mxu0 0.0
    %3635 = vmatpush1.xpose.msra.mxu0 0.0
    %3636 = vmatprep.subr.mxu0 0.0
    %3637 = vmatpush1.xpose.msra.mxu0 0.0
    %3638 = vmatprep.subr.mxu0 0.0
    %3639 = vmatpush1.xpose.msra.mxu0 0.0
    %3640 = vmatprep.subr.mxu0 0.0
    %3641 = vmatpush1.xpose.msra.mxu0 0.0
    %3642 = vmatprep.subr.mxu0 0.0
    %3643 = vmatpush1.xpose.msra.mxu0 0.0
    %3644 = vmatprep.subr.mxu0 0.0
    %3645 = vmatpush1.xpose.msra.mxu0 0.0
    %3646 = vmatprep.subr.mxu0 0.0
    %3647 = vmatpush1.xpose.msra.mxu0 0.0
    %3648 = vmatprep.mubr.f32.mxu0 0.0
    %3649 = vmatmul.mubr.f32.gmra.mrb[0].mxu0 %v3580
    %v3650 = vpop.f32.mrb[0].mxu0
    %v3651 = vadd.f32 %v56, %v3650
    %v3652 = vpop.f32.mrb[0].mxu0
    %3653 = vdwg.mxu0
    %v3654 = vsel %vm175, %v3651, -inf
    %3655 = vmax.xlane.f32.xlu0 %v3654
    %v3656 = vpop.xlane.xlu0 %3655
    %v3657 = vsub.f32 %v3651, %v3656
    %v3658 = vmul.f32 %v3657, 1.442695
    %v3659 = vpow.pop %v3658
    %v3660 = vsel %vm175, %v3659, 0.0
    %3661 = vadd.xlane.f32.xlu0 %v3660
    %v3662 = vpop.xlane.xlu0 %3661
    %v3663 = vrcp.pop %v3662
    %v3664 = vmul.f32 %v3659, %v3663
    %3665 = vrot.lane.b32.xlu0 %v3574, 64
    %v3666 = vpop.permute.xlu0 %3665
    %v3669 = vsel %vm175, %v3664, 0
    %3671 = vmatprep.subr.mxu0 0.0
    %3672 = vmatpush1.msra.mxu0 %v3666
    %3673 = vmatprep.subr.mxu0 0.0
    %3674 = vmatpush1.msra.mxu0 0.0
    %3675 = vmatprep.subr.mxu0 0.0
    %3676 = vmatpush1.msra.mxu0 0.0
    %3677 = vmatprep.subr.mxu0 0.0
    %3678 = vmatpush1.msra.mxu0 0.0
    %3679 = vmatprep.subr.mxu0 0.0
    %3680 = vmatpush1.msra.mxu0 0.0
    %3681 = vmatprep.subr.mxu0 0.0
    %3682 = vmatpush1.msra.mxu0 0.0
    %3683 = vmatprep.subr.mxu0 0.0
    %3684 = vmatpush1.msra.mxu0 0.0
    %3685 = vmatprep.subr.mxu0 0.0
    %3686 = vmatpush1.msra.mxu0 0.0
    %3687 = vmatprep.subr.mxu0 0.0
    %3688 = vmatpush1.msra.mxu0 0.0
    %3689 = vmatprep.subr.mxu0 0.0
    %3690 = vmatpush1.msra.mxu0 0.0
    %3691 = vmatprep.subr.mxu0 0.0
    %3692 = vmatpush1.msra.mxu0 0.0
    %3693 = vmatprep.subr.mxu0 0.0
    %3694 = vmatpush1.msra.mxu0 0.0
    %3695 = vmatprep.subr.mxu0 0.0
    %3696 = vmatpush1.msra.mxu0 0.0
    %3697 = vmatprep.subr.mxu0 0.0
    %3698 = vmatpush1.msra.mxu0 0.0
    %3699 = vmatprep.subr.mxu0 0.0
    %3700 = vmatpush1.msra.mxu0 0.0
    %3701 = vmatprep.subr.mxu0 0.0
    %3702 = vmatpush1.msra.mxu0 0.0
    %3703 = vmatprep.subr.mxu0 0.0
    %3704 = vmatpush1.msra.mxu0 0.0
    %3705 = vmatprep.subr.mxu0 0.0
    %3706 = vmatpush1.msra.mxu0 0.0
    %3707 = vmatprep.subr.mxu0 0.0
    %3708 = vmatpush1.msra.mxu0 0.0
    %3709 = vmatprep.subr.mxu0 0.0
    %3710 = vmatpush1.msra.mxu0 0.0
    %3711 = vmatprep.subr.mxu0 0.0
    %3712 = vmatpush1.msra.mxu0 0.0
    %3713 = vmatprep.subr.mxu0 0.0
    %3714 = vmatpush1.msra.mxu0 0.0
    %3715 = vmatprep.subr.mxu0 0.0
    %3716 = vmatpush1.msra.mxu0 0.0
    %3717 = vmatprep.subr.mxu0 0.0
    %3718 = vmatpush1.msra.mxu0 0.0
    %3719 = vmatprep.subr.mxu0 0.0
    %3720 = vmatpush1.msra.mxu0 0.0
    %3721 = vmatprep.subr.mxu0 0.0
    %3722 = vmatpush1.msra.mxu0 0.0
    %3723 = vmatprep.subr.mxu0 0.0
    %3724 = vmatpush1.msra.mxu0 0.0
    %3725 = vmatprep.subr.mxu0 0.0
    %3726 = vmatpush1.msra.mxu0 0.0
    %3727 = vmatprep.subr.mxu0 0.0
    %3728 = vmatpush1.msra.mxu0 0.0
    %3729 = vmatprep.subr.mxu0 0.0
    %3730 = vmatpush1.msra.mxu0 0.0
    %3731 = vmatprep.subr.mxu0 0.0
    %3732 = vmatpush1.msra.mxu0 0.0
    %3733 = vmatprep.subr.mxu0 0.0
    %3734 = vmatpush1.msra.mxu0 0.0
    %3735 = vmatprep.mubr.f32.mxu0 0.0
    %3736 = vmatmul.mubr.f32.gmra.mrb[0].mxu0 %v3669
    %v3737 = vpop.f32.mrb[0].mxu0
    %v3738 = vadd.f32 0.0, %v3737
    %v3739 = vpop.f32.mrb[0].mxu0
    %3740 = vdwg.mxu0
    %3741 = vrot.lane.b32.xlu0 %v3574, 120
    %v3742 = vpop.permute.xlu0 %3741
    %3743 = vrot.lane.b32.xlu0 %v3574, 88
    %v3744 = vpop.permute.xlu0 %3743
    %v3745 = vsel %vm175, %v3742, 0
    %v3747 = vsel %vm175, %v3744, 0
    %3749 = vmatprep.subr.mxu0 0.0
    %3750 = vmatpush1.xpose.msra.mxu0 %v3747
    %3751 = vmatprep.subr.mxu0 0.0
    %3752 = vmatpush1.xpose.msra.mxu0 0.0
    %3753 = vmatprep.subr.mxu0 0.0
    %3754 = vmatpush1.xpose.msra.mxu0 0.0
    %3755 = vmatprep.subr.mxu0 0.0
    %3756 = vmatpush1.xpose.msra.mxu0 0.0
    %3757 = vmatprep.subr.mxu0 0.0
    %3758 = vmatpush1.xpose.msra.mxu0 0.0
    %3759 = vmatprep.subr.mxu0 0.0
    %3760 = vmatpush1.xpose.msra.mxu0 0.0
    %3761 = vmatprep.subr.mxu0 0.0
    %3762 = vmatpush1.xpose.msra.mxu0 0.0
    %3763 = vmatprep.subr.mxu0 0.0
    %3764 = vmatpush1.xpose.msra.mxu0 0.0
    %3765 = vmatprep.subr.mxu0 0.0
    %3766 = vmatpush1.xpose.msra.mxu0 0.0
    %3767 = vmatprep.subr.mxu0 0.0
    %3768 = vmatpush1.xpose.msra.mxu0 0.0
    %3769 = vmatprep.subr.mxu0 0.0
    %3770 = vmatpush1.xpose.msra.mxu0 0.0
    %3771 = vmatprep.subr.mxu0 0.0
    %3772 = vmatpush1.xpose.msra.mxu0 0.0
    %3773 = vmatprep.subr.mxu0 0.0
    %3774 = vmatpush1.xpose.msra.mxu0 0.0
    %3775 = vmatprep.subr.mxu0 0.0
    %3776 = vmatpush1.xpose.msra.mxu0 0.0
    %3777 = vmatprep.subr.mxu0 0.0
    %3778 = vmatpush1.xpose.msra.mxu0 0.0
    %3779 = vmatprep.subr.mxu0 0.0
    %3780 = vmatpush1.xpose.msra.mxu0 0.0
    %3781 = vmatprep.subr.mxu0 0.0
    %3782 = vmatpush1.xpose.msra.mxu0 0.0
    %3783 = vmatprep.subr.mxu0 0.0
    %3784 = vmatpush1.xpose.msra.mxu0 0.0
    %3785 = vmatprep.subr.mxu0 0.0
    %3786 = vmatpush1.xpose.msra.mxu0 0.0
    %3787 = vmatprep.subr.mxu0 0.0
    %3788 = vmatpush1.xpose.msra.mxu0 0.0
    %3789 = vmatprep.subr.mxu0 0.0
    %3790 = vmatpush1.xpose.msra.mxu0 0.0
    %3791 = vmatprep.subr.mxu0 0.0
    %3792 = vmatpush1.xpose.msra.mxu0 0.0
    %3793 = vmatprep.subr.mxu0 0.0
    %3794 = vmatpush1.xpose.msra.mxu0 0.0
    %3795 = vmatprep.subr.mxu0 0.0
    %3796 = vmatpush1.xpose.msra.mxu0 0.0
    %3797 = vmatprep.subr.mxu0 0.0
    %3798 = vmatpush1.xpose.msra.mxu0 0.0
    %3799 = vmatprep.subr.mxu0 0.0
    %3800 = vmatpush1.xpose.msra.mxu0 0.0
    %3801 = vmatprep.subr.mxu0 0.0
    %3802 = vmatpush1.xpose.msra.mxu0 0.0
    %3803 = vmatprep.subr.mxu0 0.0
    %3804 = vmatpush1.xpose.msra.mxu0 0.0
    %3805 = vmatprep.subr.mxu0 0.0
    %3806 = vmatpush1.xpose.msra.mxu0 0.0
    %3807 = vmatprep.subr.mxu0 0.0
    %3808 = vmatpush1.xpose.msra.mxu0 0.0
    %3809 = vmatprep.subr.mxu0 0.0
    %3810 = vmatpush1.xpose.msra.mxu0 0.0
    %3811 = vmatprep.subr.mxu0 0.0
    %3812 = vmatpush1.xpose.msra.mxu0 0.0
    %3813 = vmatprep.mubr.f32.mxu0 0.0
    %3814 = vmatmul.mubr.f32.gmra.mrb[0].mxu0 %v3745
    %v3815 = vpop.f32.mrb[0].mxu0
    %v3816 = vadd.f32 %v56, %v3815
    %v3817 = vpop.f32.mrb[0].mxu0
    %3818 = vdwg.mxu0
    %v3819 = vsel %vm175, %v3816, -inf
    %3820 = vmax.xlane.f32.xlu0 %v3819
    %v3821 = vpop.xlane.xlu0 %3820
    %v3822 = vsub.f32 %v3816, %v3821
    %v3823 = vmul.f32 %v3822, 1.442695
    %v3824 = vpow.pop %v3823
    %v3825 = vsel %vm175, %v3824, 0.0
    %3826 = vadd.xlane.f32.xlu0 %v3825
    %v3827 = vpop.xlane.xlu0 %3826
    %v3828 = vrcp.pop %v3827
    %v3829 = vmul.f32 %v3824, %v3828
    %3830 = vrot.lane.b32.xlu0 %v3574, 56
    %v3831 = vpop.permute.xlu0 %3830
    %v3834 = vsel %vm175, %v3829, 0
    %3836 = vmatprep.subr.mxu0 0.0
    %3837 = vmatpush1.msra.mxu0 %v3831
    %3838 = vmatprep.subr.mxu0 0.0
    %3839 = vmatpush1.msra.mxu0 0.0
    %3840 = vmatprep.subr.mxu0 0.0
    %3841 = vmatpush1.msra.mxu0 0.0
    %3842 = vmatprep.subr.mxu0 0.0
    %3843 = vmatpush1.msra.mxu0 0.0
    %3844 = vmatprep.subr.mxu0 0.0
    %3845 = vmatpush1.msra.mxu0 0.0
    %3846 = vmatprep.subr.mxu0 0.0
    %3847 = vmatpush1.msra.mxu0 0.0
    %3848 = vmatprep.subr.mxu0 0.0
    %3849 = vmatpush1.msra.mxu0 0.0
    %3850 = vmatprep.subr.mxu0 0.0
    %3851 = vmatpush1.msra.mxu0 0.0
    %3852 = vmatprep.subr.mxu0 0.0
    %3853 = vmatpush1.msra.mxu0 0.0
    %3854 = vmatprep.subr.mxu0 0.0
    %3855 = vmatpush1.msra.mxu0 0.0
    %3856 = vmatprep.subr.mxu0 0.0
    %3857 = vmatpush1.msra.mxu0 0.0
    %3858 = vmatprep.subr.mxu0 0.0
    %3859 = vmatpush1.msra.mxu0 0.0
    %3860 = vmatprep.subr.mxu0 0.0
    %3861 = vmatpush1.msra.mxu0 0.0
    %3862 = vmatprep.subr.mxu0 0.0
    %3863 = vmatpush1.msra.mxu0 0.0
    %3864 = vmatprep.subr.mxu0 0.0
    %3865 = vmatpush1.msra.mxu0 0.0
    %3866 = vmatprep.subr.mxu0 0.0
    %3867 = vmatpush1.msra.mxu0 0.0
    %3868 = vmatprep.subr.mxu0 0.0
    %3869 = vmatpush1.msra.mxu0 0.0
    %3870 = vmatprep.subr.mxu0 0.0
    %3871 = vmatpush1.msra.mxu0 0.0
    %3872 = vmatprep.subr.mxu0 0.0
    %3873 = vmatpush1.msra.mxu0 0.0
    %3874 = vmatprep.subr.mxu0 0.0
    %3875 = vmatpush1.msra.mxu0 0.0
    %3876 = vmatprep.subr.mxu0 0.0
    %3877 = vmatpush1.msra.mxu0 0.0
    %3878 = vmatprep.subr.mxu0 0.0
    %3879 = vmatpush1.msra.mxu0 0.0
    %3880 = vmatprep.subr.mxu0 0.0
    %3881 = vmatpush1.msra.mxu0 0.0
    %3882 = vmatprep.subr.mxu0 0.0
    %3883 = vmatpush1.msra.mxu0 0.0
    %3884 = vmatprep.subr.mxu0 0.0
    %3885 = vmatpush1.msra.mxu0 0.0
    %3886 = vmatprep.subr.mxu0 0.0
    %3887 = vmatpush1.msra.mxu0 0.0
    %3888 = vmatprep.subr.mxu0 0.0
    %3889 = vmatpush1.msra.mxu0 0.0
    %3890 = vmatprep.subr.mxu0 0.0
    %3891 = vmatpush1.msra.mxu0 0.0
    %3892 = vmatprep.subr.mxu0 0.0
    %3893 = vmatpush1.msra.mxu0 0.0
    %3894 = vmatprep.subr.mxu0 0.0
    %3895 = vmatpush1.msra.mxu0 0.0
    %3896 = vmatprep.subr.mxu0 0.0
    %3897 = vmatpush1.msra.mxu0 0.0
    %3898 = vmatprep.subr.mxu0 0.0
    %3899 = vmatpush1.msra.mxu0 0.0
    %3900 = vmatprep.mubr.f32.mxu0 0.0
    %3901 = vmatmul.mubr.f32.gmra.mrb[0].mxu0 %v3834
    %v3902 = vpop.f32.mrb[0].mxu0
    %v3903 = vadd.f32 0.0, %v3902
    %v3904 = vpop.f32.mrb[0].mxu0
    %3905 = vdwg.mxu0
    %v3907 = vsel %vm175, %v3903, 0
    %3909 = vmatprep.subr.mxu0 0.0
    %3910 = vmatpush1.msra.mxu0 %v3494
    %3911 = vmatprep.subr.mxu0 0.0
    %3912 = vmatpush1.msra.mxu0 0.0
    %3913 = vmatprep.subr.mxu0 0.0
    %3914 = vmatpush1.msra.mxu0 0.0
    %3915 = vmatprep.subr.mxu0 0.0
    %3916 = vmatpush1.msra.mxu0 0.0
    %3917 = vmatprep.subr.mxu0 0.0
    %3918 = vmatpush1.msra.mxu0 0.0
    %3919 = vmatprep.subr.mxu0 0.0
    %3920 = vmatpush1.msra.mxu0 0.0
    %3921 = vmatprep.subr.mxu0 0.0
    %3922 = vmatpush1.msra.mxu0 0.0
    %3923 = vmatprep.subr.mxu0 0.0
    %3924 = vmatpush1.msra.mxu0 0.0
    %3925 = vmatprep.subr.mxu0 0.0
    %3926 = vmatpush1.msra.mxu0 0.0
    %3927 = vmatprep.subr.mxu0 0.0
    %3928 = vmatpush1.msra.mxu0 0.0
    %3929 = vmatprep.subr.mxu0 0.0
    %3930 = vmatpush1.msra.mxu0 0.0
    %3931 = vmatprep.subr.mxu0 0.0
    %3932 = vmatpush1.msra.mxu0 0.0
    %3933 = vmatprep.subr.mxu0 0.0
    %3934 = vmatpush1.msra.mxu0 0.0
    %3935 = vmatprep.subr.mxu0 0.0
    %3936 = vmatpush1.msra.mxu0 0.0
    %3937 = vmatprep.subr.mxu0 0.0
    %3938 = vmatpush1.msra.mxu0 0.0
    %3939 = vmatprep.subr.mxu0 0.0
    %3940 = vmatpush1.msra.mxu0 0.0
    %3941 = vmatprep.subr.mxu0 0.0
    %3942 = vmatpush1.msra.mxu0 0.0
    %3943 = vmatprep.subr.mxu0 0.0
    %3944 = vmatpush1.msra.mxu0 0.0
    %3945 = vmatprep.subr.mxu0 0.0
    %3946 = vmatpush1.msra.mxu0 0.0
    %3947 = vmatprep.subr.mxu0 0.0
    %3948 = vmatpush1.msra.mxu0 0.0
    %3949 = vmatprep.subr.mxu0 0.0
    %3950 = vmatpush1.msra.mxu0 0.0
    %3951 = vmatprep.subr.mxu0 0.0
    %3952 = vmatpush1.msra.mxu0 0.0
    %3953 = vmatprep.subr.mxu0 0.0
    %3954 = vmatpush1.msra.mxu0 0.0
    %3955 = vmatprep.subr.mxu0 0.0
    %3956 = vmatpush1.msra.mxu0 0.0
    %3957 = vmatprep.subr.mxu0 0.0
    %3958 = vmatpush1.msra.mxu0 0.0
    %3959 = vmatprep.subr.mxu0 0.0
    %3960 = vmatpush1.msra.mxu0 0.0
    %3961 = vmatprep.subr.mxu0 0.0
    %3962 = vmatpush1.msra.mxu0 0.0
    %3963 = vmatprep.subr.mxu0 0.0
    %3964 = vmatpush1.msra.mxu0 0.0
    %3965 = vmatprep.subr.mxu0 0.0
    %3966 = vmatpush1.msra.mxu0 0.0
    %3967 = vmatprep.subr.mxu0 0.0
    %3968 = vmatpush1.msra.mxu0 0.0
    %3969 = vmatprep.subr.mxu0 0.0
    %3970 = vmatpush1.msra.mxu0 0.0
    %3971 = vmatprep.subr.mxu0 0.0
    %3972 = vmatpush1.msra.mxu0 0.0
    %3973 = vmatprep.mubr.f32.mxu0 0.0
    %3974 = vmatmul.mubr.f32.gmra.mrb[0].mxu0 %v3907
    %v3975 = vpop.f32.mrb[0].mxu0
    %v3976 = vadd.f32 0.0, %v3975
    %v3977 = vpop.f32.mrb[0].mxu0
    %3978 = vdwg.mxu0
    %v3980 = vsel %vm175, %v3738, 0
    %3982 = vmatprep.subr.mxu0 0.0
    %3983 = vmatpush1.msra.mxu0 %v3493
    %3984 = vmatprep.subr.mxu0 0.0
    %3985 = vmatpush1.msra.mxu0 0.0
    %3986 = vmatprep.subr.mxu0 0.0
    %3987 = vmatpush1.msra.mxu0 0.0
    %3988 = vmatprep.subr.mxu0 0.0
    %3989 = vmatpush1.msra.mxu0 0.0
    %3990 = vmatprep.subr.mxu0 0.0
    %3991 = vmatpush1.msra.mxu0 0.0
    %3992 = vmatprep.subr.mxu0 0.0
    %3993 = vmatpush1.msra.mxu0 0.0
    %3994 = vmatprep.subr.mxu0 0.0
    %3995 = vmatpush1.msra.mxu0 0.0
    %3996 = vmatprep.subr.mxu0 0.0
    %3997 = vmatpush1.msra.mxu0 0.0
    %3998 = vmatprep.subr.mxu0 0.0
    %3999 = vmatpush1.msra.mxu0 0.0
    %4000 = vmatprep.subr.mxu0 0.0
    %4001 = vmatpush1.msra.mxu0 0.0
    %4002 = vmatprep.subr.mxu0 0.0
    %4003 = vmatpush1.msra.mxu0 0.0
    %4004 = vmatprep.subr.mxu0 0.0
    %4005 = vmatpush1.msra.mxu0 0.0
    %4006 = vmatprep.subr.mxu0 0.0
    %4007 = vmatpush1.msra.mxu0 0.0
    %4008 = vmatprep.subr.mxu0 0.0
    %4009 = vmatpush1.msra.mxu0 0.0
    %4010 = vmatprep.subr.mxu0 0.0
    %4011 = vmatpush1.msra.mxu0 0.0
    %4012 = vmatprep.subr.mxu0 0.0
    %4013 = vmatpush1.msra.mxu0 0.0
    %4014 = vmatprep.subr.mxu0 0.0
    %4015 = vmatpush1.msra.mxu0 0.0
    %4016 = vmatprep.subr.mxu0 0.0
    %4017 = vmatpush1.msra.mxu0 0.0
    %4018 = vmatprep.subr.mxu0 0.0
    %4019 = vmatpush1.msra.mxu0 0.0
    %4020 = vmatprep.subr.mxu0 0.0
    %4021 = vmatpush1.msra.mxu0 0.0
    %4022 = vmatprep.subr.mxu0 0.0
    %4023 = vmatpush1.msra.mxu0 0.0
    %4024 = vmatprep.subr.mxu0 0.0
    %4025 = vmatpush1.msra.mxu0 0.0
    %4026 = vmatprep.subr.mxu0 0.0
    %4027 = vmatpush1.msra.mxu0 0.0
    %4028 = vmatprep.subr.mxu0 0.0
    %4029 = vmatpush1.msra.mxu0 0.0
    %4030 = vmatprep.subr.mxu0 0.0
    %4031 = vmatpush1.msra.mxu0 0.0
    %4032 = vmatprep.subr.mxu0 0.0
    %4033 = vmatpush1.msra.mxu0 0.0
    %4034 = vmatprep.subr.mxu0 0.0
    %4035 = vmatpush1.msra.mxu0 0.0
    %4036 = vmatprep.subr.mxu0 0.0
    %4037 = vmatpush1.msra.mxu0 0.0
    %4038 = vmatprep.subr.mxu0 0.0
    %4039 = vmatpush1.msra.mxu0 0.0
    %4040 = vmatprep.subr.mxu0 0.0
    %4041 = vmatpush1.msra.mxu0 0.0
    %4042 = vmatprep.subr.mxu0 0.0
    %4043 = vmatpush1.msra.mxu0 0.0
    %4044 = vmatprep.subr.mxu0 0.0
    %4045 = vmatpush1.msra.mxu0 0.0
    %4046 = vmatprep.mubr.f32.mxu0 0.0
    %4047 = vmatmul.mubr.f32.gmra.mrb[0].mxu0 %v3980
    %v4048 = vpop.f32.mrb[0].mxu0
    %v4049 = vadd.f32 %v3976, %v4048
    %v4050 = vpop.f32.mrb[0].mxu0
    %4051 = vdwg.mxu0
    %4052 = vrot.lane.b32.xlu0 %v3574, 112
    %v4053 = vpop.permute.xlu0 %4052
    %4054 = vrot.lane.b32.xlu0 %v3574, 80
    %v4055 = vpop.permute.xlu0 %4054
    %v4056 = vsel %vm175, %v4053, 0
    %v4058 = vsel %vm175, %v4055, 0
    %4060 = vmatprep.subr.mxu0 0.0
    %4061 = vmatpush1.xpose.msra.mxu0 %v4058
    %4062 = vmatprep.subr.mxu0 0.0
    %4063 = vmatpush1.xpose.msra.mxu0 0.0
    %4064 = vmatprep.subr.mxu0 0.0
    %4065 = vmatpush1.xpose.msra.mxu0 0.0
    %4066 = vmatprep.subr.mxu0 0.0
    %4067 = vmatpush1.xpose.msra.mxu0 0.0
    %4068 = vmatprep.subr.mxu0 0.0
    %4069 = vmatpush1.xpose.msra.mxu0 0.0
    %4070 = vmatprep.subr.mxu0 0.0
    %4071 = vmatpush1.xpose.msra.mxu0 0.0
    %4072 = vmatprep.subr.mxu0 0.0
    %4073 = vmatpush1.xpose.msra.mxu0 0.0
    %4074 = vmatprep.subr.mxu0 0.0
    %4075 = vmatpush1.xpose.msra.mxu0 0.0
    %4076 = vmatprep.subr.mxu0 0.0
    %4077 = vmatpush1.xpose.msra.mxu0 0.0
    %4078 = vmatprep.subr.mxu0 0.0
    %4079 = vmatpush1.xpose.msra.mxu0 0.0
    %4080 = vmatprep.subr.mxu0 0.0
    %4081 = vmatpush1.xpose.msra.mxu0 0.0
    %4082 = vmatprep.subr.mxu0 0.0
    %4083 = vmatpush1.xpose.msra.mxu0 0.0
    %4084 = vmatprep.subr.mxu0 0.0
    %4085 = vmatpush1.xpose.msra.mxu0 0.0
    %4086 = vmatprep.subr.mxu0 0.0
    %4087 = vmatpush1.xpose.msra.mxu0 0.0
    %4088 = vmatprep.subr.mxu0 0.0
    %4089 = vmatpush1.xpose.msra.mxu0 0.0
    %4090 = vmatprep.subr.mxu0 0.0
    %4091 = vmatpush1.xpose.msra.mxu0 0.0
    %4092 = vmatprep.subr.mxu0 0.0
    %4093 = vmatpush1.xpose.msra.mxu0 0.0
    %4094 = vmatprep.subr.mxu0 0.0
    %4095 = vmatpush1.xpose.msra.mxu0 0.0
    %4096 = vmatprep.subr.mxu0 0.0
    %4097 = vmatpush1.xpose.msra.mxu0 0.0
    %4098 = vmatprep.subr.mxu0 0.0
    %4099 = vmatpush1.xpose.msra.mxu0 0.0
    %4100 = vmatprep.subr.mxu0 0.0
    %4101 = vmatpush1.xpose.msra.mxu0 0.0
    %4102 = vmatprep.subr.mxu0 0.0
    %4103 = vmatpush1.xpose.msra.mxu0 0.0
    %4104 = vmatprep.subr.mxu0 0.0
    %4105 = vmatpush1.xpose.msra.mxu0 0.0
    %4106 = vmatprep.subr.mxu0 0.0
    %4107 = vmatpush1.xpose.msra.mxu0 0.0
    %4108 = vmatprep.subr.mxu0 0.0
    %4109 = vmatpush1.xpose.msra.mxu0 0.0
    %4110 = vmatprep.subr.mxu0 0.0
    %4111 = vmatpush1.xpose.msra.mxu0 0.0
    %4112 = vmatprep.subr.mxu0 0.0
    %4113 = vmatpush1.xpose.msra.mxu0 0.0
    %4114 = vmatprep.subr.mxu0 0.0
    %4115 = vmatpush1.xpose.msra.mxu0 0.0
    %4116 = vmatprep.subr.mxu0 0.0
    %4117 = vmatpush1.xpose.msra.mxu0 0.0
    %4118 = vmatprep.subr.mxu0 0.0
    %4119 = vmatpush1.xpose.msra.mxu0 0.0
    %4120 = vmatprep.subr.mxu0 0.0
    %4121 = vmatpush1.xpose.msra.mxu0 0.0
    %4122 = vmatprep.subr.mxu0 0.0
    %4123 = vmatpush1.xpose.msra.mxu0 0.0
    %4124 = vmatprep.mubr.f32.mxu0 0.0
    %4125 = vmatmul.mubr.f32.gmra.mrb[0].mxu0 %v4056
    %v4126 = vpop.f32.mrb[0].mxu0
    %v4127 = vadd.f32 %v56, %v4126
    %v4128 = vpop.f32.mrb[0].mxu0
    %4129 = vdwg.mxu0
    %v4130 = vsel %vm175, %v4127, -inf
    %4131 = vmax.xlane.f32.xlu0 %v4130
    %v4132 = vpop.xlane.xlu0 %4131
    %v4133 = vsub.f32 %v4127, %v4132
    %v4134 = vmul.f32 %v4133, 1.442695
    %v4135 = vpow.pop %v4134
    %v4136 = vsel %vm175, %v4135, 0.0
    %4137 = vadd.xlane.f32.xlu0 %v4136
    %v4138 = vpop.xlane.xlu0 %4137
    %v4139 = vrcp.pop %v4138
    %v4140 = vmul.f32 %v4135, %v4139
    %4141 = vrot.lane.b32.xlu0 %v3574, 48
    %v4142 = vpop.permute.xlu0 %4141
    %v4145 = vsel %vm175, %v4140, 0
    %4147 = vmatprep.subr.mxu0 0.0
    %4148 = vmatpush1.msra.mxu0 %v4142
    %4149 = vmatprep.subr.mxu0 0.0
    %4150 = vmatpush1.msra.mxu0 0.0
    %4151 = vmatprep.subr.mxu0 0.0
    %4152 = vmatpush1.msra.mxu0 0.0
    %4153 = vmatprep.subr.mxu0 0.0
    %4154 = vmatpush1.msra.mxu0 0.0
    %4155 = vmatprep.subr.mxu0 0.0
    %4156 = vmatpush1.msra.mxu0 0.0
    %4157 = vmatprep.subr.mxu0 0.0
    %4158 = vmatpush1.msra.mxu0 0.0
    %4159 = vmatprep.subr.mxu0 0.0
    %4160 = vmatpush1.msra.mxu0 0.0
    %4161 = vmatprep.subr.mxu0 0.0
    %4162 = vmatpush1.msra.mxu0 0.0
    %4163 = vmatprep.subr.mxu0 0.0
    %4164 = vmatpush1.msra.mxu0 0.0
    %4165 = vmatprep.subr.mxu0 0.0
    %4166 = vmatpush1.msra.mxu0 0.0
    %4167 = vmatprep.subr.mxu0 0.0
    %4168 = vmatpush1.msra.mxu0 0.0
    %4169 = vmatprep.subr.mxu0 0.0
    %4170 = vmatpush1.msra.mxu0 0.0
    %4171 = vmatprep.subr.mxu0 0.0
    %4172 = vmatpush1.msra.mxu0 0.0
    %4173 = vmatprep.subr.mxu0 0.0
    %4174 = vmatpush1.msra.mxu0 0.0
    %4175 = vmatprep.subr.mxu0 0.0
    %4176 = vmatpush1.msra.mxu0 0.0
    %4177 = vmatprep.subr.mxu0 0.0
    %4178 = vmatpush1.msra.mxu0 0.0
    %4179 = vmatprep.subr.mxu0 0.0
    %4180 = vmatpush1.msra.mxu0 0.0
    %4181 = vmatprep.subr.mxu0 0.0
    %4182 = vmatpush1.msra.mxu0 0.0
    %4183 = vmatprep.subr.mxu0 0.0
    %4184 = vmatpush1.msra.mxu0 0.0
    %4185 = vmatprep.subr.mxu0 0.0
    %4186 = vmatpush1.msra.mxu0 0.0
    %4187 = vmatprep.subr.mxu0 0.0
    %4188 = vmatpush1.msra.mxu0 0.0
    %4189 = vmatprep.subr.mxu0 0.0
    %4190 = vmatpush1.msra.mxu0 0.0
    %4191 = vmatprep.subr.mxu0 0.0
    %4192 = vmatpush1.msra.mxu0 0.0
    %4193 = vmatprep.subr.mxu0 0.0
    %4194 = vmatpush1.msra.mxu0 0.0
    %4195 = vmatprep.subr.mxu0 0.0
    %4196 = vmatpush1.msra.mxu0 0.0
    %4197 = vmatprep.subr.mxu0 0.0
    %4198 = vmatpush1.msra.mxu0 0.0
    %4199 = vmatprep.subr.mxu0 0.0
    %4200 = vmatpush1.msra.mxu0 0.0
    %4201 = vmatprep.subr.mxu0 0.0
    %4202 = vmatpush1.msra.mxu0 0.0
    %4203 = vmatprep.subr.mxu0 0.0
    %4204 = vmatpush1.msra.mxu0 0.0
    %4205 = vmatprep.subr.mxu0 0.0
    %4206 = vmatpush1.msra.mxu0 0.0
    %4207 = vmatprep.subr.mxu0 0.0
    %4208 = vmatpush1.msra.mxu0 0.0
    %4209 = vmatprep.subr.mxu0 0.0
    %4210 = vmatpush1.msra.mxu0 0.0
    %4211 = vmatprep.mubr.f32.mxu0 0.0
    %4212 = vmatmul.mubr.f32.gmra.mrb[0].mxu0 %v4145
    %v4213 = vpop.f32.mrb[0].mxu0
    %v4214 = vadd.f32 0.0, %v4213
    %v4215 = vpop.f32.mrb[0].mxu0
    %4216 = vdwg.mxu0
    %v4218 = vsel %vm175, %v4214, 0
    %4220 = vmatprep.subr.mxu0 0.0
    %4221 = vmatpush1.msra.mxu0 %v3495
    %4222 = vmatprep.subr.mxu0 0.0
    %4223 = vmatpush1.msra.mxu0 0.0
    %4224 = vmatprep.subr.mxu0 0.0
    %4225 = vmatpush1.msra.mxu0 0.0
    %4226 = vmatprep.subr.mxu0 0.0
    %4227 = vmatpush1.msra.mxu0 0.0
    %4228 = vmatprep.subr.mxu0 0.0
    %4229 = vmatpush1.msra.mxu0 0.0
    %4230 = vmatprep.subr.mxu0 0.0
    %4231 = vmatpush1.msra.mxu0 0.0
    %4232 = vmatprep.subr.mxu0 0.0
    %4233 = vmatpush1.msra.mxu0 0.0
    %4234 = vmatprep.subr.mxu0 0.0
    %4235 = vmatpush1.msra.mxu0 0.0
    %4236 = vmatprep.subr.mxu0 0.0
    %4237 = vmatpush1.msra.mxu0 0.0
    %4238 = vmatprep.subr.mxu0 0.0
    %4239 = vmatpush1.msra.mxu0 0.0
    %4240 = vmatprep.subr.mxu0 0.0
    %4241 = vmatpush1.msra.mxu0 0.0
    %4242 = vmatprep.subr.mxu0 0.0
    %4243 = vmatpush1.msra.mxu0 0.0
    %4244 = vmatprep.subr.mxu0 0.0
    %4245 = vmatpush1.msra.mxu0 0.0
    %4246 = vmatprep.subr.mxu0 0.0
    %4247 = vmatpush1.msra.mxu0 0.0
    %4248 = vmatprep.subr.mxu0 0.0
    %4249 = vmatpush1.msra.mxu0 0.0
    %4250 = vmatprep.subr.mxu0 0.0
    %4251 = vmatpush1.msra.mxu0 0.0
    %4252 = vmatprep.subr.mxu0 0.0
    %4253 = vmatpush1.msra.mxu0 0.0
    %4254 = vmatprep.subr.mxu0 0.0
    %4255 = vmatpush1.msra.mxu0 0.0
    %4256 = vmatprep.subr.mxu0 0.0
    %4257 = vmatpush1.msra.mxu0 0.0
    %4258 = vmatprep.subr.mxu0 0.0
    %4259 = vmatpush1.msra.mxu0 0.0
    %4260 = vmatprep.subr.mxu0 0.0
    %4261 = vmatpush1.msra.mxu0 0.0
    %4262 = vmatprep.subr.mxu0 0.0
    %4263 = vmatpush1.msra.mxu0 0.0
    %4264 = vmatprep.subr.mxu0 0.0
    %4265 = vmatpush1.msra.mxu0 0.0
    %4266 = vmatprep.subr.mxu0 0.0
    %4267 = vmatpush1.msra.mxu0 0.0
    %4268 = vmatprep.subr.mxu0 0.0
    %4269 = vmatpush1.msra.mxu0 0.0
    %4270 = vmatprep.subr.mxu0 0.0
    %4271 = vmatpush1.msra.mxu0 0.0
    %4272 = vmatprep.subr.mxu0 0.0
    %4273 = vmatpush1.msra.mxu0 0.0
    %4274 = vmatprep.subr.mxu0 0.0
    %4275 = vmatpush1.msra.mxu0 0.0
    %4276 = vmatprep.subr.mxu0 0.0
    %4277 = vmatpush1.msra.mxu0 0.0
    %4278 = vmatprep.subr.mxu0 0.0
    %4279 = vmatpush1.msra.mxu0 0.0
    %4280 = vmatprep.subr.mxu0 0.0
    %4281 = vmatpush1.msra.mxu0 0.0
    %4282 = vmatprep.subr.mxu0 0.0
    %4283 = vmatpush1.msra.mxu0 0.0
    %4284 = vmatprep.mubr.f32.mxu0 0.0
    %4285 = vmatmul.mubr.f32.gmra.mrb[0].mxu0 %v4218
    %v4286 = vpop.f32.mrb[0].mxu0
    %v4287 = vadd.f32 0.0, %v4286
    %v4288 = vpop.f32.mrb[0].mxu0
    %4289 = vdwg.mxu0
    %v4290 = vadd.f32 %v4049, %v4287
    %4291 = vrot.lane.b32.xlu0 %v3574, 104
    %v4292 = vpop.permute.xlu0 %4291
    %4293 = vrot.lane.b32.xlu0 %v3574, 72
    %v4294 = vpop.permute.xlu0 %4293
    %v4295 = vsel %vm175, %v4292, 0
    %v4297 = vsel %vm175, %v4294, 0
    %4299 = vmatprep.subr.mxu0 0.0
    %4300 = vmatpush1.xpose.msra.mxu0 %v4297
    %4301 = vmatprep.subr.mxu0 0.0
    %4302 = vmatpush1.xpose.msra.mxu0 0.0
    %4303 = vmatprep.subr.mxu0 0.0
    %4304 = vmatpush1.xpose.msra.mxu0 0.0
    %4305 = vmatprep.subr.mxu0 0.0
    %4306 = vmatpush1.xpose.msra.mxu0 0.0
    %4307 = vmatprep.subr.mxu0 0.0
    %4308 = vmatpush1.xpose.msra.mxu0 0.0
    %4309 = vmatprep.subr.mxu0 0.0
    %4310 = vmatpush1.xpose.msra.mxu0 0.0
    %4311 = vmatprep.subr.mxu0 0.0
    %4312 = vmatpush1.xpose.msra.mxu0 0.0
    %4313 = vmatprep.subr.mxu0 0.0
    %4314 = vmatpush1.xpose.msra.mxu0 0.0
    %4315 = vmatprep.subr.mxu0 0.0
    %4316 = vmatpush1.xpose.msra.mxu0 0.0
    %4317 = vmatprep.subr.mxu0 0.0
    %4318 = vmatpush1.xpose.msra.mxu0 0.0
    %4319 = vmatprep.subr.mxu0 0.0
    %4320 = vmatpush1.xpose.msra.mxu0 0.0
    %4321 = vmatprep.subr.mxu0 0.0
    %4322 = vmatpush1.xpose.msra.mxu0 0.0
    %4323 = vmatprep.subr.mxu0 0.0
    %4324 = vmatpush1.xpose.msra.mxu0 0.0
    %4325 = vmatprep.subr.mxu0 0.0
    %4326 = vmatpush1.xpose.msra.mxu0 0.0
    %4327 = vmatprep.subr.mxu0 0.0
    %4328 = vmatpush1.xpose.msra.mxu0 0.0
    %4329 = vmatprep.subr.mxu0 0.0
    %4330 = vmatpush1.xpose.msra.mxu0 0.0
    %4331 = vmatprep.subr.mxu0 0.0
    %4332 = vmatpush1.xpose.msra.mxu0 0.0
    %4333 = vmatprep.subr.mxu0 0.0
    %4334 = vmatpush1.xpose.msra.mxu0 0.0
    %4335 = vmatprep.subr.mxu0 0.0
    %4336 = vmatpush1.xpose.msra.mxu0 0.0
    %4337 = vmatprep.subr.mxu0 0.0
    %4338 = vmatpush1.xpose.msra.mxu0 0.0
    %4339 = vmatprep.subr.mxu0 0.0
    %4340 = vmatpush1.xpose.msra.mxu0 0.0
    %4341 = vmatprep.subr.mxu0 0.0
    %4342 = vmatpush1.xpose.msra.mxu0 0.0
    %4343 = vmatprep.subr.mxu0 0.0
    %4344 = vmatpush1.xpose.msra.mxu0 0.0
    %4345 = vmatprep.subr.mxu0 0.0
    %4346 = vmatpush1.xpose.msra.mxu0 0.0
    %4347 = vmatprep.subr.mxu0 0.0
    %4348 = vmatpush1.xpose.msra.mxu0 0.0
    %4349 = vmatprep.subr.mxu0 0.0
    %4350 = vmatpush1.xpose.msra.mxu0 0.0
    %4351 = vmatprep.subr.mxu0 0.0
    %4352 = vmatpush1.xpose.msra.mxu0 0.0
    %4353 = vmatprep.subr.mxu0 0.0
    %4354 = vmatpush1.xpose.msra.mxu0 0.0
    %4355 = vmatprep.subr.mxu0 0.0
    %4356 = vmatpush1.xpose.msra.mxu0 0.0
    %4357 = vmatprep.subr.mxu0 0.0
    %4358 = vmatpush1.xpose.msra.mxu0 0.0
    %4359 = vmatprep.subr.mxu0 0.0
    %4360 = vmatpush1.xpose.msra.mxu0 0.0
    %4361 = vmatprep.subr.mxu0 0.0
    %4362 = vmatpush1.xpose.msra.mxu0 0.0
    %4363 = vmatprep.mubr.f32.mxu0 0.0
    %4364 = vmatmul.mubr.f32.gmra.mrb[0].mxu0 %v4295
    %v4365 = vpop.f32.mrb[0].mxu0
    %v4366 = vadd.f32 %v56, %v4365
    %v4367 = vpop.f32.mrb[0].mxu0
    %4368 = vdwg.mxu0
    %v4369 = vsel %vm175, %v4366, -inf
    %4370 = vmax.xlane.f32.xlu0 %v4369
    %v4371 = vpop.xlane.xlu0 %4370
    %v4372 = vsub.f32 %v4366, %v4371
    %v4373 = vmul.f32 %v4372, 1.442695
    %v4374 = vpow.pop %v4373
    %v4375 = vsel %vm175, %v4374, 0.0
    %4376 = vadd.xlane.f32.xlu0 %v4375
    %v4377 = vpop.xlane.xlu0 %4376
    %v4378 = vrcp.pop %v4377
    %v4379 = vmul.f32 %v4374, %v4378
    %4380 = vrot.lane.b32.xlu0 %v3574, 40
    %v4381 = vpop.permute.xlu0 %4380
    %v4384 = vsel %vm175, %v4379, 0
    %4386 = vmatprep.subr.mxu0 0.0
    %4387 = vmatpush1.msra.mxu0 %v4381
    %4388 = vmatprep.subr.mxu0 0.0
    %4389 = vmatpush1.msra.mxu0 0.0
    %4390 = vmatprep.subr.mxu0 0.0
    %4391 = vmatpush1.msra.mxu0 0.0
    %4392 = vmatprep.subr.mxu0 0.0
    %4393 = vmatpush1.msra.mxu0 0.0
    %4394 = vmatprep.subr.mxu0 0.0
    %4395 = vmatpush1.msra.mxu0 0.0
    %4396 = vmatprep.subr.mxu0 0.0
    %4397 = vmatpush1.msra.mxu0 0.0
    %4398 = vmatprep.subr.mxu0 0.0
    %4399 = vmatpush1.msra.mxu0 0.0
    %4400 = vmatprep.subr.mxu0 0.0
    %4401 = vmatpush1.msra.mxu0 0.0
    %4402 = vmatprep.subr.mxu0 0.0
    %4403 = vmatpush1.msra.mxu0 0.0
    %4404 = vmatprep.subr.mxu0 0.0
    %4405 = vmatpush1.msra.mxu0 0.0
    %4406 = vmatprep.subr.mxu0 0.0
    %4407 = vmatpush1.msra.mxu0 0.0
    %4408 = vmatprep.subr.mxu0 0.0
    %4409 = vmatpush1.msra.mxu0 0.0
    %4410 = vmatprep.subr.mxu0 0.0
    %4411 = vmatpush1.msra.mxu0 0.0
    %4412 = vmatprep.subr.mxu0 0.0
    %4413 = vmatpush1.msra.mxu0 0.0
    %4414 = vmatprep.subr.mxu0 0.0
    %4415 = vmatpush1.msra.mxu0 0.0
    %4416 = vmatprep.subr.mxu0 0.0
    %4417 = vmatpush1.msra.mxu0 0.0
    %4418 = vmatprep.subr.mxu0 0.0
    %4419 = vmatpush1.msra.mxu0 0.0
    %4420 = vmatprep.subr.mxu0 0.0
    %4421 = vmatpush1.msra.mxu0 0.0
    %4422 = vmatprep.subr.mxu0 0.0
    %4423 = vmatpush1.msra.mxu0 0.0
    %4424 = vmatprep.subr.mxu0 0.0
    %4425 = vmatpush1.msra.mxu0 0.0
    %4426 = vmatprep.subr.mxu0 0.0
    %4427 = vmatpush1.msra.mxu0 0.0
    %4428 = vmatprep.subr.mxu0 0.0
    %4429 = vmatpush1.msra.mxu0 0.0
    %4430 = vmatprep.subr.mxu0 0.0
    %4431 = vmatpush1.msra.mxu0 0.0
    %4432 = vmatprep.subr.mxu0 0.0
    %4433 = vmatpush1.msra.mxu0 0.0
    %4434 = vmatprep.subr.mxu0 0.0
    %4435 = vmatpush1.msra.mxu0 0.0
    %4436 = vmatprep.subr.mxu0 0.0
    %4437 = vmatpush1.msra.mxu0 0.0
    %4438 = vmatprep.subr.mxu0 0.0
    %4439 = vmatpush1.msra.mxu0 0.0
    %4440 = vmatprep.subr.mxu0 0.0
    %4441 = vmatpush1.msra.mxu0 0.0
    %4442 = vmatprep.subr.mxu0 0.0
    %4443 = vmatpush1.msra.mxu0 0.0
    %4444 = vmatprep.subr.mxu0 0.0
    %4445 = vmatpush1.msra.mxu0 0.0
    %4446 = vmatprep.subr.mxu0 0.0
    %4447 = vmatpush1.msra.mxu0 0.0
    %4448 = vmatprep.subr.mxu0 0.0
    %4449 = vmatpush1.msra.mxu0 0.0
    %4450 = vmatprep.mubr.f32.mxu0 0.0
    %4451 = vmatmul.mubr.f32.gmra.mrb[0].mxu0 %v4384
    %v4452 = vpop.f32.mrb[0].mxu0
    %v4453 = vadd.f32 0.0, %v4452
    %v4454 = vpop.f32.mrb[0].mxu0
    %4455 = vdwg.mxu0
    %v4457 = vsel %vm175, %v4453, 0
    %4459 = vmatprep.subr.mxu0 0.0
    %4460 = vmatpush1.msra.mxu0 %v3496
    %4461 = vmatprep.subr.mxu0 0.0
    %4462 = vmatpush1.msra.mxu0 0.0
    %4463 = vmatprep.subr.mxu0 0.0
    %4464 = vmatpush1.msra.mxu0 0.0
    %4465 = vmatprep.subr.mxu0 0.0
    %4466 = vmatpush1.msra.mxu0 0.0
    %4467 = vmatprep.subr.mxu0 0.0
    %4468 = vmatpush1.msra.mxu0 0.0
    %4469 = vmatprep.subr.mxu0 0.0
    %4470 = vmatpush1.msra.mxu0 0.0
    %4471 = vmatprep.subr.mxu0 0.0
    %4472 = vmatpush1.msra.mxu0 0.0
    %4473 = vmatprep.subr.mxu0 0.0
    %4474 = vmatpush1.msra.mxu0 0.0
    %4475 = vmatprep.subr.mxu0 0.0
    %4476 = vmatpush1.msra.mxu0 0.0
    %4477 = vmatprep.subr.mxu0 0.0
    %4478 = vmatpush1.msra.mxu0 0.0
    %4479 = vmatprep.subr.mxu0 0.0
    %4480 = vmatpush1.msra.mxu0 0.0
    %4481 = vmatprep.subr.mxu0 0.0
    %4482 = vmatpush1.msra.mxu0 0.0
    %4483 = vmatprep.subr.mxu0 0.0
    %4484 = vmatpush1.msra.mxu0 0.0
    %4485 = vmatprep.subr.mxu0 0.0
    %4486 = vmatpush1.msra.mxu0 0.0
    %4487 = vmatprep.subr.mxu0 0.0
    %4488 = vmatpush1.msra.mxu0 0.0
    %4489 = vmatprep.subr.mxu0 0.0
    %4490 = vmatpush1.msra.mxu0 0.0
    %4491 = vmatprep.subr.mxu0 0.0
    %4492 = vmatpush1.msra.mxu0 0.0
    %4493 = vmatprep.subr.mxu0 0.0
    %4494 = vmatpush1.msra.mxu0 0.0
    %4495 = vmatprep.subr.mxu0 0.0
    %4496 = vmatpush1.msra.mxu0 0.0
    %4497 = vmatprep.subr.mxu0 0.0
    %4498 = vmatpush1.msra.mxu0 0.0
    %4499 = vmatprep.subr.mxu0 0.0
    %4500 = vmatpush1.msra.mxu0 0.0
    %4501 = vmatprep.subr.mxu0 0.0
    %4502 = vmatpush1.msra.mxu0 0.0
    %4503 = vmatprep.subr.mxu0 0.0
    %4504 = vmatpush1.msra.mxu0 0.0
    %4505 = vmatprep.subr.mxu0 0.0
    %4506 = vmatpush1.msra.mxu0 0.0
    %4507 = vmatprep.subr.mxu0 0.0
    %4508 = vmatpush1.msra.mxu0 0.0
    %4509 = vmatprep.subr.mxu0 0.0
    %4510 = vmatpush1.msra.mxu0 0.0
    %4511 = vmatprep.subr.mxu0 0.0
    %4512 = vmatpush1.msra.mxu0 0.0
    %4513 = vmatprep.subr.mxu0 0.0
    %4514 = vmatpush1.msra.mxu0 0.0
    %4515 = vmatprep.subr.mxu0 0.0
    %4516 = vmatpush1.msra.mxu0 0.0
    %4517 = vmatprep.subr.mxu0 0.0
    %4518 = vmatpush1.msra.mxu0 0.0
    %4519 = vmatprep.subr.mxu0 0.0
    %4520 = vmatpush1.msra.mxu0 0.0
    %4521 = vmatprep.subr.mxu0 0.0
    %4522 = vmatpush1.msra.mxu0 0.0
    %4523 = vmatprep.mubr.f32.mxu0 0.0
    %4524 = vmatmul.mubr.f32.gmra.mrb[0].mxu0 %v4457
    %v4525 = vpop.f32.mrb[0].mxu0
    %v4526 = vadd.f32 0.0, %v4525
    %v4527 = vpop.f32.mrb[0].mxu0
    %4528 = vdwg.mxu0
    %v4529 = vadd.f32 %v4290, %v4526
    %v4530 = vlaneseq
    %v4531 = vshrl.u32 %v4530, 7
    %v4532 = vsub.s32 0, %v4531
    %v4533 = vrot.slane %v3497, %v4532
    %v4534 = vadd.f32 %v4529, %v4533
    %v4535 = vmax.f32 %v4534, 0.0
    %v4536 = vld [vmem:[#allocation7 + $0x430] sm:$0xff]
    %v4537 = vld [vmem:[#allocation7 + $0x438] sm:$0xff]
    %v4538 = vld [vmem:[#allocation7 + $0x440] sm:$0xff]
    %v4539 = vld [vmem:[#allocation7 + $0x448] sm:$0xff]
    %v4540 = vld [vmem:[#allocation7 + $0x450] sm:$0xff]
    %v4541 = vld [vmem:[#allocation7 + $0x458] sm:$0xff]
    %v4542 = vld [vmem:[#allocation7 + $0x460] sm:$0xff]
    %v4543 = vld [vmem:[#allocation7 + $0x468] sm:$0xff]
    %v4544 = vld [vmem:[#allocation7 + $0x470] sm:$0xff]
    %v4545 = vld [vmem:[#allocation7 + $0x478] sm:$0xff]
    %v4546 = vld [vmem:[#allocation7 + $0x480] sm:$0xff]
    %v4547 = vld [vmem:[#allocation7 + $0x488] sm:$0xff]
    %v4548 = vld [vmem:[#allocation7 + $0x490] sm:$0x1]
    %v4549 = vsel %vm60, %v4535, %v3446
    %v4551 = vsel %vm1150, %v4549, 0
    %4553 = vmatprep.subr.mxu0 0.0
    %4554 = vmatpush1.msra.mxu0 %v4536
    %4555 = vmatprep.subr.mxu0 0.0
    %4556 = vmatpush1.msra.mxu0 %v4537
    %4557 = vmatprep.subr.mxu0 0.0
    %4558 = vmatpush1.msra.mxu0 %v4538
    %4559 = vmatprep.subr.mxu0 0.0
    %4560 = vmatpush1.msra.mxu0 %v4539
    %4561 = vmatprep.subr.mxu0 0.0
    %4562 = vmatpush1.msra.mxu0 %v4540
    %4563 = vmatprep.subr.mxu0 0.0
    %4564 = vmatpush1.msra.mxu0 %v4541
    %4565 = vmatprep.subr.mxu0 0.0
    %4566 = vmatpush1.msra.mxu0 %v4542
    %4567 = vmatprep.subr.mxu0 0.0
    %4568 = vmatpush1.msra.mxu0 %v4543
    %4569 = vmatprep.subr.mxu0 0.0
    %4570 = vmatpush1.msra.mxu0 0.0
    %4571 = vmatprep.subr.mxu0 0.0
    %4572 = vmatpush1.msra.mxu0 0.0
    %4573 = vmatprep.subr.mxu0 0.0
    %4574 = vmatpush1.msra.mxu0 0.0
    %4575 = vmatprep.subr.mxu0 0.0
    %4576 = vmatpush1.msra.mxu0 0.0
    %4577 = vmatprep.subr.mxu0 0.0
    %4578 = vmatpush1.msra.mxu0 0.0
    %4579 = vmatprep.subr.mxu0 0.0
    %4580 = vmatpush1.msra.mxu0 0.0
    %4581 = vmatprep.subr.mxu0 0.0
    %4582 = vmatpush1.msra.mxu0 0.0
    %4583 = vmatprep.subr.mxu0 0.0
    %4584 = vmatpush1.msra.mxu0 0.0
    %4585 = vmatprep.subr.mxu0 0.0
    %4586 = vmatpush1.msra.mxu0 0.0
    %4587 = vmatprep.subr.mxu0 0.0
    %4588 = vmatpush1.msra.mxu0 0.0
    %4589 = vmatprep.subr.mxu0 0.0
    %4590 = vmatpush1.msra.mxu0 0.0
    %4591 = vmatprep.subr.mxu0 0.0
    %4592 = vmatpush1.msra.mxu0 0.0
    %4593 = vmatprep.subr.mxu0 0.0
    %4594 = vmatpush1.msra.mxu0 0.0
    %4595 = vmatprep.subr.mxu0 0.0
    %4596 = vmatpush1.msra.mxu0 0.0
    %4597 = vmatprep.subr.mxu0 0.0
    %4598 = vmatpush1.msra.mxu0 0.0
    %4599 = vmatprep.subr.mxu0 0.0
    %4600 = vmatpush1.msra.mxu0 0.0
    %4601 = vmatprep.subr.mxu0 0.0
    %4602 = vmatpush1.msra.mxu0 0.0
    %4603 = vmatprep.subr.mxu0 0.0
    %4604 = vmatpush1.msra.mxu0 0.0
    %4605 = vmatprep.subr.mxu0 0.0
    %4606 = vmatpush1.msra.mxu0 0.0
    %4607 = vmatprep.subr.mxu0 0.0
    %4608 = vmatpush1.msra.mxu0 0.0
    %4609 = vmatprep.subr.mxu0 0.0
    %4610 = vmatpush1.msra.mxu0 0.0
    %4611 = vmatprep.subr.mxu0 0.0
    %4612 = vmatpush1.msra.mxu0 0.0
    %4613 = vmatprep.subr.mxu0 0.0
    %4614 = vmatpush1.msra.mxu0 0.0
    %4615 = vmatprep.subr.mxu0 0.0
    %4616 = vmatpush1.msra.mxu0 0.0
    %4617 = vmatprep.mubr.f32.mxu0 0.0
    %4618 = vmatmul.mubr.f32.gmra.mrb[0].mxu0 %v4551
    %v4619 = vpop.f32.mrb[0].mxu0
    %v4620 = vadd.f32 0.0, %v4619
    %v4621 = vpop.f32.mrb[0].mxu0
    %4622 = vdwg.mxu0
    %v4623 = vxor.u32 %v4620, 2147483648
    %v4624 = vmul.f32 %v4623, 1.442695
    %v4625 = vpow.pop %v4624
    %v4626 = vadd.f32 %v4625, 1.0
    %v4627 = vrcp.pop %v4626
    %v4628 = vmul.f32 1.0, %v4627
    %v4629 = vlaneseq
    %v4630 = vshrl.u32 %v4629, 7
    %v4631 = vsub.s32 0, %v4630
    %v4632 = vrot.slane %v4548, %v4631
    %4634 = vrot.lane.b32.xlu0 %v4632, 32
    %v4635 = vpop.permute.xlu0 %4634
    %v4637 = vsub.f32 %v4620, %v4635
    %v4638 = vxor.u32 %v4637, 2147483648
    %v4639 = vmul.f32 %v4638, 1.442695
    %v4640 = vpow.pop %v4639
    %v4641 = vadd.f32 %v4640, 1.0
    %v4642 = vrcp.pop %v4641
    %v4643 = vmul.f32 1.0, %v4642
    %v4644 = vmul.f32 %v4628, %v3451
    %v4646 = vsel %vm60, %v4644, 0
    %4648 = vmatprep.subr.mxu0 0.0
    %4649 = vmatpush1.msra.mxu0 %v4544
    %4650 = vmatprep.subr.mxu0 0.0
    %4651 = vmatpush1.msra.mxu0 %v4545
    %4652 = vmatprep.subr.mxu0 0.0
    %4653 = vmatpush1.msra.mxu0 %v4546
    %4654 = vmatprep.subr.mxu0 0.0
    %4655 = vmatpush1.msra.mxu0 %v4547
    %4656 = vmatprep.subr.mxu0 0.0
    %4657 = vmatpush1.msra.mxu0 0.0
    %4658 = vmatprep.subr.mxu0 0.0
    %4659 = vmatpush1.msra.mxu0 0.0
    %4660 = vmatprep.subr.mxu0 0.0
    %4661 = vmatpush1.msra.mxu0 0.0
    %4662 = vmatprep.subr.mxu0 0.0
    %4663 = vmatpush1.msra.mxu0 0.0
    %4664 = vmatprep.subr.mxu0 0.0
    %4665 = vmatpush1.msra.mxu0 0.0
    %4666 = vmatprep.subr.mxu0 0.0
    %4667 = vmatpush1.msra.mxu0 0.0
    %4668 = vmatprep.subr.mxu0 0.0
    %4669 = vmatpush1.msra.mxu0 0.0
    %4670 = vmatprep.subr.mxu0 0.0
    %4671 = vmatpush1.msra.mxu0 0.0
    %4672 = vmatprep.subr.mxu0 0.0
    %4673 = vmatpush1.msra.mxu0 0.0
    %4674 = vmatprep.subr.mxu0 0.0
    %4675 = vmatpush1.msra.mxu0 0.0
    %4676 = vmatprep.subr.mxu0 0.0
    %4677 = vmatpush1.msra.mxu0 0.0
    %4678 = vmatprep.subr.mxu0 0.0
    %4679 = vmatpush1.msra.mxu0 0.0
    %4680 = vmatprep.subr.mxu0 0.0
    %4681 = vmatpush1.msra.mxu0 0.0
    %4682 = vmatprep.subr.mxu0 0.0
    %4683 = vmatpush1.msra.mxu0 0.0
    %4684 = vmatprep.subr.mxu0 0.0
    %4685 = vmatpush1.msra.mxu0 0.0
    %4686 = vmatprep.subr.mxu0 0.0
    %4687 = vmatpush1.msra.mxu0 0.0
    %4688 = vmatprep.subr.mxu0 0.0
    %4689 = vmatpush1.msra.mxu0 0.0
    %4690 = vmatprep.subr.mxu0 0.0
    %4691 = vmatpush1.msra.mxu0 0.0
    %4692 = vmatprep.subr.mxu0 0.0
    %4693 = vmatpush1.msra.mxu0 0.0
    %4694 = vmatprep.subr.mxu0 0.0
    %4695 = vmatpush1.msra.mxu0 0.0
    %4696 = vmatprep.subr.mxu0 0.0
    %4697 = vmatpush1.msra.mxu0 0.0
    %4698 = vmatprep.subr.mxu0 0.0
    %4699 = vmatpush1.msra.mxu0 0.0
    %4700 = vmatprep.subr.mxu0 0.0
    %4701 = vmatpush1.msra.mxu0 0.0
    %4702 = vmatprep.subr.mxu0 0.0
    %4703 = vmatpush1.msra.mxu0 0.0
    %4704 = vmatprep.subr.mxu0 0.0
    %4705 = vmatpush1.msra.mxu0 0.0
    %4706 = vmatprep.subr.mxu0 0.0
    %4707 = vmatpush1.msra.mxu0 0.0
    %4708 = vmatprep.subr.mxu0 0.0
    %4709 = vmatpush1.msra.mxu0 0.0
    %4710 = vmatprep.subr.mxu0 0.0
    %4711 = vmatpush1.msra.mxu0 0.0
    %4712 = vmatprep.mubr.f32.mxu0 0.0
    %4713 = vmatmul.mubr.f32.gmra.mrb[0].mxu0 %v4646
    %v4714 = vpop.f32.mrb[0].mxu0
    %v4715 = vadd.f32 0.0, %v4714
    %v4716 = vpop.f32.mrb[0].mxu0
    %4717 = vdwg.mxu0
    %4719 = vrot.lane.b32.xlu0 %v4715, 64
    %v4720 = vpop.permute.xlu0 %4719
    %v4722 = vadd.f32 %v4620, %v4720
    %v4723 = vtanh.pop %v4722
    %v4724 = vsub.f32 1.0, %v4643
    %v4725 = vmul.f32 %v4724, %v3446
    %4727 = vrot.lane.b32.xlu0 %v4723, 96
    %v4728 = vpop.permute.xlu0 %4727
    %v4730 = vmul.f32 %v4643, %v4728
    %v4731 = vadd.f32 %v4725, %v4730
    %v4732 = vsel %vm60, %v55, 0.0
    %4733 = vadd.xlane.f32.xlu0 %v4732
    %v4734 = vpop.xlane.xlu0 %4733
    %v4735 = vmul.f32 %v4734, %v64
    %v4736 = vsub.f32 %v55, %v4735
    %v4737 = vmul.f32 %v4736, %v4736
    %v4738 = vsel %vm60, %v4737, 0.0
    %4739 = vadd.xlane.f32.xlu0 %v4738
    %v4740 = vpop.xlane.xlu0 %4739
    %v4741 = vmul.f32 %v4740, %v64
    %v4742 = vadd.f32 %v4741, 1e-05
    %v4743 = vrsqrt.pop %v4742
    %v4744 = vmul.f32 %v4736, %v4743
    %v4745 = vmul.f32 %v4744, %v3473
    %v4746 = vadd.f32 %v4745, %v3482
    %v4747 = vld [vmem:[#allocation7 + $0x500] sm:$0xff]
    %v4748 = vld [vmem:[#allocation7 + $0x508] sm:$0xff]
    %v4749 = vld [vmem:[#allocation7 + $0x510] sm:$0xff]
    %v4750 = vld [vmem:[#allocation7 + $0x518] sm:$0xff]
    %v4751 = vld [vmem:[#allocation7 + $0x520] sm:$0x1]
    %v4752 = vld [vmem:[#allocation7 + $0x528] sm:$0xff]
    %v4753 = vld [vmem:[#allocation7 + $0x530] sm:$0xff]
    %v4754 = vld [vmem:[#allocation7 + $0x538] sm:$0xff]
    %v4755 = vld [vmem:[#allocation7 + $0x540] sm:$0xff]
    %v4756 = vld [vmem:[#allocation7 + $0x548] sm:$0x1]
    %4758 = vrot.lane.b32.xlu0 %v4746, 32
    %v4759 = vpop.permute.xlu0 %4758
    %v4760 = vlaneseq
    %v4761 = vshrl.u32 %v4760, 7
    %v4762 = vsub.s32 0, %v4761
    %v4763 = vrot.slane %v4751, %v4762
    %4765 = vrot.lane.b32.xlu0 %v4731, 96
    %v4766 = vpop.permute.xlu0 %4765
    %4767 = vrot.lane.b32.xlu0 %v4759, 96
    %v4768 = vpop.permute.xlu0 %4767
    %v4769 = vsel %vm60, %v4766, 0
    %v4771 = vsel %vm60, %v4768, 0
    %4773 = vmatprep.subr.mxu0 0.0
    %4774 = vmatpush1.msra.mxu0 %v4747
    %4775 = vmatprep.subr.mxu0 0.0
    %4776 = vmatpush1.msra.mxu0 %v4748
    %4777 = vmatprep.subr.mxu0 0.0
    %4778 = vmatpush1.msra.mxu0 %v4749
    %4779 = vmatprep.subr.mxu0 0.0
    %4780 = vmatpush1.msra.mxu0 %v4750
    %4781 = vmatprep.subr.mxu0 0.0
    %4782 = vmatpush1.msra.mxu0 0.0
    %4783 = vmatprep.subr.mxu0 0.0
    %4784 = vmatpush1.msra.mxu0 0.0
    %4785 = vmatprep.subr.mxu0 0.0
    %4786 = vmatpush1.msra.mxu0 0.0
    %4787 = vmatprep.subr.mxu0 0.0
    %4788 = vmatpush1.msra.mxu0 0.0
    %4789 = vmatprep.subr.mxu0 0.0
    %4790 = vmatpush1.msra.mxu0 0.0
    %4791 = vmatprep.subr.mxu0 0.0
    %4792 = vmatpush1.msra.mxu0 0.0
    %4793 = vmatprep.subr.mxu0 0.0
    %4794 = vmatpush1.msra.mxu0 0.0
    %4795 = vmatprep.subr.mxu0 0.0
    %4796 = vmatpush1.msra.mxu0 0.0
    %4797 = vmatprep.subr.mxu0 0.0
    %4798 = vmatpush1.msra.mxu0 0.0
    %4799 = vmatprep.subr.mxu0 0.0
    %4800 = vmatpush1.msra.mxu0 0.0
    %4801 = vmatprep.subr.mxu0 0.0
    %4802 = vmatpush1.msra.mxu0 0.0
    %4803 = vmatprep.subr.mxu0 0.0
    %4804 = vmatpush1.msra.mxu0 0.0
    %4805 = vmatprep.subr.mxu0 0.0
    %4806 = vmatpush1.msra.mxu0 0.0
    %4807 = vmatprep.subr.mxu0 0.0
    %4808 = vmatpush1.msra.mxu0 0.0
    %4809 = vmatprep.subr.mxu0 0.0
    %4810 = vmatpush1.msra.mxu0 0.0
    %4811 = vmatprep.subr.mxu0 0.0
    %4812 = vmatpush1.msra.mxu0 0.0
    %4813 = vmatprep.subr.mxu0 0.0
    %4814 = vmatpush1.msra.mxu0 0.0
    %4815 = vmatprep.subr.mxu0 0.0
    %4816 = vmatpush1.msra.mxu0 0.0
    %4817 = vmatprep.subr.mxu0 0.0
    %4818 = vmatpush1.msra.mxu0 0.0
    %4819 = vmatprep.subr.mxu0 0.0
    %4820 = vmatpush1.msra.mxu0 0.0
    %4821 = vmatprep.subr.mxu0 0.0
    %4822 = vmatpush1.msra.mxu0 0.0
    %4823 = vmatprep.subr.mxu0 0.0
    %4824 = vmatpush1.msra.mxu0 0.0
    %4825 = vmatprep.subr.mxu0 0.0
    %4826 = vmatpush1.msra.mxu0 0.0
    %4827 = vmatprep.subr.mxu0 0.0
    %4828 = vmatpush1.msra.mxu0 0.0
    %4829 = vmatprep.subr.mxu0 0.0
    %4830 = vmatpush1.msra.mxu0 0.0
    %4831 = vmatprep.subr.mxu0 0.0
    %4832 = vmatpush1.msra.mxu0 0.0
    %4833 = vmatprep.subr.mxu0 0.0
    %4834 = vmatpush1.msra.mxu0 0.0
    %4835 = vmatprep.subr.mxu0 0.0
    %4836 = vmatpush1.msra.mxu0 0.0
    %4837 = vmatprep.mubr.f32.mxu0 0.0
    %4838 = vmatmul.mubr.f32.gmra.mrb[0].mxu0 %v4769
    %v4839 = vpop.f32.mrb[0].mxu0
    %v4840 = vadd.f32 %v4763, %v4839
    %v4841 = vpop.f32.mrb[0].mxu0
    %4842 = vmatprep.mubr.f32.mxu0 0.0
    %4843 = vmatmul.mubr.f32.gmra.mrb[0].mxu0 %v4771
    %v4844 = vpop.f32.mrb[0].mxu0
    %v4845 = vadd.f32 %v4763, %v4844
    %v4846 = vpop.f32.mrb[0].mxu0
    %4847 = vdwg.mxu0
    %4849 = vrot.lane.b32.xlu0 %v4845, 96
    %v4850 = vpop.permute.xlu0 %4849
    %v4852 = vsel %vm175, %v4840, 0
    %v4854 = vsel %vm175, %v4850, 0
    %4856 = vmatprep.subr.mxu0 0.0
    %4857 = vmatpush1.xpose.msra.mxu0 %v4854
    %4858 = vmatprep.subr.mxu0 0.0
    %4859 = vmatpush1.xpose.msra.mxu0 0.0
    %4860 = vmatprep.subr.mxu0 0.0
    %4861 = vmatpush1.xpose.msra.mxu0 0.0
    %4862 = vmatprep.subr.mxu0 0.0
    %4863 = vmatpush1.xpose.msra.mxu0 0.0
    %4864 = vmatprep.subr.mxu0 0.0
    %4865 = vmatpush1.xpose.msra.mxu0 0.0
    %4866 = vmatprep.subr.mxu0 0.0
    %4867 = vmatpush1.xpose.msra.mxu0 0.0
    %4868 = vmatprep.subr.mxu0 0.0
    %4869 = vmatpush1.xpose.msra.mxu0 0.0
    %4870 = vmatprep.subr.mxu0 0.0
    %4871 = vmatpush1.xpose.msra.mxu0 0.0
    %4872 = vmatprep.subr.mxu0 0.0
    %4873 = vmatpush1.xpose.msra.mxu0 0.0
    %4874 = vmatprep.subr.mxu0 0.0
    %4875 = vmatpush1.xpose.msra.mxu0 0.0
    %4876 = vmatprep.subr.mxu0 0.0
    %4877 = vmatpush1.xpose.msra.mxu0 0.0
    %4878 = vmatprep.subr.mxu0 0.0
    %4879 = vmatpush1.xpose.msra.mxu0 0.0
    %4880 = vmatprep.subr.mxu0 0.0
    %4881 = vmatpush1.xpose.msra.mxu0 0.0
    %4882 = vmatprep.subr.mxu0 0.0
    %4883 = vmatpush1.xpose.msra.mxu0 0.0
    %4884 = vmatprep.subr.mxu0 0.0
    %4885 = vmatpush1.xpose.msra.mxu0 0.0
    %4886 = vmatprep.subr.mxu0 0.0
    %4887 = vmatpush1.xpose.msra.mxu0 0.0
    %4888 = vmatprep.subr.mxu0 0.0
    %4889 = vmatpush1.xpose.msra.mxu0 0.0
    %4890 = vmatprep.subr.mxu0 0.0
    %4891 = vmatpush1.xpose.msra.mxu0 0.0
    %4892 = vmatprep.subr.mxu0 0.0
    %4893 = vmatpush1.xpose.msra.mxu0 0.0
    %4894 = vmatprep.subr.mxu0 0.0
    %4895 = vmatpush1.xpose.msra.mxu0 0.0
    %4896 = vmatprep.subr.mxu0 0.0
    %4897 = vmatpush1.xpose.msra.mxu0 0.0
    %4898 = vmatprep.subr.mxu0 0.0
    %4899 = vmatpush1.xpose.msra.mxu0 0.0
    %4900 = vmatprep.subr.mxu0 0.0
    %4901 = vmatpush1.xpose.msra.mxu0 0.0
    %4902 = vmatprep.subr.mxu0 0.0
    %4903 = vmatpush1.xpose.msra.mxu0 0.0
    %4904 = vmatprep.subr.mxu0 0.0
    %4905 = vmatpush1.xpose.msra.mxu0 0.0
    %4906 = vmatprep.subr.mxu0 0.0
    %4907 = vmatpush1.xpose.msra.mxu0 0.0
    %4908 = vmatprep.subr.mxu0 0.0
    %4909 = vmatpush1.xpose.msra.mxu0 0.0
    %4910 = vmatprep.subr.mxu0 0.0
    %4911 = vmatpush1.xpose.msra.mxu0 0.0
    %4912 = vmatprep.subr.mxu0 0.0
    %4913 = vmatpush1.xpose.msra.mxu0 0.0
    %4914 = vmatprep.subr.mxu0 0.0
    %4915 = vmatpush1.xpose.msra.mxu0 0.0
    %4916 = vmatprep.subr.mxu0 0.0
    %4917 = vmatpush1.xpose.msra.mxu0 0.0
    %4918 = vmatprep.subr.mxu0 0.0
    %4919 = vmatpush1.xpose.msra.mxu0 0.0
    %4920 = vmatprep.mubr.f32.mxu0 0.0
    %4921 = vmatmul.mubr.f32.gmra.mrb[0].mxu0 %v4852
    %v4922 = vpop.f32.mrb[0].mxu0
    %v4923 = vadd.f32 0.0, %v4922
    %v4924 = vpop.f32.mrb[0].mxu0
    %4925 = vdwg.mxu0
    %v4926 = vsel %vm175, %v4923, -inf
    %4927 = vmax.xlane.f32.xlu0 %v4926
    %v4928 = vpop.xlane.xlu0 %4927
    %v4929 = vsub.f32 %v4923, %v4928
    %v4930 = vmul.f32 %v4929, 1.442695
    %v4931 = vpow.pop %v4930
    %v4932 = vsel %vm175, %v4931, 0.0
    %4933 = vadd.xlane.f32.xlu0 %v4932
    %v4934 = vpop.xlane.xlu0 %4933
    %v4935 = vrcp.pop %v4934
    %v4936 = vmul.f32 %v4931, %v4935
    %4937 = vrot.lane.b32.xlu0 %v4845, 64
    %v4938 = vpop.permute.xlu0 %4937
    %v4941 = vsel %vm175, %v4936, 0
    %4943 = vmatprep.subr.mxu0 0.0
    %4944 = vmatpush1.msra.mxu0 %v4938
    %4945 = vmatprep.subr.mxu0 0.0
    %4946 = vmatpush1.msra.mxu0 0.0
    %4947 = vmatprep.subr.mxu0 0.0
    %4948 = vmatpush1.msra.mxu0 0.0
    %4949 = vmatprep.subr.mxu0 0.0
    %4950 = vmatpush1.msra.mxu0 0.0
    %4951 = vmatprep.subr.mxu0 0.0
    %4952 = vmatpush1.msra.mxu0 0.0
    %4953 = vmatprep.subr.mxu0 0.0
    %4954 = vmatpush1.msra.mxu0 0.0
    %4955 = vmatprep.subr.mxu0 0.0
    %4956 = vmatpush1.msra.mxu0 0.0
    %4957 = vmatprep.subr.mxu0 0.0
    %4958 = vmatpush1.msra.mxu0 0.0
    %4959 = vmatprep.subr.mxu0 0.0
    %4960 = vmatpush1.msra.mxu0 0.0
    %4961 = vmatprep.subr.mxu0 0.0
    %4962 = vmatpush1.msra.mxu0 0.0
    %4963 = vmatprep.subr.mxu0 0.0
    %4964 = vmatpush1.msra.mxu0 0.0
    %4965 = vmatprep.subr.mxu0 0.0
    %4966 = vmatpush1.msra.mxu0 0.0
    %4967 = vmatprep.subr.mxu0 0.0
    %4968 = vmatpush1.msra.mxu0 0.0
    %4969 = vmatprep.subr.mxu0 0.0
    %4970 = vmatpush1.msra.mxu0 0.0
    %4971 = vmatprep.subr.mxu0 0.0
    %4972 = vmatpush1.msra.mxu0 0.0
    %4973 = vmatprep.subr.mxu0 0.0
    %4974 = vmatpush1.msra.mxu0 0.0
    %4975 = vmatprep.subr.mxu0 0.0
    %4976 = vmatpush1.msra.mxu0 0.0
    %4977 = vmatprep.subr.mxu0 0.0
    %4978 = vmatpush1.msra.mxu0 0.0
    %4979 = vmatprep.subr.mxu0 0.0
    %4980 = vmatpush1.msra.mxu0 0.0
    %4981 = vmatprep.subr.mxu0 0.0
    %4982 = vmatpush1.msra.mxu0 0.0
    %4983 = vmatprep.subr.mxu0 0.0
    %4984 = vmatpush1.msra.mxu0 0.0
    %4985 = vmatprep.subr.mxu0 0.0
    %4986 = vmatpush1.msra.mxu0 0.0
    %4987 = vmatprep.subr.mxu0 0.0
    %4988 = vmatpush1.msra.mxu0 0.0
    %4989 = vmatprep.subr.mxu0 0.0
    %4990 = vmatpush1.msra.mxu0 0.0
    %4991 = vmatprep.subr.mxu0 0.0
    %4992 = vmatpush1.msra.mxu0 0.0
    %4993 = vmatprep.subr.mxu0 0.0
    %4994 = vmatpush1.msra.mxu0 0.0
    %4995 = vmatprep.subr.mxu0 0.0
    %4996 = vmatpush1.msra.mxu0 0.0
    %4997 = vmatprep.subr.mxu0 0.0
    %4998 = vmatpush1.msra.mxu0 0.0
    %4999 = vmatprep.subr.mxu0 0.0
    %5000 = vmatpush1.msra.mxu0 0.0
    %5001 = vmatprep.subr.mxu0 0.0
    %5002 = vmatpush1.msra.mxu0 0.0
    %5003 = vmatprep.subr.mxu0 0.0
    %5004 = vmatpush1.msra.mxu0 0.0
    %5005 = vmatprep.subr.mxu0 0.0
    %5006 = vmatpush1.msra.mxu0 0.0
    %5007 = vmatprep.mubr.f32.mxu0 0.0
    %5008 = vmatmul.mubr.f32.gmra.mrb[0].mxu0 %v4941
    %v5009 = vpop.f32.mrb[0].mxu0
    %v5010 = vadd.f32 0.0, %v5009
    %v5011 = vpop.f32.mrb[0].mxu0
    %5012 = vdwg.mxu0
    %5013 = vrot.lane.b32.xlu0 %v4840, 120
    %v5014 = vpop.permute.xlu0 %5013
    %5015 = vrot.lane.b32.xlu0 %v4845, 88
    %v5016 = vpop.permute.xlu0 %5015
    %v5017 = vsel %vm175, %v5014, 0
    %v5019 = vsel %vm175, %v5016, 0
    %5021 = vmatprep.subr.mxu0 0.0
    %5022 = vmatpush1.xpose.msra.mxu0 %v5019
    %5023 = vmatprep.subr.mxu0 0.0
    %5024 = vmatpush1.xpose.msra.mxu0 0.0
    %5025 = vmatprep.subr.mxu0 0.0
    %5026 = vmatpush1.xpose.msra.mxu0 0.0
    %5027 = vmatprep.subr.mxu0 0.0
    %5028 = vmatpush1.xpose.msra.mxu0 0.0
    %5029 = vmatprep.subr.mxu0 0.0
    %5030 = vmatpush1.xpose.msra.mxu0 0.0
    %5031 = vmatprep.subr.mxu0 0.0
    %5032 = vmatpush1.xpose.msra.mxu0 0.0
    %5033 = vmatprep.subr.mxu0 0.0
    %5034 = vmatpush1.xpose.msra.mxu0 0.0
    %5035 = vmatprep.subr.mxu0 0.0
    %5036 = vmatpush1.xpose.msra.mxu0 0.0
    %5037 = vmatprep.subr.mxu0 0.0
    %5038 = vmatpush1.xpose.msra.mxu0 0.0
    %5039 = vmatprep.subr.mxu0 0.0
    %5040 = vmatpush1.xpose.msra.mxu0 0.0
    %5041 = vmatprep.subr.mxu0 0.0
    %5042 = vmatpush1.xpose.msra.mxu0 0.0
    %5043 = vmatprep.subr.mxu0 0.0
    %5044 = vmatpush1.xpose.msra.mxu0 0.0
    %5045 = vmatprep.subr.mxu0 0.0
    %5046 = vmatpush1.xpose.msra.mxu0 0.0
    %5047 = vmatprep.subr.mxu0 0.0
    %5048 = vmatpush1.xpose.msra.mxu0 0.0
    %5049 = vmatprep.subr.mxu0 0.0
    %5050 = vmatpush1.xpose.msra.mxu0 0.0
    %5051 = vmatprep.subr.mxu0 0.0
    %5052 = vmatpush1.xpose.msra.mxu0 0.0
    %5053 = vmatprep.subr.mxu0 0.0
    %5054 = vmatpush1.xpose.msra.mxu0 0.0
    %5055 = vmatprep.subr.mxu0 0.0
    %5056 = vmatpush1.xpose.msra.mxu0 0.0
    %5057 = vmatprep.subr.mxu0 0.0
    %5058 = vmatpush1.xpose.msra.mxu0 0.0
    %5059 = vmatprep.subr.mxu0 0.0
    %5060 = vmatpush1.xpose.msra.mxu0 0.0
    %5061 = vmatprep.subr.mxu0 0.0
    %5062 = vmatpush1.xpose.msra.mxu0 0.0
    %5063 = vmatprep.subr.mxu0 0.0
    %5064 = vmatpush1.xpose.msra.mxu0 0.0
    %5065 = vmatprep.subr.mxu0 0.0
    %5066 = vmatpush1.xpose.msra.mxu0 0.0
    %5067 = vmatprep.subr.mxu0 0.0
    %5068 = vmatpush1.xpose.msra.mxu0 0.0
    %5069 = vmatprep.subr.mxu0 0.0
    %5070 = vmatpush1.xpose.msra.mxu0 0.0
    %5071 = vmatprep.subr.mxu0 0.0
    %5072 = vmatpush1.xpose.msra.mxu0 0.0
    %5073 = vmatprep.subr.mxu0 0.0
    %5074 = vmatpush1.xpose.msra.mxu0 0.0
    %5075 = vmatprep.subr.mxu0 0.0
    %5076 = vmatpush1.xpose.msra.mxu0 0.0
    %5077 = vmatprep.subr.mxu0 0.0
    %5078 = vmatpush1.xpose.msra.mxu0 0.0
    %5079 = vmatprep.subr.mxu0 0.0
    %5080 = vmatpush1.xpose.msra.mxu0 0.0
    %5081 = vmatprep.subr.mxu0 0.0
    %5082 = vmatpush1.xpose.msra.mxu0 0.0
    %5083 = vmatprep.subr.mxu0 0.0
    %5084 = vmatpush1.xpose.msra.mxu0 0.0
    %5085 = vmatprep.mubr.f32.mxu0 0.0
    %5086 = vmatmul.mubr.f32.gmra.mrb[0].mxu0 %v5017
    %v5087 = vpop.f32.mrb[0].mxu0
    %v5088 = vadd.f32 0.0, %v5087
    %v5089 = vpop.f32.mrb[0].mxu0
    %5090 = vdwg.mxu0
    %v5091 = vsel %vm175, %v5088, -inf
    %5092 = vmax.xlane.f32.xlu0 %v5091
    %v5093 = vpop.xlane.xlu0 %5092
    %v5094 = vsub.f32 %v5088, %v5093
    %v5095 = vmul.f32 %v5094, 1.442695
    %v5096 = vpow.pop %v5095
    %v5097 = vsel %vm175, %v5096, 0.0
    %5098 = vadd.xlane.f32.xlu0 %v5097
    %v5099 = vpop.xlane.xlu0 %5098
    %v5100 = vrcp.pop %v5099
    %v5101 = vmul.f32 %v5096, %v5100
    %5102 = vrot.lane.b32.xlu0 %v4845, 56
    %v5103 = vpop.permute.xlu0 %5102
    %v5106 = vsel %vm175, %v5101, 0
    %5108 = vmatprep.subr.mxu0 0.0
    %5109 = vmatpush1.msra.mxu0 %v5103
    %5110 = vmatprep.subr.mxu0 0.0
    %5111 = vmatpush1.msra.mxu0 0.0
    %5112 = vmatprep.subr.mxu0 0.0
    %5113 = vmatpush1.msra.mxu0 0.0
    %5114 = vmatprep.subr.mxu0 0.0
    %5115 = vmatpush1.msra.mxu0 0.0
    %5116 = vmatprep.subr.mxu0 0.0
    %5117 = vmatpush1.msra.mxu0 0.0
    %5118 = vmatprep.subr.mxu0 0.0
    %5119 = vmatpush1.msra.mxu0 0.0
    %5120 = vmatprep.subr.mxu0 0.0
    %5121 = vmatpush1.msra.mxu0 0.0
    %5122 = vmatprep.subr.mxu0 0.0
    %5123 = vmatpush1.msra.mxu0 0.0
    %5124 = vmatprep.subr.mxu0 0.0
    %5125 = vmatpush1.msra.mxu0 0.0
    %5126 = vmatprep.subr.mxu0 0.0
    %5127 = vmatpush1.msra.mxu0 0.0
    %5128 = vmatprep.subr.mxu0 0.0
    %5129 = vmatpush1.msra.mxu0 0.0
    %5130 = vmatprep.subr.mxu0 0.0
    %5131 = vmatpush1.msra.mxu0 0.0
    %5132 = vmatprep.subr.mxu0 0.0
    %5133 = vmatpush1.msra.mxu0 0.0
    %5134 = vmatprep.subr.mxu0 0.0
    %5135 = vmatpush1.msra.mxu0 0.0
    %5136 = vmatprep.subr.mxu0 0.0
    %5137 = vmatpush1.msra.mxu0 0.0
    %5138 = vmatprep.subr.mxu0 0.0
    %5139 = vmatpush1.msra.mxu0 0.0
    %5140 = vmatprep.subr.mxu0 0.0
    %5141 = vmatpush1.msra.mxu0 0.0
    %5142 = vmatprep.subr.mxu0 0.0
    %5143 = vmatpush1.msra.mxu0 0.0
    %5144 = vmatprep.subr.mxu0 0.0
    %5145 = vmatpush1.msra.mxu0 0.0
    %5146 = vmatprep.subr.mxu0 0.0
    %5147 = vmatpush1.msra.mxu0 0.0
    %5148 = vmatprep.subr.mxu0 0.0
    %5149 = vmatpush1.msra.mxu0 0.0
    %5150 = vmatprep.subr.mxu0 0.0
    %5151 = vmatpush1.msra.mxu0 0.0
    %5152 = vmatprep.subr.mxu0 0.0
    %5153 = vmatpush1.msra.mxu0 0.0
    %5154 = vmatprep.subr.mxu0 0.0
    %5155 = vmatpush1.msra.mxu0 0.0
    %5156 = vmatprep.subr.mxu0 0.0
    %5157 = vmatpush1.msra.mxu0 0.0
    %5158 = vmatprep.subr.mxu0 0.0
    %5159 = vmatpush1.msra.mxu0 0.0
    %5160 = vmatprep.subr.mxu0 0.0
    %5161 = vmatpush1.msra.mxu0 0.0
    %5162 = vmatprep.subr.mxu0 0.0
    %5163 = vmatpush1.msra.mxu0 0.0
    %5164 = vmatprep.subr.mxu0 0.0
    %5165 = vmatpush1.msra.mxu0 0.0
    %5166 = vmatprep.subr.mxu0 0.0
    %5167 = vmatpush1.msra.mxu0 0.0
    %5168 = vmatprep.subr.mxu0 0.0
    %5169 = vmatpush1.msra.mxu0 0.0
    %5170 = vmatprep.subr.mxu0 0.0
    %5171 = vmatpush1.msra.mxu0 0.0
    %5172 = vmatprep.mubr.f32.mxu0 0.0
    %5173 = vmatmul.mubr.f32.gmra.mrb[0].mxu0 %v5106
    %v5174 = vpop.f32.mrb[0].mxu0
    %v5175 = vadd.f32 0.0, %v5174
    %v5176 = vpop.f32.mrb[0].mxu0
    %5177 = vdwg.mxu0
    %v5179 = vsel %vm175, %v5175, 0
    %5181 = vmatprep.subr.mxu0 0.0
    %5182 = vmatpush1.msra.mxu0 %v4753
    %5183 = vmatprep.subr.mxu0 0.0
    %5184 = vmatpush1.msra.mxu0 0.0
    %5185 = vmatprep.subr.mxu0 0.0
    %5186 = vmatpush1.msra.mxu0 0.0
    %5187 = vmatprep.subr.mxu0 0.0
    %5188 = vmatpush1.msra.mxu0 0.0
    %5189 = vmatprep.subr.mxu0 0.0
    %5190 = vmatpush1.msra.mxu0 0.0
    %5191 = vmatprep.subr.mxu0 0.0
    %5192 = vmatpush1.msra.mxu0 0.0
    %5193 = vmatprep.subr.mxu0 0.0
    %5194 = vmatpush1.msra.mxu0 0.0
    %5195 = vmatprep.subr.mxu0 0.0
    %5196 = vmatpush1.msra.mxu0 0.0
    %5197 = vmatprep.subr.mxu0 0.0
    %5198 = vmatpush1.msra.mxu0 0.0
    %5199 = vmatprep.subr.mxu0 0.0
    %5200 = vmatpush1.msra.mxu0 0.0
    %5201 = vmatprep.subr.mxu0 0.0
    %5202 = vmatpush1.msra.mxu0 0.0
    %5203 = vmatprep.subr.mxu0 0.0
    %5204 = vmatpush1.msra.mxu0 0.0
    %5205 = vmatprep.subr.mxu0 0.0
    %5206 = vmatpush1.msra.mxu0 0.0
    %5207 = vmatprep.subr.mxu0 0.0
    %5208 = vmatpush1.msra.mxu0 0.0
    %5209 = vmatprep.subr.mxu0 0.0
    %5210 = vmatpush1.msra.mxu0 0.0
    %5211 = vmatprep.subr.mxu0 0.0
    %5212 = vmatpush1.msra.mxu0 0.0
    %5213 = vmatprep.subr.mxu0 0.0
    %5214 = vmatpush1.msra.mxu0 0.0
    %5215 = vmatprep.subr.mxu0 0.0
    %5216 = vmatpush1.msra.mxu0 0.0
    %5217 = vmatprep.subr.mxu0 0.0
    %5218 = vmatpush1.msra.mxu0 0.0
    %5219 = vmatprep.subr.mxu0 0.0
    %5220 = vmatpush1.msra.mxu0 0.0
    %5221 = vmatprep.subr.mxu0 0.0
    %5222 = vmatpush1.msra.mxu0 0.0
    %5223 = vmatprep.subr.mxu0 0.0
    %5224 = vmatpush1.msra.mxu0 0.0
    %5225 = vmatprep.subr.mxu0 0.0
    %5226 = vmatpush1.msra.mxu0 0.0
    %5227 = vmatprep.subr.mxu0 0.0
    %5228 = vmatpush1.msra.mxu0 0.0
    %5229 = vmatprep.subr.mxu0 0.0
    %5230 = vmatpush1.msra.mxu0 0.0
    %5231 = vmatprep.subr.mxu0 0.0
    %5232 = vmatpush1.msra.mxu0 0.0
    %5233 = vmatprep.subr.mxu0 0.0
    %5234 = vmatpush1.msra.mxu0 0.0
    %5235 = vmatprep.subr.mxu0 0.0
    %5236 = vmatpush1.msra.mxu0 0.0
    %5237 = vmatprep.subr.mxu0 0.0
    %5238 = vmatpush1.msra.mxu0 0.0
    %5239 = vmatprep.subr.mxu0 0.0
    %5240 = vmatpush1.msra.mxu0 0.0
    %5241 = vmatprep.subr.mxu0 0.0
    %5242 = vmatpush1.msra.mxu0 0.0
    %5243 = vmatprep.subr.mxu0 0.0
    %5244 = vmatpush1.msra.mxu0 0.0
    %5245 = vmatprep.mubr.f32.mxu0 0.0
    %5246 = vmatmul.mubr.f32.gmra.mrb[0].mxu0 %v5179
    %v5247 = vpop.f32.mrb[0].mxu0
    %v5248 = vadd.f32 0.0, %v5247
    %v5249 = vpop.f32.mrb[0].mxu0
    %5250 = vdwg.mxu0
    %v5252 = vsel %vm175, %v5010, 0
    %5254 = vmatprep.subr.mxu0 0.0
    %5255 = vmatpush1.msra.mxu0 %v4752
    %5256 = vmatprep.subr.mxu0 0.0
    %5257 = vmatpush1.msra.mxu0 0.0
    %5258 = vmatprep.subr.mxu0 0.0
    %5259 = vmatpush1.msra.mxu0 0.0
    %5260 = vmatprep.subr.mxu0 0.0
    %5261 = vmatpush1.msra.mxu0 0.0
    %5262 = vmatprep.subr.mxu0 0.0
    %5263 = vmatpush1.msra.mxu0 0.0
    %5264 = vmatprep.subr.mxu0 0.0
    %5265 = vmatpush1.msra.mxu0 0.0
    %5266 = vmatprep.subr.mxu0 0.0
    %5267 = vmatpush1.msra.mxu0 0.0
    %5268 = vmatprep.subr.mxu0 0.0
    %5269 = vmatpush1.msra.mxu0 0.0
    %5270 = vmatprep.subr.mxu0 0.0
    %5271 = vmatpush1.msra.mxu0 0.0
    %5272 = vmatprep.subr.mxu0 0.0
    %5273 = vmatpush1.msra.mxu0 0.0
    %5274 = vmatprep.subr.mxu0 0.0
    %5275 = vmatpush1.msra.mxu0 0.0
    %5276 = vmatprep.subr.mxu0 0.0
    %5277 = vmatpush1.msra.mxu0 0.0
    %5278 = vmatprep.subr.mxu0 0.0
    %5279 = vmatpush1.msra.mxu0 0.0
    %5280 = vmatprep.subr.mxu0 0.0
    %5281 = vmatpush1.msra.mxu0 0.0
    %5282 = vmatprep.subr.mxu0 0.0
    %5283 = vmatpush1.msra.mxu0 0.0
    %5284 = vmatprep.subr.mxu0 0.0
    %5285 = vmatpush1.msra.mxu0 0.0
    %5286 = vmatprep.subr.mxu0 0.0
    %5287 = vmatpush1.msra.mxu0 0.0
    %5288 = vmatprep.subr.mxu0 0.0
    %5289 = vmatpush1.msra.mxu0 0.0
    %5290 = vmatprep.subr.mxu0 0.0
    %5291 = vmatpush1.msra.mxu0 0.0
    %5292 = vmatprep.subr.mxu0 0.0
    %5293 = vmatpush1.msra.mxu0 0.0
    %5294 = vmatprep.subr.mxu0 0.0
    %5295 = vmatpush1.msra.mxu0 0.0
    %5296 = vmatprep.subr.mxu0 0.0
    %5297 = vmatpush1.msra.mxu0 0.0
    %5298 = vmatprep.subr.mxu0 0.0
    %5299 = vmatpush1.msra.mxu0 0.0
    %5300 = vmatprep.subr.mxu0 0.0
    %5301 = vmatpush1.msra.mxu0 0.0
    %5302 = vmatprep.subr.mxu0 0.0
    %5303 = vmatpush1.msra.mxu0 0.0
    %5304 = vmatprep.subr.mxu0 0.0
    %5305 = vmatpush1.msra.mxu0 0.0
    %5306 = vmatprep.subr.mxu0 0.0
    %5307 = vmatpush1.msra.mxu0 0.0
    %5308 = vmatprep.subr.mxu0 0.0
    %5309 = vmatpush1.msra.mxu0 0.0
    %5310 = vmatprep.subr.mxu0 0.0
    %5311 = vmatpush1.msra.mxu0 0.0
    %5312 = vmatprep.subr.mxu0 0.0
    %5313 = vmatpush1.msra.mxu0 0.0
    %5314 = vmatprep.subr.mxu0 0.0
    %5315 = vmatpush1.msra.mxu0 0.0
    %5316 = vmatprep.subr.mxu0 0.0
    %5317 = vmatpush1.msra.mxu0 0.0
    %5318 = vmatprep.mubr.f32.mxu0 0.0
    %5319 = vmatmul.mubr.f32.gmra.mrb[0].mxu0 %v5252
    %v5320 = vpop.f32.mrb[0].mxu0
    %v5321 = vadd.f32 %v5248, %v5320
    %v5322 = vpop.f32.mrb[0].mxu0
    %5323 = vdwg.mxu0
    %5324 = vrot.lane.b32.xlu0 %v4840, 112
    %v5325 = vpop.permute.xlu0 %5324
    %5326 = vrot.lane.b32.xlu0 %v4845, 80
    %v5327 = vpop.permute.xlu0 %5326
    %v5328 = vsel %vm175, %v5325, 0
    %v5330 = vsel %vm175, %v5327, 0
    %5332 = vmatprep.subr.mxu0 0.0
    %5333 = vmatpush1.xpose.msra.mxu0 %v5330
    %5334 = vmatprep.subr.mxu0 0.0
    %5335 = vmatpush1.xpose.msra.mxu0 0.0
    %5336 = vmatprep.subr.mxu0 0.0
    %5337 = vmatpush1.xpose.msra.mxu0 0.0
    %5338 = vmatprep.subr.mxu0 0.0
    %5339 = vmatpush1.xpose.msra.mxu0 0.0
    %5340 = vmatprep.subr.mxu0 0.0
    %5341 = vmatpush1.xpose.msra.mxu0 0.0
    %5342 = vmatprep.subr.mxu0 0.0
    %5343 = vmatpush1.xpose.msra.mxu0 0.0
    %5344 = vmatprep.subr.mxu0 0.0
    %5345 = vmatpush1.xpose.msra.mxu0 0.0
    %5346 = vmatprep.subr.mxu0 0.0
    %5347 = vmatpush1.xpose.msra.mxu0 0.0
    %5348 = vmatprep.subr.mxu0 0.0
    %5349 = vmatpush1.xpose.msra.mxu0 0.0
    %5350 = vmatprep.subr.mxu0 0.0
    %5351 = vmatpush1.xpose.msra.mxu0 0.0
    %5352 = vmatprep.subr.mxu0 0.0
    %5353 = vmatpush1.xpose.msra.mxu0 0.0
    %5354 = vmatprep.subr.mxu0 0.0
    %5355 = vmatpush1.xpose.msra.mxu0 0.0
    %5356 = vmatprep.subr.mxu0 0.0
    %5357 = vmatpush1.xpose.msra.mxu0 0.0
    %5358 = vmatprep.subr.mxu0 0.0
    %5359 = vmatpush1.xpose.msra.mxu0 0.0
    %5360 = vmatprep.subr.mxu0 0.0
    %5361 = vmatpush1.xpose.msra.mxu0 0.0
    %5362 = vmatprep.subr.mxu0 0.0
    %5363 = vmatpush1.xpose.msra.mxu0 0.0
    %5364 = vmatprep.subr.mxu0 0.0
    %5365 = vmatpush1.xpose.msra.mxu0 0.0
    %5366 = vmatprep.subr.mxu0 0.0
    %5367 = vmatpush1.xpose.msra.mxu0 0.0
    %5368 = vmatprep.subr.mxu0 0.0
    %5369 = vmatpush1.xpose.msra.mxu0 0.0
    %5370 = vmatprep.subr.mxu0 0.0
    %5371 = vmatpush1.xpose.msra.mxu0 0.0
    %5372 = vmatprep.subr.mxu0 0.0
    %5373 = vmatpush1.xpose.msra.mxu0 0.0
    %5374 = vmatprep.subr.mxu0 0.0
    %5375 = vmatpush1.xpose.msra.mxu0 0.0
    %5376 = vmatprep.subr.mxu0 0.0
    %5377 = vmatpush1.xpose.msra.mxu0 0.0
    %5378 = vmatprep.subr.mxu0 0.0
    %5379 = vmatpush1.xpose.msra.mxu0 0.0
    %5380 = vmatprep.subr.mxu0 0.0
    %5381 = vmatpush1.xpose.msra.mxu0 0.0
    %5382 = vmatprep.subr.mxu0 0.0
    %5383 = vmatpush1.xpose.msra.mxu0 0.0
    %5384 = vmatprep.subr.mxu0 0.0
    %5385 = vmatpush1.xpose.msra.mxu0 0.0
    %5386 = vmatprep.subr.mxu0 0.0
    %5387 = vmatpush1.xpose.msra.mxu0 0.0
    %5388 = vmatprep.subr.mxu0 0.0
    %5389 = vmatpush1.xpose.msra.mxu0 0.0
    %5390 = vmatprep.subr.mxu0 0.0
    %5391 = vmatpush1.xpose.msra.mxu0 0.0
    %5392 = vmatprep.subr.mxu0 0.0
    %5393 = vmatpush1.xpose.msra.mxu0 0.0
    %5394 = vmatprep.subr.mxu0 0.0
    %5395 = vmatpush1.xpose.msra.mxu0 0.0
    %5396 = vmatprep.mubr.f32.mxu0 0.0
    %5397 = vmatmul.mubr.f32.gmra.mrb[0].mxu0 %v5328
    %v5398 = vpop.f32.mrb[0].mxu0
    %v5399 = vadd.f32 0.0, %v5398
    %v5400 = vpop.f32.mrb[0].mxu0
    %5401 = vdwg.mxu0
    %v5402 = vsel %vm175, %v5399, -inf
    %5403 = vmax.xlane.f32.xlu0 %v5402
    %v5404 = vpop.xlane.xlu0 %5403
    %v5405 = vsub.f32 %v5399, %v5404
    %v5406 = vmul.f32 %v5405, 1.442695
    %v5407 = vpow.pop %v5406
    %v5408 = vsel %vm175, %v5407, 0.0
    %5409 = vadd.xlane.f32.xlu0 %v5408
    %v5410 = vpop.xlane.xlu0 %5409
    %v5411 = vrcp.pop %v5410
    %v5412 = vmul.f32 %v5407, %v5411
    %5413 = vrot.lane.b32.xlu0 %v4845, 48
    %v5414 = vpop.permute.xlu0 %5413
    %v5417 = vsel %vm175, %v5412, 0
    %5419 = vmatprep.subr.mxu0 0.0
    %5420 = vmatpush1.msra.mxu0 %v5414
    %5421 = vmatprep.subr.mxu0 0.0
    %5422 = vmatpush1.msra.mxu0 0.0
    %5423 = vmatprep.subr.mxu0 0.0
    %5424 = vmatpush1.msra.mxu0 0.0
    %5425 = vmatprep.subr.mxu0 0.0
    %5426 = vmatpush1.msra.mxu0 0.0
    %5427 = vmatprep.subr.mxu0 0.0
    %5428 = vmatpush1.msra.mxu0 0.0
    %5429 = vmatprep.subr.mxu0 0.0
    %5430 = vmatpush1.msra.mxu0 0.0
    %5431 = vmatprep.subr.mxu0 0.0
    %5432 = vmatpush1.msra.mxu0 0.0
    %5433 = vmatprep.subr.mxu0 0.0
    %5434 = vmatpush1.msra.mxu0 0.0
    %5435 = vmatprep.subr.mxu0 0.0
    %5436 = vmatpush1.msra.mxu0 0.0
    %5437 = vmatprep.subr.mxu0 0.0
    %5438 = vmatpush1.msra.mxu0 0.0
    %5439 = vmatprep.subr.mxu0 0.0
    %5440 = vmatpush1.msra.mxu0 0.0
    %5441 = vmatprep.subr.mxu0 0.0
    %5442 = vmatpush1.msra.mxu0 0.0
    %5443 = vmatprep.subr.mxu0 0.0
    %5444 = vmatpush1.msra.mxu0 0.0
    %5445 = vmatprep.subr.mxu0 0.0
    %5446 = vmatpush1.msra.mxu0 0.0
    %5447 = vmatprep.subr.mxu0 0.0
    %5448 = vmatpush1.msra.mxu0 0.0
    %5449 = vmatprep.subr.mxu0 0.0
    %5450 = vmatpush1.msra.mxu0 0.0
    %5451 = vmatprep.subr.mxu0 0.0
    %5452 = vmatpush1.msra.mxu0 0.0
    %5453 = vmatprep.subr.mxu0 0.0
    %5454 = vmatpush1.msra.mxu0 0.0
    %5455 = vmatprep.subr.mxu0 0.0
    %5456 = vmatpush1.msra.mxu0 0.0
    %5457 = vmatprep.subr.mxu0 0.0
    %5458 = vmatpush1.msra.mxu0 0.0
    %5459 = vmatprep.subr.mxu0 0.0
    %5460 = vmatpush1.msra.mxu0 0.0
    %5461 = vmatprep.subr.mxu0 0.0
    %5462 = vmatpush1.msra.mxu0 0.0
    %5463 = vmatprep.subr.mxu0 0.0
    %5464 = vmatpush1.msra.mxu0 0.0
    %5465 = vmatprep.subr.mxu0 0.0
    %5466 = vmatpush1.msra.mxu0 0.0
    %5467 = vmatprep.subr.mxu0 0.0
    %5468 = vmatpush1.msra.mxu0 0.0
    %5469 = vmatprep.subr.mxu0 0.0
    %5470 = vmatpush1.msra.mxu0 0.0
    %5471 = vmatprep.subr.mxu0 0.0
    %5472 = vmatpush1.msra.mxu0 0.0
    %5473 = vmatprep.subr.mxu0 0.0
    %5474 = vmatpush1.msra.mxu0 0.0
    %5475 = vmatprep.subr.mxu0 0.0
    %5476 = vmatpush1.msra.mxu0 0.0
    %5477 = vmatprep.subr.mxu0 0.0
    %5478 = vmatpush1.msra.mxu0 0.0
    %5479 = vmatprep.subr.mxu0 0.0
    %5480 = vmatpush1.msra.mxu0 0.0
    %5481 = vmatprep.subr.mxu0 0.0
    %5482 = vmatpush1.msra.mxu0 0.0
    %5483 = vmatprep.mubr.f32.mxu0 0.0
    %5484 = vmatmul.mubr.f32.gmra.mrb[0].mxu0 %v5417
    %v5485 = vpop.f32.mrb[0].mxu0
    %v5486 = vadd.f32 0.0, %v5485
    %v5487 = vpop.f32.mrb[0].mxu0
    %5488 = vdwg.mxu0
    %v5490 = vsel %vm175, %v5486, 0
    %5492 = vmatprep.subr.mxu0 0.0
    %5493 = vmatpush1.msra.mxu0 %v4754
    %5494 = vmatprep.subr.mxu0 0.0
    %5495 = vmatpush1.msra.mxu0 0.0
    %5496 = vmatprep.subr.mxu0 0.0
    %5497 = vmatpush1.msra.mxu0 0.0
    %5498 = vmatprep.subr.mxu0 0.0
    %5499 = vmatpush1.msra.mxu0 0.0
    %5500 = vmatprep.subr.mxu0 0.0
    %5501 = vmatpush1.msra.mxu0 0.0
    %5502 = vmatprep.subr.mxu0 0.0
    %5503 = vmatpush1.msra.mxu0 0.0
    %5504 = vmatprep.subr.mxu0 0.0
    %5505 = vmatpush1.msra.mxu0 0.0
    %5506 = vmatprep.subr.mxu0 0.0
    %5507 = vmatpush1.msra.mxu0 0.0
    %5508 = vmatprep.subr.mxu0 0.0
    %5509 = vmatpush1.msra.mxu0 0.0
    %5510 = vmatprep.subr.mxu0 0.0
    %5511 = vmatpush1.msra.mxu0 0.0
    %5512 = vmatprep.subr.mxu0 0.0
    %5513 = vmatpush1.msra.mxu0 0.0
    %5514 = vmatprep.subr.mxu0 0.0
    %5515 = vmatpush1.msra.mxu0 0.0
    %5516 = vmatprep.subr.mxu0 0.0
    %5517 = vmatpush1.msra.mxu0 0.0
    %5518 = vmatprep.subr.mxu0 0.0
    %5519 = vmatpush1.msra.mxu0 0.0
    %5520 = vmatprep.subr.mxu0 0.0
    %5521 = vmatpush1.msra.mxu0 0.0
    %5522 = vmatprep.subr.mxu0 0.0
    %5523 = vmatpush1.msra.mxu0 0.0
    %5524 = vmatprep.subr.mxu0 0.0
    %5525 = vmatpush1.msra.mxu0 0.0
    %5526 = vmatprep.subr.mxu0 0.0
    %5527 = vmatpush1.msra.mxu0 0.0
    %5528 = vmatprep.subr.mxu0 0.0
    %5529 = vmatpush1.msra.mxu0 0.0
    %5530 = vmatprep.subr.mxu0 0.0
    %5531 = vmatpush1.msra.mxu0 0.0
    %5532 = vmatprep.subr.mxu0 0.0
    %5533 = vmatpush1.msra.mxu0 0.0
    %5534 = vmatprep.subr.mxu0 0.0
    %5535 = vmatpush1.msra.mxu0 0.0
    %5536 = vmatprep.subr.mxu0 0.0
    %5537 = vmatpush1.msra.mxu0 0.0
    %5538 = vmatprep.subr.mxu0 0.0
    %5539 = vmatpush1.msra.mxu0 0.0
    %5540 = vmatprep.subr.mxu0 0.0
    %5541 = vmatpush1.msra.mxu0 0.0
    %5542 = vmatprep.subr.mxu0 0.0
    %5543 = vmatpush1.msra.mxu0 0.0
    %5544 = vmatprep.subr.mxu0 0.0
    %5545 = vmatpush1.msra.mxu0 0.0
    %5546 = vmatprep.subr.mxu0 0.0
    %5547 = vmatpush1.msra.mxu0 0.0
    %5548 = vmatprep.subr.mxu0 0.0
    %5549 = vmatpush1.msra.mxu0 0.0
    %5550 = vmatprep.subr.mxu0 0.0
    %5551 = vmatpush1.msra.mxu0 0.0
    %5552 = vmatprep.subr.mxu0 0.0
    %5553 = vmatpush1.msra.mxu0 0.0
    %5554 = vmatprep.subr.mxu0 0.0
    %5555 = vmatpush1.msra.mxu0 0.0
    %5556 = vmatprep.mubr.f32.mxu0 0.0
    %5557 = vmatmul.mubr.f32.gmra.mrb[0].mxu0 %v5490
    %v5558 = vpop.f32.mrb[0].mxu0
    %v5559 = vadd.f32 0.0, %v5558
    %v5560 = vpop.f32.mrb[0].mxu0
    %5561 = vdwg.mxu0
    %v5562 = vadd.f32 %v5321, %v5559
    %5563 = vrot.lane.b32.xlu0 %v4840, 104
    %v5564 = vpop.permute.xlu0 %5563
    %5565 = vrot.lane.b32.xlu0 %v4845, 72
    %v5566 = vpop.permute.xlu0 %5565
    %v5567 = vsel %vm175, %v5564, 0
    %v5569 = vsel %vm175, %v5566, 0
    %5571 = vmatprep.subr.mxu0 0.0
    %5572 = vmatpush1.xpose.msra.mxu0 %v5569
    %5573 = vmatprep.subr.mxu0 0.0
    %5574 = vmatpush1.xpose.msra.mxu0 0.0
    %5575 = vmatprep.subr.mxu0 0.0
    %5576 = vmatpush1.xpose.msra.mxu0 0.0
    %5577 = vmatprep.subr.mxu0 0.0
    %5578 = vmatpush1.xpose.msra.mxu0 0.0
    %5579 = vmatprep.subr.mxu0 0.0
    %5580 = vmatpush1.xpose.msra.mxu0 0.0
    %5581 = vmatprep.subr.mxu0 0.0
    %5582 = vmatpush1.xpose.msra.mxu0 0.0
    %5583 = vmatprep.subr.mxu0 0.0
    %5584 = vmatpush1.xpose.msra.mxu0 0.0
    %5585 = vmatprep.subr.mxu0 0.0
    %5586 = vmatpush1.xpose.msra.mxu0 0.0
    %5587 = vmatprep.subr.mxu0 0.0
    %5588 = vmatpush1.xpose.msra.mxu0 0.0
    %5589 = vmatprep.subr.mxu0 0.0
    %5590 = vmatpush1.xpose.msra.mxu0 0.0
    %5591 = vmatprep.subr.mxu0 0.0
    %5592 = vmatpush1.xpose.msra.mxu0 0.0
    %5593 = vmatprep.subr.mxu0 0.0
    %5594 = vmatpush1.xpose.msra.mxu0 0.0
    %5595 = vmatprep.subr.mxu0 0.0
    %5596 = vmatpush1.xpose.msra.mxu0 0.0
    %5597 = vmatprep.subr.mxu0 0.0
    %5598 = vmatpush1.xpose.msra.mxu0 0.0
    %5599 = vmatprep.subr.mxu0 0.0
    %5600 = vmatpush1.xpose.msra.mxu0 0.0
    %5601 = vmatprep.subr.mxu0 0.0
    %5602 = vmatpush1.xpose.msra.mxu0 0.0
    %5603 = vmatprep.subr.mxu0 0.0
    %5604 = vmatpush1.xpose.msra.mxu0 0.0
    %5605 = vmatprep.subr.mxu0 0.0
    %5606 = vmatpush1.xpose.msra.mxu0 0.0
    %5607 = vmatprep.subr.mxu0 0.0
    %5608 = vmatpush1.xpose.msra.mxu0 0.0
    %5609 = vmatprep.subr.mxu0 0.0
    %5610 = vmatpush1.xpose.msra.mxu0 0.0
    %5611 = vmatprep.subr.mxu0 0.0
    %5612 = vmatpush1.xpose.msra.mxu0 0.0
    %5613 = vmatprep.subr.mxu0 0.0
    %5614 = vmatpush1.xpose.msra.mxu0 0.0
    %5615 = vmatprep.subr.mxu0 0.0
    %5616 = vmatpush1.xpose.msra.mxu0 0.0
    %5617 = vmatprep.subr.mxu0 0.0
    %5618 = vmatpush1.xpose.msra.mxu0 0.0
    %5619 = vmatprep.subr.mxu0 0.0
    %5620 = vmatpush1.xpose.msra.mxu0 0.0
    %5621 = vmatprep.subr.mxu0 0.0
    %5622 = vmatpush1.xpose.msra.mxu0 0.0
    %5623 = vmatprep.subr.mxu0 0.0
    %5624 = vmatpush1.xpose.msra.mxu0 0.0
    %5625 = vmatprep.subr.mxu0 0.0
    %5626 = vmatpush1.xpose.msra.mxu0 0.0
    %5627 = vmatprep.subr.mxu0 0.0
    %5628 = vmatpush1.xpose.msra.mxu0 0.0
    %5629 = vmatprep.subr.mxu0 0.0
    %5630 = vmatpush1.xpose.msra.mxu0 0.0
    %5631 = vmatprep.subr.mxu0 0.0
    %5632 = vmatpush1.xpose.msra.mxu0 0.0
    %5633 = vmatprep.subr.mxu0 0.0
    %5634 = vmatpush1.xpose.msra.mxu0 0.0
    %5635 = vmatprep.mubr.f32.mxu0 0.0
    %5636 = vmatmul.mubr.f32.gmra.mrb[0].mxu0 %v5567
    %v5637 = vpop.f32.mrb[0].mxu0
    %v5638 = vadd.f32 0.0, %v5637
    %v5639 = vpop.f32.mrb[0].mxu0
    %5640 = vdwg.mxu0
    %v5641 = vsel %vm175, %v5638, -inf
    %5642 = vmax.xlane.f32.xlu0 %v5641
    %v5643 = vpop.xlane.xlu0 %5642
    %v5644 = vsub.f32 %v5638, %v5643
    %v5645 = vmul.f32 %v5644, 1.442695
    %v5646 = vpow.pop %v5645
    %v5647 = vsel %vm175, %v5646, 0.0
    %5648 = vadd.xlane.f32.xlu0 %v5647
    %v5649 = vpop.xlane.xlu0 %5648
    %v5650 = vrcp.pop %v5649
    %v5651 = vmul.f32 %v5646, %v5650
    %5652 = vrot.lane.b32.xlu0 %v4845, 40
    %v5653 = vpop.permute.xlu0 %5652
    %v5656 = vsel %vm175, %v5651, 0
    %5658 = vmatprep.subr.mxu0 0.0
    %5659 = vmatpush1.msra.mxu0 %v5653
    %5660 = vmatprep.subr.mxu0 0.0
    %5661 = vmatpush1.msra.mxu0 0.0
    %5662 = vmatprep.subr.mxu0 0.0
    %5663 = vmatpush1.msra.mxu0 0.0
    %5664 = vmatprep.subr.mxu0 0.0
    %5665 = vmatpush1.msra.mxu0 0.0
    %5666 = vmatprep.subr.mxu0 0.0
    %5667 = vmatpush1.msra.mxu0 0.0
    %5668 = vmatprep.subr.mxu0 0.0
    %5669 = vmatpush1.msra.mxu0 0.0
    %5670 = vmatprep.subr.mxu0 0.0
    %5671 = vmatpush1.msra.mxu0 0.0
    %5672 = vmatprep.subr.mxu0 0.0
    %5673 = vmatpush1.msra.mxu0 0.0
    %5674 = vmatprep.subr.mxu0 0.0
    %5675 = vmatpush1.msra.mxu0 0.0
    %5676 = vmatprep.subr.mxu0 0.0
    %5677 = vmatpush1.msra.mxu0 0.0
    %5678 = vmatprep.subr.mxu0 0.0
    %5679 = vmatpush1.msra.mxu0 0.0
    %5680 = vmatprep.subr.mxu0 0.0
    %5681 = vmatpush1.msra.mxu0 0.0
    %5682 = vmatprep.subr.mxu0 0.0
    %5683 = vmatpush1.msra.mxu0 0.0
    %5684 = vmatprep.subr.mxu0 0.0
    %5685 = vmatpush1.msra.mxu0 0.0
    %5686 = vmatprep.subr.mxu0 0.0
    %5687 = vmatpush1.msra.mxu0 0.0
    %5688 = vmatprep.subr.mxu0 0.0
    %5689 = vmatpush1.msra.mxu0 0.0
    %5690 = vmatprep.subr.mxu0 0.0
    %5691 = vmatpush1.msra.mxu0 0.0
    %5692 = vmatprep.subr.mxu0 0.0
    %5693 = vmatpush1.msra.mxu0 0.0
    %5694 = vmatprep.subr.mxu0 0.0
    %5695 = vmatpush1.msra.mxu0 0.0
    %5696 = vmatprep.subr.mxu0 0.0
    %5697 = vmatpush1.msra.mxu0 0.0
    %5698 = vmatprep.subr.mxu0 0.0
    %5699 = vmatpush1.msra.mxu0 0.0
    %5700 = vmatprep.subr.mxu0 0.0
    %5701 = vmatpush1.msra.mxu0 0.0
    %5702 = vmatprep.subr.mxu0 0.0
    %5703 = vmatpush1.msra.mxu0 0.0
    %5704 = vmatprep.subr.mxu0 0.0
    %5705 = vmatpush1.msra.mxu0 0.0
    %5706 = vmatprep.subr.mxu0 0.0
    %5707 = vmatpush1.msra.mxu0 0.0
    %5708 = vmatprep.subr.mxu0 0.0
    %5709 = vmatpush1.msra.mxu0 0.0
    %5710 = vmatprep.subr.mxu0 0.0
    %5711 = vmatpush1.msra.mxu0 0.0
    %5712 = vmatprep.subr.mxu0 0.0
    %5713 = vmatpush1.msra.mxu0 0.0
    %5714 = vmatprep.subr.mxu0 0.0
    %5715 = vmatpush1.msra.mxu0 0.0
    %5716 = vmatprep.subr.mxu0 0.0
    %5717 = vmatpush1.msra.mxu0 0.0
    %5718 = vmatprep.subr.mxu0 0.0
    %5719 = vmatpush1.msra.mxu0 0.0
    %5720 = vmatprep.subr.mxu0 0.0
    %5721 = vmatpush1.msra.mxu0 0.0
    %5722 = vmatprep.mubr.f32.mxu0 0.0
    %5723 = vmatmul.mubr.f32.gmra.mrb[0].mxu0 %v5656
    %v5724 = vpop.f32.mrb[0].mxu0
    %v5725 = vadd.f32 0.0, %v5724
    %v5726 = vpop.f32.mrb[0].mxu0
    %5727 = vdwg.mxu0
    %v5729 = vsel %vm175, %v5725, 0
    %5731 = vmatprep.subr.mxu0 0.0
    %5732 = vmatpush1.msra.mxu0 %v4755
    %5733 = vmatprep.subr.mxu0 0.0
    %5734 = vmatpush1.msra.mxu0 0.0
    %5735 = vmatprep.subr.mxu0 0.0
    %5736 = vmatpush1.msra.mxu0 0.0
    %5737 = vmatprep.subr.mxu0 0.0
    %5738 = vmatpush1.msra.mxu0 0.0
    %5739 = vmatprep.subr.mxu0 0.0
    %5740 = vmatpush1.msra.mxu0 0.0
    %5741 = vmatprep.subr.mxu0 0.0
    %5742 = vmatpush1.msra.mxu0 0.0
    %5743 = vmatprep.subr.mxu0 0.0
    %5744 = vmatpush1.msra.mxu0 0.0
    %5745 = vmatprep.subr.mxu0 0.0
    %5746 = vmatpush1.msra.mxu0 0.0
    %5747 = vmatprep.subr.mxu0 0.0
    %5748 = vmatpush1.msra.mxu0 0.0
    %5749 = vmatprep.subr.mxu0 0.0
    %5750 = vmatpush1.msra.mxu0 0.0
    %5751 = vmatprep.subr.mxu0 0.0
    %5752 = vmatpush1.msra.mxu0 0.0
    %5753 = vmatprep.subr.mxu0 0.0
    %5754 = vmatpush1.msra.mxu0 0.0
    %5755 = vmatprep.subr.mxu0 0.0
    %5756 = vmatpush1.msra.mxu0 0.0
    %5757 = vmatprep.subr.mxu0 0.0
    %5758 = vmatpush1.msra.mxu0 0.0
    %5759 = vmatprep.subr.mxu0 0.0
    %5760 = vmatpush1.msra.mxu0 0.0
    %5761 = vmatprep.subr.mxu0 0.0
    %5762 = vmatpush1.msra.mxu0 0.0
    %5763 = vmatprep.subr.mxu0 0.0
    %5764 = vmatpush1.msra.mxu0 0.0
    %5765 = vmatprep.subr.mxu0 0.0
    %5766 = vmatpush1.msra.mxu0 0.0
    %5767 = vmatprep.subr.mxu0 0.0
    %5768 = vmatpush1.msra.mxu0 0.0
    %5769 = vmatprep.subr.mxu0 0.0
    %5770 = vmatpush1.msra.mxu0 0.0
    %5771 = vmatprep.subr.mxu0 0.0
    %5772 = vmatpush1.msra.mxu0 0.0
    %5773 = vmatprep.subr.mxu0 0.0
    %5774 = vmatpush1.msra.mxu0 0.0
    %5775 = vmatprep.subr.mxu0 0.0
    %5776 = vmatpush1.msra.mxu0 0.0
    %5777 = vmatprep.subr.mxu0 0.0
    %5778 = vmatpush1.msra.mxu0 0.0
    %5779 = vmatprep.subr.mxu0 0.0
    %5780 = vmatpush1.msra.mxu0 0.0
    %5781 = vmatprep.subr.mxu0 0.0
    %5782 = vmatpush1.msra.mxu0 0.0
    %5783 = vmatprep.subr.mxu0 0.0
    %5784 = vmatpush1.msra.mxu0 0.0
    %5785 = vmatprep.subr.mxu0 0.0
    %5786 = vmatpush1.msra.mxu0 0.0
    %5787 = vmatprep.subr.mxu0 0.0
    %5788 = vmatpush1.msra.mxu0 0.0
    %5789 = vmatprep.subr.mxu0 0.0
    %5790 = vmatpush1.msra.mxu0 0.0
    %5791 = vmatprep.subr.mxu0 0.0
    %5792 = vmatpush1.msra.mxu0 0.0
    %5793 = vmatprep.subr.mxu0 0.0
    %5794 = vmatpush1.msra.mxu0 0.0
    %5795 = vmatprep.mubr.f32.mxu0 0.0
    %5796 = vmatmul.mubr.f32.gmra.mrb[0].mxu0 %v5729
    %v5797 = vpop.f32.mrb[0].mxu0
    %v5798 = vadd.f32 0.0, %v5797
    %v5799 = vpop.f32.mrb[0].mxu0
    %5800 = vdwg.mxu0
    %v5801 = vadd.f32 %v5562, %v5798
    %v5802 = vlaneseq
    %v5803 = vshrl.u32 %v5802, 7
    %v5804 = vsub.s32 0, %v5803
    %v5805 = vrot.slane %v4756, %v5804
    %v5806 = vadd.f32 %v5801, %v5805
    %v5807 = vmax.f32 %v5806, 0.0
    %v5808 = vld [vmem:[#allocation7 + $0x498] sm:$0xff]
    %v5809 = vld [vmem:[#allocation7 + $0x4a0] sm:$0xff]
    %v5810 = vld [vmem:[#allocation7 + $0x4a8] sm:$0xff]
    %v5811 = vld [vmem:[#allocation7 + $0x4b0] sm:$0xff]
    %v5812 = vld [vmem:[#allocation7 + $0x4b8] sm:$0xff]
    %v5813 = vld [vmem:[#allocation7 + $0x4c0] sm:$0xff]
    %v5814 = vld [vmem:[#allocation7 + $0x4c8] sm:$0xff]
    %v5815 = vld [vmem:[#allocation7 + $0x4d0] sm:$0xff]
    %v5816 = vld [vmem:[#allocation7 + $0x4d8] sm:$0xff]
    %v5817 = vld [vmem:[#allocation7 + $0x4e0] sm:$0xff]
    %v5818 = vld [vmem:[#allocation7 + $0x4e8] sm:$0xff]
    %v5819 = vld [vmem:[#allocation7 + $0x4f0] sm:$0xff]
    %v5820 = vld [vmem:[#allocation7 + $0x4f8] sm:$0x1]
    %v5821 = vsel %vm60, %v5807, %v4731
    %v5823 = vsel %vm1150, %v5821, 0
    %5825 = vmatprep.subr.mxu0 0.0
    %5826 = vmatpush1.msra.mxu0 %v5808
    %5827 = vmatprep.subr.mxu0 0.0
    %5828 = vmatpush1.msra.mxu0 %v5809
    %5829 = vmatprep.subr.mxu0 0.0
    %5830 = vmatpush1.msra.mxu0 %v5810
    %5831 = vmatprep.subr.mxu0 0.0
    %5832 = vmatpush1.msra.mxu0 %v5811
    %5833 = vmatprep.subr.mxu0 0.0
    %5834 = vmatpush1.msra.mxu0 %v5812
    %5835 = vmatprep.subr.mxu0 0.0
    %5836 = vmatpush1.msra.mxu0 %v5813
    %5837 = vmatprep.subr.mxu0 0.0
    %5838 = vmatpush1.msra.mxu0 %v5814
    %5839 = vmatprep.subr.mxu0 0.0
    %5840 = vmatpush1.msra.mxu0 %v5815
    %5841 = vmatprep.subr.mxu0 0.0
    %5842 = vmatpush1.msra.mxu0 0.0
    %5843 = vmatprep.subr.mxu0 0.0
    %5844 = vmatpush1.msra.mxu0 0.0
    %5845 = vmatprep.subr.mxu0 0.0
    %5846 = vmatpush1.msra.mxu0 0.0
    %5847 = vmatprep.subr.mxu0 0.0
    %5848 = vmatpush1.msra.mxu0 0.0
    %5849 = vmatprep.subr.mxu0 0.0
    %5850 = vmatpush1.msra.mxu0 0.0
    %5851 = vmatprep.subr.mxu0 0.0
    %5852 = vmatpush1.msra.mxu0 0.0
    %5853 = vmatprep.subr.mxu0 0.0
    %5854 = vmatpush1.msra.mxu0 0.0
    %5855 = vmatprep.subr.mxu0 0.0
    %5856 = vmatpush1.msra.mxu0 0.0
    %5857 = vmatprep.subr.mxu0 0.0
    %5858 = vmatpush1.msra.mxu0 0.0
    %5859 = vmatprep.subr.mxu0 0.0
    %5860 = vmatpush1.msra.mxu0 0.0
    %5861 = vmatprep.subr.mxu0 0.0
    %5862 = vmatpush1.msra.mxu0 0.0
    %5863 = vmatprep.subr.mxu0 0.0
    %5864 = vmatpush1.msra.mxu0 0.0
    %5865 = vmatprep.subr.mxu0 0.0
    %5866 = vmatpush1.msra.mxu0 0.0
    %5867 = vmatprep.subr.mxu0 0.0
    %5868 = vmatpush1.msra.mxu0 0.0
    %5869 = vmatprep.subr.mxu0 0.0
    %5870 = vmatpush1.msra.mxu0 0.0
    %5871 = vmatprep.subr.mxu0 0.0
    %5872 = vmatpush1.msra.mxu0 0.0
    %5873 = vmatprep.subr.mxu0 0.0
    %5874 = vmatpush1.msra.mxu0 0.0
    %5875 = vmatprep.subr.mxu0 0.0
    %5876 = vmatpush1.msra.mxu0 0.0
    %5877 = vmatprep.subr.mxu0 0.0
    %5878 = vmatpush1.msra.mxu0 0.0
    %5879 = vmatprep.subr.mxu0 0.0
    %5880 = vmatpush1.msra.mxu0 0.0
    %5881 = vmatprep.subr.mxu0 0.0
    %5882 = vmatpush1.msra.mxu0 0.0
    %5883 = vmatprep.subr.mxu0 0.0
    %5884 = vmatpush1.msra.mxu0 0.0
    %5885 = vmatprep.subr.mxu0 0.0
    %5886 = vmatpush1.msra.mxu0 0.0
    %5887 = vmatprep.subr.mxu0 0.0
    %5888 = vmatpush1.msra.mxu0 0.0
    %5889 = vmatprep.mubr.f32.mxu0 0.0
    %5890 = vmatmul.mubr.f32.gmra.mrb[0].mxu0 %v5823
    %v5891 = vpop.f32.mrb[0].mxu0
    %v5892 = vadd.f32 0.0, %v5891
    %v5893 = vpop.f32.mrb[0].mxu0
    %5894 = vdwg.mxu0
    %v5895 = vxor.u32 %v5892, 2147483648
    %v5896 = vmul.f32 %v5895, 1.442695
    %v5897 = vpow.pop %v5896
    %v5898 = vadd.f32 %v5897, 1.0
    %v5899 = vrcp.pop %v5898
    %v5900 = vmul.f32 1.0, %v5899
    %v5901 = vlaneseq
    %v5902 = vshrl.u32 %v5901, 7
    %v5903 = vsub.s32 0, %v5902
    %v5904 = vrot.slane %v5820, %v5903
    %5906 = vrot.lane.b32.xlu0 %v5904, 32
    %v5907 = vpop.permute.xlu0 %5906
    %v5909 = vsub.f32 %v5892, %v5907
    %v5910 = vxor.u32 %v5909, 2147483648
    %v5911 = vmul.f32 %v5910, 1.442695
    %v5912 = vpow.pop %v5911
    %v5913 = vadd.f32 %v5912, 1.0
    %v5914 = vrcp.pop %v5913
    %v5915 = vmul.f32 1.0, %v5914
    %v5917 = vmul.f32 %v5900, %v4766
    %v5919 = vsel %vm60, %v5917, 0
    %5921 = vmatprep.subr.mxu0 0.0
    %5922 = vmatpush1.msra.mxu0 %v5816
    %5923 = vmatprep.subr.mxu0 0.0
    %5924 = vmatpush1.msra.mxu0 %v5817
    %5925 = vmatprep.subr.mxu0 0.0
    %5926 = vmatpush1.msra.mxu0 %v5818
    %5927 = vmatprep.subr.mxu0 0.0
    %5928 = vmatpush1.msra.mxu0 %v5819
    %5929 = vmatprep.subr.mxu0 0.0
    %5930 = vmatpush1.msra.mxu0 0.0
    %5931 = vmatprep.subr.mxu0 0.0
    %5932 = vmatpush1.msra.mxu0 0.0
    %5933 = vmatprep.subr.mxu0 0.0
    %5934 = vmatpush1.msra.mxu0 0.0
    %5935 = vmatprep.subr.mxu0 0.0
    %5936 = vmatpush1.msra.mxu0 0.0
    %5937 = vmatprep.subr.mxu0 0.0
    %5938 = vmatpush1.msra.mxu0 0.0
    %5939 = vmatprep.subr.mxu0 0.0
    %5940 = vmatpush1.msra.mxu0 0.0
    %5941 = vmatprep.subr.mxu0 0.0
    %5942 = vmatpush1.msra.mxu0 0.0
    %5943 = vmatprep.subr.mxu0 0.0
    %5944 = vmatpush1.msra.mxu0 0.0
    %5945 = vmatprep.subr.mxu0 0.0
    %5946 = vmatpush1.msra.mxu0 0.0
    %5947 = vmatprep.subr.mxu0 0.0
    %5948 = vmatpush1.msra.mxu0 0.0
    %5949 = vmatprep.subr.mxu0 0.0
    %5950 = vmatpush1.msra.mxu0 0.0
    %5951 = vmatprep.subr.mxu0 0.0
    %5952 = vmatpush1.msra.mxu0 0.0
    %5953 = vmatprep.subr.mxu0 0.0
    %5954 = vmatpush1.msra.mxu0 0.0
    %5955 = vmatprep.subr.mxu0 0.0
    %5956 = vmatpush1.msra.mxu0 0.0
    %5957 = vmatprep.subr.mxu0 0.0
    %5958 = vmatpush1.msra.mxu0 0.0
    %5959 = vmatprep.subr.mxu0 0.0
    %5960 = vmatpush1.msra.mxu0 0.0
    %5961 = vmatprep.subr.mxu0 0.0
    %5962 = vmatpush1.msra.mxu0 0.0
    %5963 = vmatprep.subr.mxu0 0.0
    %5964 = vmatpush1.msra.mxu0 0.0
    %5965 = vmatprep.subr.mxu0 0.0
    %5966 = vmatpush1.msra.mxu0 0.0
    %5967 = vmatprep.subr.mxu0 0.0
    %5968 = vmatpush1.msra.mxu0 0.0
    %5969 = vmatprep.subr.mxu0 0.0
    %5970 = vmatpush1.msra.mxu0 0.0
    %5971 = vmatprep.subr.mxu0 0.0
    %5972 = vmatpush1.msra.mxu0 0.0
    %5973 = vmatprep.subr.mxu0 0.0
    %5974 = vmatpush1.msra.mxu0 0.0
    %5975 = vmatprep.subr.mxu0 0.0
    %5976 = vmatpush1.msra.mxu0 0.0
    %5977 = vmatprep.subr.mxu0 0.0
    %5978 = vmatpush1.msra.mxu0 0.0
    %5979 = vmatprep.subr.mxu0 0.0
    %5980 = vmatpush1.msra.mxu0 0.0
    %5981 = vmatprep.subr.mxu0 0.0
    %5982 = vmatpush1.msra.mxu0 0.0
    %5983 = vmatprep.subr.mxu0 0.0
    %5984 = vmatpush1.msra.mxu0 0.0
    %5985 = vmatprep.mubr.f32.mxu0 0.0
    %5986 = vmatmul.mubr.f32.gmra.mrb[0].mxu0 %v5919
    %v5987 = vpop.f32.mrb[0].mxu0
    %v5988 = vadd.f32 0.0, %v5987
    %v5989 = vpop.f32.mrb[0].mxu0
    %5990 = vdwg.mxu0
    %5992 = vrot.lane.b32.xlu0 %v5988, 64
    %v5993 = vpop.permute.xlu0 %5992
    %v5995 = vadd.f32 %v5892, %v5993
    %v5996 = vtanh.pop %v5995
    %v5997 = vsub.f32 1.0, %v5915
    %v5998 = vmul.f32 %v5997, %v4731
    %6000 = vrot.lane.b32.xlu0 %v5996, 96
    %v6001 = vpop.permute.xlu0 %6000
    %v6003 = vmul.f32 %v5915, %v6001
    %v6004 = vadd.f32 %v5998, %v6003
    %6006 = vrot.lane.b32.xlu0 %v6004, 96
    %v6007 = vpop.permute.xlu0 %6006
    %v6009 = vsel %vm60, %v6007, 0.0
    %6010 = vadd.xlane.f32.xlu0 %v6009
    %v6011 = vpop.xlane.xlu0 %6010
    %v6012 = vmul.f32 %v6011, %v64
    %v6013 = vsub.f32 %v6004, %v6012
    %v6014 = vmul.f32 %v6013, %v6013
    %6016 = vrot.lane.b32.xlu0 %v6014, 96
    %v6017 = vpop.permute.xlu0 %6016
    %v6019 = vsel %vm60, %v6017, 0.0
    %6020 = vadd.xlane.f32.xlu0 %v6019
    %v6021 = vpop.xlane.xlu0 %6020
    %v6022 = vmul.f32 %v6021, %v64
    %v6023 = vadd.f32 %v6022, 1e-05
    %v6024 = vrsqrt.pop %v6023
    %v6025 = vmul.f32 %v6013, %v6024
    %v6026 = vmul.f32 %v6025, %v3476
    %v6027 = vadd.f32 %v6026, %v3485
    %v6028 = vld [vmem:[#allocation7 + $0x3c0] sm:$0xff]
    %v6029 = vld [vmem:[#allocation7 + $0x3c8] sm:$0xff]
    %v6030 = vld [vmem:[#allocation7 + $0x3d0] sm:$0xff]
    %v6031 = vld [vmem:[#allocation7 + $0x3d8] sm:$0xff]
    %v6032 = vld [vmem:[#allocation7 + $0x3e0] sm:$0x1]
    %v6033 = vld [vmem:[#allocation7 + $0x3e8] sm:$0xff]
    %v6034 = vld [vmem:[#allocation7 + $0x3f0] sm:$0xff]
    %v6035 = vld [vmem:[#allocation7 + $0x3f8] sm:$0xff]
    %v6036 = vld [vmem:[#allocation7 + $0x400] sm:$0xff]
    %v6037 = vld [vmem:[#allocation7 + $0x408] sm:$0xff]
    %v6038 = vld [vmem:[#allocation7 + $0x410] sm:$0xff]
    %v6039 = vld [vmem:[#allocation7 + $0x418] sm:$0xff]
    %v6040 = vld [vmem:[#allocation7 + $0x420] sm:$0xff]
    %v6041 = vld [vmem:[#allocation7 + $0x428] sm:$0x1]
    %v6042 = vlaneseq
    %v6043 = vshrl.u32 %v6042, 7
    %v6044 = vsub.s32 0, %v6043
    %v6045 = vrot.slane %v6032, %v6044
    %6047 = vrot.lane.b32.xlu0 %v6027, 96
    %v6048 = vpop.permute.xlu0 %6047
    %v6049 = vsel %vm60, %v6048, 0
    %6051 = vmatprep.subr.mxu0 0.0
    %6052 = vmatpush1.msra.mxu0 %v6028
    %6053 = vmatprep.subr.mxu0 0.0
    %6054 = vmatpush1.msra.mxu0 %v6029
    %6055 = vmatprep.subr.mxu0 0.0
    %6056 = vmatpush1.msra.mxu0 %v6030
    %6057 = vmatprep.subr.mxu0 0.0
    %6058 = vmatpush1.msra.mxu0 %v6031
    %6059 = vmatprep.subr.mxu0 0.0
    %6060 = vmatpush1.msra.mxu0 0.0
    %6061 = vmatprep.subr.mxu0 0.0
    %6062 = vmatpush1.msra.mxu0 0.0
    %6063 = vmatprep.subr.mxu0 0.0
    %6064 = vmatpush1.msra.mxu0 0.0
    %6065 = vmatprep.subr.mxu0 0.0
    %6066 = vmatpush1.msra.mxu0 0.0
    %6067 = vmatprep.subr.mxu0 0.0
    %6068 = vmatpush1.msra.mxu0 0.0
    %6069 = vmatprep.subr.mxu0 0.0
    %6070 = vmatpush1.msra.mxu0 0.0
    %6071 = vmatprep.subr.mxu0 0.0
    %6072 = vmatpush1.msra.mxu0 0.0
    %6073 = vmatprep.subr.mxu0 0.0
    %6074 = vmatpush1.msra.mxu0 0.0
    %6075 = vmatprep.subr.mxu0 0.0
    %6076 = vmatpush1.msra.mxu0 0.0
    %6077 = vmatprep.subr.mxu0 0.0
    %6078 = vmatpush1.msra.mxu0 0.0
    %6079 = vmatprep.subr.mxu0 0.0
    %6080 = vmatpush1.msra.mxu0 0.0
    %6081 = vmatprep.subr.mxu0 0.0
    %6082 = vmatpush1.msra.mxu0 0.0
    %6083 = vmatprep.subr.mxu0 0.0
    %6084 = vmatpush1.msra.mxu0 0.0
    %6085 = vmatprep.subr.mxu0 0.0
    %6086 = vmatpush1.msra.mxu0 0.0
    %6087 = vmatprep.subr.mxu0 0.0
    %6088 = vmatpush1.msra.mxu0 0.0
    %6089 = vmatprep.subr.mxu0 0.0
    %6090 = vmatpush1.msra.mxu0 0.0
    %6091 = vmatprep.subr.mxu0 0.0
    %6092 = vmatpush1.msra.mxu0 0.0
    %6093 = vmatprep.subr.mxu0 0.0
    %6094 = vmatpush1.msra.mxu0 0.0
    %6095 = vmatprep.subr.mxu0 0.0
    %6096 = vmatpush1.msra.mxu0 0.0
    %6097 = vmatprep.subr.mxu0 0.0
    %6098 = vmatpush1.msra.mxu0 0.0
    %6099 = vmatprep.subr.mxu0 0.0
    %6100 = vmatpush1.msra.mxu0 0.0
    %6101 = vmatprep.subr.mxu0 0.0
    %6102 = vmatpush1.msra.mxu0 0.0
    %6103 = vmatprep.subr.mxu0 0.0
    %6104 = vmatpush1.msra.mxu0 0.0
    %6105 = vmatprep.subr.mxu0 0.0
    %6106 = vmatpush1.msra.mxu0 0.0
    %6107 = vmatprep.subr.mxu0 0.0
    %6108 = vmatpush1.msra.mxu0 0.0
    %6109 = vmatprep.subr.mxu0 0.0
    %6110 = vmatpush1.msra.mxu0 0.0
    %6111 = vmatprep.subr.mxu0 0.0
    %6112 = vmatpush1.msra.mxu0 0.0
    %6113 = vmatprep.subr.mxu0 0.0
    %6114 = vmatpush1.msra.mxu0 0.0
    %6115 = vmatprep.mubr.f32.mxu0 0.0
    %6116 = vmatmul.mubr.f32.gmra.mrb[0].mxu0 %v6049
    %v6117 = vpop.f32.mrb[0].mxu0
    %v6118 = vadd.f32 %v6045, %v6117
    %v6119 = vpop.f32.mrb[0].mxu0
    %6120 = vdwg.mxu0
    %v6121 = vmax.f32 %v6118, 0.0
    %v6122 = vlaneseq
    %v6123 = vshrl.u32 %v6122, 7
    %v6124 = vsub.s32 0, %v6123
    %v6125 = vrot.slane %v6041, %v6124
    %v6127 = vsel %vm1150, %v6121, 0
    %6129 = vmatprep.subr.mxu0 0.0
    %6130 = vmatpush1.msra.mxu0 %v6033
    %6131 = vmatprep.subr.mxu0 0.0
    %6132 = vmatpush1.msra.mxu0 %v6034
    %6133 = vmatprep.subr.mxu0 0.0
    %6134 = vmatpush1.msra.mxu0 %v6035
    %6135 = vmatprep.subr.mxu0 0.0
    %6136 = vmatpush1.msra.mxu0 %v6036
    %6137 = vmatprep.subr.mxu0 0.0
    %6138 = vmatpush1.msra.mxu0 %v6037
    %6139 = vmatprep.subr.mxu0 0.0
    %6140 = vmatpush1.msra.mxu0 %v6038
    %6141 = vmatprep.subr.mxu0 0.0
    %6142 = vmatpush1.msra.mxu0 %v6039
    %6143 = vmatprep.subr.mxu0 0.0
    %6144 = vmatpush1.msra.mxu0 %v6040
    %6145 = vmatprep.subr.mxu0 0.0
    %6146 = vmatpush1.msra.mxu0 0.0
    %6147 = vmatprep.subr.mxu0 0.0
    %6148 = vmatpush1.msra.mxu0 0.0
    %6149 = vmatprep.subr.mxu0 0.0
    %6150 = vmatpush1.msra.mxu0 0.0
    %6151 = vmatprep.subr.mxu0 0.0
    %6152 = vmatpush1.msra.mxu0 0.0
    %6153 = vmatprep.subr.mxu0 0.0
    %6154 = vmatpush1.msra.mxu0 0.0
    %6155 = vmatprep.subr.mxu0 0.0
    %6156 = vmatpush1.msra.mxu0 0.0
    %6157 = vmatprep.subr.mxu0 0.0
    %6158 = vmatpush1.msra.mxu0 0.0
    %6159 = vmatprep.subr.mxu0 0.0
    %6160 = vmatpush1.msra.mxu0 0.0
    %6161 = vmatprep.subr.mxu0 0.0
    %6162 = vmatpush1.msra.mxu0 0.0
    %6163 = vmatprep.subr.mxu0 0.0
    %6164 = vmatpush1.msra.mxu0 0.0
    %6165 = vmatprep.subr.mxu0 0.0
    %6166 = vmatpush1.msra.mxu0 0.0
    %6167 = vmatprep.subr.mxu0 0.0
    %6168 = vmatpush1.msra.mxu0 0.0
    %6169 = vmatprep.subr.mxu0 0.0
    %6170 = vmatpush1.msra.mxu0 0.0
    %6171 = vmatprep.subr.mxu0 0.0
    %6172 = vmatpush1.msra.mxu0 0.0
    %6173 = vmatprep.subr.mxu0 0.0
    %6174 = vmatpush1.msra.mxu0 0.0
    %6175 = vmatprep.subr.mxu0 0.0
    %6176 = vmatpush1.msra.mxu0 0.0
    %6177 = vmatprep.subr.mxu0 0.0
    %6178 = vmatpush1.msra.mxu0 0.0
    %6179 = vmatprep.subr.mxu0 0.0
    %6180 = vmatpush1.msra.mxu0 0.0
    %6181 = vmatprep.subr.mxu0 0.0
    %6182 = vmatpush1.msra.mxu0 0.0
    %6183 = vmatprep.subr.mxu0 0.0
    %6184 = vmatpush1.msra.mxu0 0.0
    %6185 = vmatprep.subr.mxu0 0.0
    %6186 = vmatpush1.msra.mxu0 0.0
    %6187 = vmatprep.subr.mxu0 0.0
    %6188 = vmatpush1.msra.mxu0 0.0
    %6189 = vmatprep.subr.mxu0 0.0
    %6190 = vmatpush1.msra.mxu0 0.0
    %6191 = vmatprep.subr.mxu0 0.0
    %6192 = vmatpush1.msra.mxu0 0.0
    %6193 = vmatprep.mubr.f32.mxu0 0.0
    %6194 = vmatmul.mubr.f32.gmra.mrb[0].mxu0 %v6127
    %v6195 = vpop.f32.mrb[0].mxu0
    %v6196 = vadd.f32 %v6125, %v6195
    %v6197 = vpop.f32.mrb[0].mxu0
    %6198 = vdwg.mxu0
    %v6199 = vmax.f32 %v6196, 0.0
    %v6200 = vsel %vm60, %v6199, %v6004
    %v6202 = vsel %vm1150, %v6200, 0
    %6204 = vmatprep.subr.mxu0 0.0
    %6205 = vmatpush1.msra.mxu0 %v5808
    %6206 = vmatprep.subr.mxu0 0.0
    %6207 = vmatpush1.msra.mxu0 %v5809
    %6208 = vmatprep.subr.mxu0 0.0
    %6209 = vmatpush1.msra.mxu0 %v5810
    %6210 = vmatprep.subr.mxu0 0.0
    %6211 = vmatpush1.msra.mxu0 %v5811
    %6212 = vmatprep.subr.mxu0 0.0
    %6213 = vmatpush1.msra.mxu0 %v5812
    %6214 = vmatprep.subr.mxu0 0.0
    %6215 = vmatpush1.msra.mxu0 %v5813
    %6216 = vmatprep.subr.mxu0 0.0
    %6217 = vmatpush1.msra.mxu0 %v5814
    %6218 = vmatprep.subr.mxu0 0.0
    %6219 = vmatpush1.msra.mxu0 %v5815
    %6220 = vmatprep.subr.mxu0 0.0
    %6221 = vmatpush1.msra.mxu0 0.0
    %6222 = vmatprep.subr.mxu0 0.0
    %6223 = vmatpush1.msra.mxu0 0.0
    %6224 = vmatprep.subr.mxu0 0.0
    %6225 = vmatpush1.msra.mxu0 0.0
    %6226 = vmatprep.subr.mxu0 0.0
    %6227 = vmatpush1.msra.mxu0 0.0
    %6228 = vmatprep.subr.mxu0 0.0
    %6229 = vmatpush1.msra.mxu0 0.0
    %6230 = vmatprep.subr.mxu0 0.0
    %6231 = vmatpush1.msra.mxu0 0.0
    %6232 = vmatprep.subr.mxu0 0.0
    %6233 = vmatpush1.msra.mxu0 0.0
    %6234 = vmatprep.subr.mxu0 0.0
    %6235 = vmatpush1.msra.mxu0 0.0
    %6236 = vmatprep.subr.mxu0 0.0
    %6237 = vmatpush1.msra.mxu0 0.0
    %6238 = vmatprep.subr.mxu0 0.0
    %6239 = vmatpush1.msra.mxu0 0.0
    %6240 = vmatprep.subr.mxu0 0.0
    %6241 = vmatpush1.msra.mxu0 0.0
    %6242 = vmatprep.subr.mxu0 0.0
    %6243 = vmatpush1.msra.mxu0 0.0
    %6244 = vmatprep.subr.mxu0 0.0
    %6245 = vmatpush1.msra.mxu0 0.0
    %6246 = vmatprep.subr.mxu0 0.0
    %6247 = vmatpush1.msra.mxu0 0.0
    %6248 = vmatprep.subr.mxu0 0.0
    %6249 = vmatpush1.msra.mxu0 0.0
    %6250 = vmatprep.subr.mxu0 0.0
    %6251 = vmatpush1.msra.mxu0 0.0
    %6252 = vmatprep.subr.mxu0 0.0
    %6253 = vmatpush1.msra.mxu0 0.0
    %6254 = vmatprep.subr.mxu0 0.0
    %6255 = vmatpush1.msra.mxu0 0.0
    %6256 = vmatprep.subr.mxu0 0.0
    %6257 = vmatpush1.msra.mxu0 0.0
    %6258 = vmatprep.subr.mxu0 0.0
    %6259 = vmatpush1.msra.mxu0 0.0
    %6260 = vmatprep.subr.mxu0 0.0
    %6261 = vmatpush1.msra.mxu0 0.0
    %6262 = vmatprep.subr.mxu0 0.0
    %6263 = vmatpush1.msra.mxu0 0.0
    %6264 = vmatprep.subr.mxu0 0.0
    %6265 = vmatpush1.msra.mxu0 0.0
    %6266 = vmatprep.subr.mxu0 0.0
    %6267 = vmatpush1.msra.mxu0 0.0
    %6268 = vmatprep.mubr.f32.mxu0 0.0
    %6269 = vmatmul.mubr.f32.gmra.mrb[0].mxu0 %v6202
    %v6270 = vpop.f32.mrb[0].mxu0
    %v6271 = vadd.f32 0.0, %v6270
    %v6272 = vpop.f32.mrb[0].mxu0
    %6273 = vdwg.mxu0
    %v6274 = vxor.u32 %v6271, 2147483648
    %v6275 = vmul.f32 %v6274, 1.442695
    %v6276 = vpow.pop %v6275
    %v6277 = vadd.f32 %v6276, 1.0
    %v6278 = vrcp.pop %v6277
    %v6279 = vmul.f32 1.0, %v6278
    %v6280 = vsub.f32 %v6271, %v5907
    %v6281 = vxor.u32 %v6280, 2147483648
    %v6282 = vmul.f32 %v6281, 1.442695
    %v6283 = vpow.pop %v6282
    %v6284 = vadd.f32 %v6283, 1.0
    %v6285 = vrcp.pop %v6284
    %v6286 = vmul.f32 1.0, %v6285
    %v6287 = vmul.f32 %v6279, %v6007
    %v6289 = vsel %vm60, %v6287, 0
    %6291 = vmatprep.subr.mxu0 0.0
    %6292 = vmatpush1.msra.mxu0 %v5816
    %6293 = vmatprep.subr.mxu0 0.0
    %6294 = vmatpush1.msra.mxu0 %v5817
    %6295 = vmatprep.subr.mxu0 0.0
    %6296 = vmatpush1.msra.mxu0 %v5818
    %6297 = vmatprep.subr.mxu0 0.0
    %6298 = vmatpush1.msra.mxu0 %v5819
    %6299 = vmatprep.subr.mxu0 0.0
    %6300 = vmatpush1.msra.mxu0 0.0
    %6301 = vmatprep.subr.mxu0 0.0
    %6302 = vmatpush1.msra.mxu0 0.0
    %6303 = vmatprep.subr.mxu0 0.0
    %6304 = vmatpush1.msra.mxu0 0.0
    %6305 = vmatprep.subr.mxu0 0.0
    %6306 = vmatpush1.msra.mxu0 0.0
    %6307 = vmatprep.subr.mxu0 0.0
    %6308 = vmatpush1.msra.mxu0 0.0
    %6309 = vmatprep.subr.mxu0 0.0
    %6310 = vmatpush1.msra.mxu0 0.0
    %6311 = vmatprep.subr.mxu0 0.0
    %6312 = vmatpush1.msra.mxu0 0.0
    %6313 = vmatprep.subr.mxu0 0.0
    %6314 = vmatpush1.msra.mxu0 0.0
    %6315 = vmatprep.subr.mxu0 0.0
    %6316 = vmatpush1.msra.mxu0 0.0
    %6317 = vmatprep.subr.mxu0 0.0
    %6318 = vmatpush1.msra.mxu0 0.0
    %6319 = vmatprep.subr.mxu0 0.0
    %6320 = vmatpush1.msra.mxu0 0.0
    %6321 = vmatprep.subr.mxu0 0.0
    %6322 = vmatpush1.msra.mxu0 0.0
    %6323 = vmatprep.subr.mxu0 0.0
    %6324 = vmatpush1.msra.mxu0 0.0
    %6325 = vmatprep.subr.mxu0 0.0
    %6326 = vmatpush1.msra.mxu0 0.0
    %6327 = vmatprep.subr.mxu0 0.0
    %6328 = vmatpush1.msra.mxu0 0.0
    %6329 = vmatprep.subr.mxu0 0.0
    %6330 = vmatpush1.msra.mxu0 0.0
    %6331 = vmatprep.subr.mxu0 0.0
    %6332 = vmatpush1.msra.mxu0 0.0
    %6333 = vmatprep.subr.mxu0 0.0
    %6334 = vmatpush1.msra.mxu0 0.0
    %6335 = vmatprep.subr.mxu0 0.0
    %6336 = vmatpush1.msra.mxu0 0.0
    %6337 = vmatprep.subr.mxu0 0.0
    %6338 = vmatpush1.msra.mxu0 0.0
    %6339 = vmatprep.subr.mxu0 0.0
    %6340 = vmatpush1.msra.mxu0 0.0
    %6341 = vmatprep.subr.mxu0 0.0
    %6342 = vmatpush1.msra.mxu0 0.0
    %6343 = vmatprep.subr.mxu0 0.0
    %6344 = vmatpush1.msra.mxu0 0.0
    %6345 = vmatprep.subr.mxu0 0.0
    %6346 = vmatpush1.msra.mxu0 0.0
    %6347 = vmatprep.subr.mxu0 0.0
    %6348 = vmatpush1.msra.mxu0 0.0
    %6349 = vmatprep.subr.mxu0 0.0
    %6350 = vmatpush1.msra.mxu0 0.0
    %6351 = vmatprep.subr.mxu0 0.0
    %6352 = vmatpush1.msra.mxu0 0.0
    %6353 = vmatprep.subr.mxu0 0.0
    %6354 = vmatpush1.msra.mxu0 0.0
    %6355 = vmatprep.mubr.f32.mxu0 0.0
    %6356 = vmatmul.mubr.f32.gmra.mrb[0].mxu0 %v6289
    %v6357 = vpop.f32.mrb[0].mxu0
    %v6358 = vadd.f32 0.0, %v6357
    %v6359 = vpop.f32.mrb[0].mxu0
    %6360 = vdwg.mxu0
    %6362 = vrot.lane.b32.xlu0 %v6358, 64
    %v6363 = vpop.permute.xlu0 %6362
    %v6365 = vadd.f32 %v6271, %v6363
    %v6366 = vtanh.pop %v6365
    %v6367 = vsub.f32 1.0, %v6286
    %v6368 = vmul.f32 %v6367, %v6004
    %6370 = vrot.lane.b32.xlu0 %v6366, 96
    %v6371 = vpop.permute.xlu0 %6370
    %v6373 = vmul.f32 %v6286, %v6371
    %v6374 = vadd.f32 %v6368, %v6373
    %6376 = vrot.lane.b32.xlu0 %v6374, 96
    %v6377 = vpop.permute.xlu0 %6376
    %6379 = vst.msk [vmem:[#allocation8] sm:$0xff] %vm60, %v6377
    // Predicated region
    $region26: #{_decoder_forward.1} parent=1 // pred_check
      _
    $region27: #{_decoder_forward.1} parent=1 // pred_check_branch
      %6381 = sbr.rel (0) target = $region29
    $region28: #{_decoder_forward.1} parent=1 // pred_region
      %s6383 = ssub.s32 128, 128
      %6384 = vsyncadd [#allocation4], %s6383
      %s6386 = sshll.u32 [#allocation8], 4
      %s6387 = int_to_ptr.vmem [resolvable:$true] %s6386
      %6389 = dma.vmem_to_hbm [thread:$0]  %s6387, 128, %s3, [#allocation4]
    $region29: #{_decoder_forward.1} parent=1 // pred_fallthru
      _
    // Predicated region
    $region30: #{_decoder_forward.1} parent=1 // pred_check
      _
    $region31: #{_decoder_forward.1} parent=1 // pred_check_branch
      %6391 = sbr.rel (0) target = $region33
    $region32: #{_decoder_forward.1} parent=1 // pred_region
      %6392 = dma.done [#allocation4], 128
    $region33: #{_decoder_forward.1} parent=1 // pred_fallthru
      _
    %6393 = vsyncpa [#allocation3], 1
    %6394 = vsyncpa [#allocation6], 1
    %6395 = vsyncpa [#allocation4], 1

</llo_original>
